<compile_context>
chip_gen: v6e
topology: v6e:2x2x1
jax: 0.10.0
libtpu: 0.0.40
codegen_flags: <defaults>
</compile_context>

<pallas_src>
import functools

import jax
import jax.numpy as jnp
from jax.experimental import pallas as pl
from jax.experimental.pallas import tpu as pltpu

LEAKY_SLOPE = 0.2
BN_EPS = 1e-5
# [output parity][window offset dy] -> ConvTranspose2d kernel tap index (K=4, s=2, p=1)
_KY_TAB = ((3, 1), (2, 0))


# ---------------------------------------------------------------------------
# Small helpers
# ---------------------------------------------------------------------------
@functools.lru_cache(maxsize=None)
def _vmem_limit_bytes():
    try:
        info = pltpu.get_tpu_info()
        cap = int(getattr(info, "vmem_capacity_bytes", 128 * 1024 * 1024))
        return int(min(cap // 2, 64 * 1024 * 1024))
    except Exception:
        return 32 * 1024 * 1024


def _compiler_params(semantics):
    return pltpu.CompilerParams(
        dimension_semantics=semantics,
        vmem_limit_bytes=_vmem_limit_bytes(),
    )


def _pad128(c):
    return max(128, ((c + 127) // 128) * 128)


def _row_tile(n, kc):
    """Row (H*W) tile: full if small, else a multiple-of-16 divisor; tighter cap for
    wide contractions so double-buffered blocks stay well inside v7x's 64 MiB VMEM."""
    cap = 256 if kc >= 1024 else 512
    if n <= cap:
        return n
    for t in range(cap, 15, -16):
        if n % t == 0:
            return t
    return n


# ---------------------------------------------------------------------------
# Kernels
# ---------------------------------------------------------------------------
def _fc_leaky_kernel(x_ref, w_ref, b_ref, o_ref):
    y = jnp.dot(x_ref[...], w_ref[...], preferred_element_type=jnp.float32) + b_ref[...]
    o_ref[...] = jnp.maximum(y, LEAKY_SLOPE * y)


def fc_leaky(x, w, b2d):
    B, K = x.shape
    N = w.shape[1]
    return pl.pallas_call(
        _fc_leaky_kernel,
        out_shape=jax.ShapeDtypeStruct((B, N), jnp.float32),
        grid=(1,),
        in_specs=[
            pl.BlockSpec((B, K), lambda j: (0, 0)),
            pl.BlockSpec((K, N), lambda j: (0, 0)),
            pl.BlockSpec((1, N), lambda j: (0, 0)),
        ],
        out_specs=pl.BlockSpec((B, N), lambda j: (0, 0)),
        compiler_params=_compiler_params(("arbitrary",)),
    )(x, w, b2d)


def _make_subpixel_conv_kernel(n_par):
    """Per-parity 2-D bf16 matmul (taps packed along contraction) + f32 bias, plus
    per-tile sum / sum-of-squares partials for BatchNorm batch statistics."""

    def kernel(slab_ref, w_ref, b_ref, y_ref, sum_ref, sq_ref):
        bias = b_ref[...]                       # (1, cout) f32, hoisted out of the loop
        s = jnp.zeros_like(bias)
        ss = jnp.zeros_like(bias)
        for p in range(n_par):
            y = jnp.dot(slab_ref[0, p], w_ref[p],
                        preferred_element_type=jnp.float32) + bias
            y_ref[0, p] = y
            s = s + jnp.sum(y, axis=0, keepdims=True)
            ss = ss + jnp.sum(y * y, axis=0, keepdims=True)
        sum_ref[0, 0] = s
        sq_ref[0, 0] = ss

    return kernel


def subpixel_conv_stats(slab, w_par, b2d):
    B, n_par, HW, kc = slab.shape
    cout = w_par.shape[-1]
    t_hw = _row_tile(HW, kc)
    n_t = HW // t_hw
    return pl.pallas_call(
        _make_subpixel_conv_kernel(n_par),
        out_shape=(
            jax.ShapeDtypeStruct((B, n_par, HW, cout), jnp.float32),
            jax.ShapeDtypeStruct((B, n_t, 1, cout), jnp.float32),
            jax.ShapeDtypeStruct((B, n_t, 1, cout), jnp.float32),
        ),
        grid=(B, n_t),
        in_specs=[
            pl.BlockSpec((1, n_par, t_hw, kc), lambda b, t: (b, 0, t, 0)),
            pl.BlockSpec((n_par, kc, cout), lambda b, t: (0, 0, 0)),
            pl.BlockSpec((1, cout), lambda b, t: (0, 0)),
        ],
        out_specs=(
            pl.BlockSpec((1, n_par, t_hw, cout), lambda b, t: (b, 0, t, 0)),
            pl.BlockSpec((1, 1, 1, cout), lambda b, t: (b, t, 0, 0)),
            pl.BlockSpec((1, 1, 1, cout), lambda b, t: (b, t, 0, 0)),
        ),
        compiler_params=_compiler_params(("parallel", "parallel")),
    )(slab, w_par, b2d)


def _affine_lrelu_kernel(y_ref, scale_ref, shift_ref, o_ref):
    sc = scale_ref[...]
    sh = shift_ref[...]
    for p in range(y_ref.shape[1]):
        z = y_ref[0, p] * sc + sh
        o_ref[0, p] = jnp.maximum(z, LEAKY_SLOPE * z).astype(o_ref.dtype)


def affine_lrelu(y, scale2d, shift2d):
    B, n_par, HW, c = y.shape
    t_hw = _row_tile(HW, c)
    return pl.pallas_call(
        _affine_lrelu_kernel,
        out_shape=jax.ShapeDtypeStruct(y.shape, jnp.bfloat16),
        grid=(B, HW // t_hw),
        in_specs=[
            pl.BlockSpec((1, n_par, t_hw, c), lambda b, t: (b, 0, t, 0)),
            pl.BlockSpec((1, c), lambda b, t: (0, 0)),
            pl.BlockSpec((1, c), lambda b, t: (0, 0)),
        ],
        out_specs=pl.BlockSpec((1, n_par, t_hw, c), lambda b, t: (b, 0, t, 0)),
        compiler_params=_compiler_params(("parallel", "parallel")),
    )(y, scale2d, shift2d)


def _conv3x3_tanh_kernel(slab_ref, w_ref, b_ref, o_ref):
    y = jnp.dot(slab_ref[0], w_ref[...], preferred_element_type=jnp.float32) + b_ref[...]
    o_ref[0] = jnp.tanh(y)


def conv3x3_tanh(slab, w_mat, b2d):
    B, HW, kc = slab.shape
    cout = w_mat.shape[-1]          # lane-dense (padded to a multiple of 128)
    t_hw = _row_tile(HW, kc)
    return pl.pallas_call(
        _conv3x3_tanh_kernel,
        out_shape=jax.ShapeDtypeStruct((B, HW, cout), jnp.float32),
        grid=(B, HW // t_hw),
        in_specs=[
            pl.BlockSpec((1, t_hw, kc), lambda b, t: (b, t, 0)),
            pl.BlockSpec((kc, cout), lambda b, t: (0, 0)),
            pl.BlockSpec((1, cout), lambda b, t: (0, 0)),
        ],
        out_specs=pl.BlockSpec((1, t_hw, cout), lambda b, t: (b, t, 0)),
        compiler_params=_compiler_params(("parallel", "parallel")),
    )(slab, w_mat, b2d)


# ---------------------------------------------------------------------------
# XLA glue: layout prep (im2col, parity interleave)
# TODO(synk): embedding gather + im2col / pad / interleave layout prep stay in XLA;
#             matmuls, bias, BatchNorm stats/normalization and activations are Pallas.
# ---------------------------------------------------------------------------
def _subpixel_im2col(x_nhwc):
    """(B, H, W, Cin) -> (B, 4, H*W, 4*Cin); parity p = ry*2+rx, taps row-major."""
    B, H, W, C = x_nhwc.shape
    xp = jnp.pad(x_nhwc, ((0, 0), (1, 1), (1, 1), (0, 0)))
    planes = []
    for ry in range(2):
        for rx in range(2):
            taps = [xp[:, ry + dy:ry + dy + H, rx + dx:rx + dx + W, :]
                    for dy in range(2) for dx in range(2)]
            planes.append(jnp.concatenate(taps, axis=-1).reshape(B, H * W, 4 * C))
    return jnp.stack(planes, axis=1)


def _im2col_3x3(x_nhwc):
    """(B, H, W, Cin) -> (B, H*W, 9*Cin), 'same' padding, taps row-major."""
    B, H, W, C = x_nhwc.shape
    xp = jnp.pad(x_nhwc, ((0, 0), (1, 1), (1, 1), (0, 0)))
    taps = [xp[:, dy:dy + H, dx:dx + W, :] for dy in range(3) for dx in range(3)]
    return jnp.concatenate(taps, axis=-1).reshape(B, H * W, 9 * C)


def _interleave_parities(y, H, W):
    """(B, 4, H*W, C) parity-major -> (B, 2H, 2W, C)."""
    B, _, _, C = y.shape
    y = y.reshape(B, 2, 2, H, W, C)
    y = jnp.transpose(y, (0, 3, 1, 4, 2, 5))
    return y.reshape(B, 2 * H, 2 * W, C)


# ---------------------------------------------------------------------------
# Config (static, Python-only) and parameters (arrays-only pytree)
# ---------------------------------------------------------------------------
def compute_base_size(img_size):
    temp = img_size
    while temp % 2 == 0:
        temp //= 2
    if temp == 1:
        return 4
    return temp if temp > 4 else temp * 2


def make_config(latent_dim, img_channels, img_size, num_classes):
    base = compute_base_size(img_size)
    layers = []
    in_ch, out_ch, s = 256, 128, base
    while s < img_size:
        layers.append(dict(cin=in_ch, cout=out_ch, stride=2, bn=True))
        in_ch, out_ch, s = out_ch, out_ch // 2, s * 2
    layers.append(dict(cin=in_ch, cout=img_channels, stride=1, bn=False))
    return dict(latent_dim=latent_dim, img_channels=img_channels, img_size=img_size,
                num_classes=num_classes, base=base, layers=tuple(layers))


def build_params(key, cfg):
    """Deterministic params in PyTorch layout (Embedding / Linear / ConvTranspose2d)."""
    keys = iter(jax.random.split(key, 4 + 2 * len(cfg["layers"])))

    def nrm(shape, scale=0.05):
        return scale * jax.random.normal(next(keys), shape, dtype=jnp.float32)

    base = cfg["base"]
    params = {
        "embed": nrm((cfg["num_classes"], cfg["latent_dim"])),
        "fc_w": nrm((2 * cfg["latent_dim"], 256 * base * base)),
        "fc_b": nrm((256 * base * base,)),
        "layers": [],
    }
    for lc in cfg["layers"]:
        k = 4 if lc["stride"] == 2 else 3
        layer = {"w": nrm((lc["cin"], lc["cout"], k, k)), "b": nrm((lc["cout"],))}
        if lc["bn"]:
            layer["gamma"] = jnp.ones((lc["cout"],), jnp.float32)
            layer["beta"] = jnp.zeros((lc["cout"],), jnp.float32)
        params["layers"].append(layer)
    return params


def _subpixel_weight_mats(w_t, cin_pad, cout_pad):
    """(Cin, Cout, 4, 4) ConvTranspose2d weight -> bf16 (4, 4*cin_pad, cout_pad): one
    matrix per output parity, 2x2 sub-kernel packed along the contraction dim, rows
    zero-padded for carried (zero) input channels, columns zero-padded lane-dense."""
    cin, cout = w_t.shape[0], w_t.shape[1]
    mats = []
    for ry in range(2):
        for rx in range(2):
            taps = [jnp.pad(w_t[:, :, _KY_TAB[ry][dy], _KY_TAB[rx][dx]],
                            ((0, cin_pad - cin), (0, cout_pad - cout)))
                    for dy in range(2) for dx in range(2)]
            mats.append(jnp.concatenate(taps, axis=0))
    return jnp.stack(mats, axis=0).astype(jnp.bfloat16)


def _conv3x3_weight_mat(w_t, cin_pad, cout_pad):
    """(Cin, Cout, 3, 3) ConvTranspose2d(3,1,1) -> bf16 (9*cin_pad, cout_pad) flipped
    direct-conv matrix, zero rows for carried input channels, lane-dense columns."""
    cin, cout = w_t.shape[0], w_t.shape[1]
    taps = [jnp.pad(w_t[:, :, 2 - dy, 2 - dx],
                    ((0, cin_pad - cin), (0, cout_pad - cout)))
            for dy in range(3) for dx in range(3)]
    return jnp.concatenate(taps, axis=0).astype(jnp.bfloat16)


def prepare_params(params, cfg):
    """One-time layout prep (outside jit): bf16 sub-pixel / direct-conv weight matrices,
    lane-dense (128-multiple) channel padding with zero bias/gamma/beta so padded
    channels stay exactly 0, and NHWC-ordered FC output columns."""
    base = cfg["base"]
    in_dim = params["fc_w"].shape[0]
    fc_w = params["fc_w"].reshape(in_dim, 256, base, base)
    fc_w = jnp.transpose(fc_w, (0, 2, 3, 1)).reshape(in_dim, -1)
    fc_b = params["fc_b"].reshape(256, base, base)
    fc_b = jnp.transpose(fc_b, (1, 2, 0)).reshape(1, -1)

    kp = {"embed": params["embed"], "fc_w": fc_w, "fc_b": fc_b, "layers": []}
    cin_pad = 256                      # FC output channels (already lane-dense)
    for lc, lp in zip(cfg["layers"], params["layers"]):
        cout = lc["cout"]
        cout_pad = _pad128(cout)
        b_pad = jnp.pad(lp["b"], (0, cout_pad - cout)).reshape(1, -1)
        if lc["stride"] == 2:
            kp["layers"].append({
                "w": _subpixel_weight_mats(lp["w"], cin_pad, cout_pad),
                "b": b_pad,
                "gamma": jnp.pad(lp["gamma"], (0, cout_pad - cout)),
                "beta": jnp.pad(lp["beta"], (0, cout_pad - cout)),
            })
        else:
            kp["layers"].append({
                "w": _conv3x3_weight_mat(lp["w"], cin_pad, cout_pad),
                "b": b_pad,
            })
        cin_pad = cout_pad
    return kp


# ---------------------------------------------------------------------------
# Forward pass
# ---------------------------------------------------------------------------
def generator_forward(cfg, params, noise, labels):
    B = noise.shape[0]
    base = cfg["base"]

    emb = jnp.take(params["embed"], labels, axis=0)            # (B, L) embedding lookup
    combined = jnp.concatenate([noise, emb], axis=1)           # (B, 2L)

    h = fc_leaky(combined, params["fc_w"], params["fc_b"])     # (B, base*base*256) NHWC
    x = h.reshape(B, base, base, 256).astype(jnp.bfloat16)     # NHWC, bf16 matmul path

    for lc, lp in zip(cfg["layers"], params["layers"]):
        _, H, W, _ = x.shape
        if lc["stride"] == 2:
            slab = _subpixel_im2col(x)                         # bf16 (B, 4, H*W, 4*Cp)
            y, ssum, ssq = subpixel_conv_stats(slab, lp["w"], lp["b"])
            cnt = float(B * 4 * H * W)                         # = B * (2H) * (2W)
            mean = jnp.sum(ssum, axis=(0, 1, 2)) / cnt
            var = jnp.maximum(jnp.sum(ssq, axis=(0, 1, 2)) / cnt - mean * mean, 0.0)
            scale = lp["gamma"] * jax.lax.rsqrt(var + BN_EPS)
            shift = lp["beta"] - mean * scale
            z = affine_lrelu(y, scale.reshape(1, -1), shift.reshape(1, -1))   # bf16
            x = _interleave_parities(z, H, W)                  # (B, 2H, 2W, Cp) bf16
        else:
            slab = _im2col_3x3(x)                              # bf16 (B, H*W, 9*Cp)
            y = conv3x3_tanh(slab, lp["w"], lp["b"])           # f32, lane-dense cout
            x = y.reshape(B, H, W, -1)[..., :cfg["img_channels"]]

    return jnp.transpose(x, (0, 3, 1, 2))                      # NHWC -> NCHW, f32


# ---------------------------------------------------------------------------
if __name__ == "__main__":
    # Small config consistent with the module: latent=16, img_size=16 -> base=4,
    # deconv stack: 256->128 (4->8), 128->64 (8->16), 64->1 (16->16, tanh).
    LATENT_DIM = 16
    IMG_CHANNELS = 1
    IMG_SIZE = 16
    NUM_CLASSES = 10
    BATCH = 2

    cfg = make_config(LATENT_DIM, IMG_CHANNELS, IMG_SIZE, NUM_CLASSES)

    root = jax.random.PRNGKey(0)
    k_params, k_noise = jax.random.split(root)
    torch_layout_params = build_params(k_params, cfg)
    params = prepare_params(torch_layout_params, cfg)          # arrays-only pytree

    noise = jax.random.normal(k_noise, (BATCH, LATENT_DIM), dtype=jnp.float32)
    labels = jnp.array([1, 7], dtype=jnp.int32)

    fwd = jax.jit(functools.partial(generator_forward, cfg))   # cfg is static (closure)
    img = jax.block_until_ready(fwd(params, noise, labels))

    assert img.shape == (BATCH, IMG_CHANNELS, IMG_SIZE, IMG_SIZE), img.shape
    assert bool(jnp.all(jnp.isfinite(img)))
    assert bool(jnp.all(jnp.abs(img) <= 1.0))                  # tanh output range
    print("KERNEL_OK")
</pallas_src>

<mosaic_0001>
module attributes {stable_mosaic.version = 11 : i64} {
  func.func @_fc_leaky_kernel(%arg0: i32, %arg1: memref<2x32xf32, #tpu.memory_space<vmem>>, %arg2: memref<32x4096xf32, #tpu.memory_space<vmem>>, %arg3: memref<1x4096xf32, #tpu.memory_space<vmem>>, %arg4: memref<2x4096xf32, #tpu.memory_space<vmem>>) attributes {dimension_semantics = [#tpu.dimension_semantics<arbitrary>], iteration_bounds = array<i64: 1>, scalar_prefetch = 0 : i64, scratch_operands = 0 : i64, tpu.core_type = #tpu.core_type<tc>, window_params = [{pipeline_mode = #tpu.pipeline_mode<synchronous>, transform_indices = @transform_0, window_bounds = array<i64: 2, 32>}, {pipeline_mode = #tpu.pipeline_mode<synchronous>, transform_indices = @transform_1, window_bounds = array<i64: 32, 4096>}, {pipeline_mode = #tpu.pipeline_mode<synchronous>, transform_indices = @transform_2, window_bounds = array<i64: 1, 4096>}, {pipeline_mode = #tpu.pipeline_mode<synchronous>, transform_indices = @transform_3, window_bounds = array<i64: 2, 4096>}]} {
    %c0 = arith.constant 0 : index
    %c0_0 = arith.constant 0 : index
    %0 = vector.load %arg1[%c0, %c0_0] : memref<2x32xf32, #tpu.memory_space<vmem>>, vector<2x32xf32>
    %c0_1 = arith.constant 0 : index
    %c0_2 = arith.constant 0 : index
    %1 = vector.load %arg2[%c0_1, %c0_2] : memref<32x4096xf32, #tpu.memory_space<vmem>>, vector<32x4096xf32>
    %cst = arith.constant dense<0.000000e+00> : vector<2x4096xf32>
    %2 = tpu.matmul %0, %1, %cst {dimension_numbers = #tpu.dot_dimension_numbers<[1], [0], [0], [1], [0, 0, 1, 1], [], []>} : vector<2x32xf32>, vector<32x4096xf32>, vector<2x4096xf32> -> vector<2x4096xf32>
    %c0_3 = arith.constant 0 : index
    %c0_4 = arith.constant 0 : index
    %3 = vector.load %arg3[%c0_3, %c0_4] : memref<1x4096xf32, #tpu.memory_space<vmem>>, vector<1x4096xf32>
    %4 = vector.broadcast %3 : vector<1x4096xf32> to vector<2x4096xf32>
    %5 = arith.addf %2, %4 : vector<2x4096xf32>
    %cst_5 = arith.constant 2.000000e-01 : f32
    %6 = vector.broadcast %cst_5 : f32 to vector<2x4096xf32>
    %7 = arith.mulf %6, %5 : vector<2x4096xf32>
    %8 = arith.maximumf %5, %7 : vector<2x4096xf32>
    %c0_6 = arith.constant 0 : index
    %c0_7 = arith.constant 0 : index
    %9 = vector.load %arg4[%c0_6, %c0_7] : memref<2x4096xf32, #tpu.memory_space<vmem>>, vector<2x4096xf32>
    tpu.vector_store %arg4[%c0_6, %c0_7], %8 {strides = array<i32>} : memref<2x4096xf32, #tpu.memory_space<vmem>>, vector<2x4096xf32>,
    return
  }
  func.func @transform_0(%arg0: i32) -> (i32, i32) {
    %c0_i32 = arith.constant 0 : i32
    %c0_i32_0 = arith.constant 0 : i32
    %c0_i32_1 = arith.constant 0 : i32
    return %c0_i32, %c0_i32_0 : i32, i32
  }
  func.func @transform_1(%arg0: i32) -> (i32, i32) {
    %c0_i32 = arith.constant 0 : i32
    %c0_i32_0 = arith.constant 0 : i32
    %c0_i32_1 = arith.constant 0 : i32
    return %c0_i32, %c0_i32_0 : i32, i32
  }
  func.func @transform_2(%arg0: i32) -> (i32, i32) {
    %c0_i32 = arith.constant 0 : i32
    %c0_i32_0 = arith.constant 0 : i32
    %c0_i32_1 = arith.constant 0 : i32
    return %c0_i32, %c0_i32_0 : i32, i32
  }
  func.func @transform_3(%arg0: i32) -> (i32, i32) {
    %c0_i32 = arith.constant 0 : i32
    %c0_i32_0 = arith.constant 0 : i32
    %c0_i32_1 = arith.constant 0 : i32
    return %c0_i32, %c0_i32_0 : i32, i32
  }
}

module attributes {stable_mosaic.version = 11 : i64} {
  func.func @kernel(%arg0: i32, %arg1: i32, %arg2: memref<1x4x16x1024xbf16, #tpu.memory_space<vmem>>, %arg3: memref<4x1024x128xbf16, #tpu.memory_space<vmem>>, %arg4: memref<1x128xf32, #tpu.memory_space<vmem>>, %arg5: memref<1x4x16x128xf32, #tpu.memory_space<vmem>>, %arg6: memref<1x1x1x128xf32, #tpu.memory_space<vmem>>, %arg7: memref<1x1x1x128xf32, #tpu.memory_space<vmem>>) attributes {dimension_semantics = [#tpu.dimension_semantics<parallel>, #tpu.dimension_semantics<parallel>], iteration_bounds = array<i64: 2, 1>, scalar_prefetch = 0 : i64, scratch_operands = 0 : i64, tpu.core_type = #tpu.core_type<tc>, window_params = [{transform_indices = @transform_0, window_bounds = array<i64: 1, 4, 16, 1024>}, {pipeline_mode = #tpu.pipeline_mode<synchronous>, transform_indices = @transform_1, window_bounds = array<i64: 4, 1024, 128>}, {pipeline_mode = #tpu.pipeline_mode<synchronous>, transform_indices = @transform_2, window_bounds = array<i64: 1, 128>}, {transform_indices = @transform_3, window_bounds = array<i64: 1, 4, 16, 128>}, {transform_indices = @transform_4, window_bounds = array<i64: 1, 1, 1, 128>}, {transform_indices = @transform_5, window_bounds = array<i64: 1, 1, 1, 128>}]} {
    %c0 = arith.constant 0 : index
    %c0_0 = arith.constant 0 : index
    %0 = vector.load %arg4[%c0, %c0_0] : memref<1x128xf32, #tpu.memory_space<vmem>>, vector<1x128xf32>
    %cst = arith.constant 0.000000e+00 : f32
    %1 = vector.broadcast %cst : f32 to vector<1x128xf32>
    %cst_1 = arith.constant 0.000000e+00 : f32
    %2 = vector.broadcast %cst_1 : f32 to vector<1x128xf32>
    %c0_2 = arith.constant 0 : index
    %c0_3 = arith.constant 0 : index
    %c0_4 = arith.constant 0 : index
    %c0_5 = arith.constant 0 : index
    %3 = vector.load %arg2[%c0_2, %c0_3, %c0_4, %c0_5] : memref<1x4x16x1024xbf16, #tpu.memory_space<vmem>>, vector<1x1x16x1024xbf16>
    %4 = vector.shape_cast %3 : vector<1x1x16x1024xbf16> to vector<16x1024xbf16>
    %c0_6 = arith.constant 0 : index
    %c0_7 = arith.constant 0 : index
    %c0_8 = arith.constant 0 : index
    %5 = vector.load %arg3[%c0_6, %c0_7, %c0_8] : memref<4x1024x128xbf16, #tpu.memory_space<vmem>>, vector<1x1024x128xbf16>
    %6 = vector.shape_cast %5 : vector<1x1024x128xbf16> to vector<1024x128xbf16>
    %cst_9 = arith.constant dense<0.000000e+00> : vector<16x128xf32>
    %7 = tpu.matmul %4, %6, %cst_9 {dimension_numbers = #tpu.dot_dimension_numbers<[1], [0], [0], [1], [0, 0, 1, 1], [], []>} : vector<16x1024xbf16>, vector<1024x128xbf16>, vector<16x128xf32> -> vector<16x128xf32>
    %8 = vector.broadcast %0 : vector<1x128xf32> to vector<16x128xf32>
    %9 = arith.addf %7, %8 : vector<16x128xf32>
    %c0_10 = arith.constant 0 : index
    %c0_11 = arith.constant 0 : index
    %c0_12 = arith.constant 0 : index
    %c0_13 = arith.constant 0 : index
    %10 = vector.load %arg5[%c0_10, %c0_11, %c0_12, %c0_13] : memref<1x4x16x128xf32, #tpu.memory_space<vmem>>, vector<1x1x16x128xf32>
    %11 = vector.shape_cast %10 : vector<1x1x16x128xf32> to vector<16x128xf32>
    %12 = vector.shape_cast %9 : vector<16x128xf32> to vector<1x1x16x128xf32>
    tpu.vector_store %arg5[%c0_10, %c0_11, %c0_12, %c0_13], %12 {strides = array<i32>} : memref<1x4x16x128xf32, #tpu.memory_space<vmem>>, vector<1x1x16x128xf32>,
    %cst_14 = arith.constant dense<0.000000e+00> : vector<128xf32>
    %13 = vector.multi_reduction <add>, %9, %cst_14 [0] : vector<16x128xf32> to vector<128xf32>
    %14 = vector.shape_cast %13 : vector<128xf32> to vector<1x128xf32>
    %15 = arith.addf %1, %14 : vector<1x128xf32>
    %16 = arith.mulf %9, %9 : vector<16x128xf32>
    %cst_15 = arith.constant dense<0.000000e+00> : vector<128xf32>
    %17 = vector.multi_reduction <add>, %16, %cst_15 [0] : vector<16x128xf32> to vector<128xf32>
    %18 = vector.shape_cast %17 : vector<128xf32> to vector<1x128xf32>
    %19 = arith.addf %2, %18 : vector<1x128xf32>
    %c0_16 = arith.constant 0 : index
    %c1 = arith.constant 1 : index
    %c0_17 = arith.constant 0 : index
    %c0_18 = arith.constant 0 : index
    %20 = vector.load %arg2[%c0_16, %c1, %c0_17, %c0_18] : memref<1x4x16x1024xbf16, #tpu.memory_space<vmem>>, vector<1x1x16x1024xbf16>
    %21 = vector.shape_cast %20 : vector<1x1x16x1024xbf16> to vector<16x1024xbf16>
    %c1_19 = arith.constant 1 : index
    %c0_20 = arith.constant 0 : index
    %c0_21 = arith.constant 0 : index
    %22 = vector.load %arg3[%c1_19, %c0_20, %c0_21] : memref<4x1024x128xbf16, #tpu.memory_space<vmem>>, vector<1x1024x128xbf16>
    %23 = vector.shape_cast %22 : vector<1x1024x128xbf16> to vector<1024x128xbf16>
    %cst_22 = arith.constant dense<0.000000e+00> : vector<16x128xf32>
    %24 = tpu.matmul %21, %23, %cst_22 {dimension_numbers = #tpu.dot_dimension_numbers<[1], [0], [0], [1], [0, 0, 1, 1], [], []>} : vector<16x1024xbf16>, vector<1024x128xbf16>, vector<16x128xf32> -> vector<16x128xf32>
    %25 = vector.broadcast %0 : vector<1x128xf32> to vector<16x128xf32>
    %26 = arith.addf %24, %25 : vector<16x128xf32>
    %c0_23 = arith.constant 0 : index
    %c1_24 = arith.constant 1 : index
    %c0_25 = arith.constant 0 : index
    %c0_26 = arith.constant 0 : index
    %27 = vector.load %arg5[%c0_23, %c1_24, %c0_25, %c0_26] : memref<1x4x16x128xf32, #tpu.memory_space<vmem>>, vector<1x1x16x128xf32>
    %28 = vector.shape_cast %27 : vector<1x1x16x128xf32> to vector<16x128xf32>
    %29 = vector.shape_cast %26 : vector<16x128xf32> to vector<1x1x16x128xf32>
    tpu.vector_store %arg5[%c0_23, %c1_24, %c0_25, %c0_26], %29 {strides = array<i32>} : memref<1x4x16x128xf32, #tpu.memory_space<vmem>>, vector<1x1x16x128xf32>,
    %cst_27 = arith.constant dense<0.000000e+00> : vector<128xf32>
    %30 = vector.multi_reduction <add>, %26, %cst_27 [0] : vector<16x128xf32> to vector<128xf32>
    %31 = vector.shape_cast %30 : vector<128xf32> to vector<1x128xf32>
    %32 = arith.addf %15, %31 : vector<1x128xf32>
    %33 = arith.mulf %26, %26 : vector<16x128xf32>
    %cst_28 = arith.constant dense<0.000000e+00> : vector<128xf32>
    %34 = vector.multi_reduction <add>, %33, %cst_28 [0] : vector<16x128xf32> to vector<128xf32>
    %35 = vector.shape_cast %34 : vector<128xf32> to vector<1x128xf32>
    %36 = arith.addf %19, %35 : vector<1x128xf32>
    %c0_29 = arith.constant 0 : index
    %c2 = arith.constant 2 : index
    %c0_30 = arith.constant 0 : index
    %c0_31 = arith.constant 0 : index
    %37 = vector.load %arg2[%c0_29, %c2, %c0_30, %c0_31] : memref<1x4x16x1024xbf16, #tpu.memory_space<vmem>>, vector<1x1x16x1024xbf16>
    %38 = vector.shape_cast %37 : vector<1x1x16x1024xbf16> to vector<16x1024xbf16>
    %c2_32 = arith.constant 2 : index
    %c0_33 = arith.constant 0 : index
    %c0_34 = arith.constant 0 : index
    %39 = vector.load %arg3[%c2_32, %c0_33, %c0_34] : memref<4x1024x128xbf16, #tpu.memory_space<vmem>>, vector<1x1024x128xbf16>
    %40 = vector.shape_cast %39 : vector<1x1024x128xbf16> to vector<1024x128xbf16>
    %cst_35 = arith.constant dense<0.000000e+00> : vector<16x128xf32>
    %41 = tpu.matmul %38, %40, %cst_35 {dimension_numbers = #tpu.dot_dimension_numbers<[1], [0], [0], [1], [0, 0, 1, 1], [], []>} : vector<16x1024xbf16>, vector<1024x128xbf16>, vector<16x128xf32> -> vector<16x128xf32>
    %42 = vector.broadcast %0 : vector<1x128xf32> to vector<16x128xf32>
    %43 = arith.addf %41, %42 : vector<16x128xf32>
    %c0_36 = arith.constant 0 : index
    %c2_37 = arith.constant 2 : index
    %c0_38 = arith.constant 0 : index
    %c0_39 = arith.constant 0 : index
    %44 = vector.load %arg5[%c0_36, %c2_37, %c0_38, %c0_39] : memref<1x4x16x128xf32, #tpu.memory_space<vmem>>, vector<1x1x16x128xf32>
    %45 = vector.shape_cast %44 : vector<1x1x16x128xf32> to vector<16x128xf32>
    %46 = vector.shape_cast %43 : vector<16x128xf32> to vector<1x1x16x128xf32>
    tpu.vector_store %arg5[%c0_36, %c2_37, %c0_38, %c0_39], %46 {strides = array<i32>} : memref<1x4x16x128xf32, #tpu.memory_space<vmem>>, vector<1x1x16x128xf32>,
    %cst_40 = arith.constant dense<0.000000e+00> : vector<128xf32>
    %47 = vector.multi_reduction <add>, %43, %cst_40 [0] : vector<16x128xf32> to vector<128xf32>
    %48 = vector.shape_cast %47 : vector<128xf32> to vector<1x128xf32>
    %49 = arith.addf %32, %48 : vector<1x128xf32>
    %50 = arith.mulf %43, %43 : vector<16x128xf32>
    %cst_41 = arith.constant dense<0.000000e+00> : vector<128xf32>
    %51 = vector.multi_reduction <add>, %50, %cst_41 [0] : vector<16x128xf32> to vector<128xf32>
    %52 = vector.shape_cast %51 : vector<128xf32> to vector<1x128xf32>
    %53 = arith.addf %36, %52 : vector<1x128xf32>
    %c0_42 = arith.constant 0 : index
    %c3 = arith.constant 3 : index
    %c0_43 = arith.constant 0 : index
    %c0_44 = arith.constant 0 : index
    %54 = vector.load %arg2[%c0_42, %c3, %c0_43, %c0_44] : memref<1x4x16x1024xbf16, #tpu.memory_space<vmem>>, vector<1x1x16x1024xbf16>
    %55 = vector.shape_cast %54 : vector<1x1x16x1024xbf16> to vector<16x1024xbf16>
    %c3_45 = arith.constant 3 : index
    %c0_46 = arith.constant 0 : index
    %c0_47 = arith.constant 0 : index
    %56 = vector.load %arg3[%c3_45, %c0_46, %c0_47] : memref<4x1024x128xbf16, #tpu.memory_space<vmem>>, vector<1x1024x128xbf16>
    %57 = vector.shape_cast %56 : vector<1x1024x128xbf16> to vector<1024x128xbf16>
    %cst_48 = arith.constant dense<0.000000e+00> : vector<16x128xf32>
    %58 = tpu.matmul %55, %57, %cst_48 {dimension_numbers = #tpu.dot_dimension_numbers<[1], [0], [0], [1], [0, 0, 1, 1], [], []>} : vector<16x1024xbf16>, vector<1024x128xbf16>, vector<16x128xf32> -> vector<16x128xf32>
    %59 = vector.broadcast %0 : vector<1x128xf32> to vector<16x128xf32>
    %60 = arith.addf %58, %59 : vector<16x128xf32>
    %c0_49 = arith.constant 0 : index
    %c3_50 = arith.constant 3 : index
    %c0_51 = arith.constant 0 : index
    %c0_52 = arith.constant 0 : index
    %61 = vector.load %arg5[%c0_49, %c3_50, %c0_51, %c0_52] : memref<1x4x16x128xf32, #tpu.memory_space<vmem>>, vector<1x1x16x128xf32>
    %62 = vector.shape_cast %61 : vector<1x1x16x128xf32> to vector<16x128xf32>
    %63 = vector.shape_cast %60 : vector<16x128xf32> to vector<1x1x16x128xf32>
    tpu.vector_store %arg5[%c0_49, %c3_50, %c0_51, %c0_52], %63 {strides = array<i32>} : memref<1x4x16x128xf32, #tpu.memory_space<vmem>>, vector<1x1x16x128xf32>,
    %cst_53 = arith.constant dense<0.000000e+00> : vector<128xf32>
    %64 = vector.multi_reduction <add>, %60, %cst_53 [0] : vector<16x128xf32> to vector<128xf32>
    %65 = vector.shape_cast %64 : vector<128xf32> to vector<1x128xf32>
    %66 = arith.addf %49, %65 : vector<1x128xf32>
    %67 = arith.mulf %60, %60 : vector<16x128xf32>
    %cst_54 = arith.constant dense<0.000000e+00> : vector<128xf32>
    %68 = vector.multi_reduction <add>, %67, %cst_54 [0] : vector<16x128xf32> to vector<128xf32>
    %69 = vector.shape_cast %68 : vector<128xf32> to vector<1x128xf32>
    %70 = arith.addf %53, %69 : vector<1x128xf32>
    %c0_55 = arith.constant 0 : index
    %c0_56 = arith.constant 0 : index
    %c0_57 = arith.constant 0 : index
    %c0_58 = arith.constant 0 : index
    %71 = vector.load %arg6[%c0_55, %c0_56, %c0_57, %c0_58] : memref<1x1x1x128xf32, #tpu.memory_space<vmem>>, vector<1x1x1x128xf32>
    %72 = vector.shape_cast %71 : vector<1x1x1x128xf32> to vector<1x128xf32>
    %73 = vector.shape_cast %66 : vector<1x128xf32> to vector<1x1x1x128xf32>
    tpu.vector_store %arg6[%c0_55, %c0_56, %c0_57, %c0_58], %73 {strides = array<i32>} : memref<1x1x1x128xf32, #tpu.memory_space<vmem>>, vector<1x1x1x128xf32>,
    %c0_59 = arith.constant 0 : index
    %c0_60 = arith.constant 0 : index
    %c0_61 = arith.constant 0 : index
    %c0_62 = arith.constant 0 : index
    %74 = vector.load %arg7[%c0_59, %c0_60, %c0_61, %c0_62] : memref<1x1x1x128xf32, #tpu.memory_space<vmem>>, vector<1x1x1x128xf32>
    %75 = vector.shape_cast %74 : vector<1x1x1x128xf32> to vector<1x128xf32>
    %76 = vector.shape_cast %70 : vector<1x128xf32> to vector<1x1x1x128xf32>
    tpu.vector_store %arg7[%c0_59, %c0_60, %c0_61, %c0_62], %76 {strides = array<i32>} : memref<1x1x1x128xf32, #tpu.memory_space<vmem>>, vector<1x1x1x128xf32>,
    return
  }
  func.func @transform_0(%arg0: i32, %arg1: i32) -> (i32, i32, i32, i32) {
    %c0_i32 = arith.constant 0 : i32
    %c0_i32_0 = arith.constant 0 : i32
    %c0_i32_1 = arith.constant 0 : i32
    return %arg0, %c0_i32, %arg1, %c0_i32_0 : i32, i32, i32, i32
  }
  func.func @transform_1(%arg0: i32, %arg1: i32) -> (i32, i32, i32) {
    %c0_i32 = arith.constant 0 : i32
    %c0_i32_0 = arith.constant 0 : i32
    %c0_i32_1 = arith.constant 0 : i32
    %c0_i32_2 = arith.constant 0 : i32
    return %c0_i32, %c0_i32_0, %c0_i32_1 : i32, i32, i32
  }
  func.func @transform_2(%arg0: i32, %arg1: i32) -> (i32, i32) {
    %c0_i32 = arith.constant 0 : i32
    %c0_i32_0 = arith.constant 0 : i32
    %c0_i32_1 = arith.constant 0 : i32
    return %c0_i32, %c0_i32_0 : i32, i32
  }
  func.func @transform_3(%arg0: i32, %arg1: i32) -> (i32, i32, i32, i32) {
    %c0_i32 = arith.constant 0 : i32
    %c0_i32_0 = arith.constant 0 : i32
    %c0_i32_1 = arith.constant 0 : i32
    return %arg0, %c0_i32, %arg1, %c0_i32_0 : i32, i32, i32, i32
  }
  func.func @transform_4(%arg0: i32, %arg1: i32) -> (i32, i32, i32, i32) {
    %c0_i32 = arith.constant 0 : i32
    %c0_i32_0 = arith.constant 0 : i32
    %c0_i32_1 = arith.constant 0 : i32
    return %arg0, %arg1, %c0_i32, %c0_i32_0 : i32, i32, i32, i32
  }
  func.func @transform_5(%arg0: i32, %arg1: i32) -> (i32, i32, i32, i32) {
    %c0_i32 = arith.constant 0 : i32
    %c0_i32_0 = arith.constant 0 : i32
    %c0_i32_1 = arith.constant 0 : i32
    return %arg0, %arg1, %c0_i32, %c0_i32_0 : i32, i32, i32, i32
  }
}

module attributes {stable_mosaic.version = 11 : i64} {
  func.func @_affine_lrelu_kernel(%arg0: i32, %arg1: i32, %arg2: memref<1x4x16x128xf32, #tpu.memory_space<vmem>>, %arg3: memref<1x128xf32, #tpu.memory_space<vmem>>, %arg4: memref<1x128xf32, #tpu.memory_space<vmem>>, %arg5: memref<1x4x16x128xbf16, #tpu.memory_space<vmem>>) attributes {dimension_semantics = [#tpu.dimension_semantics<parallel>, #tpu.dimension_semantics<parallel>], iteration_bounds = array<i64: 2, 1>, scalar_prefetch = 0 : i64, scratch_operands = 0 : i64, tpu.core_type = #tpu.core_type<tc>, window_params = [{transform_indices = @transform_0, window_bounds = array<i64: 1, 4, 16, 128>}, {pipeline_mode = #tpu.pipeline_mode<synchronous>, transform_indices = @transform_1, window_bounds = array<i64: 1, 128>}, {pipeline_mode = #tpu.pipeline_mode<synchronous>, transform_indices = @transform_2, window_bounds = array<i64: 1, 128>}, {transform_indices = @transform_3, window_bounds = array<i64: 1, 4, 16, 128>}]} {
    %c0 = arith.constant 0 : index
    %c0_0 = arith.constant 0 : index
    %0 = vector.load %arg3[%c0, %c0_0] : memref<1x128xf32, #tpu.memory_space<vmem>>, vector<1x128xf32>
    %c0_1 = arith.constant 0 : index
    %c0_2 = arith.constant 0 : index
    %1 = vector.load %arg4[%c0_1, %c0_2] : memref<1x128xf32, #tpu.memory_space<vmem>>, vector<1x128xf32>
    %c0_3 = arith.constant 0 : index
    %c0_4 = arith.constant 0 : index
    %c0_5 = arith.constant 0 : index
    %c0_6 = arith.constant 0 : index
    %2 = vector.load %arg2[%c0_3, %c0_4, %c0_5, %c0_6] : memref<1x4x16x128xf32, #tpu.memory_space<vmem>>, vector<1x1x16x128xf32>
    %3 = vector.shape_cast %2 : vector<1x1x16x128xf32> to vector<16x128xf32>
    %4 = vector.broadcast %0 : vector<1x128xf32> to vector<16x128xf32>
    %5 = arith.mulf %3, %4 : vector<16x128xf32>
    %6 = vector.broadcast %1 : vector<1x128xf32> to vector<16x128xf32>
    %7 = arith.addf %5, %6 : vector<16x128xf32>
    %cst = arith.constant 2.000000e-01 : f32
    %8 = vector.broadcast %cst : f32 to vector<16x128xf32>
    %9 = arith.mulf %8, %7 : vector<16x128xf32>
    %10 = arith.maximumf %7, %9 : vector<16x128xf32>
    %11 = arith.truncf %10 : vector<16x128xf32> to vector<16x128xbf16>
    %c0_7 = arith.constant 0 : index
    %c0_8 = arith.constant 0 : index
    %c0_9 = arith.constant 0 : index
    %c0_10 = arith.constant 0 : index
    %12 = vector.load %arg5[%c0_7, %c0_8, %c0_9, %c0_10] : memref<1x4x16x128xbf16, #tpu.memory_space<vmem>>, vector<1x1x16x128xbf16>
    %13 = vector.shape_cast %12 : vector<1x1x16x128xbf16> to vector<16x128xbf16>
    %14 = vector.shape_cast %11 : vector<16x128xbf16> to vector<1x1x16x128xbf16>
    tpu.vector_store %arg5[%c0_7, %c0_8, %c0_9, %c0_10], %14 {strides = array<i32>} : memref<1x4x16x128xbf16, #tpu.memory_space<vmem>>, vector<1x1x16x128xbf16>,
    %c0_11 = arith.constant 0 : index
    %c1 = arith.constant 1 : index
    %c0_12 = arith.constant 0 : index
    %c0_13 = arith.constant 0 : index
    %15 = vector.load %arg2[%c0_11, %c1, %c0_12, %c0_13] : memref<1x4x16x128xf32, #tpu.memory_space<vmem>>, vector<1x1x16x128xf32>
    %16 = vector.shape_cast %15 : vector<1x1x16x128xf32> to vector<16x128xf32>
    %17 = vector.broadcast %0 : vector<1x128xf32> to vector<16x128xf32>
    %18 = arith.mulf %16, %17 : vector<16x128xf32>
    %19 = vector.broadcast %1 : vector<1x128xf32> to vector<16x128xf32>
    %20 = arith.addf %18, %19 : vector<16x128xf32>
    %cst_14 = arith.constant 2.000000e-01 : f32
    %21 = vector.broadcast %cst_14 : f32 to vector<16x128xf32>
    %22 = arith.mulf %21, %20 : vector<16x128xf32>
    %23 = arith.maximumf %20, %22 : vector<16x128xf32>
    %24 = arith.truncf %23 : vector<16x128xf32> to vector<16x128xbf16>
    %c0_15 = arith.constant 0 : index
    %c1_16 = arith.constant 1 : index
    %c0_17 = arith.constant 0 : index
    %c0_18 = arith.constant 0 : index
    %25 = vector.load %arg5[%c0_15, %c1_16, %c0_17, %c0_18] : memref<1x4x16x128xbf16, #tpu.memory_space<vmem>>, vector<1x1x16x128xbf16>
    %26 = vector.shape_cast %25 : vector<1x1x16x128xbf16> to vector<16x128xbf16>
    %27 = vector.shape_cast %24 : vector<16x128xbf16> to vector<1x1x16x128xbf16>
    tpu.vector_store %arg5[%c0_15, %c1_16, %c0_17, %c0_18], %27 {strides = array<i32>} : memref<1x4x16x128xbf16, #tpu.memory_space<vmem>>, vector<1x1x16x128xbf16>,
    %c0_19 = arith.constant 0 : index
    %c2 = arith.constant 2 : index
    %c0_20 = arith.constant 0 : index
    %c0_21 = arith.constant 0 : index
    %28 = vector.load %arg2[%c0_19, %c2, %c0_20, %c0_21] : memref<1x4x16x128xf32, #tpu.memory_space<vmem>>, vector<1x1x16x128xf32>
    %29 = vector.shape_cast %28 : vector<1x1x16x128xf32> to vector<16x128xf32>
    %30 = vector.broadcast %0 : vector<1x128xf32> to vector<16x128xf32>
    %31 = arith.mulf %29, %30 : vector<16x128xf32>
    %32 = vector.broadcast %1 : vector<1x128xf32> to vector<16x128xf32>
    %33 = arith.addf %31, %32 : vector<16x128xf32>
    %cst_22 = arith.constant 2.000000e-01 : f32
    %34 = vector.broadcast %cst_22 : f32 to vector<16x128xf32>
    %35 = arith.mulf %34, %33 : vector<16x128xf32>
    %36 = arith.maximumf %33, %35 : vector<16x128xf32>
    %37 = arith.truncf %36 : vector<16x128xf32> to vector<16x128xbf16>
    %c0_23 = arith.constant 0 : index
    %c2_24 = arith.constant 2 : index
    %c0_25 = arith.constant 0 : index
    %c0_26 = arith.constant 0 : index
    %38 = vector.load %arg5[%c0_23, %c2_24, %c0_25, %c0_26] : memref<1x4x16x128xbf16, #tpu.memory_space<vmem>>, vector<1x1x16x128xbf16>
    %39 = vector.shape_cast %38 : vector<1x1x16x128xbf16> to vector<16x128xbf16>
    %40 = vector.shape_cast %37 : vector<16x128xbf16> to vector<1x1x16x128xbf16>
    tpu.vector_store %arg5[%c0_23, %c2_24, %c0_25, %c0_26], %40 {strides = array<i32>} : memref<1x4x16x128xbf16, #tpu.memory_space<vmem>>, vector<1x1x16x128xbf16>,
    %c0_27 = arith.constant 0 : index
    %c3 = arith.constant 3 : index
    %c0_28 = arith.constant 0 : index
    %c0_29 = arith.constant 0 : index
    %41 = vector.load %arg2[%c0_27, %c3, %c0_28, %c0_29] : memref<1x4x16x128xf32, #tpu.memory_space<vmem>>, vector<1x1x16x128xf32>
    %42 = vector.shape_cast %41 : vector<1x1x16x128xf32> to vector<16x128xf32>
    %43 = vector.broadcast %0 : vector<1x128xf32> to vector<16x128xf32>
    %44 = arith.mulf %42, %43 : vector<16x128xf32>
    %45 = vector.broadcast %1 : vector<1x128xf32> to vector<16x128xf32>
    %46 = arith.addf %44, %45 : vector<16x128xf32>
    %cst_30 = arith.constant 2.000000e-01 : f32
    %47 = vector.broadcast %cst_30 : f32 to vector<16x128xf32>
    %48 = arith.mulf %47, %46 : vector<16x128xf32>
    %49 = arith.maximumf %46, %48 : vector<16x128xf32>
    %50 = arith.truncf %49 : vector<16x128xf32> to vector<16x128xbf16>
    %c0_31 = arith.constant 0 : index
    %c3_32 = arith.constant 3 : index
    %c0_33 = arith.constant 0 : index
    %c0_34 = arith.constant 0 : index
    %51 = vector.load %arg5[%c0_31, %c3_32, %c0_33, %c0_34] : memref<1x4x16x128xbf16, #tpu.memory_space<vmem>>, vector<1x1x16x128xbf16>
    %52 = vector.shape_cast %51 : vector<1x1x16x128xbf16> to vector<16x128xbf16>
    %53 = vector.shape_cast %50 : vector<16x128xbf16> to vector<1x1x16x128xbf16>
    tpu.vector_store %arg5[%c0_31, %c3_32, %c0_33, %c0_34], %53 {strides = array<i32>} : memref<1x4x16x128xbf16, #tpu.memory_space<vmem>>, vector<1x1x16x128xbf16>,
    return
  }
  func.func @transform_0(%arg0: i32, %arg1: i32) -> (i32, i32, i32, i32) {
    %c0_i32 = arith.constant 0 : i32
    %c0_i32_0 = arith.constant 0 : i32
    %c0_i32_1 = arith.constant 0 : i32
    return %arg0, %c0_i32, %arg1, %c0_i32_0 : i32, i32, i32, i32
  }
  func.func @transform_1(%arg0: i32, %arg1: i32) -> (i32, i32) {
    %c0_i32 = arith.constant 0 : i32
    %c0_i32_0 = arith.constant 0 : i32
    %c0_i32_1 = arith.constant 0 : i32
    return %c0_i32, %c0_i32_0 : i32, i32
  }
  func.func @transform_2(%arg0: i32, %arg1: i32) -> (i32, i32) {
    %c0_i32 = arith.constant 0 : i32
    %c0_i32_0 = arith.constant 0 : i32
    %c0_i32_1 = arith.constant 0 : i32
    return %c0_i32, %c0_i32_0 : i32, i32
  }
  func.func @transform_3(%arg0: i32, %arg1: i32) -> (i32, i32, i32, i32) {
    %c0_i32 = arith.constant 0 : i32
    %c0_i32_0 = arith.constant 0 : i32
    %c0_i32_1 = arith.constant 0 : i32
    return %arg0, %c0_i32, %arg1, %c0_i32_0 : i32, i32, i32, i32
  }
}

module attributes {stable_mosaic.version = 11 : i64} {
  func.func @_affine_lrelu_kernel(%arg0: i32, %arg1: i32, %arg2: memref<1x4x64x128xf32, #tpu.memory_space<vmem>>, %arg3: memref<1x128xf32, #tpu.memory_space<vmem>>, %arg4: memref<1x128xf32, #tpu.memory_space<vmem>>, %arg5: memref<1x4x64x128xbf16, #tpu.memory_space<vmem>>) attributes {dimension_semantics = [#tpu.dimension_semantics<parallel>, #tpu.dimension_semantics<parallel>], iteration_bounds = array<i64: 2, 1>, scalar_prefetch = 0 : i64, scratch_operands = 0 : i64, tpu.core_type = #tpu.core_type<tc>, window_params = [{transform_indices = @transform_0, window_bounds = array<i64: 1, 4, 64, 128>}, {pipeline_mode = #tpu.pipeline_mode<synchronous>, transform_indices = @transform_1, window_bounds = array<i64: 1, 128>}, {pipeline_mode = #tpu.pipeline_mode<synchronous>, transform_indices = @transform_2, window_bounds = array<i64: 1, 128>}, {transform_indices = @transform_3, window_bounds = array<i64: 1, 4, 64, 128>}]} {
    %c0 = arith.constant 0 : index
    %c0_0 = arith.constant 0 : index
    %0 = vector.load %arg3[%c0, %c0_0] : memref<1x128xf32, #tpu.memory_space<vmem>>, vector<1x128xf32>
    %c0_1 = arith.constant 0 : index
    %c0_2 = arith.constant 0 : index
    %1 = vector.load %arg4[%c0_1, %c0_2] : memref<1x128xf32, #tpu.memory_space<vmem>>, vector<1x128xf32>
    %c0_3 = arith.constant 0 : index
    %c0_4 = arith.constant 0 : index
    %c0_5 = arith.constant 0 : index
    %c0_6 = arith.constant 0 : index
    %2 = vector.load %arg2[%c0_3, %c0_4, %c0_5, %c0_6] : memref<1x4x64x128xf32, #tpu.memory_space<vmem>>, vector<1x1x64x128xf32>
    %3 = vector.shape_cast %2 : vector<1x1x64x128xf32> to vector<64x128xf32>
    %4 = vector.broadcast %0 : vector<1x128xf32> to vector<64x128xf32>
    %5 = arith.mulf %3, %4 : vector<64x128xf32>
    %6 = vector.broadcast %1 : vector<1x128xf32> to vector<64x128xf32>
    %7 = arith.addf %5, %6 : vector<64x128xf32>
    %cst = arith.constant 2.000000e-01 : f32
    %8 = vector.broadcast %cst : f32 to vector<64x128xf32>
    %9 = arith.mulf %8, %7 : vector<64x128xf32>
    %10 = arith.maximumf %7, %9 : vector<64x128xf32>
    %11 = arith.truncf %10 : vector<64x128xf32> to vector<64x128xbf16>
    %c0_7 = arith.constant 0 : index
    %c0_8 = arith.constant 0 : index
    %c0_9 = arith.constant 0 : index
    %c0_10 = arith.constant 0 : index
    %12 = vector.load %arg5[%c0_7, %c0_8, %c0_9, %c0_10] : memref<1x4x64x128xbf16, #tpu.memory_space<vmem>>, vector<1x1x64x128xbf16>
    %13 = vector.shape_cast %12 : vector<1x1x64x128xbf16> to vector<64x128xbf16>
    %14 = vector.shape_cast %11 : vector<64x128xbf16> to vector<1x1x64x128xbf16>
    tpu.vector_store %arg5[%c0_7, %c0_8, %c0_9, %c0_10], %14 {strides = array<i32>} : memref<1x4x64x128xbf16, #tpu.memory_space<vmem>>, vector<1x1x64x128xbf16>,
    %c0_11 = arith.constant 0 : index
    %c1 = arith.constant 1 : index
    %c0_12 = arith.constant 0 : index
    %c0_13 = arith.constant 0 : index
    %15 = vector.load %arg2[%c0_11, %c1, %c0_12, %c0_13] : memref<1x4x64x128xf32, #tpu.memory_space<vmem>>, vector<1x1x64x128xf32>
    %16 = vector.shape_cast %15 : vector<1x1x64x128xf32> to vector<64x128xf32>
    %17 = vector.broadcast %0 : vector<1x128xf32> to vector<64x128xf32>
    %18 = arith.mulf %16, %17 : vector<64x128xf32>
    %19 = vector.broadcast %1 : vector<1x128xf32> to vector<64x128xf32>
    %20 = arith.addf %18, %19 : vector<64x128xf32>
    %cst_14 = arith.constant 2.000000e-01 : f32
    %21 = vector.broadcast %cst_14 : f32 to vector<64x128xf32>
    %22 = arith.mulf %21, %20 : vector<64x128xf32>
    %23 = arith.maximumf %20, %22 : vector<64x128xf32>
    %24 = arith.truncf %23 : vector<64x128xf32> to vector<64x128xbf16>
    %c0_15 = arith.constant 0 : index
    %c1_16 = arith.constant 1 : index
    %c0_17 = arith.constant 0 : index
    %c0_18 = arith.constant 0 : index
    %25 = vector.load %arg5[%c0_15, %c1_16, %c0_17, %c0_18] : memref<1x4x64x128xbf16, #tpu.memory_space<vmem>>, vector<1x1x64x128xbf16>
    %26 = vector.shape_cast %25 : vector<1x1x64x128xbf16> to vector<64x128xbf16>
    %27 = vector.shape_cast %24 : vector<64x128xbf16> to vector<1x1x64x128xbf16>
    tpu.vector_store %arg5[%c0_15, %c1_16, %c0_17, %c0_18], %27 {strides = array<i32>} : memref<1x4x64x128xbf16, #tpu.memory_space<vmem>>, vector<1x1x64x128xbf16>,
    %c0_19 = arith.constant 0 : index
    %c2 = arith.constant 2 : index
    %c0_20 = arith.constant 0 : index
    %c0_21 = arith.constant 0 : index
    %28 = vector.load %arg2[%c0_19, %c2, %c0_20, %c0_21] : memref<1x4x64x128xf32, #tpu.memory_space<vmem>>, vector<1x1x64x128xf32>
    %29 = vector.shape_cast %28 : vector<1x1x64x128xf32> to vector<64x128xf32>
    %30 = vector.broadcast %0 : vector<1x128xf32> to vector<64x128xf32>
    %31 = arith.mulf %29, %30 : vector<64x128xf32>
    %32 = vector.broadcast %1 : vector<1x128xf32> to vector<64x128xf32>
    %33 = arith.addf %31, %32 : vector<64x128xf32>
    %cst_22 = arith.constant 2.000000e-01 : f32
    %34 = vector.broadcast %cst_22 : f32 to vector<64x128xf32>
    %35 = arith.mulf %34, %33 : vector<64x128xf32>
    %36 = arith.maximumf %33, %35 : vector<64x128xf32>
    %37 = arith.truncf %36 : vector<64x128xf32> to vector<64x128xbf16>
    %c0_23 = arith.constant 0 : index
    %c2_24 = arith.constant 2 : index
    %c0_25 = arith.constant 0 : index
    %c0_26 = arith.constant 0 : index
    %38 = vector.load %arg5[%c0_23, %c2_24, %c0_25, %c0_26] : memref<1x4x64x128xbf16, #tpu.memory_space<vmem>>, vector<1x1x64x128xbf16>
    %39 = vector.shape_cast %38 : vector<1x1x64x128xbf16> to vector<64x128xbf16>
    %40 = vector.shape_cast %37 : vector<64x128xbf16> to vector<1x1x64x128xbf16>
    tpu.vector_store %arg5[%c0_23, %c2_24, %c0_25, %c0_26], %40 {strides = array<i32>} : memref<1x4x64x128xbf16, #tpu.memory_space<vmem>>, vector<1x1x64x128xbf16>,
    %c0_27 = arith.constant 0 : index
    %c3 = arith.constant 3 : index
    %c0_28 = arith.constant 0 : index
    %c0_29 = arith.constant 0 : index
    %41 = vector.load %arg2[%c0_27, %c3, %c0_28, %c0_29] : memref<1x4x64x128xf32, #tpu.memory_space<vmem>>, vector<1x1x64x128xf32>
    %42 = vector.shape_cast %41 : vector<1x1x64x128xf32> to vector<64x128xf32>
    %43 = vector.broadcast %0 : vector<1x128xf32> to vector<64x128xf32>
    %44 = arith.mulf %42, %43 : vector<64x128xf32>
    %45 = vector.broadcast %1 : vector<1x128xf32> to vector<64x128xf32>
    %46 = arith.addf %44, %45 : vector<64x128xf32>
    %cst_30 = arith.constant 2.000000e-01 : f32
    %47 = vector.broadcast %cst_30 : f32 to vector<64x128xf32>
    %48 = arith.mulf %47, %46 : vector<64x128xf32>
    %49 = arith.maximumf %46, %48 : vector<64x128xf32>
    %50 = arith.truncf %49 : vector<64x128xf32> to vector<64x128xbf16>
    %c0_31 = arith.constant 0 : index
    %c3_32 = arith.constant 3 : index
    %c0_33 = arith.constant 0 : index
    %c0_34 = arith.constant 0 : index
    %51 = vector.load %arg5[%c0_31, %c3_32, %c0_33, %c0_34] : memref<1x4x64x128xbf16, #tpu.memory_space<vmem>>, vector<1x1x64x128xbf16>
    %52 = vector.shape_cast %51 : vector<1x1x64x128xbf16> to vector<64x128xbf16>
    %53 = vector.shape_cast %50 : vector<64x128xbf16> to vector<1x1x64x128xbf16>
    tpu.vector_store %arg5[%c0_31, %c3_32, %c0_33, %c0_34], %53 {strides = array<i32>} : memref<1x4x64x128xbf16, #tpu.memory_space<vmem>>, vector<1x1x64x128xbf16>,
    return
  }
  func.func @transform_0(%arg0: i32, %arg1: i32) -> (i32, i32, i32, i32) {
    %c0_i32 = arith.constant 0 : i32
    %c0_i32_0 = arith.constant 0 : i32
    %c0_i32_1 = arith.constant 0 : i32
    return %arg0, %c0_i32, %arg1, %c0_i32_0 : i32, i32, i32, i32
  }
  func.func @transform_1(%arg0: i32, %arg1: i32) -> (i32, i32) {
    %c0_i32 = arith.constant 0 : i32
    %c0_i32_0 = arith.constant 0 : i32
    %c0_i32_1 = arith.constant 0 : i32
    return %c0_i32, %c0_i32_0 : i32, i32
  }
  func.func @transform_2(%arg0: i32, %arg1: i32) -> (i32, i32) {
    %c0_i32 = arith.constant 0 : i32
    %c0_i32_0 = arith.constant 0 : i32
    %c0_i32_1 = arith.constant 0 : i32
    return %c0_i32, %c0_i32_0 : i32, i32
  }
  func.func @transform_3(%arg0: i32, %arg1: i32) -> (i32, i32, i32, i32) {
    %c0_i32 = arith.constant 0 : i32
    %c0_i32_0 = arith.constant 0 : i32
    %c0_i32_1 = arith.constant 0 : i32
    return %arg0, %c0_i32, %arg1, %c0_i32_0 : i32, i32, i32, i32
  }
}

module attributes {stable_mosaic.version = 11 : i64} {
  func.func @kernel(%arg0: i32, %arg1: i32, %arg2: memref<1x4x64x512xbf16, #tpu.memory_space<vmem>>, %arg3: memref<4x512x128xbf16, #tpu.memory_space<vmem>>, %arg4: memref<1x128xf32, #tpu.memory_space<vmem>>, %arg5: memref<1x4x64x128xf32, #tpu.memory_space<vmem>>, %arg6: memref<1x1x1x128xf32, #tpu.memory_space<vmem>>, %arg7: memref<1x1x1x128xf32, #tpu.memory_space<vmem>>) attributes {dimension_semantics = [#tpu.dimension_semantics<parallel>, #tpu.dimension_semantics<parallel>], iteration_bounds = array<i64: 2, 1>, scalar_prefetch = 0 : i64, scratch_operands = 0 : i64, tpu.core_type = #tpu.core_type<tc>, window_params = [{transform_indices = @transform_0, window_bounds = array<i64: 1, 4, 64, 512>}, {pipeline_mode = #tpu.pipeline_mode<synchronous>, transform_indices = @transform_1, window_bounds = array<i64: 4, 512, 128>}, {pipeline_mode = #tpu.pipeline_mode<synchronous>, transform_indices = @transform_2, window_bounds = array<i64: 1, 128>}, {transform_indices = @transform_3, window_bounds = array<i64: 1, 4, 64, 128>}, {transform_indices = @transform_4, window_bounds = array<i64: 1, 1, 1, 128>}, {transform_indices = @transform_5, window_bounds = array<i64: 1, 1, 1, 128>}]} {
    %c0 = arith.constant 0 : index
    %c0_0 = arith.constant 0 : index
    %0 = vector.load %arg4[%c0, %c0_0] : memref<1x128xf32, #tpu.memory_space<vmem>>, vector<1x128xf32>
    %cst = arith.constant 0.000000e+00 : f32
    %1 = vector.broadcast %cst : f32 to vector<1x128xf32>
    %cst_1 = arith.constant 0.000000e+00 : f32
    %2 = vector.broadcast %cst_1 : f32 to vector<1x128xf32>
    %c0_2 = arith.constant 0 : index
    %c0_3 = arith.constant 0 : index
    %c0_4 = arith.constant 0 : index
    %c0_5 = arith.constant 0 : index
    %3 = vector.load %arg2[%c0_2, %c0_3, %c0_4, %c0_5] : memref<1x4x64x512xbf16, #tpu.memory_space<vmem>>, vector<1x1x64x512xbf16>
    %4 = vector.shape_cast %3 : vector<1x1x64x512xbf16> to vector<64x512xbf16>
    %c0_6 = arith.constant 0 : index
    %c0_7 = arith.constant 0 : index
    %c0_8 = arith.constant 0 : index
    %5 = vector.load %arg3[%c0_6, %c0_7, %c0_8] : memref<4x512x128xbf16, #tpu.memory_space<vmem>>, vector<1x512x128xbf16>
    %6 = vector.shape_cast %5 : vector<1x512x128xbf16> to vector<512x128xbf16>
    %cst_9 = arith.constant dense<0.000000e+00> : vector<64x128xf32>
    %7 = tpu.matmul %4, %6, %cst_9 {dimension_numbers = #tpu.dot_dimension_numbers<[1], [0], [0], [1], [0, 0, 1, 1], [], []>} : vector<64x512xbf16>, vector<512x128xbf16>, vector<64x128xf32> -> vector<64x128xf32>
    %8 = vector.broadcast %0 : vector<1x128xf32> to vector<64x128xf32>
    %9 = arith.addf %7, %8 : vector<64x128xf32>
    %c0_10 = arith.constant 0 : index
    %c0_11 = arith.constant 0 : index
    %c0_12 = arith.constant 0 : index
    %c0_13 = arith.constant 0 : index
    %10 = vector.load %arg5[%c0_10, %c0_11, %c0_12, %c0_13] : memref<1x4x64x128xf32, #tpu.memory_space<vmem>>, vector<1x1x64x128xf32>
    %11 = vector.shape_cast %10 : vector<1x1x64x128xf32> to vector<64x128xf32>
    %12 = vector.shape_cast %9 : vector<64x128xf32> to vector<1x1x64x128xf32>
    tpu.vector_store %arg5[%c0_10, %c0_11, %c0_12, %c0_13], %12 {strides = array<i32>} : memref<1x4x64x128xf32, #tpu.memory_space<vmem>>, vector<1x1x64x128xf32>,
    %cst_14 = arith.constant dense<0.000000e+00> : vector<128xf32>
    %13 = vector.multi_reduction <add>, %9, %cst_14 [0] : vector<64x128xf32> to vector<128xf32>
    %14 = vector.shape_cast %13 : vector<128xf32> to vector<1x128xf32>
    %15 = arith.addf %1, %14 : vector<1x128xf32>
    %16 = arith.mulf %9, %9 : vector<64x128xf32>
    %cst_15 = arith.constant dense<0.000000e+00> : vector<128xf32>
    %17 = vector.multi_reduction <add>, %16, %cst_15 [0] : vector<64x128xf32> to vector<128xf32>
    %18 = vector.shape_cast %17 : vector<128xf32> to vector<1x128xf32>
    %19 = arith.addf %2, %18 : vector<1x128xf32>
    %c0_16 = arith.constant 0 : index
    %c1 = arith.constant 1 : index
    %c0_17 = arith.constant 0 : index
    %c0_18 = arith.constant 0 : index
    %20 = vector.load %arg2[%c0_16, %c1, %c0_17, %c0_18] : memref<1x4x64x512xbf16, #tpu.memory_space<vmem>>, vector<1x1x64x512xbf16>
    %21 = vector.shape_cast %20 : vector<1x1x64x512xbf16> to vector<64x512xbf16>
    %c1_19 = arith.constant 1 : index
    %c0_20 = arith.constant 0 : index
    %c0_21 = arith.constant 0 : index
    %22 = vector.load %arg3[%c1_19, %c0_20, %c0_21] : memref<4x512x128xbf16, #tpu.memory_space<vmem>>, vector<1x512x128xbf16>
    %23 = vector.shape_cast %22 : vector<1x512x128xbf16> to vector<512x128xbf16>
    %cst_22 = arith.constant dense<0.000000e+00> : vector<64x128xf32>
    %24 = tpu.matmul %21, %23, %cst_22 {dimension_numbers = #tpu.dot_dimension_numbers<[1], [0], [0], [1], [0, 0, 1, 1], [], []>} : vector<64x512xbf16>, vector<512x128xbf16>, vector<64x128xf32> -> vector<64x128xf32>
    %25 = vector.broadcast %0 : vector<1x128xf32> to vector<64x128xf32>
    %26 = arith.addf %24, %25 : vector<64x128xf32>
    %c0_23 = arith.constant 0 : index
    %c1_24 = arith.constant 1 : index
    %c0_25 = arith.constant 0 : index
    %c0_26 = arith.constant 0 : index
    %27 = vector.load %arg5[%c0_23, %c1_24, %c0_25, %c0_26] : memref<1x4x64x128xf32, #tpu.memory_space<vmem>>, vector<1x1x64x128xf32>
    %28 = vector.shape_cast %27 : vector<1x1x64x128xf32> to vector<64x128xf32>
    %29 = vector.shape_cast %26 : vector<64x128xf32> to vector<1x1x64x128xf32>
    tpu.vector_store %arg5[%c0_23, %c1_24, %c0_25, %c0_26], %29 {strides = array<i32>} : memref<1x4x64x128xf32, #tpu.memory_space<vmem>>, vector<1x1x64x128xf32>,
    %cst_27 = arith.constant dense<0.000000e+00> : vector<128xf32>
    %30 = vector.multi_reduction <add>, %26, %cst_27 [0] : vector<64x128xf32> to vector<128xf32>
    %31 = vector.shape_cast %30 : vector<128xf32> to vector<1x128xf32>
    %32 = arith.addf %15, %31 : vector<1x128xf32>
    %33 = arith.mulf %26, %26 : vector<64x128xf32>
    %cst_28 = arith.constant dense<0.000000e+00> : vector<128xf32>
    %34 = vector.multi_reduction <add>, %33, %cst_28 [0] : vector<64x128xf32> to vector<128xf32>
    %35 = vector.shape_cast %34 : vector<128xf32> to vector<1x128xf32>
    %36 = arith.addf %19, %35 : vector<1x128xf32>
    %c0_29 = arith.constant 0 : index
    %c2 = arith.constant 2 : index
    %c0_30 = arith.constant 0 : index
    %c0_31 = arith.constant 0 : index
    %37 = vector.load %arg2[%c0_29, %c2, %c0_30, %c0_31] : memref<1x4x64x512xbf16, #tpu.memory_space<vmem>>, vector<1x1x64x512xbf16>
    %38 = vector.shape_cast %37 : vector<1x1x64x512xbf16> to vector<64x512xbf16>
    %c2_32 = arith.constant 2 : index
    %c0_33 = arith.constant 0 : index
    %c0_34 = arith.constant 0 : index
    %39 = vector.load %arg3[%c2_32, %c0_33, %c0_34] : memref<4x512x128xbf16, #tpu.memory_space<vmem>>, vector<1x512x128xbf16>
    %40 = vector.shape_cast %39 : vector<1x512x128xbf16> to vector<512x128xbf16>
    %cst_35 = arith.constant dense<0.000000e+00> : vector<64x128xf32>
    %41 = tpu.matmul %38, %40, %cst_35 {dimension_numbers = #tpu.dot_dimension_numbers<[1], [0], [0], [1], [0, 0, 1, 1], [], []>} : vector<64x512xbf16>, vector<512x128xbf16>, vector<64x128xf32> -> vector<64x128xf32>
    %42 = vector.broadcast %0 : vector<1x128xf32> to vector<64x128xf32>
    %43 = arith.addf %41, %42 : vector<64x128xf32>
    %c0_36 = arith.constant 0 : index
    %c2_37 = arith.constant 2 : index
    %c0_38 = arith.constant 0 : index
    %c0_39 = arith.constant 0 : index
    %44 = vector.load %arg5[%c0_36, %c2_37, %c0_38, %c0_39] : memref<1x4x64x128xf32, #tpu.memory_space<vmem>>, vector<1x1x64x128xf32>
    %45 = vector.shape_cast %44 : vector<1x1x64x128xf32> to vector<64x128xf32>
    %46 = vector.shape_cast %43 : vector<64x128xf32> to vector<1x1x64x128xf32>
    tpu.vector_store %arg5[%c0_36, %c2_37, %c0_38, %c0_39], %46 {strides = array<i32>} : memref<1x4x64x128xf32, #tpu.memory_space<vmem>>, vector<1x1x64x128xf32>,
    %cst_40 = arith.constant dense<0.000000e+00> : vector<128xf32>
    %47 = vector.multi_reduction <add>, %43, %cst_40 [0] : vector<64x128xf32> to vector<128xf32>
    %48 = vector.shape_cast %47 : vector<128xf32> to vector<1x128xf32>
    %49 = arith.addf %32, %48 : vector<1x128xf32>
    %50 = arith.mulf %43, %43 : vector<64x128xf32>
    %cst_41 = arith.constant dense<0.000000e+00> : vector<128xf32>
    %51 = vector.multi_reduction <add>, %50, %cst_41 [0] : vector<64x128xf32> to vector<128xf32>
    %52 = vector.shape_cast %51 : vector<128xf32> to vector<1x128xf32>
    %53 = arith.addf %36, %52 : vector<1x128xf32>
    %c0_42 = arith.constant 0 : index
    %c3 = arith.constant 3 : index
    %c0_43 = arith.constant 0 : index
    %c0_44 = arith.constant 0 : index
    %54 = vector.load %arg2[%c0_42, %c3, %c0_43, %c0_44] : memref<1x4x64x512xbf16, #tpu.memory_space<vmem>>, vector<1x1x64x512xbf16>
    %55 = vector.shape_cast %54 : vector<1x1x64x512xbf16> to vector<64x512xbf16>
    %c3_45 = arith.constant 3 : index
    %c0_46 = arith.constant 0 : index
    %c0_47 = arith.constant 0 : index
    %56 = vector.load %arg3[%c3_45, %c0_46, %c0_47] : memref<4x512x128xbf16, #tpu.memory_space<vmem>>, vector<1x512x128xbf16>
    %57 = vector.shape_cast %56 : vector<1x512x128xbf16> to vector<512x128xbf16>
    %cst_48 = arith.constant dense<0.000000e+00> : vector<64x128xf32>
    %58 = tpu.matmul %55, %57, %cst_48 {dimension_numbers = #tpu.dot_dimension_numbers<[1], [0], [0], [1], [0, 0, 1, 1], [], []>} : vector<64x512xbf16>, vector<512x128xbf16>, vector<64x128xf32> -> vector<64x128xf32>
    %59 = vector.broadcast %0 : vector<1x128xf32> to vector<64x128xf32>
    %60 = arith.addf %58, %59 : vector<64x128xf32>
    %c0_49 = arith.constant 0 : index
    %c3_50 = arith.constant 3 : index
    %c0_51 = arith.constant 0 : index
    %c0_52 = arith.constant 0 : index
    %61 = vector.load %arg5[%c0_49, %c3_50, %c0_51, %c0_52] : memref<1x4x64x128xf32, #tpu.memory_space<vmem>>, vector<1x1x64x128xf32>
    %62 = vector.shape_cast %61 : vector<1x1x64x128xf32> to vector<64x128xf32>
    %63 = vector.shape_cast %60 : vector<64x128xf32> to vector<1x1x64x128xf32>
    tpu.vector_store %arg5[%c0_49, %c3_50, %c0_51, %c0_52], %63 {strides = array<i32>} : memref<1x4x64x128xf32, #tpu.memory_space<vmem>>, vector<1x1x64x128xf32>,
    %cst_53 = arith.constant dense<0.000000e+00> : vector<128xf32>
    %64 = vector.multi_reduction <add>, %60, %cst_53 [0] : vector<64x128xf32> to vector<128xf32>
    %65 = vector.shape_cast %64 : vector<128xf32> to vector<1x128xf32>
    %66 = arith.addf %49, %65 : vector<1x128xf32>
    %67 = arith.mulf %60, %60 : vector<64x128xf32>
    %cst_54 = arith.constant dense<0.000000e+00> : vector<128xf32>
    %68 = vector.multi_reduction <add>, %67, %cst_54 [0] : vector<64x128xf32> to vector<128xf32>
    %69 = vector.shape_cast %68 : vector<128xf32> to vector<1x128xf32>
    %70 = arith.addf %53, %69 : vector<1x128xf32>
    %c0_55 = arith.constant 0 : index
    %c0_56 = arith.constant 0 : index
    %c0_57 = arith.constant 0 : index
    %c0_58 = arith.constant 0 : index
    %71 = vector.load %arg6[%c0_55, %c0_56, %c0_57, %c0_58] : memref<1x1x1x128xf32, #tpu.memory_space<vmem>>, vector<1x1x1x128xf32>
    %72 = vector.shape_cast %71 : vector<1x1x1x128xf32> to vector<1x128xf32>
    %73 = vector.shape_cast %66 : vector<1x128xf32> to vector<1x1x1x128xf32>
    tpu.vector_store %arg6[%c0_55, %c0_56, %c0_57, %c0_58], %73 {strides = array<i32>} : memref<1x1x1x128xf32, #tpu.memory_space<vmem>>, vector<1x1x1x128xf32>,
    %c0_59 = arith.constant 0 : index
    %c0_60 = arith.constant 0 : index
    %c0_61 = arith.constant 0 : index
    %c0_62 = arith.constant 0 : index
    %74 = vector.load %arg7[%c0_59, %c0_60, %c0_61, %c0_62] : memref<1x1x1x128xf32, #tpu.memory_space<vmem>>, vector<1x1x1x128xf32>
    %75 = vector.shape_cast %74 : vector<1x1x1x128xf32> to vector<1x128xf32>
    %76 = vector.shape_cast %70 : vector<1x128xf32> to vector<1x1x1x128xf32>
    tpu.vector_store %arg7[%c0_59, %c0_60, %c0_61, %c0_62], %76 {strides = array<i32>} : memref<1x1x1x128xf32, #tpu.memory_space<vmem>>, vector<1x1x1x128xf32>,
    return
  }
  func.func @transform_0(%arg0: i32, %arg1: i32) -> (i32, i32, i32, i32) {
    %c0_i32 = arith.constant 0 : i32
    %c0_i32_0 = arith.constant 0 : i32
    %c0_i32_1 = arith.constant 0 : i32
    return %arg0, %c0_i32, %arg1, %c0_i32_0 : i32, i32, i32, i32
  }
  func.func @transform_1(%arg0: i32, %arg1: i32) -> (i32, i32, i32) {
    %c0_i32 = arith.constant 0 : i32
    %c0_i32_0 = arith.constant 0 : i32
    %c0_i32_1 = arith.constant 0 : i32
    %c0_i32_2 = arith.constant 0 : i32
    return %c0_i32, %c0_i32_0, %c0_i32_1 : i32, i32, i32
  }
  func.func @transform_2(%arg0: i32, %arg1: i32) -> (i32, i32) {
    %c0_i32 = arith.constant 0 : i32
    %c0_i32_0 = arith.constant 0 : i32
    %c0_i32_1 = arith.constant 0 : i32
    return %c0_i32, %c0_i32_0 : i32, i32
  }
  func.func @transform_3(%arg0: i32, %arg1: i32) -> (i32, i32, i32, i32) {
    %c0_i32 = arith.constant 0 : i32
    %c0_i32_0 = arith.constant 0 : i32
    %c0_i32_1 = arith.constant 0 : i32
    return %arg0, %c0_i32, %arg1, %c0_i32_0 : i32, i32, i32, i32
  }
  func.func @transform_4(%arg0: i32, %arg1: i32) -> (i32, i32, i32, i32) {
    %c0_i32 = arith.constant 0 : i32
    %c0_i32_0 = arith.constant 0 : i32
    %c0_i32_1 = arith.constant 0 : i32
    return %arg0, %arg1, %c0_i32, %c0_i32_0 : i32, i32, i32, i32
  }
  func.func @transform_5(%arg0: i32, %arg1: i32) -> (i32, i32, i32, i32) {
    %c0_i32 = arith.constant 0 : i32
    %c0_i32_0 = arith.constant 0 : i32
    %c0_i32_1 = arith.constant 0 : i32
    return %arg0, %arg1, %c0_i32, %c0_i32_0 : i32, i32, i32, i32
  }
}

module attributes {stable_mosaic.version = 11 : i64} {
  func.func @_conv3x3_tanh_kernel(%arg0: i32, %arg1: i32, %arg2: memref<1x256x1152xbf16, #tpu.memory_space<vmem>>, %arg3: memref<1152x128xbf16, #tpu.memory_space<vmem>>, %arg4: memref<1x128xf32, #tpu.memory_space<vmem>>, %arg5: memref<1x256x128xf32, #tpu.memory_space<vmem>>) attributes {dimension_semantics = [#tpu.dimension_semantics<parallel>, #tpu.dimension_semantics<parallel>], iteration_bounds = array<i64: 2, 1>, scalar_prefetch = 0 : i64, scratch_operands = 0 : i64, tpu.core_type = #tpu.core_type<tc>, window_params = [{transform_indices = @transform_0, window_bounds = array<i64: 1, 256, 1152>}, {pipeline_mode = #tpu.pipeline_mode<synchronous>, transform_indices = @transform_1, window_bounds = array<i64: 1152, 128>}, {pipeline_mode = #tpu.pipeline_mode<synchronous>, transform_indices = @transform_2, window_bounds = array<i64: 1, 128>}, {transform_indices = @transform_3, window_bounds = array<i64: 1, 256, 128>}]} {
    %c0 = arith.constant 0 : index
    %c0_0 = arith.constant 0 : index
    %c0_1 = arith.constant 0 : index
    %0 = vector.load %arg2[%c0, %c0_0, %c0_1] : memref<1x256x1152xbf16, #tpu.memory_space<vmem>>, vector<1x256x1152xbf16>
    %1 = vector.shape_cast %0 : vector<1x256x1152xbf16> to vector<256x1152xbf16>
    %c0_2 = arith.constant 0 : index
    %c0_3 = arith.constant 0 : index
    %2 = vector.load %arg3[%c0_2, %c0_3] : memref<1152x128xbf16, #tpu.memory_space<vmem>>, vector<1152x128xbf16>
    %cst = arith.constant dense<0.000000e+00> : vector<256x128xf32>
    %3 = tpu.matmul %1, %2, %cst {dimension_numbers = #tpu.dot_dimension_numbers<[1], [0], [0], [1], [0, 0, 1, 1], [], []>} : vector<256x1152xbf16>, vector<1152x128xbf16>, vector<256x128xf32> -> vector<256x128xf32>
    %c0_4 = arith.constant 0 : index
    %c0_5 = arith.constant 0 : index
    %4 = vector.load %arg4[%c0_4, %c0_5] : memref<1x128xf32, #tpu.memory_space<vmem>>, vector<1x128xf32>
    %5 = vector.broadcast %4 : vector<1x128xf32> to vector<256x128xf32>
    %6 = arith.addf %3, %5 : vector<256x128xf32>
    %7 = math.tanh %6 : vector<256x128xf32>
    %c0_6 = arith.constant 0 : index
    %c0_7 = arith.constant 0 : index
    %c0_8 = arith.constant 0 : index
    %8 = vector.load %arg5[%c0_6, %c0_7, %c0_8] : memref<1x256x128xf32, #tpu.memory_space<vmem>>, vector<1x256x128xf32>
    %9 = vector.shape_cast %8 : vector<1x256x128xf32> to vector<256x128xf32>
    %10 = vector.shape_cast %7 : vector<256x128xf32> to vector<1x256x128xf32>
    tpu.vector_store %arg5[%c0_6, %c0_7, %c0_8], %10 {strides = array<i32>} : memref<1x256x128xf32, #tpu.memory_space<vmem>>, vector<1x256x128xf32>,
    return
  }
  func.func @transform_0(%arg0: i32, %arg1: i32) -> (i32, i32, i32) {
    %c0_i32 = arith.constant 0 : i32
    %c0_i32_0 = arith.constant 0 : i32
    return %arg0, %arg1, %c0_i32 : i32, i32, i32
  }
  func.func @transform_1(%arg0: i32, %arg1: i32) -> (i32, i32) {
    %c0_i32 = arith.constant 0 : i32
    %c0_i32_0 = arith.constant 0 : i32
    %c0_i32_1 = arith.constant 0 : i32
    return %c0_i32, %c0_i32_0 : i32, i32
  }
  func.func @transform_2(%arg0: i32, %arg1: i32) -> (i32, i32) {
    %c0_i32 = arith.constant 0 : i32
    %c0_i32_0 = arith.constant 0 : i32
    %c0_i32_1 = arith.constant 0 : i32
    return %c0_i32, %c0_i32_0 : i32, i32
  }
  func.func @transform_3(%arg0: i32, %arg1: i32) -> (i32, i32, i32) {
    %c0_i32 = arith.constant 0 : i32
    %c0_i32_0 = arith.constant 0 : i32
    return %arg0, %arg1, %c0_i32 : i32, i32, i32
  }
}

</mosaic_0001>

<llo_original>
// kernel: generator_forward.8
$region0: #{generator_forward.8}
  #allocation0 [shape = 'u32[]', space=smem, size = 0x4, offset = 0x4, fixed_abs, tag = 'smem constant byte address 0x4 - core index']
  #allocation1 [shape = 'u32[144,128]{1,0:T(1,128)}', space=vmem, size = 0x12000, scoped, tag = 'internal scratch']
  %s0 = inlined_call_operand.vmem [shape: f32[2,4,16,128], index: 0, kind: input, shape index: {}]
  %s1 = inlined_call_operand.vmem [shape: f32[1,128], index: 1, kind: input, shape index: {}]
  %s2 = inlined_call_operand.vmem [shape: f32[1,128], index: 2, kind: input, shape index: {}]
  %s3 = inlined_call_operand.vmem [shape: bf16[2,4,16,128], index: 3, kind: output, shape index: {}]
  %s4 = sld [smem:[#allocation0]]
  $region45: #{generator_forward.8} parent=0
    _
  %s6 = ssub.s32 1, %s4
  %s7 = scalar_select 0, %s6, %s4
  loop: start=0, step=1, limit=4
  $region2: #{generator_forward.8} parent=0 // loop_pre_header
    _
  $region3: #{generator_forward.8} parent=0 // loop_header
    %s9 = sphi 0, %s13
    %p10 = scmp.ge.s32.totalorder %s9, 4
    %s16 = sphi 0, %s28
    %s17 = sphi 0, %s24
    %s18 = sphi 0, %s16
    %s19 = sphi 0, %s17
    %s20 = sphi 0, %s18
    %s21 = sphi 0, %s19
    %s33 = sphi 0, %s35
    %s36 = sphi 0, %s33
    %s37 = sphi 0, %s36
    %s53 = sphi 0, %s37
    %s57 = sphi 0, %s57
    %s59 = sphi 0, %s57
    %s60 = sphi 0, %s59
    %s74 = sphi 0, %s60
    %s78 = sphi 0, %s78
    %s80 = sphi 0, %s78
    %s81 = sphi 0, %s80
    %s95 = sphi 0, %s81
    %s103 = sphi 0, %s105
    %s106 = sphi 0, %s103
    %s107 = sphi 0, %s106
    %s123 = sphi 0, %s107
  $region4: #{generator_forward.8} parent=0 // loop_header_branch
    %12 = sbr.rel (%p10) target = $region8
  $region5: #{generator_forward.8} parent=0 // loop_body
    %s14 = ssub.s32 %s9, 1
    %s15 = ssub.s32 %s9, 2
    %s22 = sadd.s32 1, %s17
    %p23 = scmp.ge.s32.totalorder %s22, 1
    %s24 = scalar_select %p23, 0, %s22
    %s25 = sadd.s32 1, %s16
    %s26 = scalar_select %p23, %s25, %s16
    %p27 = scmp.ge.s32.totalorder %s26, 2
    %s28 = scalar_select %p27, 0, %s26
    %s29 = ssub.s32 %s16, %s28
    %s30 = ssub.s32 %s17, %s24
    %s31 = sor.u32 %s29, %s30
    %p32 = scmp.eq.s32.totalorder %s31, 0
    %s34 = sadd.s32 %s33, 1
    %s35 = scalar_select %p32, %s33, %s34
    %p38 = pneg %p32
    %p39 = scmp.eq.s32.totalorder %s9, 1
    %p40 = por %p38, %p39
    %p41 = scmp.ne.s32.totalorder %s33, %s36
    %p42 = scmp.eq.s32.totalorder %s9, 0
    %p43 = por %p41, %p42
    %p44 = scmp.ne.s32.totalorder %s33, %s36
    %p45 = scmp.eq.s32.totalorder %s14, 1
    %p46 = por %p44, %p45
    %p47 = scmp.ne.s32.totalorder %s36, %s37
    %p48 = scmp.eq.s32.totalorder %s14, 0
    %p49 = por %p47, %p48
    %p50 = scmp.ne.s32.totalorder %s36, %s37
    %p51 = scmp.eq.s32.totalorder %s15, 1
    %p52 = por %p50, %p51
    %p54 = scmp.ne.s32.totalorder %s37, %s53
    %p55 = scmp.eq.s32.totalorder %s15, 0
    %p56 = por %p54, %p55
    %s58 = sadd.s32 %s57, 1
    %p61 = scmp.eq.s32.totalorder %s9, 1
    %p62 = scmp.ne.s32.totalorder %s57, %s59
    %p63 = scmp.eq.s32.totalorder %s9, 0
    %p64 = por %p62, %p63
    %p65 = scmp.ne.s32.totalorder %s57, %s59
    %p66 = scmp.eq.s32.totalorder %s14, 1
    %p67 = por %p65, %p66
    %p68 = scmp.ne.s32.totalorder %s59, %s60
    %p69 = scmp.eq.s32.totalorder %s14, 0
    %p70 = por %p68, %p69
    %p71 = scmp.ne.s32.totalorder %s59, %s60
    %p72 = scmp.eq.s32.totalorder %s15, 1
    %p73 = por %p71, %p72
    %p75 = scmp.ne.s32.totalorder %s60, %s74
    %p76 = scmp.eq.s32.totalorder %s15, 0
    %p77 = por %p75, %p76
    %s79 = sadd.s32 %s78, 1
    %p82 = scmp.eq.s32.totalorder %s9, 1
    %p83 = scmp.ne.s32.totalorder %s78, %s80
    %p84 = scmp.eq.s32.totalorder %s9, 0
    %p85 = por %p83, %p84
    %p86 = scmp.ne.s32.totalorder %s78, %s80
    %p87 = scmp.eq.s32.totalorder %s14, 1
    %p88 = por %p86, %p87
    %p89 = scmp.ne.s32.totalorder %s80, %s81
    %p90 = scmp.eq.s32.totalorder %s14, 0
    %p91 = por %p89, %p90
    %p92 = scmp.ne.s32.totalorder %s80, %s81
    %p93 = scmp.eq.s32.totalorder %s15, 1
    %p94 = por %p92, %p93
    %p96 = scmp.ne.s32.totalorder %s81, %s95
    %p97 = scmp.eq.s32.totalorder %s15, 0
    %p98 = por %p96, %p97
    %s99 = ssub.s32 %s16, %s28
    %s100 = ssub.s32 %s17, %s24
    %s101 = sor.u32 %s99, %s100
    %p102 = scmp.eq.s32.totalorder %s101, 0
    %s104 = sadd.s32 %s103, 1
    %s105 = scalar_select %p102, %s103, %s104
    %p108 = pneg %p102
    %p109 = scmp.eq.s32.totalorder %s9, 1
    %p110 = por %p108, %p109
    %p111 = scmp.ne.s32.totalorder %s103, %s106
    %p112 = scmp.eq.s32.totalorder %s9, 0
    %p113 = por %p111, %p112
    %p114 = scmp.ne.s32.totalorder %s103, %s106
    %p115 = scmp.eq.s32.totalorder %s14, 1
    %p116 = por %p114, %p115
    %p117 = scmp.ne.s32.totalorder %s106, %s107
    %p118 = scmp.eq.s32.totalorder %s14, 0
    %p119 = por %p117, %p118
    %p120 = scmp.ne.s32.totalorder %s106, %s107
    %p121 = scmp.eq.s32.totalorder %s15, 1
    %p122 = por %p120, %p121
    %p124 = scmp.ne.s32.totalorder %s107, %s123
    %p125 = scmp.eq.s32.totalorder %s15, 0
    %p126 = por %p124, %p125
    %p127 = scmp.le.s32.totalorder 1, %s9
    %p128 = scmp.lt.s32.totalorder %s9, 3
    %p129 = pnand %p127, %p128
    %p130 = pneg %p129
    // Predicated region
    $region9: #{generator_forward.8} parent=5 // pred_check
      _
    $region10: #{generator_forward.8} parent=5 // pred_check_branch
      %132 = sbr.rel (%p129) target = $region12
    $region11: #{generator_forward.8} parent=5 // pred_region
      %s133 = ssub.s32 %s9, 1
      // Predicated region
      $region13: #{generator_forward.8} parent=11 // pred_check
        %p134 = pneg %p70
      $region14: #{generator_forward.8} parent=11 // pred_check_branch
        %136 = sbr.rel (%p134) target = $region16
      $region15: #{generator_forward.8} parent=11 // pred_region
        _
      $region16: #{generator_forward.8} parent=11 // pred_fallthru
        _
      // Predicated region
      $region17: #{generator_forward.8} parent=11 // pred_check
        %p137 = pneg %p91
      $region18: #{generator_forward.8} parent=11 // pred_check_branch
        %139 = sbr.rel (%p137) target = $region20
      $region19: #{generator_forward.8} parent=11 // pred_region
        _
      $region20: #{generator_forward.8} parent=11 // pred_fallthru
        _
    $region12: #{generator_forward.8} parent=5 // pred_fallthru
      _
    %p140 = scmp.lt.s32.totalorder %s9, 2
    // Predicated region
    $region21: #{generator_forward.8} parent=5 // pred_check
      %p141 = pneg %p140
    $region22: #{generator_forward.8} parent=5 // pred_check_branch
      %143 = sbr.rel (%p141) target = $region24
    $region23: #{generator_forward.8} parent=5 // pred_region
      // Predicated region
      $region25: #{generator_forward.8} parent=23 // pred_check
        %p144 = pneg %p43
      $region26: #{generator_forward.8} parent=23 // pred_check_branch
        %146 = sbr.rel (%p144) target = $region28
      $region27: #{generator_forward.8} parent=23 // pred_region
        %s147 = smul.u32 2, %s17
        %p148 = scmp.lt.s32.totalorder %s16, 1
        %s149 = scalar_select %p148, %s16, 1
        %p150 = scmp.lt.s32.totalorder %s147, 1
        %s151 = scalar_select %p150, %s147, 1
        %s152 = smul.addr %s149, 8
        %s153 = sadd.s32 %s151, %s152
        %s154 = smul.addr %s153, 8
        %s155 = scalar_lea.vmem %s0, %s154
        %s156 = smul.u32 2, %s17
      $region28: #{generator_forward.8} parent=23 // pred_fallthru
        _
    $region24: #{generator_forward.8} parent=5 // pred_fallthru
      _
    %p157 = scmp.le.s32.totalorder 1, %s9
    %p158 = scmp.lt.s32.totalorder %s9, 3
    %p159 = pnand %p157, %p158
    %p160 = pneg %p159
    // Predicated region
    $region29: #{generator_forward.8} parent=5 // pred_check
      _
    $region30: #{generator_forward.8} parent=5 // pred_check_branch
      %162 = sbr.rel (%p159) target = $region32
    $region31: #{generator_forward.8} parent=5 // pred_region
      %s163 = ssub.s32 %s9, 1
      %s164 = smul.u32 2, %s19
      %p165 = scmp.lt.s32.totalorder %s18, 1
      %s166 = scalar_select %p165, %s18, 1
      %p167 = scmp.lt.s32.totalorder %s164, 1
      %s168 = scalar_select %p167, %s164, 1
      %s169 = smul.addr %s166, 8
      %s170 = sadd.s32 %s168, %s169
      %s171 = smul.addr %s170, 8
      %s172 = scalar_lea.vmem %s0, %s171
      %p173 = pneg %p49
      %p174 = pneg %p46
      %p175 = pneg %p70
      %p176 = pneg %p67
      %p177 = pneg %p91
      %p178 = pneg %p88
      %p179 = pneg %p119
      %p180 = pneg %p116
      %s181 = smul.u32 2, %s19
      %p182 = scmp.lt.s32.totalorder %s18, 1
      %s183 = scalar_select %p182, %s18, 1
      %p184 = scmp.lt.s32.totalorder %s181, 1
      %s185 = scalar_select %p184, %s181, 1
      %s186 = smul.addr %s183, 8
      %s187 = sadd.s32 %s185, %s186
      %s188 = smul.addr %s187, 4
      %s189 = scalar_lea.vmem %s3, %s188
      %s190 = smul.u32 2, %s19
      %p191 = scmp.lt.s32.totalorder %s18, 1
      %s192 = scalar_select %p191, %s18, 1
      %p193 = scmp.lt.s32.totalorder %s190, 1
      %s194 = scalar_select %p193, %s190, 1
      %s195 = smul.addr %s192, 8
      %s196 = sadd.s32 %s194, %s195
      %s197 = smul.addr %s196, 8
      %s198 = scalar_lea.vmem %s0, %s197
      %s199 = smul.u32 2, %s19
      %s200 = smul.u32 2, %s19
      %p201 = scmp.lt.s32.totalorder %s18, 1
      %s202 = scalar_select %p201, %s18, 1
      %p203 = scmp.lt.s32.totalorder %s200, 1
      %s204 = scalar_select %p203, %s200, 1
      %s205 = smul.addr %s202, 8
      %s206 = sadd.s32 %s204, %s205
      %s207 = smul.addr %s206, 4
      %s208 = scalar_lea.vmem %s3, %s207
      %s209 = smul.u32 2, %s19
      %v210 = vld [vmem:[%s1] sm:$0x1]
      %v211 = vld [vmem:[%s2] sm:$0x1]
      %v212 = vld [vmem:[%s198] sm:$0xff]
      %v213 = vld [vmem:[%s198 + $0x8] sm:$0xff]
      %v215 = vlaneseq
      %v216 = vshrl.u32 %v215, 7
      %v217 = vsub.s32 0, %v216
      %v218 = vrot.slane %v210, %v217
      %v220 = vmul.f32 %v212, %v218
      %v221 = vmul.f32 %v213, %v218
      %v223 = vlaneseq
      %v224 = vshrl.u32 %v223, 7
      %v225 = vsub.s32 0, %v224
      %v226 = vrot.slane %v211, %v225
      %v228 = vadd.f32 %v220, %v226
      %v229 = vadd.f32 %v221, %v226
      %v230 = vmul.f32 %v228, 0.2
      %v231 = vmul.f32 %v229, 0.2
      %v232 = vmax.f32 %v228, %v230
      %v233 = vmax.f32 %v229, %v231
      %v234 = vpack.c.bf16 %v233, %v232
      %v236 = vunpack.c.l.b16 %v234
      %v237 = vunpack.c.h.b16 %v234
      %v238 = vpack.c.b16 %v236, %v236
      %v239 = vpack.c.b16 %v237, %v237
      %242 = vst [vmem:[%s208] sm:$0xf] %v238
      %243 = vst [vmem:[%s208 + $0x4] sm:$0xf] %v239
      %s244 = scalar_lea.vmem %s198, 16
      %v245 = vld [vmem:[%s244] sm:$0xff]
      %v246 = vld [vmem:[%s244 + $0x8] sm:$0xff]
      %v247 = vmul.f32 %v245, %v218
      %v248 = vmul.f32 %v246, %v218
      %v249 = vadd.f32 %v247, %v226
      %v250 = vadd.f32 %v248, %v226
      %v251 = vmul.f32 %v249, 0.2
      %v252 = vmul.f32 %v250, 0.2
      %v253 = vmax.f32 %v249, %v251
      %v254 = vmax.f32 %v250, %v252
      %v255 = vpack.c.bf16 %v254, %v253
      %v257 = vunpack.c.l.b16 %v255
      %v258 = vunpack.c.h.b16 %v255
      %v259 = vpack.c.b16 %v257, %v257
      %v260 = vpack.c.b16 %v258, %v258
      %s263 = scalar_lea.vmem %s208, 8
      %264 = vst [vmem:[%s263] sm:$0xf] %v259
      %265 = vst [vmem:[%s263 + $0x4] sm:$0xf] %v260
      %s266 = scalar_lea.vmem %s198, 32
      %v267 = vld [vmem:[%s266] sm:$0xff]
      %v268 = vld [vmem:[%s266 + $0x8] sm:$0xff]
      %v269 = vmul.f32 %v267, %v218
      %v270 = vmul.f32 %v268, %v218
      %v271 = vadd.f32 %v269, %v226
      %v272 = vadd.f32 %v270, %v226
      %v273 = vmul.f32 %v271, 0.2
      %v274 = vmul.f32 %v272, 0.2
      %v275 = vmax.f32 %v271, %v273
      %v276 = vmax.f32 %v272, %v274
      %v277 = vpack.c.bf16 %v276, %v275
      %v279 = vunpack.c.l.b16 %v277
      %v280 = vunpack.c.h.b16 %v277
      %v281 = vpack.c.b16 %v279, %v279
      %v282 = vpack.c.b16 %v280, %v280
      %s285 = scalar_lea.vmem %s208, 16
      %286 = vst [vmem:[%s285] sm:$0xf] %v281
      %287 = vst [vmem:[%s285 + $0x4] sm:$0xf] %v282
      %s288 = scalar_lea.vmem %s198, 48
      %v289 = vld [vmem:[%s288] sm:$0xff]
      %v290 = vld [vmem:[%s288 + $0x8] sm:$0xff]
      %v291 = vmul.f32 %v289, %v218
      %v292 = vmul.f32 %v290, %v218
      %v293 = vadd.f32 %v291, %v226
      %v294 = vadd.f32 %v292, %v226
      %v295 = vmul.f32 %v293, 0.2
      %v296 = vmul.f32 %v294, 0.2
      %v297 = vmax.f32 %v293, %v295
      %v298 = vmax.f32 %v294, %v296
      %v299 = vpack.c.bf16 %v298, %v297
      %v301 = vunpack.c.l.b16 %v299
      %v302 = vunpack.c.h.b16 %v299
      %v303 = vpack.c.b16 %v301, %v301
      %v304 = vpack.c.b16 %v302, %v302
      %s307 = scalar_lea.vmem %s208, 24
      %308 = vst [vmem:[%s307] sm:$0xf] %v303
      %309 = vst [vmem:[%s307 + $0x4] sm:$0xf] %v304
      %s310 = smul.u32 2, %s19
      %p311 = scmp.lt.s32.totalorder %s18, 1
      %s312 = scalar_select %p311, %s18, 1
      %p313 = scmp.lt.s32.totalorder %s310, 1
      %s314 = scalar_select %p313, %s310, 1
      %s315 = smul.addr %s312, 8
      %s316 = sadd.s32 %s314, %s315
      %s317 = smul.addr %s316, 4
      %s318 = scalar_lea.vmem %s3, %s317
      // Predicated region
      $region33: #{generator_forward.8} parent=31 // pred_check
        %p319 = pneg %p116
      $region34: #{generator_forward.8} parent=31 // pred_check_branch
        %321 = sbr.rel (%p319) target = $region36
      $region35: #{generator_forward.8} parent=31 // pred_region
        %s322 = smul.u32 2, %s19
      $region36: #{generator_forward.8} parent=31 // pred_fallthru
        _
    $region32: #{generator_forward.8} parent=5 // pred_fallthru
      _
    %p323 = scmp.le.s32.totalorder 2, %s9
    // Predicated region
    $region37: #{generator_forward.8} parent=5 // pred_check
      %p324 = pneg %p323
    $region38: #{generator_forward.8} parent=5 // pred_check_branch
      %326 = sbr.rel (%p324) target = $region40
    $region39: #{generator_forward.8} parent=5 // pred_region
      %s327 = ssub.s32 %s9, 2
      // Predicated region
      $region41: #{generator_forward.8} parent=39 // pred_check
        %p328 = pneg %p122
      $region42: #{generator_forward.8} parent=39 // pred_check_branch
        %330 = sbr.rel (%p328) target = $region44
      $region43: #{generator_forward.8} parent=39 // pred_region
        %s331 = smul.u32 2, %s21
        %p332 = scmp.lt.s32.totalorder %s20, 1
        %s333 = scalar_select %p332, %s20, 1
        %p334 = scmp.lt.s32.totalorder %s331, 1
        %s335 = scalar_select %p334, %s331, 1
        %s336 = smul.addr %s333, 8
        %s337 = sadd.s32 %s335, %s336
        %s338 = smul.addr %s337, 4
        %s339 = scalar_lea.vmem %s3, %s338
      $region44: #{generator_forward.8} parent=39 // pred_fallthru
        _
    $region40: #{generator_forward.8} parent=5 // pred_fallthru
      _
  $region6: #{generator_forward.8} parent=0 // loop_footer
    %s13 = sadd.s32 1, %s9
  $region7: #{generator_forward.8} parent=0 // loop_footer_branch
    %8 = sbr.rel target = $region3
  $region8: #{generator_forward.8} parent=0 // loop_exit
    _

// kernel: generator_forward.6
$region0: #{generator_forward.6}
  #allocation0 [shape = 'u32[]', space=smem, size = 0x4, offset = 0x4, fixed_abs, tag = 'smem constant byte address 0x4 - core index']
  #allocation1 [shape = 'u32[144,128]{1,0:T(1,128)}', space=vmem, size = 0x12000, scoped, tag = 'internal scratch']
  %s0 = inlined_call_operand.vmem [shape: f32[2,32], index: 0, kind: input, shape index: {}]
  %s1 = inlined_call_operand.hbm [shape: f32[32,4096], index: 1, kind: input, shape index: {}]
  %s2 = inlined_call_operand.hbm [shape: f32[1,4096], index: 2, kind: input, shape index: {}]
  %s3 = inlined_call_operand.vmem [shape: f32[2,4096], index: 3, kind: output, shape index: {}]
  %s4 = sld [smem:[#allocation0]]
  $region30: #{generator_forward.6} parent=0
    _
  %s6 = ssub.s32 1, %s4
  %s7 = scalar_select 0, %s6, %s4
  $region1: #{generator_forward.6} parent=0
    #allocation2 [shape = 'u8[524288]{0}', space=vmem, size = 0x80000, scoped, tag = 'input window, operand 1, single buffered']
    #allocation3 [shape = 's32[1]{0}', space=sflag, size = 0x4, scoped, tag = 'scoped memory for generator_forward.6']
    #allocation4 [shape = 'u8[16384]{0}', space=vmem, size = 0x4000, scoped, tag = 'input window, operand 2, single buffered']
    #allocation5 [shape = 's32[1]{0}', space=sflag, size = 0x4, scoped, tag = 'scoped memory for generator_forward.6']
    %8 = vsyncpa [#allocation3], 0
    %9 = vsyncpa [#allocation5], 0
    // Predicated region
    $region2: #{generator_forward.6} parent=1 // pred_check
      _
    $region3: #{generator_forward.6} parent=1 // pred_check_branch
      %11 = sbr.rel (0) target = $region5
    $region4: #{generator_forward.6} parent=1 // pred_region
      _
    $region5: #{generator_forward.6} parent=1 // pred_fallthru
      _
    // Predicated region
    $region6: #{generator_forward.6} parent=1 // pred_check
      _
    $region7: #{generator_forward.6} parent=1 // pred_check_branch
      %13 = sbr.rel (0) target = $region9
    $region8: #{generator_forward.6} parent=1 // pred_region
      %s15 = ssub.s32 16384, 16384
      %16 = vsyncadd [#allocation3], %s15
      %s17 = sshll.u32 [#allocation2], 4
      %s18 = int_to_ptr.vmem [resolvable:$true] %s17
      %23 = dma.hbm_to_vmem [thread:$0]  %s1, 16384, %s18, [#allocation3], 4096, 4096, 256
    $region9: #{generator_forward.6} parent=1 // pred_fallthru
      _
    // Predicated region
    $region10: #{generator_forward.6} parent=1 // pred_check
      _
    $region11: #{generator_forward.6} parent=1 // pred_check_branch
      %25 = sbr.rel (0) target = $region13
    $region12: #{generator_forward.6} parent=1 // pred_region
      %s27 = ssub.s32 512, 512
      %28 = vsyncadd [#allocation5], %s27
      %s30 = sshll.u32 [#allocation4], 4
      %s31 = int_to_ptr.vmem [resolvable:$true] %s30
      %33 = dma.hbm_to_vmem [thread:$0]  %s2, 512, %s31, [#allocation5]
    $region13: #{generator_forward.6} parent=1 // pred_fallthru
      _
    // Predicated region
    $region14: #{generator_forward.6} parent=1 // pred_check
      _
    $region15: #{generator_forward.6} parent=1 // pred_check_branch
      %35 = sbr.rel (0) target = $region17
    $region16: #{generator_forward.6} parent=1 // pred_region
      %36 = dma.done [#allocation3], 16384
    $region17: #{generator_forward.6} parent=1 // pred_fallthru
      _
    // Predicated region
    $region18: #{generator_forward.6} parent=1 // pred_check
      _
    $region19: #{generator_forward.6} parent=1 // pred_check_branch
      %38 = sbr.rel (0) target = $region21
    $region20: #{generator_forward.6} parent=1 // pred_region
      %39 = dma.done [#allocation5], 512
    $region21: #{generator_forward.6} parent=1 // pred_fallthru
      _
    %v40 = vld [vmem:[%s0] sm:$0x3]
    %v41 = vld [vmem:[#allocation2] sm:$0xff]
    %v42 = vld [vmem:[#allocation2 + $0x8] sm:$0xff]
    %v43 = vld [vmem:[#allocation2 + $0x10] sm:$0xff]
    %v44 = vld [vmem:[#allocation2 + $0x18] sm:$0xff]
    %v45 = vld [vmem:[#allocation2 + $0x20] sm:$0xff]
    %v46 = vld [vmem:[#allocation2 + $0x28] sm:$0xff]
    %v47 = vld [vmem:[#allocation2 + $0x30] sm:$0xff]
    %v48 = vld [vmem:[#allocation2 + $0x38] sm:$0xff]
    %v49 = vld [vmem:[#allocation2 + $0x40] sm:$0xff]
    %v50 = vld [vmem:[#allocation2 + $0x48] sm:$0xff]
    %v51 = vld [vmem:[#allocation2 + $0x50] sm:$0xff]
    %v52 = vld [vmem:[#allocation2 + $0x58] sm:$0xff]
    %v53 = vld [vmem:[#allocation2 + $0x60] sm:$0xff]
    %v54 = vld [vmem:[#allocation2 + $0x68] sm:$0xff]
    %v55 = vld [vmem:[#allocation2 + $0x70] sm:$0xff]
    %v56 = vld [vmem:[#allocation2 + $0x78] sm:$0xff]
    %v57 = vld [vmem:[#allocation2 + $0x80] sm:$0xff]
    %v58 = vld [vmem:[#allocation2 + $0x88] sm:$0xff]
    %v59 = vld [vmem:[#allocation2 + $0x90] sm:$0xff]
    %v60 = vld [vmem:[#allocation2 + $0x98] sm:$0xff]
    %v61 = vld [vmem:[#allocation2 + $0xa0] sm:$0xff]
    %v62 = vld [vmem:[#allocation2 + $0xa8] sm:$0xff]
    %v63 = vld [vmem:[#allocation2 + $0xb0] sm:$0xff]
    %v64 = vld [vmem:[#allocation2 + $0xb8] sm:$0xff]
    %v65 = vld [vmem:[#allocation2 + $0xc0] sm:$0xff]
    %v66 = vld [vmem:[#allocation2 + $0xc8] sm:$0xff]
    %v67 = vld [vmem:[#allocation2 + $0xd0] sm:$0xff]
    %v68 = vld [vmem:[#allocation2 + $0xd8] sm:$0xff]
    %v69 = vld [vmem:[#allocation2 + $0xe0] sm:$0xff]
    %v70 = vld [vmem:[#allocation2 + $0xe8] sm:$0xff]
    %v71 = vld [vmem:[#allocation2 + $0xf0] sm:$0xff]
    %v72 = vld [vmem:[#allocation2 + $0xf8] sm:$0xff]
    %v73 = vld [vmem:[#allocation2 + $0x100] sm:$0xff]
    %v74 = vld [vmem:[#allocation2 + $0x108] sm:$0xff]
    %v75 = vld [vmem:[#allocation2 + $0x110] sm:$0xff]
    %v76 = vld [vmem:[#allocation2 + $0x118] sm:$0xff]
    %v77 = vld [vmem:[#allocation2 + $0x120] sm:$0xff]
    %v78 = vld [vmem:[#allocation2 + $0x128] sm:$0xff]
    %v79 = vld [vmem:[#allocation2 + $0x130] sm:$0xff]
    %v80 = vld [vmem:[#allocation2 + $0x138] sm:$0xff]
    %v81 = vld [vmem:[#allocation2 + $0x140] sm:$0xff]
    %v82 = vld [vmem:[#allocation2 + $0x148] sm:$0xff]
    %v83 = vld [vmem:[#allocation2 + $0x150] sm:$0xff]
    %v84 = vld [vmem:[#allocation2 + $0x158] sm:$0xff]
    %v85 = vld [vmem:[#allocation2 + $0x160] sm:$0xff]
    %v86 = vld [vmem:[#allocation2 + $0x168] sm:$0xff]
    %v87 = vld [vmem:[#allocation2 + $0x170] sm:$0xff]
    %v88 = vld [vmem:[#allocation2 + $0x178] sm:$0xff]
    %v89 = vld [vmem:[#allocation2 + $0x180] sm:$0xff]
    %v90 = vld [vmem:[#allocation2 + $0x188] sm:$0xff]
    %v91 = vld [vmem:[#allocation2 + $0x190] sm:$0xff]
    %v92 = vld [vmem:[#allocation2 + $0x198] sm:$0xff]
    %v93 = vld [vmem:[#allocation2 + $0x1a0] sm:$0xff]
    %v94 = vld [vmem:[#allocation2 + $0x1a8] sm:$0xff]
    %v95 = vld [vmem:[#allocation2 + $0x1b0] sm:$0xff]
    %v96 = vld [vmem:[#allocation2 + $0x1b8] sm:$0xff]
    %v97 = vld [vmem:[#allocation2 + $0x1c0] sm:$0xff]
    %v98 = vld [vmem:[#allocation2 + $0x1c8] sm:$0xff]
    %v99 = vld [vmem:[#allocation2 + $0x1d0] sm:$0xff]
    %v100 = vld [vmem:[#allocation2 + $0x1d8] sm:$0xff]
    %v101 = vld [vmem:[#allocation2 + $0x1e0] sm:$0xff]
    %v102 = vld [vmem:[#allocation2 + $0x1e8] sm:$0xff]
    %v103 = vld [vmem:[#allocation2 + $0x1f0] sm:$0xff]
    %v104 = vld [vmem:[#allocation2 + $0x1f8] sm:$0xff]
    %v105 = vld [vmem:[#allocation2 + $0x200] sm:$0xff]
    %v106 = vld [vmem:[#allocation2 + $0x208] sm:$0xff]
    %v107 = vld [vmem:[#allocation2 + $0x210] sm:$0xff]
    %v108 = vld [vmem:[#allocation2 + $0x218] sm:$0xff]
    %v109 = vld [vmem:[#allocation2 + $0x220] sm:$0xff]
    %v110 = vld [vmem:[#allocation2 + $0x228] sm:$0xff]
    %v111 = vld [vmem:[#allocation2 + $0x230] sm:$0xff]
    %v112 = vld [vmem:[#allocation2 + $0x238] sm:$0xff]
    %v113 = vld [vmem:[#allocation2 + $0x240] sm:$0xff]
    %v114 = vld [vmem:[#allocation2 + $0x248] sm:$0xff]
    %v115 = vld [vmem:[#allocation2 + $0x250] sm:$0xff]
    %v116 = vld [vmem:[#allocation2 + $0x258] sm:$0xff]
    %v117 = vld [vmem:[#allocation2 + $0x260] sm:$0xff]
    %v118 = vld [vmem:[#allocation2 + $0x268] sm:$0xff]
    %v119 = vld [vmem:[#allocation2 + $0x270] sm:$0xff]
    %v120 = vld [vmem:[#allocation2 + $0x278] sm:$0xff]
    %v121 = vld [vmem:[#allocation2 + $0x280] sm:$0xff]
    %v122 = vld [vmem:[#allocation2 + $0x288] sm:$0xff]
    %v123 = vld [vmem:[#allocation2 + $0x290] sm:$0xff]
    %v124 = vld [vmem:[#allocation2 + $0x298] sm:$0xff]
    %v125 = vld [vmem:[#allocation2 + $0x2a0] sm:$0xff]
    %v126 = vld [vmem:[#allocation2 + $0x2a8] sm:$0xff]
    %v127 = vld [vmem:[#allocation2 + $0x2b0] sm:$0xff]
    %v128 = vld [vmem:[#allocation2 + $0x2b8] sm:$0xff]
    %v129 = vld [vmem:[#allocation2 + $0x2c0] sm:$0xff]
    %v130 = vld [vmem:[#allocation2 + $0x2c8] sm:$0xff]
    %v131 = vld [vmem:[#allocation2 + $0x2d0] sm:$0xff]
    %v132 = vld [vmem:[#allocation2 + $0x2d8] sm:$0xff]
    %v133 = vld [vmem:[#allocation2 + $0x2e0] sm:$0xff]
    %v134 = vld [vmem:[#allocation2 + $0x2e8] sm:$0xff]
    %v135 = vld [vmem:[#allocation2 + $0x2f0] sm:$0xff]
    %v136 = vld [vmem:[#allocation2 + $0x2f8] sm:$0xff]
    %v137 = vld [vmem:[#allocation2 + $0x300] sm:$0xff]
    %v138 = vld [vmem:[#allocation2 + $0x308] sm:$0xff]
    %v139 = vld [vmem:[#allocation2 + $0x310] sm:$0xff]
    %v140 = vld [vmem:[#allocation2 + $0x318] sm:$0xff]
    %v141 = vld [vmem:[#allocation2 + $0x320] sm:$0xff]
    %v142 = vld [vmem:[#allocation2 + $0x328] sm:$0xff]
    %v143 = vld [vmem:[#allocation2 + $0x330] sm:$0xff]
    %v144 = vld [vmem:[#allocation2 + $0x338] sm:$0xff]
    %v145 = vld [vmem:[#allocation2 + $0x340] sm:$0xff]
    %v146 = vld [vmem:[#allocation2 + $0x348] sm:$0xff]
    %v147 = vld [vmem:[#allocation2 + $0x350] sm:$0xff]
    %v148 = vld [vmem:[#allocation2 + $0x358] sm:$0xff]
    %v149 = vld [vmem:[#allocation2 + $0x360] sm:$0xff]
    %v150 = vld [vmem:[#allocation2 + $0x368] sm:$0xff]
    %v151 = vld [vmem:[#allocation2 + $0x370] sm:$0xff]
    %v152 = vld [vmem:[#allocation2 + $0x378] sm:$0xff]
    %v153 = vld [vmem:[#allocation2 + $0x380] sm:$0xff]
    %v154 = vld [vmem:[#allocation2 + $0x388] sm:$0xff]
    %v155 = vld [vmem:[#allocation2 + $0x390] sm:$0xff]
    %v156 = vld [vmem:[#allocation2 + $0x398] sm:$0xff]
    %v157 = vld [vmem:[#allocation2 + $0x3a0] sm:$0xff]
    %v158 = vld [vmem:[#allocation2 + $0x3a8] sm:$0xff]
    %v159 = vld [vmem:[#allocation2 + $0x3b0] sm:$0xff]
    %v160 = vld [vmem:[#allocation2 + $0x3b8] sm:$0xff]
    %v161 = vld [vmem:[#allocation2 + $0x3c0] sm:$0xff]
    %v162 = vld [vmem:[#allocation2 + $0x3c8] sm:$0xff]
    %v163 = vld [vmem:[#allocation2 + $0x3d0] sm:$0xff]
    %v164 = vld [vmem:[#allocation2 + $0x3d8] sm:$0xff]
    %v165 = vld [vmem:[#allocation2 + $0x3e0] sm:$0xff]
    %v166 = vld [vmem:[#allocation2 + $0x3e8] sm:$0xff]
    %v167 = vld [vmem:[#allocation2 + $0x3f0] sm:$0xff]
    %v168 = vld [vmem:[#allocation2 + $0x3f8] sm:$0xff]
    %v169 = vld [vmem:[#allocation4] sm:$0xff]
    %v170 = vld [vmem:[#allocation4 + $0x8] sm:$0xff]
    %v171 = vld [vmem:[#allocation4 + $0x10] sm:$0xff]
    %v172 = vld [vmem:[#allocation4 + $0x18] sm:$0xff]
    %v177 = vlaneseq
    %v178 = vshrl.u32 %v177, 7
    %v179 = vsub.s32 0, %v178
    %v180 = vrot.slane %v169, %v179
    %v181 = vlaneseq
    %v182 = vshrl.u32 %v181, 7
    %v183 = vsub.s32 1, %v182
    %v184 = vrot.slane %v169, %v183
    %v185 = vlaneseq
    %v186 = vshrl.u32 %v185, 7
    %v187 = vsub.s32 2, %v186
    %v188 = vrot.slane %v169, %v187
    %v189 = vlaneseq
    %v190 = vshrl.u32 %v189, 7
    %v191 = vsub.s32 3, %v190
    %v192 = vrot.slane %v169, %v191
    %v193 = vlaneseq
    %v194 = vshrl.u32 %v193, 7
    %v195 = vsub.s32 4, %v194
    %v196 = vrot.slane %v169, %v195
    %v197 = vlaneseq
    %v198 = vshrl.u32 %v197, 7
    %v199 = vsub.s32 5, %v198
    %v200 = vrot.slane %v169, %v199
    %v201 = vlaneseq
    %v202 = vshrl.u32 %v201, 7
    %v203 = vsub.s32 6, %v202
    %v204 = vrot.slane %v169, %v203
    %v205 = vlaneseq
    %v206 = vshrl.u32 %v205, 7
    %v207 = vsub.s32 7, %v206
    %v208 = vrot.slane %v169, %v207
    %v209 = vlaneseq
    %v210 = vshrl.u32 %v209, 7
    %v211 = vsub.s32 0, %v210
    %v212 = vrot.slane %v170, %v211
    %v213 = vlaneseq
    %v214 = vshrl.u32 %v213, 7
    %v215 = vsub.s32 1, %v214
    %v216 = vrot.slane %v170, %v215
    %v217 = vlaneseq
    %v218 = vshrl.u32 %v217, 7
    %v219 = vsub.s32 2, %v218
    %v220 = vrot.slane %v170, %v219
    %v221 = vlaneseq
    %v222 = vshrl.u32 %v221, 7
    %v223 = vsub.s32 3, %v222
    %v224 = vrot.slane %v170, %v223
    %v225 = vlaneseq
    %v226 = vshrl.u32 %v225, 7
    %v227 = vsub.s32 4, %v226
    %v228 = vrot.slane %v170, %v227
    %v229 = vlaneseq
    %v230 = vshrl.u32 %v229, 7
    %v231 = vsub.s32 5, %v230
    %v232 = vrot.slane %v170, %v231
    %v233 = vlaneseq
    %v234 = vshrl.u32 %v233, 7
    %v235 = vsub.s32 6, %v234
    %v236 = vrot.slane %v170, %v235
    %v237 = vlaneseq
    %v238 = vshrl.u32 %v237, 7
    %v239 = vsub.s32 7, %v238
    %v240 = vrot.slane %v170, %v239
    %v241 = vlaneseq
    %v242 = vshrl.u32 %v241, 7
    %v243 = vsub.s32 0, %v242
    %v244 = vrot.slane %v171, %v243
    %v245 = vlaneseq
    %v246 = vshrl.u32 %v245, 7
    %v247 = vsub.s32 1, %v246
    %v248 = vrot.slane %v171, %v247
    %v249 = vlaneseq
    %v250 = vshrl.u32 %v249, 7
    %v251 = vsub.s32 2, %v250
    %v252 = vrot.slane %v171, %v251
    %v253 = vlaneseq
    %v254 = vshrl.u32 %v253, 7
    %v255 = vsub.s32 3, %v254
    %v256 = vrot.slane %v171, %v255
    %v257 = vlaneseq
    %v258 = vshrl.u32 %v257, 7
    %v259 = vsub.s32 4, %v258
    %v260 = vrot.slane %v171, %v259
    %v261 = vlaneseq
    %v262 = vshrl.u32 %v261, 7
    %v263 = vsub.s32 5, %v262
    %v264 = vrot.slane %v171, %v263
    %v265 = vlaneseq
    %v266 = vshrl.u32 %v265, 7
    %v267 = vsub.s32 6, %v266
    %v268 = vrot.slane %v171, %v267
    %v269 = vlaneseq
    %v270 = vshrl.u32 %v269, 7
    %v271 = vsub.s32 7, %v270
    %v272 = vrot.slane %v171, %v271
    %v273 = vlaneseq
    %v274 = vshrl.u32 %v273, 7
    %v275 = vsub.s32 0, %v274
    %v276 = vrot.slane %v172, %v275
    %v277 = vlaneseq
    %v278 = vshrl.u32 %v277, 7
    %v279 = vsub.s32 1, %v278
    %v280 = vrot.slane %v172, %v279
    %v281 = vlaneseq
    %v282 = vshrl.u32 %v281, 7
    %v283 = vsub.s32 2, %v282
    %v284 = vrot.slane %v172, %v283
    %v285 = vlaneseq
    %v286 = vshrl.u32 %v285, 7
    %v287 = vsub.s32 3, %v286
    %v288 = vrot.slane %v172, %v287
    %v289 = vlaneseq
    %v290 = vshrl.u32 %v289, 7
    %v291 = vsub.s32 4, %v290
    %v292 = vrot.slane %v172, %v291
    %v293 = vlaneseq
    %v294 = vshrl.u32 %v293, 7
    %v295 = vsub.s32 5, %v294
    %v296 = vrot.slane %v172, %v295
    %v297 = vlaneseq
    %v298 = vshrl.u32 %v297, 7
    %v299 = vsub.s32 6, %v298
    %v300 = vrot.slane %v172, %v299
    %v301 = vlaneseq
    %v302 = vshrl.u32 %v301, 7
    %v303 = vsub.s32 7, %v302
    %v304 = vrot.slane %v172, %v303
    %vm337 = vcmask 261120
    %v339 = vsel %vm337, %v40, 0
    %341 = vmatprep.subr.mxu0 0.0
    %342 = vmatpush1.msra.mxu0 0.0
    %343 = vmatprep.subr.mxu0 0.0
    %344 = vmatpush1.msra.mxu0 0.0
    %345 = vmatprep.subr.mxu0 0.0
    %346 = vmatpush1.msra.mxu0 0.0
    %347 = vmatprep.subr.mxu0 0.0
    %348 = vmatpush1.msra.mxu0 0.0
    %349 = vmatprep.subr.mxu0 0.0
    %350 = vmatpush1.msra.mxu0 0.0
    %351 = vmatprep.subr.mxu0 0.0
    %352 = vmatpush1.msra.mxu0 0.0
    %353 = vmatprep.subr.mxu0 0.0
    %354 = vmatpush1.msra.mxu0 0.0
    %355 = vmatprep.subr.mxu0 0.0
    %356 = vmatpush1.msra.mxu0 0.0
    %357 = vmatprep.subr.mxu0 0.0
    %358 = vmatpush1.msra.mxu0 0.0
    %359 = vmatprep.subr.mxu0 0.0
    %360 = vmatpush1.msra.mxu0 0.0
    %361 = vmatprep.subr.mxu0 0.0
    %362 = vmatpush1.msra.mxu0 0.0
    %363 = vmatprep.subr.mxu0 0.0
    %364 = vmatpush1.msra.mxu0 0.0
    %365 = vmatprep.subr.mxu0 %v138
    %366 = vmatpush1.msra.mxu0 %v137
    %367 = vmatprep.subr.mxu0 %v106
    %368 = vmatpush1.msra.mxu0 %v105
    %369 = vmatprep.subr.mxu0 %v74
    %370 = vmatpush1.msra.mxu0 %v73
    %371 = vmatprep.subr.mxu0 %v42
    %372 = vmatpush1.msra.mxu0 %v41
    %373 = vmatprep.subr.mxu0 0.0
    %374 = vmatpush2.msra.mxu0 0.0
    %375 = vmatprep.subr.mxu0 0.0
    %376 = vmatpush2.msra.mxu0 0.0
    %377 = vmatprep.subr.mxu0 0.0
    %378 = vmatpush2.msra.mxu0 0.0
    %379 = vmatprep.subr.mxu0 0.0
    %380 = vmatpush2.msra.mxu0 0.0
    %381 = vmatprep.subr.mxu0 0.0
    %382 = vmatpush2.msra.mxu0 0.0
    %383 = vmatprep.subr.mxu0 0.0
    %384 = vmatpush2.msra.mxu0 0.0
    %385 = vmatprep.subr.mxu0 0.0
    %386 = vmatpush2.msra.mxu0 0.0
    %387 = vmatprep.subr.mxu0 0.0
    %388 = vmatpush2.msra.mxu0 0.0
    %389 = vmatprep.subr.mxu0 0.0
    %390 = vmatpush2.msra.mxu0 0.0
    %391 = vmatprep.subr.mxu0 0.0
    %392 = vmatpush2.msra.mxu0 0.0
    %393 = vmatprep.subr.mxu0 0.0
    %394 = vmatpush2.msra.mxu0 0.0
    %395 = vmatprep.subr.mxu0 0.0
    %396 = vmatpush2.msra.mxu0 0.0
    %397 = vmatprep.subr.mxu0 0.0
    %398 = vmatpush2.msra.mxu0 0.0
    %399 = vmatprep.subr.mxu0 0.0
    %400 = vmatpush2.msra.mxu0 0.0
    %401 = vmatprep.subr.mxu0 0.0
    %402 = vmatpush2.msra.mxu0 0.0
    %403 = vmatprep.subr.mxu0 0.0
    %404 = vmatpush2.msra.mxu0 0.0
    %405 = vmatprep.mubr.f32.mxu0 0.0
    %406 = vmatmul.mubr.f32.gmra.mxu0 %v339
    %v407 = vpop.f32.mrf.mxu0
    %v408 = vadd.f32 %v180, %v407
    %v409 = vpop.f32.mrf.mxu0
    %v410 = vadd.f32 %v184, %v409
    %411 = vdwg.mxu0
    %412 = vmatprep.subr.mxu0 0.0
    %413 = vmatpush1.msra.mxu0 0.0
    %414 = vmatprep.subr.mxu0 0.0
    %415 = vmatpush1.msra.mxu0 0.0
    %416 = vmatprep.subr.mxu0 0.0
    %417 = vmatpush1.msra.mxu0 0.0
    %418 = vmatprep.subr.mxu0 0.0
    %419 = vmatpush1.msra.mxu0 0.0
    %420 = vmatprep.subr.mxu0 0.0
    %421 = vmatpush1.msra.mxu0 0.0
    %422 = vmatprep.subr.mxu0 0.0
    %423 = vmatpush1.msra.mxu0 0.0
    %424 = vmatprep.subr.mxu0 0.0
    %425 = vmatpush1.msra.mxu0 0.0
    %426 = vmatprep.subr.mxu0 0.0
    %427 = vmatpush1.msra.mxu0 0.0
    %428 = vmatprep.subr.mxu0 0.0
    %429 = vmatpush1.msra.mxu0 0.0
    %430 = vmatprep.subr.mxu0 0.0
    %431 = vmatpush1.msra.mxu0 0.0
    %432 = vmatprep.subr.mxu0 0.0
    %433 = vmatpush1.msra.mxu0 0.0
    %434 = vmatprep.subr.mxu0 0.0
    %435 = vmatpush1.msra.mxu0 0.0
    %436 = vmatprep.subr.mxu0 %v140
    %437 = vmatpush1.msra.mxu0 %v139
    %438 = vmatprep.subr.mxu0 %v108
    %439 = vmatpush1.msra.mxu0 %v107
    %440 = vmatprep.subr.mxu0 %v76
    %441 = vmatpush1.msra.mxu0 %v75
    %442 = vmatprep.subr.mxu0 %v44
    %443 = vmatpush1.msra.mxu0 %v43
    %444 = vmatprep.subr.mxu0 0.0
    %445 = vmatpush2.msra.mxu0 0.0
    %446 = vmatprep.subr.mxu0 0.0
    %447 = vmatpush2.msra.mxu0 0.0
    %448 = vmatprep.subr.mxu0 0.0
    %449 = vmatpush2.msra.mxu0 0.0
    %450 = vmatprep.subr.mxu0 0.0
    %451 = vmatpush2.msra.mxu0 0.0
    %452 = vmatprep.subr.mxu0 0.0
    %453 = vmatpush2.msra.mxu0 0.0
    %454 = vmatprep.subr.mxu0 0.0
    %455 = vmatpush2.msra.mxu0 0.0
    %456 = vmatprep.subr.mxu0 0.0
    %457 = vmatpush2.msra.mxu0 0.0
    %458 = vmatprep.subr.mxu0 0.0
    %459 = vmatpush2.msra.mxu0 0.0
    %460 = vmatprep.subr.mxu0 0.0
    %461 = vmatpush2.msra.mxu0 0.0
    %462 = vmatprep.subr.mxu0 0.0
    %463 = vmatpush2.msra.mxu0 0.0
    %464 = vmatprep.subr.mxu0 0.0
    %465 = vmatpush2.msra.mxu0 0.0
    %466 = vmatprep.subr.mxu0 0.0
    %467 = vmatpush2.msra.mxu0 0.0
    %468 = vmatprep.subr.mxu0 0.0
    %469 = vmatpush2.msra.mxu0 0.0
    %470 = vmatprep.subr.mxu0 0.0
    %471 = vmatpush2.msra.mxu0 0.0
    %472 = vmatprep.subr.mxu0 0.0
    %473 = vmatpush2.msra.mxu0 0.0
    %474 = vmatprep.subr.mxu0 0.0
    %475 = vmatpush2.msra.mxu0 0.0
    %476 = vmatprep.mubr.f32.mxu0 0.0
    %477 = vmatmul.mubr.f32.gmra.mxu0 %v339
    %v478 = vpop.f32.mrf.mxu0
    %v479 = vadd.f32 %v188, %v478
    %v480 = vpop.f32.mrf.mxu0
    %v481 = vadd.f32 %v192, %v480
    %482 = vdwg.mxu0
    %483 = vmatprep.subr.mxu0 0.0
    %484 = vmatpush1.msra.mxu0 0.0
    %485 = vmatprep.subr.mxu0 0.0
    %486 = vmatpush1.msra.mxu0 0.0
    %487 = vmatprep.subr.mxu0 0.0
    %488 = vmatpush1.msra.mxu0 0.0
    %489 = vmatprep.subr.mxu0 0.0
    %490 = vmatpush1.msra.mxu0 0.0
    %491 = vmatprep.subr.mxu0 0.0
    %492 = vmatpush1.msra.mxu0 0.0
    %493 = vmatprep.subr.mxu0 0.0
    %494 = vmatpush1.msra.mxu0 0.0
    %495 = vmatprep.subr.mxu0 0.0
    %496 = vmatpush1.msra.mxu0 0.0
    %497 = vmatprep.subr.mxu0 0.0
    %498 = vmatpush1.msra.mxu0 0.0
    %499 = vmatprep.subr.mxu0 0.0
    %500 = vmatpush1.msra.mxu0 0.0
    %501 = vmatprep.subr.mxu0 0.0
    %502 = vmatpush1.msra.mxu0 0.0
    %503 = vmatprep.subr.mxu0 0.0
    %504 = vmatpush1.msra.mxu0 0.0
    %505 = vmatprep.subr.mxu0 0.0
    %506 = vmatpush1.msra.mxu0 0.0
    %507 = vmatprep.subr.mxu0 %v142
    %508 = vmatpush1.msra.mxu0 %v141
    %509 = vmatprep.subr.mxu0 %v110
    %510 = vmatpush1.msra.mxu0 %v109
    %511 = vmatprep.subr.mxu0 %v78
    %512 = vmatpush1.msra.mxu0 %v77
    %513 = vmatprep.subr.mxu0 %v46
    %514 = vmatpush1.msra.mxu0 %v45
    %515 = vmatprep.subr.mxu0 0.0
    %516 = vmatpush2.msra.mxu0 0.0
    %517 = vmatprep.subr.mxu0 0.0
    %518 = vmatpush2.msra.mxu0 0.0
    %519 = vmatprep.subr.mxu0 0.0
    %520 = vmatpush2.msra.mxu0 0.0
    %521 = vmatprep.subr.mxu0 0.0
    %522 = vmatpush2.msra.mxu0 0.0
    %523 = vmatprep.subr.mxu0 0.0
    %524 = vmatpush2.msra.mxu0 0.0
    %525 = vmatprep.subr.mxu0 0.0
    %526 = vmatpush2.msra.mxu0 0.0
    %527 = vmatprep.subr.mxu0 0.0
    %528 = vmatpush2.msra.mxu0 0.0
    %529 = vmatprep.subr.mxu0 0.0
    %530 = vmatpush2.msra.mxu0 0.0
    %531 = vmatprep.subr.mxu0 0.0
    %532 = vmatpush2.msra.mxu0 0.0
    %533 = vmatprep.subr.mxu0 0.0
    %534 = vmatpush2.msra.mxu0 0.0
    %535 = vmatprep.subr.mxu0 0.0
    %536 = vmatpush2.msra.mxu0 0.0
    %537 = vmatprep.subr.mxu0 0.0
    %538 = vmatpush2.msra.mxu0 0.0
    %539 = vmatprep.subr.mxu0 0.0
    %540 = vmatpush2.msra.mxu0 0.0
    %541 = vmatprep.subr.mxu0 0.0
    %542 = vmatpush2.msra.mxu0 0.0
    %543 = vmatprep.subr.mxu0 0.0
    %544 = vmatpush2.msra.mxu0 0.0
    %545 = vmatprep.subr.mxu0 0.0
    %546 = vmatpush2.msra.mxu0 0.0
    %547 = vmatprep.mubr.f32.mxu0 0.0
    %548 = vmatmul.mubr.f32.gmra.mxu0 %v339
    %v549 = vpop.f32.mrf.mxu0
    %v550 = vadd.f32 %v196, %v549
    %v551 = vpop.f32.mrf.mxu0
    %v552 = vadd.f32 %v200, %v551
    %553 = vdwg.mxu0
    %554 = vmatprep.subr.mxu0 0.0
    %555 = vmatpush1.msra.mxu0 0.0
    %556 = vmatprep.subr.mxu0 0.0
    %557 = vmatpush1.msra.mxu0 0.0
    %558 = vmatprep.subr.mxu0 0.0
    %559 = vmatpush1.msra.mxu0 0.0
    %560 = vmatprep.subr.mxu0 0.0
    %561 = vmatpush1.msra.mxu0 0.0
    %562 = vmatprep.subr.mxu0 0.0
    %563 = vmatpush1.msra.mxu0 0.0
    %564 = vmatprep.subr.mxu0 0.0
    %565 = vmatpush1.msra.mxu0 0.0
    %566 = vmatprep.subr.mxu0 0.0
    %567 = vmatpush1.msra.mxu0 0.0
    %568 = vmatprep.subr.mxu0 0.0
    %569 = vmatpush1.msra.mxu0 0.0
    %570 = vmatprep.subr.mxu0 0.0
    %571 = vmatpush1.msra.mxu0 0.0
    %572 = vmatprep.subr.mxu0 0.0
    %573 = vmatpush1.msra.mxu0 0.0
    %574 = vmatprep.subr.mxu0 0.0
    %575 = vmatpush1.msra.mxu0 0.0
    %576 = vmatprep.subr.mxu0 0.0
    %577 = vmatpush1.msra.mxu0 0.0
    %578 = vmatprep.subr.mxu0 %v144
    %579 = vmatpush1.msra.mxu0 %v143
    %580 = vmatprep.subr.mxu0 %v112
    %581 = vmatpush1.msra.mxu0 %v111
    %582 = vmatprep.subr.mxu0 %v80
    %583 = vmatpush1.msra.mxu0 %v79
    %584 = vmatprep.subr.mxu0 %v48
    %585 = vmatpush1.msra.mxu0 %v47
    %586 = vmatprep.subr.mxu0 0.0
    %587 = vmatpush2.msra.mxu0 0.0
    %588 = vmatprep.subr.mxu0 0.0
    %589 = vmatpush2.msra.mxu0 0.0
    %590 = vmatprep.subr.mxu0 0.0
    %591 = vmatpush2.msra.mxu0 0.0
    %592 = vmatprep.subr.mxu0 0.0
    %593 = vmatpush2.msra.mxu0 0.0
    %594 = vmatprep.subr.mxu0 0.0
    %595 = vmatpush2.msra.mxu0 0.0
    %596 = vmatprep.subr.mxu0 0.0
    %597 = vmatpush2.msra.mxu0 0.0
    %598 = vmatprep.subr.mxu0 0.0
    %599 = vmatpush2.msra.mxu0 0.0
    %600 = vmatprep.subr.mxu0 0.0
    %601 = vmatpush2.msra.mxu0 0.0
    %602 = vmatprep.subr.mxu0 0.0
    %603 = vmatpush2.msra.mxu0 0.0
    %604 = vmatprep.subr.mxu0 0.0
    %605 = vmatpush2.msra.mxu0 0.0
    %606 = vmatprep.subr.mxu0 0.0
    %607 = vmatpush2.msra.mxu0 0.0
    %608 = vmatprep.subr.mxu0 0.0
    %609 = vmatpush2.msra.mxu0 0.0
    %610 = vmatprep.subr.mxu0 0.0
    %611 = vmatpush2.msra.mxu0 0.0
    %612 = vmatprep.subr.mxu0 0.0
    %613 = vmatpush2.msra.mxu0 0.0
    %614 = vmatprep.subr.mxu0 0.0
    %615 = vmatpush2.msra.mxu0 0.0
    %616 = vmatprep.subr.mxu0 0.0
    %617 = vmatpush2.msra.mxu0 0.0
    %618 = vmatprep.mubr.f32.mxu0 0.0
    %619 = vmatmul.mubr.f32.gmra.mxu0 %v339
    %v620 = vpop.f32.mrf.mxu0
    %v621 = vadd.f32 %v204, %v620
    %v622 = vpop.f32.mrf.mxu0
    %v623 = vadd.f32 %v208, %v622
    %624 = vdwg.mxu0
    %625 = vmatprep.subr.mxu0 0.0
    %626 = vmatpush1.msra.mxu0 0.0
    %627 = vmatprep.subr.mxu0 0.0
    %628 = vmatpush1.msra.mxu0 0.0
    %629 = vmatprep.subr.mxu0 0.0
    %630 = vmatpush1.msra.mxu0 0.0
    %631 = vmatprep.subr.mxu0 0.0
    %632 = vmatpush1.msra.mxu0 0.0
    %633 = vmatprep.subr.mxu0 0.0
    %634 = vmatpush1.msra.mxu0 0.0
    %635 = vmatprep.subr.mxu0 0.0
    %636 = vmatpush1.msra.mxu0 0.0
    %637 = vmatprep.subr.mxu0 0.0
    %638 = vmatpush1.msra.mxu0 0.0
    %639 = vmatprep.subr.mxu0 0.0
    %640 = vmatpush1.msra.mxu0 0.0
    %641 = vmatprep.subr.mxu0 0.0
    %642 = vmatpush1.msra.mxu0 0.0
    %643 = vmatprep.subr.mxu0 0.0
    %644 = vmatpush1.msra.mxu0 0.0
    %645 = vmatprep.subr.mxu0 0.0
    %646 = vmatpush1.msra.mxu0 0.0
    %647 = vmatprep.subr.mxu0 0.0
    %648 = vmatpush1.msra.mxu0 0.0
    %649 = vmatprep.subr.mxu0 %v146
    %650 = vmatpush1.msra.mxu0 %v145
    %651 = vmatprep.subr.mxu0 %v114
    %652 = vmatpush1.msra.mxu0 %v113
    %653 = vmatprep.subr.mxu0 %v82
    %654 = vmatpush1.msra.mxu0 %v81
    %655 = vmatprep.subr.mxu0 %v50
    %656 = vmatpush1.msra.mxu0 %v49
    %657 = vmatprep.subr.mxu0 0.0
    %658 = vmatpush2.msra.mxu0 0.0
    %659 = vmatprep.subr.mxu0 0.0
    %660 = vmatpush2.msra.mxu0 0.0
    %661 = vmatprep.subr.mxu0 0.0
    %662 = vmatpush2.msra.mxu0 0.0
    %663 = vmatprep.subr.mxu0 0.0
    %664 = vmatpush2.msra.mxu0 0.0
    %665 = vmatprep.subr.mxu0 0.0
    %666 = vmatpush2.msra.mxu0 0.0
    %667 = vmatprep.subr.mxu0 0.0
    %668 = vmatpush2.msra.mxu0 0.0
    %669 = vmatprep.subr.mxu0 0.0
    %670 = vmatpush2.msra.mxu0 0.0
    %671 = vmatprep.subr.mxu0 0.0
    %672 = vmatpush2.msra.mxu0 0.0
    %673 = vmatprep.subr.mxu0 0.0
    %674 = vmatpush2.msra.mxu0 0.0
    %675 = vmatprep.subr.mxu0 0.0
    %676 = vmatpush2.msra.mxu0 0.0
    %677 = vmatprep.subr.mxu0 0.0
    %678 = vmatpush2.msra.mxu0 0.0
    %679 = vmatprep.subr.mxu0 0.0
    %680 = vmatpush2.msra.mxu0 0.0
    %681 = vmatprep.subr.mxu0 0.0
    %682 = vmatpush2.msra.mxu0 0.0
    %683 = vmatprep.subr.mxu0 0.0
    %684 = vmatpush2.msra.mxu0 0.0
    %685 = vmatprep.subr.mxu0 0.0
    %686 = vmatpush2.msra.mxu0 0.0
    %687 = vmatprep.subr.mxu0 0.0
    %688 = vmatpush2.msra.mxu0 0.0
    %689 = vmatprep.mubr.f32.mxu0 0.0
    %690 = vmatmul.mubr.f32.gmra.mxu0 %v339
    %v691 = vpop.f32.mrf.mxu0
    %v692 = vadd.f32 %v212, %v691
    %v693 = vpop.f32.mrf.mxu0
    %v694 = vadd.f32 %v216, %v693
    %695 = vdwg.mxu0
    %696 = vmatprep.subr.mxu0 0.0
    %697 = vmatpush1.msra.mxu0 0.0
    %698 = vmatprep.subr.mxu0 0.0
    %699 = vmatpush1.msra.mxu0 0.0
    %700 = vmatprep.subr.mxu0 0.0
    %701 = vmatpush1.msra.mxu0 0.0
    %702 = vmatprep.subr.mxu0 0.0
    %703 = vmatpush1.msra.mxu0 0.0
    %704 = vmatprep.subr.mxu0 0.0
    %705 = vmatpush1.msra.mxu0 0.0
    %706 = vmatprep.subr.mxu0 0.0
    %707 = vmatpush1.msra.mxu0 0.0
    %708 = vmatprep.subr.mxu0 0.0
    %709 = vmatpush1.msra.mxu0 0.0
    %710 = vmatprep.subr.mxu0 0.0
    %711 = vmatpush1.msra.mxu0 0.0
    %712 = vmatprep.subr.mxu0 0.0
    %713 = vmatpush1.msra.mxu0 0.0
    %714 = vmatprep.subr.mxu0 0.0
    %715 = vmatpush1.msra.mxu0 0.0
    %716 = vmatprep.subr.mxu0 0.0
    %717 = vmatpush1.msra.mxu0 0.0
    %718 = vmatprep.subr.mxu0 0.0
    %719 = vmatpush1.msra.mxu0 0.0
    %720 = vmatprep.subr.mxu0 %v148
    %721 = vmatpush1.msra.mxu0 %v147
    %722 = vmatprep.subr.mxu0 %v116
    %723 = vmatpush1.msra.mxu0 %v115
    %724 = vmatprep.subr.mxu0 %v84
    %725 = vmatpush1.msra.mxu0 %v83
    %726 = vmatprep.subr.mxu0 %v52
    %727 = vmatpush1.msra.mxu0 %v51
    %728 = vmatprep.subr.mxu0 0.0
    %729 = vmatpush2.msra.mxu0 0.0
    %730 = vmatprep.subr.mxu0 0.0
    %731 = vmatpush2.msra.mxu0 0.0
    %732 = vmatprep.subr.mxu0 0.0
    %733 = vmatpush2.msra.mxu0 0.0
    %734 = vmatprep.subr.mxu0 0.0
    %735 = vmatpush2.msra.mxu0 0.0
    %736 = vmatprep.subr.mxu0 0.0
    %737 = vmatpush2.msra.mxu0 0.0
    %738 = vmatprep.subr.mxu0 0.0
    %739 = vmatpush2.msra.mxu0 0.0
    %740 = vmatprep.subr.mxu0 0.0
    %741 = vmatpush2.msra.mxu0 0.0
    %742 = vmatprep.subr.mxu0 0.0
    %743 = vmatpush2.msra.mxu0 0.0
    %744 = vmatprep.subr.mxu0 0.0
    %745 = vmatpush2.msra.mxu0 0.0
    %746 = vmatprep.subr.mxu0 0.0
    %747 = vmatpush2.msra.mxu0 0.0
    %748 = vmatprep.subr.mxu0 0.0
    %749 = vmatpush2.msra.mxu0 0.0
    %750 = vmatprep.subr.mxu0 0.0
    %751 = vmatpush2.msra.mxu0 0.0
    %752 = vmatprep.subr.mxu0 0.0
    %753 = vmatpush2.msra.mxu0 0.0
    %754 = vmatprep.subr.mxu0 0.0
    %755 = vmatpush2.msra.mxu0 0.0
    %756 = vmatprep.subr.mxu0 0.0
    %757 = vmatpush2.msra.mxu0 0.0
    %758 = vmatprep.subr.mxu0 0.0
    %759 = vmatpush2.msra.mxu0 0.0
    %760 = vmatprep.mubr.f32.mxu0 0.0
    %761 = vmatmul.mubr.f32.gmra.mxu0 %v339
    %v762 = vpop.f32.mrf.mxu0
    %v763 = vadd.f32 %v220, %v762
    %v764 = vpop.f32.mrf.mxu0
    %v765 = vadd.f32 %v224, %v764
    %766 = vdwg.mxu0
    %767 = vmatprep.subr.mxu0 0.0
    %768 = vmatpush1.msra.mxu0 0.0
    %769 = vmatprep.subr.mxu0 0.0
    %770 = vmatpush1.msra.mxu0 0.0
    %771 = vmatprep.subr.mxu0 0.0
    %772 = vmatpush1.msra.mxu0 0.0
    %773 = vmatprep.subr.mxu0 0.0
    %774 = vmatpush1.msra.mxu0 0.0
    %775 = vmatprep.subr.mxu0 0.0
    %776 = vmatpush1.msra.mxu0 0.0
    %777 = vmatprep.subr.mxu0 0.0
    %778 = vmatpush1.msra.mxu0 0.0
    %779 = vmatprep.subr.mxu0 0.0
    %780 = vmatpush1.msra.mxu0 0.0
    %781 = vmatprep.subr.mxu0 0.0
    %782 = vmatpush1.msra.mxu0 0.0
    %783 = vmatprep.subr.mxu0 0.0
    %784 = vmatpush1.msra.mxu0 0.0
    %785 = vmatprep.subr.mxu0 0.0
    %786 = vmatpush1.msra.mxu0 0.0
    %787 = vmatprep.subr.mxu0 0.0
    %788 = vmatpush1.msra.mxu0 0.0
    %789 = vmatprep.subr.mxu0 0.0
    %790 = vmatpush1.msra.mxu0 0.0
    %791 = vmatprep.subr.mxu0 %v150
    %792 = vmatpush1.msra.mxu0 %v149
    %793 = vmatprep.subr.mxu0 %v118
    %794 = vmatpush1.msra.mxu0 %v117
    %795 = vmatprep.subr.mxu0 %v86
    %796 = vmatpush1.msra.mxu0 %v85
    %797 = vmatprep.subr.mxu0 %v54
    %798 = vmatpush1.msra.mxu0 %v53
    %799 = vmatprep.subr.mxu0 0.0
    %800 = vmatpush2.msra.mxu0 0.0
    %801 = vmatprep.subr.mxu0 0.0
    %802 = vmatpush2.msra.mxu0 0.0
    %803 = vmatprep.subr.mxu0 0.0
    %804 = vmatpush2.msra.mxu0 0.0
    %805 = vmatprep.subr.mxu0 0.0
    %806 = vmatpush2.msra.mxu0 0.0
    %807 = vmatprep.subr.mxu0 0.0
    %808 = vmatpush2.msra.mxu0 0.0
    %809 = vmatprep.subr.mxu0 0.0
    %810 = vmatpush2.msra.mxu0 0.0
    %811 = vmatprep.subr.mxu0 0.0
    %812 = vmatpush2.msra.mxu0 0.0
    %813 = vmatprep.subr.mxu0 0.0
    %814 = vmatpush2.msra.mxu0 0.0
    %815 = vmatprep.subr.mxu0 0.0
    %816 = vmatpush2.msra.mxu0 0.0
    %817 = vmatprep.subr.mxu0 0.0
    %818 = vmatpush2.msra.mxu0 0.0
    %819 = vmatprep.subr.mxu0 0.0
    %820 = vmatpush2.msra.mxu0 0.0
    %821 = vmatprep.subr.mxu0 0.0
    %822 = vmatpush2.msra.mxu0 0.0
    %823 = vmatprep.subr.mxu0 0.0
    %824 = vmatpush2.msra.mxu0 0.0
    %825 = vmatprep.subr.mxu0 0.0
    %826 = vmatpush2.msra.mxu0 0.0
    %827 = vmatprep.subr.mxu0 0.0
    %828 = vmatpush2.msra.mxu0 0.0
    %829 = vmatprep.subr.mxu0 0.0
    %830 = vmatpush2.msra.mxu0 0.0
    %831 = vmatprep.mubr.f32.mxu0 0.0
    %832 = vmatmul.mubr.f32.gmra.mxu0 %v339
    %v833 = vpop.f32.mrf.mxu0
    %v834 = vadd.f32 %v228, %v833
    %v835 = vpop.f32.mrf.mxu0
    %v836 = vadd.f32 %v232, %v835
    %837 = vdwg.mxu0
    %838 = vmatprep.subr.mxu0 0.0
    %839 = vmatpush1.msra.mxu0 0.0
    %840 = vmatprep.subr.mxu0 0.0
    %841 = vmatpush1.msra.mxu0 0.0
    %842 = vmatprep.subr.mxu0 0.0
    %843 = vmatpush1.msra.mxu0 0.0
    %844 = vmatprep.subr.mxu0 0.0
    %845 = vmatpush1.msra.mxu0 0.0
    %846 = vmatprep.subr.mxu0 0.0
    %847 = vmatpush1.msra.mxu0 0.0
    %848 = vmatprep.subr.mxu0 0.0
    %849 = vmatpush1.msra.mxu0 0.0
    %850 = vmatprep.subr.mxu0 0.0
    %851 = vmatpush1.msra.mxu0 0.0
    %852 = vmatprep.subr.mxu0 0.0
    %853 = vmatpush1.msra.mxu0 0.0
    %854 = vmatprep.subr.mxu0 0.0
    %855 = vmatpush1.msra.mxu0 0.0
    %856 = vmatprep.subr.mxu0 0.0
    %857 = vmatpush1.msra.mxu0 0.0
    %858 = vmatprep.subr.mxu0 0.0
    %859 = vmatpush1.msra.mxu0 0.0
    %860 = vmatprep.subr.mxu0 0.0
    %861 = vmatpush1.msra.mxu0 0.0
    %862 = vmatprep.subr.mxu0 %v152
    %863 = vmatpush1.msra.mxu0 %v151
    %864 = vmatprep.subr.mxu0 %v120
    %865 = vmatpush1.msra.mxu0 %v119
    %866 = vmatprep.subr.mxu0 %v88
    %867 = vmatpush1.msra.mxu0 %v87
    %868 = vmatprep.subr.mxu0 %v56
    %869 = vmatpush1.msra.mxu0 %v55
    %870 = vmatprep.subr.mxu0 0.0
    %871 = vmatpush2.msra.mxu0 0.0
    %872 = vmatprep.subr.mxu0 0.0
    %873 = vmatpush2.msra.mxu0 0.0
    %874 = vmatprep.subr.mxu0 0.0
    %875 = vmatpush2.msra.mxu0 0.0
    %876 = vmatprep.subr.mxu0 0.0
    %877 = vmatpush2.msra.mxu0 0.0
    %878 = vmatprep.subr.mxu0 0.0
    %879 = vmatpush2.msra.mxu0 0.0
    %880 = vmatprep.subr.mxu0 0.0
    %881 = vmatpush2.msra.mxu0 0.0
    %882 = vmatprep.subr.mxu0 0.0
    %883 = vmatpush2.msra.mxu0 0.0
    %884 = vmatprep.subr.mxu0 0.0
    %885 = vmatpush2.msra.mxu0 0.0
    %886 = vmatprep.subr.mxu0 0.0
    %887 = vmatpush2.msra.mxu0 0.0
    %888 = vmatprep.subr.mxu0 0.0
    %889 = vmatpush2.msra.mxu0 0.0
    %890 = vmatprep.subr.mxu0 0.0
    %891 = vmatpush2.msra.mxu0 0.0
    %892 = vmatprep.subr.mxu0 0.0
    %893 = vmatpush2.msra.mxu0 0.0
    %894 = vmatprep.subr.mxu0 0.0
    %895 = vmatpush2.msra.mxu0 0.0
    %896 = vmatprep.subr.mxu0 0.0
    %897 = vmatpush2.msra.mxu0 0.0
    %898 = vmatprep.subr.mxu0 0.0
    %899 = vmatpush2.msra.mxu0 0.0
    %900 = vmatprep.subr.mxu0 0.0
    %901 = vmatpush2.msra.mxu0 0.0
    %902 = vmatprep.mubr.f32.mxu0 0.0
    %903 = vmatmul.mubr.f32.gmra.mxu0 %v339
    %v904 = vpop.f32.mrf.mxu0
    %v905 = vadd.f32 %v236, %v904
    %v906 = vpop.f32.mrf.mxu0
    %v907 = vadd.f32 %v240, %v906
    %908 = vdwg.mxu0
    %909 = vmatprep.subr.mxu0 0.0
    %910 = vmatpush1.msra.mxu0 0.0
    %911 = vmatprep.subr.mxu0 0.0
    %912 = vmatpush1.msra.mxu0 0.0
    %913 = vmatprep.subr.mxu0 0.0
    %914 = vmatpush1.msra.mxu0 0.0
    %915 = vmatprep.subr.mxu0 0.0
    %916 = vmatpush1.msra.mxu0 0.0
    %917 = vmatprep.subr.mxu0 0.0
    %918 = vmatpush1.msra.mxu0 0.0
    %919 = vmatprep.subr.mxu0 0.0
    %920 = vmatpush1.msra.mxu0 0.0
    %921 = vmatprep.subr.mxu0 0.0
    %922 = vmatpush1.msra.mxu0 0.0
    %923 = vmatprep.subr.mxu0 0.0
    %924 = vmatpush1.msra.mxu0 0.0
    %925 = vmatprep.subr.mxu0 0.0
    %926 = vmatpush1.msra.mxu0 0.0
    %927 = vmatprep.subr.mxu0 0.0
    %928 = vmatpush1.msra.mxu0 0.0
    %929 = vmatprep.subr.mxu0 0.0
    %930 = vmatpush1.msra.mxu0 0.0
    %931 = vmatprep.subr.mxu0 0.0
    %932 = vmatpush1.msra.mxu0 0.0
    %933 = vmatprep.subr.mxu0 %v154
    %934 = vmatpush1.msra.mxu0 %v153
    %935 = vmatprep.subr.mxu0 %v122
    %936 = vmatpush1.msra.mxu0 %v121
    %937 = vmatprep.subr.mxu0 %v90
    %938 = vmatpush1.msra.mxu0 %v89
    %939 = vmatprep.subr.mxu0 %v58
    %940 = vmatpush1.msra.mxu0 %v57
    %941 = vmatprep.subr.mxu0 0.0
    %942 = vmatpush2.msra.mxu0 0.0
    %943 = vmatprep.subr.mxu0 0.0
    %944 = vmatpush2.msra.mxu0 0.0
    %945 = vmatprep.subr.mxu0 0.0
    %946 = vmatpush2.msra.mxu0 0.0
    %947 = vmatprep.subr.mxu0 0.0
    %948 = vmatpush2.msra.mxu0 0.0
    %949 = vmatprep.subr.mxu0 0.0
    %950 = vmatpush2.msra.mxu0 0.0
    %951 = vmatprep.subr.mxu0 0.0
    %952 = vmatpush2.msra.mxu0 0.0
    %953 = vmatprep.subr.mxu0 0.0
    %954 = vmatpush2.msra.mxu0 0.0
    %955 = vmatprep.subr.mxu0 0.0
    %956 = vmatpush2.msra.mxu0 0.0
    %957 = vmatprep.subr.mxu0 0.0
    %958 = vmatpush2.msra.mxu0 0.0
    %959 = vmatprep.subr.mxu0 0.0
    %960 = vmatpush2.msra.mxu0 0.0
    %961 = vmatprep.subr.mxu0 0.0
    %962 = vmatpush2.msra.mxu0 0.0
    %963 = vmatprep.subr.mxu0 0.0
    %964 = vmatpush2.msra.mxu0 0.0
    %965 = vmatprep.subr.mxu0 0.0
    %966 = vmatpush2.msra.mxu0 0.0
    %967 = vmatprep.subr.mxu0 0.0
    %968 = vmatpush2.msra.mxu0 0.0
    %969 = vmatprep.subr.mxu0 0.0
    %970 = vmatpush2.msra.mxu0 0.0
    %971 = vmatprep.subr.mxu0 0.0
    %972 = vmatpush2.msra.mxu0 0.0
    %973 = vmatprep.mubr.f32.mxu0 0.0
    %974 = vmatmul.mubr.f32.gmra.mxu0 %v339
    %v975 = vpop.f32.mrf.mxu0
    %v976 = vadd.f32 %v244, %v975
    %v977 = vpop.f32.mrf.mxu0
    %v978 = vadd.f32 %v248, %v977
    %979 = vdwg.mxu0
    %980 = vmatprep.subr.mxu0 0.0
    %981 = vmatpush1.msra.mxu0 0.0
    %982 = vmatprep.subr.mxu0 0.0
    %983 = vmatpush1.msra.mxu0 0.0
    %984 = vmatprep.subr.mxu0 0.0
    %985 = vmatpush1.msra.mxu0 0.0
    %986 = vmatprep.subr.mxu0 0.0
    %987 = vmatpush1.msra.mxu0 0.0
    %988 = vmatprep.subr.mxu0 0.0
    %989 = vmatpush1.msra.mxu0 0.0
    %990 = vmatprep.subr.mxu0 0.0
    %991 = vmatpush1.msra.mxu0 0.0
    %992 = vmatprep.subr.mxu0 0.0
    %993 = vmatpush1.msra.mxu0 0.0
    %994 = vmatprep.subr.mxu0 0.0
    %995 = vmatpush1.msra.mxu0 0.0
    %996 = vmatprep.subr.mxu0 0.0
    %997 = vmatpush1.msra.mxu0 0.0
    %998 = vmatprep.subr.mxu0 0.0
    %999 = vmatpush1.msra.mxu0 0.0
    %1000 = vmatprep.subr.mxu0 0.0
    %1001 = vmatpush1.msra.mxu0 0.0
    %1002 = vmatprep.subr.mxu0 0.0
    %1003 = vmatpush1.msra.mxu0 0.0
    %1004 = vmatprep.subr.mxu0 %v156
    %1005 = vmatpush1.msra.mxu0 %v155
    %1006 = vmatprep.subr.mxu0 %v124
    %1007 = vmatpush1.msra.mxu0 %v123
    %1008 = vmatprep.subr.mxu0 %v92
    %1009 = vmatpush1.msra.mxu0 %v91
    %1010 = vmatprep.subr.mxu0 %v60
    %1011 = vmatpush1.msra.mxu0 %v59
    %1012 = vmatprep.subr.mxu0 0.0
    %1013 = vmatpush2.msra.mxu0 0.0
    %1014 = vmatprep.subr.mxu0 0.0
    %1015 = vmatpush2.msra.mxu0 0.0
    %1016 = vmatprep.subr.mxu0 0.0
    %1017 = vmatpush2.msra.mxu0 0.0
    %1018 = vmatprep.subr.mxu0 0.0
    %1019 = vmatpush2.msra.mxu0 0.0
    %1020 = vmatprep.subr.mxu0 0.0
    %1021 = vmatpush2.msra.mxu0 0.0
    %1022 = vmatprep.subr.mxu0 0.0
    %1023 = vmatpush2.msra.mxu0 0.0
    %1024 = vmatprep.subr.mxu0 0.0
    %1025 = vmatpush2.msra.mxu0 0.0
    %1026 = vmatprep.subr.mxu0 0.0
    %1027 = vmatpush2.msra.mxu0 0.0
    %1028 = vmatprep.subr.mxu0 0.0
    %1029 = vmatpush2.msra.mxu0 0.0
    %1030 = vmatprep.subr.mxu0 0.0
    %1031 = vmatpush2.msra.mxu0 0.0
    %1032 = vmatprep.subr.mxu0 0.0
    %1033 = vmatpush2.msra.mxu0 0.0
    %1034 = vmatprep.subr.mxu0 0.0
    %1035 = vmatpush2.msra.mxu0 0.0
    %1036 = vmatprep.subr.mxu0 0.0
    %1037 = vmatpush2.msra.mxu0 0.0
    %1038 = vmatprep.subr.mxu0 0.0
    %1039 = vmatpush2.msra.mxu0 0.0
    %1040 = vmatprep.subr.mxu0 0.0
    %1041 = vmatpush2.msra.mxu0 0.0
    %1042 = vmatprep.subr.mxu0 0.0
    %1043 = vmatpush2.msra.mxu0 0.0
    %1044 = vmatprep.mubr.f32.mxu0 0.0
    %1045 = vmatmul.mubr.f32.gmra.mxu0 %v339
    %v1046 = vpop.f32.mrf.mxu0
    %v1047 = vadd.f32 %v252, %v1046
    %v1048 = vpop.f32.mrf.mxu0
    %v1049 = vadd.f32 %v256, %v1048
    %1050 = vdwg.mxu0
    %1051 = vmatprep.subr.mxu0 0.0
    %1052 = vmatpush1.msra.mxu0 0.0
    %1053 = vmatprep.subr.mxu0 0.0
    %1054 = vmatpush1.msra.mxu0 0.0
    %1055 = vmatprep.subr.mxu0 0.0
    %1056 = vmatpush1.msra.mxu0 0.0
    %1057 = vmatprep.subr.mxu0 0.0
    %1058 = vmatpush1.msra.mxu0 0.0
    %1059 = vmatprep.subr.mxu0 0.0
    %1060 = vmatpush1.msra.mxu0 0.0
    %1061 = vmatprep.subr.mxu0 0.0
    %1062 = vmatpush1.msra.mxu0 0.0
    %1063 = vmatprep.subr.mxu0 0.0
    %1064 = vmatpush1.msra.mxu0 0.0
    %1065 = vmatprep.subr.mxu0 0.0
    %1066 = vmatpush1.msra.mxu0 0.0
    %1067 = vmatprep.subr.mxu0 0.0
    %1068 = vmatpush1.msra.mxu0 0.0
    %1069 = vmatprep.subr.mxu0 0.0
    %1070 = vmatpush1.msra.mxu0 0.0
    %1071 = vmatprep.subr.mxu0 0.0
    %1072 = vmatpush1.msra.mxu0 0.0
    %1073 = vmatprep.subr.mxu0 0.0
    %1074 = vmatpush1.msra.mxu0 0.0
    %1075 = vmatprep.subr.mxu0 %v158
    %1076 = vmatpush1.msra.mxu0 %v157
    %1077 = vmatprep.subr.mxu0 %v126
    %1078 = vmatpush1.msra.mxu0 %v125
    %1079 = vmatprep.subr.mxu0 %v94
    %1080 = vmatpush1.msra.mxu0 %v93
    %1081 = vmatprep.subr.mxu0 %v62
    %1082 = vmatpush1.msra.mxu0 %v61
    %1083 = vmatprep.subr.mxu0 0.0
    %1084 = vmatpush2.msra.mxu0 0.0
    %1085 = vmatprep.subr.mxu0 0.0
    %1086 = vmatpush2.msra.mxu0 0.0
    %1087 = vmatprep.subr.mxu0 0.0
    %1088 = vmatpush2.msra.mxu0 0.0
    %1089 = vmatprep.subr.mxu0 0.0
    %1090 = vmatpush2.msra.mxu0 0.0
    %1091 = vmatprep.subr.mxu0 0.0
    %1092 = vmatpush2.msra.mxu0 0.0
    %1093 = vmatprep.subr.mxu0 0.0
    %1094 = vmatpush2.msra.mxu0 0.0
    %1095 = vmatprep.subr.mxu0 0.0
    %1096 = vmatpush2.msra.mxu0 0.0
    %1097 = vmatprep.subr.mxu0 0.0
    %1098 = vmatpush2.msra.mxu0 0.0
    %1099 = vmatprep.subr.mxu0 0.0
    %1100 = vmatpush2.msra.mxu0 0.0
    %1101 = vmatprep.subr.mxu0 0.0
    %1102 = vmatpush2.msra.mxu0 0.0
    %1103 = vmatprep.subr.mxu0 0.0
    %1104 = vmatpush2.msra.mxu0 0.0
    %1105 = vmatprep.subr.mxu0 0.0
    %1106 = vmatpush2.msra.mxu0 0.0
    %1107 = vmatprep.subr.mxu0 0.0
    %1108 = vmatpush2.msra.mxu0 0.0
    %1109 = vmatprep.subr.mxu0 0.0
    %1110 = vmatpush2.msra.mxu0 0.0
    %1111 = vmatprep.subr.mxu0 0.0
    %1112 = vmatpush2.msra.mxu0 0.0
    %1113 = vmatprep.subr.mxu0 0.0
    %1114 = vmatpush2.msra.mxu0 0.0
    %1115 = vmatprep.mubr.f32.mxu0 0.0
    %1116 = vmatmul.mubr.f32.gmra.mxu0 %v339
    %v1117 = vpop.f32.mrf.mxu0
    %v1118 = vadd.f32 %v260, %v1117
    %v1119 = vpop.f32.mrf.mxu0
    %v1120 = vadd.f32 %v264, %v1119
    %1121 = vdwg.mxu0
    %1122 = vmatprep.subr.mxu0 0.0
    %1123 = vmatpush1.msra.mxu0 0.0
    %1124 = vmatprep.subr.mxu0 0.0
    %1125 = vmatpush1.msra.mxu0 0.0
    %1126 = vmatprep.subr.mxu0 0.0
    %1127 = vmatpush1.msra.mxu0 0.0
    %1128 = vmatprep.subr.mxu0 0.0
    %1129 = vmatpush1.msra.mxu0 0.0
    %1130 = vmatprep.subr.mxu0 0.0
    %1131 = vmatpush1.msra.mxu0 0.0
    %1132 = vmatprep.subr.mxu0 0.0
    %1133 = vmatpush1.msra.mxu0 0.0
    %1134 = vmatprep.subr.mxu0 0.0
    %1135 = vmatpush1.msra.mxu0 0.0
    %1136 = vmatprep.subr.mxu0 0.0
    %1137 = vmatpush1.msra.mxu0 0.0
    %1138 = vmatprep.subr.mxu0 0.0
    %1139 = vmatpush1.msra.mxu0 0.0
    %1140 = vmatprep.subr.mxu0 0.0
    %1141 = vmatpush1.msra.mxu0 0.0
    %1142 = vmatprep.subr.mxu0 0.0
    %1143 = vmatpush1.msra.mxu0 0.0
    %1144 = vmatprep.subr.mxu0 0.0
    %1145 = vmatpush1.msra.mxu0 0.0
    %1146 = vmatprep.subr.mxu0 %v160
    %1147 = vmatpush1.msra.mxu0 %v159
    %1148 = vmatprep.subr.mxu0 %v128
    %1149 = vmatpush1.msra.mxu0 %v127
    %1150 = vmatprep.subr.mxu0 %v96
    %1151 = vmatpush1.msra.mxu0 %v95
    %1152 = vmatprep.subr.mxu0 %v64
    %1153 = vmatpush1.msra.mxu0 %v63
    %1154 = vmatprep.subr.mxu0 0.0
    %1155 = vmatpush2.msra.mxu0 0.0
    %1156 = vmatprep.subr.mxu0 0.0
    %1157 = vmatpush2.msra.mxu0 0.0
    %1158 = vmatprep.subr.mxu0 0.0
    %1159 = vmatpush2.msra.mxu0 0.0
    %1160 = vmatprep.subr.mxu0 0.0
    %1161 = vmatpush2.msra.mxu0 0.0
    %1162 = vmatprep.subr.mxu0 0.0
    %1163 = vmatpush2.msra.mxu0 0.0
    %1164 = vmatprep.subr.mxu0 0.0
    %1165 = vmatpush2.msra.mxu0 0.0
    %1166 = vmatprep.subr.mxu0 0.0
    %1167 = vmatpush2.msra.mxu0 0.0
    %1168 = vmatprep.subr.mxu0 0.0
    %1169 = vmatpush2.msra.mxu0 0.0
    %1170 = vmatprep.subr.mxu0 0.0
    %1171 = vmatpush2.msra.mxu0 0.0
    %1172 = vmatprep.subr.mxu0 0.0
    %1173 = vmatpush2.msra.mxu0 0.0
    %1174 = vmatprep.subr.mxu0 0.0
    %1175 = vmatpush2.msra.mxu0 0.0
    %1176 = vmatprep.subr.mxu0 0.0
    %1177 = vmatpush2.msra.mxu0 0.0
    %1178 = vmatprep.subr.mxu0 0.0
    %1179 = vmatpush2.msra.mxu0 0.0
    %1180 = vmatprep.subr.mxu0 0.0
    %1181 = vmatpush2.msra.mxu0 0.0
    %1182 = vmatprep.subr.mxu0 0.0
    %1183 = vmatpush2.msra.mxu0 0.0
    %1184 = vmatprep.subr.mxu0 0.0
    %1185 = vmatpush2.msra.mxu0 0.0
    %1186 = vmatprep.mubr.f32.mxu0 0.0
    %1187 = vmatmul.mubr.f32.gmra.mxu0 %v339
    %v1188 = vpop.f32.mrf.mxu0
    %v1189 = vadd.f32 %v268, %v1188
    %v1190 = vpop.f32.mrf.mxu0
    %v1191 = vadd.f32 %v272, %v1190
    %1192 = vdwg.mxu0
    %1193 = vmatprep.subr.mxu0 0.0
    %1194 = vmatpush1.msra.mxu0 0.0
    %1195 = vmatprep.subr.mxu0 0.0
    %1196 = vmatpush1.msra.mxu0 0.0
    %1197 = vmatprep.subr.mxu0 0.0
    %1198 = vmatpush1.msra.mxu0 0.0
    %1199 = vmatprep.subr.mxu0 0.0
    %1200 = vmatpush1.msra.mxu0 0.0
    %1201 = vmatprep.subr.mxu0 0.0
    %1202 = vmatpush1.msra.mxu0 0.0
    %1203 = vmatprep.subr.mxu0 0.0
    %1204 = vmatpush1.msra.mxu0 0.0
    %1205 = vmatprep.subr.mxu0 0.0
    %1206 = vmatpush1.msra.mxu0 0.0
    %1207 = vmatprep.subr.mxu0 0.0
    %1208 = vmatpush1.msra.mxu0 0.0
    %1209 = vmatprep.subr.mxu0 0.0
    %1210 = vmatpush1.msra.mxu0 0.0
    %1211 = vmatprep.subr.mxu0 0.0
    %1212 = vmatpush1.msra.mxu0 0.0
    %1213 = vmatprep.subr.mxu0 0.0
    %1214 = vmatpush1.msra.mxu0 0.0
    %1215 = vmatprep.subr.mxu0 0.0
    %1216 = vmatpush1.msra.mxu0 0.0
    %1217 = vmatprep.subr.mxu0 %v162
    %1218 = vmatpush1.msra.mxu0 %v161
    %1219 = vmatprep.subr.mxu0 %v130
    %1220 = vmatpush1.msra.mxu0 %v129
    %1221 = vmatprep.subr.mxu0 %v98
    %1222 = vmatpush1.msra.mxu0 %v97
    %1223 = vmatprep.subr.mxu0 %v66
    %1224 = vmatpush1.msra.mxu0 %v65
    %1225 = vmatprep.subr.mxu0 0.0
    %1226 = vmatpush2.msra.mxu0 0.0
    %1227 = vmatprep.subr.mxu0 0.0
    %1228 = vmatpush2.msra.mxu0 0.0
    %1229 = vmatprep.subr.mxu0 0.0
    %1230 = vmatpush2.msra.mxu0 0.0
    %1231 = vmatprep.subr.mxu0 0.0
    %1232 = vmatpush2.msra.mxu0 0.0
    %1233 = vmatprep.subr.mxu0 0.0
    %1234 = vmatpush2.msra.mxu0 0.0
    %1235 = vmatprep.subr.mxu0 0.0
    %1236 = vmatpush2.msra.mxu0 0.0
    %1237 = vmatprep.subr.mxu0 0.0
    %1238 = vmatpush2.msra.mxu0 0.0
    %1239 = vmatprep.subr.mxu0 0.0
    %1240 = vmatpush2.msra.mxu0 0.0
    %1241 = vmatprep.subr.mxu0 0.0
    %1242 = vmatpush2.msra.mxu0 0.0
    %1243 = vmatprep.subr.mxu0 0.0
    %1244 = vmatpush2.msra.mxu0 0.0
    %1245 = vmatprep.subr.mxu0 0.0
    %1246 = vmatpush2.msra.mxu0 0.0
    %1247 = vmatprep.subr.mxu0 0.0
    %1248 = vmatpush2.msra.mxu0 0.0
    %1249 = vmatprep.subr.mxu0 0.0
    %1250 = vmatpush2.msra.mxu0 0.0
    %1251 = vmatprep.subr.mxu0 0.0
    %1252 = vmatpush2.msra.mxu0 0.0
    %1253 = vmatprep.subr.mxu0 0.0
    %1254 = vmatpush2.msra.mxu0 0.0
    %1255 = vmatprep.subr.mxu0 0.0
    %1256 = vmatpush2.msra.mxu0 0.0
    %1257 = vmatprep.mubr.f32.mxu0 0.0
    %1258 = vmatmul.mubr.f32.gmra.mxu0 %v339
    %v1259 = vpop.f32.mrf.mxu0
    %v1260 = vadd.f32 %v276, %v1259
    %v1261 = vpop.f32.mrf.mxu0
    %v1262 = vadd.f32 %v280, %v1261
    %1263 = vdwg.mxu0
    %1264 = vmatprep.subr.mxu0 0.0
    %1265 = vmatpush1.msra.mxu0 0.0
    %1266 = vmatprep.subr.mxu0 0.0
    %1267 = vmatpush1.msra.mxu0 0.0
    %1268 = vmatprep.subr.mxu0 0.0
    %1269 = vmatpush1.msra.mxu0 0.0
    %1270 = vmatprep.subr.mxu0 0.0
    %1271 = vmatpush1.msra.mxu0 0.0
    %1272 = vmatprep.subr.mxu0 0.0
    %1273 = vmatpush1.msra.mxu0 0.0
    %1274 = vmatprep.subr.mxu0 0.0
    %1275 = vmatpush1.msra.mxu0 0.0
    %1276 = vmatprep.subr.mxu0 0.0
    %1277 = vmatpush1.msra.mxu0 0.0
    %1278 = vmatprep.subr.mxu0 0.0
    %1279 = vmatpush1.msra.mxu0 0.0
    %1280 = vmatprep.subr.mxu0 0.0
    %1281 = vmatpush1.msra.mxu0 0.0
    %1282 = vmatprep.subr.mxu0 0.0
    %1283 = vmatpush1.msra.mxu0 0.0
    %1284 = vmatprep.subr.mxu0 0.0
    %1285 = vmatpush1.msra.mxu0 0.0
    %1286 = vmatprep.subr.mxu0 0.0
    %1287 = vmatpush1.msra.mxu0 0.0
    %1288 = vmatprep.subr.mxu0 %v164
    %1289 = vmatpush1.msra.mxu0 %v163
    %1290 = vmatprep.subr.mxu0 %v132
    %1291 = vmatpush1.msra.mxu0 %v131
    %1292 = vmatprep.subr.mxu0 %v100
    %1293 = vmatpush1.msra.mxu0 %v99
    %1294 = vmatprep.subr.mxu0 %v68
    %1295 = vmatpush1.msra.mxu0 %v67
    %1296 = vmatprep.subr.mxu0 0.0
    %1297 = vmatpush2.msra.mxu0 0.0
    %1298 = vmatprep.subr.mxu0 0.0
    %1299 = vmatpush2.msra.mxu0 0.0
    %1300 = vmatprep.subr.mxu0 0.0
    %1301 = vmatpush2.msra.mxu0 0.0
    %1302 = vmatprep.subr.mxu0 0.0
    %1303 = vmatpush2.msra.mxu0 0.0
    %1304 = vmatprep.subr.mxu0 0.0
    %1305 = vmatpush2.msra.mxu0 0.0
    %1306 = vmatprep.subr.mxu0 0.0
    %1307 = vmatpush2.msra.mxu0 0.0
    %1308 = vmatprep.subr.mxu0 0.0
    %1309 = vmatpush2.msra.mxu0 0.0
    %1310 = vmatprep.subr.mxu0 0.0
    %1311 = vmatpush2.msra.mxu0 0.0
    %1312 = vmatprep.subr.mxu0 0.0
    %1313 = vmatpush2.msra.mxu0 0.0
    %1314 = vmatprep.subr.mxu0 0.0
    %1315 = vmatpush2.msra.mxu0 0.0
    %1316 = vmatprep.subr.mxu0 0.0
    %1317 = vmatpush2.msra.mxu0 0.0
    %1318 = vmatprep.subr.mxu0 0.0
    %1319 = vmatpush2.msra.mxu0 0.0
    %1320 = vmatprep.subr.mxu0 0.0
    %1321 = vmatpush2.msra.mxu0 0.0
    %1322 = vmatprep.subr.mxu0 0.0
    %1323 = vmatpush2.msra.mxu0 0.0
    %1324 = vmatprep.subr.mxu0 0.0
    %1325 = vmatpush2.msra.mxu0 0.0
    %1326 = vmatprep.subr.mxu0 0.0
    %1327 = vmatpush2.msra.mxu0 0.0
    %1328 = vmatprep.mubr.f32.mxu0 0.0
    %1329 = vmatmul.mubr.f32.gmra.mxu0 %v339
    %v1330 = vpop.f32.mrf.mxu0
    %v1331 = vadd.f32 %v284, %v1330
    %v1332 = vpop.f32.mrf.mxu0
    %v1333 = vadd.f32 %v288, %v1332
    %1334 = vdwg.mxu0
    %1335 = vmatprep.subr.mxu0 0.0
    %1336 = vmatpush1.msra.mxu0 0.0
    %1337 = vmatprep.subr.mxu0 0.0
    %1338 = vmatpush1.msra.mxu0 0.0
    %1339 = vmatprep.subr.mxu0 0.0
    %1340 = vmatpush1.msra.mxu0 0.0
    %1341 = vmatprep.subr.mxu0 0.0
    %1342 = vmatpush1.msra.mxu0 0.0
    %1343 = vmatprep.subr.mxu0 0.0
    %1344 = vmatpush1.msra.mxu0 0.0
    %1345 = vmatprep.subr.mxu0 0.0
    %1346 = vmatpush1.msra.mxu0 0.0
    %1347 = vmatprep.subr.mxu0 0.0
    %1348 = vmatpush1.msra.mxu0 0.0
    %1349 = vmatprep.subr.mxu0 0.0
    %1350 = vmatpush1.msra.mxu0 0.0
    %1351 = vmatprep.subr.mxu0 0.0
    %1352 = vmatpush1.msra.mxu0 0.0
    %1353 = vmatprep.subr.mxu0 0.0
    %1354 = vmatpush1.msra.mxu0 0.0
    %1355 = vmatprep.subr.mxu0 0.0
    %1356 = vmatpush1.msra.mxu0 0.0
    %1357 = vmatprep.subr.mxu0 0.0
    %1358 = vmatpush1.msra.mxu0 0.0
    %1359 = vmatprep.subr.mxu0 %v166
    %1360 = vmatpush1.msra.mxu0 %v165
    %1361 = vmatprep.subr.mxu0 %v134
    %1362 = vmatpush1.msra.mxu0 %v133
    %1363 = vmatprep.subr.mxu0 %v102
    %1364 = vmatpush1.msra.mxu0 %v101
    %1365 = vmatprep.subr.mxu0 %v70
    %1366 = vmatpush1.msra.mxu0 %v69
    %1367 = vmatprep.subr.mxu0 0.0
    %1368 = vmatpush2.msra.mxu0 0.0
    %1369 = vmatprep.subr.mxu0 0.0
    %1370 = vmatpush2.msra.mxu0 0.0
    %1371 = vmatprep.subr.mxu0 0.0
    %1372 = vmatpush2.msra.mxu0 0.0
    %1373 = vmatprep.subr.mxu0 0.0
    %1374 = vmatpush2.msra.mxu0 0.0
    %1375 = vmatprep.subr.mxu0 0.0
    %1376 = vmatpush2.msra.mxu0 0.0
    %1377 = vmatprep.subr.mxu0 0.0
    %1378 = vmatpush2.msra.mxu0 0.0
    %1379 = vmatprep.subr.mxu0 0.0
    %1380 = vmatpush2.msra.mxu0 0.0
    %1381 = vmatprep.subr.mxu0 0.0
    %1382 = vmatpush2.msra.mxu0 0.0
    %1383 = vmatprep.subr.mxu0 0.0
    %1384 = vmatpush2.msra.mxu0 0.0
    %1385 = vmatprep.subr.mxu0 0.0
    %1386 = vmatpush2.msra.mxu0 0.0
    %1387 = vmatprep.subr.mxu0 0.0
    %1388 = vmatpush2.msra.mxu0 0.0
    %1389 = vmatprep.subr.mxu0 0.0
    %1390 = vmatpush2.msra.mxu0 0.0
    %1391 = vmatprep.subr.mxu0 0.0
    %1392 = vmatpush2.msra.mxu0 0.0
    %1393 = vmatprep.subr.mxu0 0.0
    %1394 = vmatpush2.msra.mxu0 0.0
    %1395 = vmatprep.subr.mxu0 0.0
    %1396 = vmatpush2.msra.mxu0 0.0
    %1397 = vmatprep.subr.mxu0 0.0
    %1398 = vmatpush2.msra.mxu0 0.0
    %1399 = vmatprep.mubr.f32.mxu0 0.0
    %1400 = vmatmul.mubr.f32.gmra.mxu0 %v339
    %v1401 = vpop.f32.mrf.mxu0
    %v1402 = vadd.f32 %v292, %v1401
    %v1403 = vpop.f32.mrf.mxu0
    %v1404 = vadd.f32 %v296, %v1403
    %1405 = vdwg.mxu0
    %1406 = vmatprep.subr.mxu0 0.0
    %1407 = vmatpush1.msra.mxu0 0.0
    %1408 = vmatprep.subr.mxu0 0.0
    %1409 = vmatpush1.msra.mxu0 0.0
    %1410 = vmatprep.subr.mxu0 0.0
    %1411 = vmatpush1.msra.mxu0 0.0
    %1412 = vmatprep.subr.mxu0 0.0
    %1413 = vmatpush1.msra.mxu0 0.0
    %1414 = vmatprep.subr.mxu0 0.0
    %1415 = vmatpush1.msra.mxu0 0.0
    %1416 = vmatprep.subr.mxu0 0.0
    %1417 = vmatpush1.msra.mxu0 0.0
    %1418 = vmatprep.subr.mxu0 0.0
    %1419 = vmatpush1.msra.mxu0 0.0
    %1420 = vmatprep.subr.mxu0 0.0
    %1421 = vmatpush1.msra.mxu0 0.0
    %1422 = vmatprep.subr.mxu0 0.0
    %1423 = vmatpush1.msra.mxu0 0.0
    %1424 = vmatprep.subr.mxu0 0.0
    %1425 = vmatpush1.msra.mxu0 0.0
    %1426 = vmatprep.subr.mxu0 0.0
    %1427 = vmatpush1.msra.mxu0 0.0
    %1428 = vmatprep.subr.mxu0 0.0
    %1429 = vmatpush1.msra.mxu0 0.0
    %1430 = vmatprep.subr.mxu0 %v168
    %1431 = vmatpush1.msra.mxu0 %v167
    %1432 = vmatprep.subr.mxu0 %v136
    %1433 = vmatpush1.msra.mxu0 %v135
    %1434 = vmatprep.subr.mxu0 %v104
    %1435 = vmatpush1.msra.mxu0 %v103
    %1436 = vmatprep.subr.mxu0 %v72
    %1437 = vmatpush1.msra.mxu0 %v71
    %1438 = vmatprep.subr.mxu0 0.0
    %1439 = vmatpush2.msra.mxu0 0.0
    %1440 = vmatprep.subr.mxu0 0.0
    %1441 = vmatpush2.msra.mxu0 0.0
    %1442 = vmatprep.subr.mxu0 0.0
    %1443 = vmatpush2.msra.mxu0 0.0
    %1444 = vmatprep.subr.mxu0 0.0
    %1445 = vmatpush2.msra.mxu0 0.0
    %1446 = vmatprep.subr.mxu0 0.0
    %1447 = vmatpush2.msra.mxu0 0.0
    %1448 = vmatprep.subr.mxu0 0.0
    %1449 = vmatpush2.msra.mxu0 0.0
    %1450 = vmatprep.subr.mxu0 0.0
    %1451 = vmatpush2.msra.mxu0 0.0
    %1452 = vmatprep.subr.mxu0 0.0
    %1453 = vmatpush2.msra.mxu0 0.0
    %1454 = vmatprep.subr.mxu0 0.0
    %1455 = vmatpush2.msra.mxu0 0.0
    %1456 = vmatprep.subr.mxu0 0.0
    %1457 = vmatpush2.msra.mxu0 0.0
    %1458 = vmatprep.subr.mxu0 0.0
    %1459 = vmatpush2.msra.mxu0 0.0
    %1460 = vmatprep.subr.mxu0 0.0
    %1461 = vmatpush2.msra.mxu0 0.0
    %1462 = vmatprep.subr.mxu0 0.0
    %1463 = vmatpush2.msra.mxu0 0.0
    %1464 = vmatprep.subr.mxu0 0.0
    %1465 = vmatpush2.msra.mxu0 0.0
    %1466 = vmatprep.subr.mxu0 0.0
    %1467 = vmatpush2.msra.mxu0 0.0
    %1468 = vmatprep.subr.mxu0 0.0
    %1469 = vmatpush2.msra.mxu0 0.0
    %1470 = vmatprep.mubr.f32.mxu0 0.0
    %1471 = vmatmul.mubr.f32.gmra.mxu0 %v339
    %v1472 = vpop.f32.mrf.mxu0
    %v1473 = vadd.f32 %v300, %v1472
    %v1474 = vpop.f32.mrf.mxu0
    %v1475 = vadd.f32 %v304, %v1474
    %1476 = vdwg.mxu0
    %v1477 = vmul.f32 %v408, 0.2
    %v1478 = vmul.f32 %v410, 0.2
    %v1479 = vmul.f32 %v479, 0.2
    %v1480 = vmul.f32 %v481, 0.2
    %v1481 = vmul.f32 %v550, 0.2
    %v1482 = vmul.f32 %v552, 0.2
    %v1483 = vmul.f32 %v621, 0.2
    %v1484 = vmul.f32 %v623, 0.2
    %v1485 = vmul.f32 %v692, 0.2
    %v1486 = vmul.f32 %v694, 0.2
    %v1487 = vmul.f32 %v763, 0.2
    %v1488 = vmul.f32 %v765, 0.2
    %v1489 = vmul.f32 %v834, 0.2
    %v1490 = vmul.f32 %v836, 0.2
    %v1491 = vmul.f32 %v905, 0.2
    %v1492 = vmul.f32 %v907, 0.2
    %v1493 = vmul.f32 %v976, 0.2
    %v1494 = vmul.f32 %v978, 0.2
    %v1495 = vmul.f32 %v1047, 0.2
    %v1496 = vmul.f32 %v1049, 0.2
    %v1497 = vmul.f32 %v1118, 0.2
    %v1498 = vmul.f32 %v1120, 0.2
    %v1499 = vmul.f32 %v1189, 0.2
    %v1500 = vmul.f32 %v1191, 0.2
    %v1501 = vmul.f32 %v1260, 0.2
    %v1502 = vmul.f32 %v1262, 0.2
    %v1503 = vmul.f32 %v1331, 0.2
    %v1504 = vmul.f32 %v1333, 0.2
    %v1505 = vmul.f32 %v1402, 0.2
    %v1506 = vmul.f32 %v1404, 0.2
    %v1507 = vmul.f32 %v1473, 0.2
    %v1508 = vmul.f32 %v1475, 0.2
    %v1509 = vmax.f32 %v408, %v1477
    %v1510 = vmax.f32 %v410, %v1478
    %v1511 = vmax.f32 %v479, %v1479
    %v1512 = vmax.f32 %v481, %v1480
    %v1513 = vmax.f32 %v550, %v1481
    %v1514 = vmax.f32 %v552, %v1482
    %v1515 = vmax.f32 %v621, %v1483
    %v1516 = vmax.f32 %v623, %v1484
    %v1517 = vmax.f32 %v692, %v1485
    %v1518 = vmax.f32 %v694, %v1486
    %v1519 = vmax.f32 %v763, %v1487
    %v1520 = vmax.f32 %v765, %v1488
    %v1521 = vmax.f32 %v834, %v1489
    %v1522 = vmax.f32 %v836, %v1490
    %v1523 = vmax.f32 %v905, %v1491
    %v1524 = vmax.f32 %v907, %v1492
    %v1525 = vmax.f32 %v976, %v1493
    %v1526 = vmax.f32 %v978, %v1494
    %v1527 = vmax.f32 %v1047, %v1495
    %v1528 = vmax.f32 %v1049, %v1496
    %v1529 = vmax.f32 %v1118, %v1497
    %v1530 = vmax.f32 %v1120, %v1498
    %v1531 = vmax.f32 %v1189, %v1499
    %v1532 = vmax.f32 %v1191, %v1500
    %v1533 = vmax.f32 %v1260, %v1501
    %v1534 = vmax.f32 %v1262, %v1502
    %v1535 = vmax.f32 %v1331, %v1503
    %v1536 = vmax.f32 %v1333, %v1504
    %v1537 = vmax.f32 %v1402, %v1505
    %v1538 = vmax.f32 %v1404, %v1506
    %v1539 = vmax.f32 %v1473, %v1507
    %v1540 = vmax.f32 %v1475, %v1508
    %v1573 = vcombine.low %v1509, %v1510
    %v1574 = vcombine.low %v1511, %v1512
    %v1576 = vunpack.c.l.s4 1983009808
    %v1577 = vunpack.c.0.s8 %v1576
    %v1578 = vlaneseq
    %v1579 = vshrl.u32 %v1578, 7
    %v1580 = vsub.s32 %v1577, %v1579
    %v1581 = vrot.slane %v1573, %v1580
    %v1583 = vunpack.c.l.s4 1983009808
    %v1584 = vunpack.c.0.s8 %v1583
    %v1585 = vlaneseq
    %v1586 = vshrl.u32 %v1585, 7
    %v1587 = vsub.s32 %v1584, %v1586
    %v1588 = vrot.slane %v1574, %v1587
    %v1589 = vcombine.low %v1581, %v1588
    %v1590 = vcombine.low %v1513, %v1514
    %v1591 = vcombine.low %v1515, %v1516
    %v1593 = vunpack.c.l.s4 1983009808
    %v1594 = vunpack.c.0.s8 %v1593
    %v1595 = vlaneseq
    %v1596 = vshrl.u32 %v1595, 7
    %v1597 = vsub.s32 %v1594, %v1596
    %v1598 = vrot.slane %v1590, %v1597
    %v1600 = vunpack.c.l.s4 1983009808
    %v1601 = vunpack.c.0.s8 %v1600
    %v1602 = vlaneseq
    %v1603 = vshrl.u32 %v1602, 7
    %v1604 = vsub.s32 %v1601, %v1603
    %v1605 = vrot.slane %v1591, %v1604
    %v1606 = vcombine.low %v1598, %v1605
    %v1607 = vcombine.low %v1517, %v1518
    %v1608 = vcombine.low %v1519, %v1520
    %v1610 = vunpack.c.l.s4 1983009808
    %v1611 = vunpack.c.0.s8 %v1610
    %v1612 = vlaneseq
    %v1613 = vshrl.u32 %v1612, 7
    %v1614 = vsub.s32 %v1611, %v1613
    %v1615 = vrot.slane %v1607, %v1614
    %v1617 = vunpack.c.l.s4 1983009808
    %v1618 = vunpack.c.0.s8 %v1617
    %v1619 = vlaneseq
    %v1620 = vshrl.u32 %v1619, 7
    %v1621 = vsub.s32 %v1618, %v1620
    %v1622 = vrot.slane %v1608, %v1621
    %v1623 = vcombine.low %v1615, %v1622
    %v1624 = vcombine.low %v1521, %v1522
    %v1625 = vcombine.low %v1523, %v1524
    %v1627 = vunpack.c.l.s4 1983009808
    %v1628 = vunpack.c.0.s8 %v1627
    %v1629 = vlaneseq
    %v1630 = vshrl.u32 %v1629, 7
    %v1631 = vsub.s32 %v1628, %v1630
    %v1632 = vrot.slane %v1624, %v1631
    %v1634 = vunpack.c.l.s4 1983009808
    %v1635 = vunpack.c.0.s8 %v1634
    %v1636 = vlaneseq
    %v1637 = vshrl.u32 %v1636, 7
    %v1638 = vsub.s32 %v1635, %v1637
    %v1639 = vrot.slane %v1625, %v1638
    %v1640 = vcombine.low %v1632, %v1639
    %v1641 = vcombine.low %v1525, %v1526
    %v1642 = vcombine.low %v1527, %v1528
    %v1644 = vunpack.c.l.s4 1983009808
    %v1645 = vunpack.c.0.s8 %v1644
    %v1646 = vlaneseq
    %v1647 = vshrl.u32 %v1646, 7
    %v1648 = vsub.s32 %v1645, %v1647
    %v1649 = vrot.slane %v1641, %v1648
    %v1651 = vunpack.c.l.s4 1983009808
    %v1652 = vunpack.c.0.s8 %v1651
    %v1653 = vlaneseq
    %v1654 = vshrl.u32 %v1653, 7
    %v1655 = vsub.s32 %v1652, %v1654
    %v1656 = vrot.slane %v1642, %v1655
    %v1657 = vcombine.low %v1649, %v1656
    %v1658 = vcombine.low %v1529, %v1530
    %v1659 = vcombine.low %v1531, %v1532
    %v1661 = vunpack.c.l.s4 1983009808
    %v1662 = vunpack.c.0.s8 %v1661
    %v1663 = vlaneseq
    %v1664 = vshrl.u32 %v1663, 7
    %v1665 = vsub.s32 %v1662, %v1664
    %v1666 = vrot.slane %v1658, %v1665
    %v1668 = vunpack.c.l.s4 1983009808
    %v1669 = vunpack.c.0.s8 %v1668
    %v1670 = vlaneseq
    %v1671 = vshrl.u32 %v1670, 7
    %v1672 = vsub.s32 %v1669, %v1671
    %v1673 = vrot.slane %v1659, %v1672
    %v1674 = vcombine.low %v1666, %v1673
    %v1675 = vcombine.low %v1533, %v1534
    %v1676 = vcombine.low %v1535, %v1536
    %v1678 = vunpack.c.l.s4 1983009808
    %v1679 = vunpack.c.0.s8 %v1678
    %v1680 = vlaneseq
    %v1681 = vshrl.u32 %v1680, 7
    %v1682 = vsub.s32 %v1679, %v1681
    %v1683 = vrot.slane %v1675, %v1682
    %v1685 = vunpack.c.l.s4 1983009808
    %v1686 = vunpack.c.0.s8 %v1685
    %v1687 = vlaneseq
    %v1688 = vshrl.u32 %v1687, 7
    %v1689 = vsub.s32 %v1686, %v1688
    %v1690 = vrot.slane %v1676, %v1689
    %v1691 = vcombine.low %v1683, %v1690
    %v1692 = vcombine.low %v1537, %v1538
    %v1693 = vcombine.low %v1539, %v1540
    %v1695 = vunpack.c.l.s4 1983009808
    %v1696 = vunpack.c.0.s8 %v1695
    %v1697 = vlaneseq
    %v1698 = vshrl.u32 %v1697, 7
    %v1699 = vsub.s32 %v1696, %v1698
    %v1700 = vrot.slane %v1692, %v1699
    %v1702 = vunpack.c.l.s4 1983009808
    %v1703 = vunpack.c.0.s8 %v1702
    %v1704 = vlaneseq
    %v1705 = vshrl.u32 %v1704, 7
    %v1706 = vsub.s32 %v1703, %v1705
    %v1707 = vrot.slane %v1693, %v1706
    %v1708 = vcombine.low %v1700, %v1707
    %1717 = vst [vmem:[%s3] sm:$0xff] %v1589
    %1718 = vst [vmem:[%s3 + $0x8] sm:$0xff] %v1606
    %1719 = vst [vmem:[%s3 + $0x10] sm:$0xff] %v1623
    %1720 = vst [vmem:[%s3 + $0x18] sm:$0xff] %v1640
    %1721 = vst [vmem:[%s3 + $0x20] sm:$0xff] %v1657
    %1722 = vst [vmem:[%s3 + $0x28] sm:$0xff] %v1674
    %1723 = vst [vmem:[%s3 + $0x30] sm:$0xff] %v1691
    %1724 = vst [vmem:[%s3 + $0x38] sm:$0xff] %v1708
    // Predicated region
    $region22: #{generator_forward.6} parent=1 // pred_check
      _
    $region23: #{generator_forward.6} parent=1 // pred_check_branch
      %1726 = sbr.rel (0) target = $region25
    $region24: #{generator_forward.6} parent=1 // pred_region
      _
    $region25: #{generator_forward.6} parent=1 // pred_fallthru
      _
    // Predicated region
    $region26: #{generator_forward.6} parent=1 // pred_check
      _
    $region27: #{generator_forward.6} parent=1 // pred_check_branch
      %1728 = sbr.rel (0) target = $region29
    $region28: #{generator_forward.6} parent=1 // pred_region
      _
    $region29: #{generator_forward.6} parent=1 // pred_fallthru
      _
    %1729 = vsyncpa [#allocation3], 1
    %1730 = vsyncpa [#allocation5], 1

// kernel: generator_forward.10
$region0: #{generator_forward.10}
  #allocation0 [shape = 'u32[]', space=smem, size = 0x4, offset = 0x4, fixed_abs, tag = 'smem constant byte address 0x4 - core index']
  #allocation1 [shape = 'u32[144,128]{1,0:T(1,128)}', space=vmem, size = 0x12000, scoped, tag = 'internal scratch']
  %s0 = inlined_call_operand.vmem [shape: f32[2,4,64,128], index: 0, kind: input, shape index: {}]
  %s1 = inlined_call_operand.vmem [shape: f32[1,128], index: 1, kind: input, shape index: {}]
  %s2 = inlined_call_operand.vmem [shape: f32[1,128], index: 2, kind: input, shape index: {}]
  %s3 = inlined_call_operand.vmem [shape: bf16[2,4,64,128], index: 3, kind: output, shape index: {}]
  %s4 = sld [smem:[#allocation0]]
  $region45: #{generator_forward.10} parent=0
    _
  %s6 = ssub.s32 1, %s4
  %s7 = scalar_select 0, %s6, %s4
  loop: start=0, step=1, limit=4
  $region2: #{generator_forward.10} parent=0 // loop_pre_header
    _
  $region3: #{generator_forward.10} parent=0 // loop_header
    %s9 = sphi 0, %s13
    %p10 = scmp.ge.s32.totalorder %s9, 4
    %s16 = sphi 0, %s28
    %s17 = sphi 0, %s24
    %s18 = sphi 0, %s16
    %s19 = sphi 0, %s17
    %s20 = sphi 0, %s18
    %s21 = sphi 0, %s19
    %s33 = sphi 0, %s35
    %s36 = sphi 0, %s33
    %s37 = sphi 0, %s36
    %s53 = sphi 0, %s37
    %s57 = sphi 0, %s57
    %s59 = sphi 0, %s57
    %s60 = sphi 0, %s59
    %s74 = sphi 0, %s60
    %s78 = sphi 0, %s78
    %s80 = sphi 0, %s78
    %s81 = sphi 0, %s80
    %s95 = sphi 0, %s81
    %s103 = sphi 0, %s105
    %s106 = sphi 0, %s103
    %s107 = sphi 0, %s106
    %s123 = sphi 0, %s107
  $region4: #{generator_forward.10} parent=0 // loop_header_branch
    %12 = sbr.rel (%p10) target = $region8
  $region5: #{generator_forward.10} parent=0 // loop_body
    %s14 = ssub.s32 %s9, 1
    %s15 = ssub.s32 %s9, 2
    %s22 = sadd.s32 1, %s17
    %p23 = scmp.ge.s32.totalorder %s22, 1
    %s24 = scalar_select %p23, 0, %s22
    %s25 = sadd.s32 1, %s16
    %s26 = scalar_select %p23, %s25, %s16
    %p27 = scmp.ge.s32.totalorder %s26, 2
    %s28 = scalar_select %p27, 0, %s26
    %s29 = ssub.s32 %s16, %s28
    %s30 = ssub.s32 %s17, %s24
    %s31 = sor.u32 %s29, %s30
    %p32 = scmp.eq.s32.totalorder %s31, 0
    %s34 = sadd.s32 %s33, 1
    %s35 = scalar_select %p32, %s33, %s34
    %p38 = pneg %p32
    %p39 = scmp.eq.s32.totalorder %s9, 1
    %p40 = por %p38, %p39
    %p41 = scmp.ne.s32.totalorder %s33, %s36
    %p42 = scmp.eq.s32.totalorder %s9, 0
    %p43 = por %p41, %p42
    %p44 = scmp.ne.s32.totalorder %s33, %s36
    %p45 = scmp.eq.s32.totalorder %s14, 1
    %p46 = por %p44, %p45
    %p47 = scmp.ne.s32.totalorder %s36, %s37
    %p48 = scmp.eq.s32.totalorder %s14, 0
    %p49 = por %p47, %p48
    %p50 = scmp.ne.s32.totalorder %s36, %s37
    %p51 = scmp.eq.s32.totalorder %s15, 1
    %p52 = por %p50, %p51
    %p54 = scmp.ne.s32.totalorder %s37, %s53
    %p55 = scmp.eq.s32.totalorder %s15, 0
    %p56 = por %p54, %p55
    %s58 = sadd.s32 %s57, 1
    %p61 = scmp.eq.s32.totalorder %s9, 1
    %p62 = scmp.ne.s32.totalorder %s57, %s59
    %p63 = scmp.eq.s32.totalorder %s9, 0
    %p64 = por %p62, %p63
    %p65 = scmp.ne.s32.totalorder %s57, %s59
    %p66 = scmp.eq.s32.totalorder %s14, 1
    %p67 = por %p65, %p66
    %p68 = scmp.ne.s32.totalorder %s59, %s60
    %p69 = scmp.eq.s32.totalorder %s14, 0
    %p70 = por %p68, %p69
    %p71 = scmp.ne.s32.totalorder %s59, %s60
    %p72 = scmp.eq.s32.totalorder %s15, 1
    %p73 = por %p71, %p72
    %p75 = scmp.ne.s32.totalorder %s60, %s74
    %p76 = scmp.eq.s32.totalorder %s15, 0
    %p77 = por %p75, %p76
    %s79 = sadd.s32 %s78, 1
    %p82 = scmp.eq.s32.totalorder %s9, 1
    %p83 = scmp.ne.s32.totalorder %s78, %s80
    %p84 = scmp.eq.s32.totalorder %s9, 0
    %p85 = por %p83, %p84
    %p86 = scmp.ne.s32.totalorder %s78, %s80
    %p87 = scmp.eq.s32.totalorder %s14, 1
    %p88 = por %p86, %p87
    %p89 = scmp.ne.s32.totalorder %s80, %s81
    %p90 = scmp.eq.s32.totalorder %s14, 0
    %p91 = por %p89, %p90
    %p92 = scmp.ne.s32.totalorder %s80, %s81
    %p93 = scmp.eq.s32.totalorder %s15, 1
    %p94 = por %p92, %p93
    %p96 = scmp.ne.s32.totalorder %s81, %s95
    %p97 = scmp.eq.s32.totalorder %s15, 0
    %p98 = por %p96, %p97
    %s99 = ssub.s32 %s16, %s28
    %s100 = ssub.s32 %s17, %s24
    %s101 = sor.u32 %s99, %s100
    %p102 = scmp.eq.s32.totalorder %s101, 0
    %s104 = sadd.s32 %s103, 1
    %s105 = scalar_select %p102, %s103, %s104
    %p108 = pneg %p102
    %p109 = scmp.eq.s32.totalorder %s9, 1
    %p110 = por %p108, %p109
    %p111 = scmp.ne.s32.totalorder %s103, %s106
    %p112 = scmp.eq.s32.totalorder %s9, 0
    %p113 = por %p111, %p112
    %p114 = scmp.ne.s32.totalorder %s103, %s106
    %p115 = scmp.eq.s32.totalorder %s14, 1
    %p116 = por %p114, %p115
    %p117 = scmp.ne.s32.totalorder %s106, %s107
    %p118 = scmp.eq.s32.totalorder %s14, 0
    %p119 = por %p117, %p118
    %p120 = scmp.ne.s32.totalorder %s106, %s107
    %p121 = scmp.eq.s32.totalorder %s15, 1
    %p122 = por %p120, %p121
    %p124 = scmp.ne.s32.totalorder %s107, %s123
    %p125 = scmp.eq.s32.totalorder %s15, 0
    %p126 = por %p124, %p125
    %p127 = scmp.le.s32.totalorder 1, %s9
    %p128 = scmp.lt.s32.totalorder %s9, 3
    %p129 = pnand %p127, %p128
    %p130 = pneg %p129
    // Predicated region
    $region9: #{generator_forward.10} parent=5 // pred_check
      _
    $region10: #{generator_forward.10} parent=5 // pred_check_branch
      %132 = sbr.rel (%p129) target = $region12
    $region11: #{generator_forward.10} parent=5 // pred_region
      %s133 = ssub.s32 %s9, 1
      // Predicated region
      $region13: #{generator_forward.10} parent=11 // pred_check
        %p134 = pneg %p70
      $region14: #{generator_forward.10} parent=11 // pred_check_branch
        %136 = sbr.rel (%p134) target = $region16
      $region15: #{generator_forward.10} parent=11 // pred_region
        _
      $region16: #{generator_forward.10} parent=11 // pred_fallthru
        _
      // Predicated region
      $region17: #{generator_forward.10} parent=11 // pred_check
        %p137 = pneg %p91
      $region18: #{generator_forward.10} parent=11 // pred_check_branch
        %139 = sbr.rel (%p137) target = $region20
      $region19: #{generator_forward.10} parent=11 // pred_region
        _
      $region20: #{generator_forward.10} parent=11 // pred_fallthru
        _
    $region12: #{generator_forward.10} parent=5 // pred_fallthru
      _
    %p140 = scmp.lt.s32.totalorder %s9, 2
    // Predicated region
    $region21: #{generator_forward.10} parent=5 // pred_check
      %p141 = pneg %p140
    $region22: #{generator_forward.10} parent=5 // pred_check_branch
      %143 = sbr.rel (%p141) target = $region24
    $region23: #{generator_forward.10} parent=5 // pred_region
      // Predicated region
      $region25: #{generator_forward.10} parent=23 // pred_check
        %p144 = pneg %p43
      $region26: #{generator_forward.10} parent=23 // pred_check_branch
        %146 = sbr.rel (%p144) target = $region28
      $region27: #{generator_forward.10} parent=23 // pred_region
        %s147 = smul.u32 8, %s17
        %p148 = scmp.lt.s32.totalorder %s16, 1
        %s149 = scalar_select %p148, %s16, 1
        %p150 = scmp.lt.s32.totalorder %s147, 7
        %s151 = scalar_select %p150, %s147, 7
        %s152 = smul.addr %s149, 32
        %s153 = sadd.s32 %s151, %s152
        %s154 = smul.addr %s153, 8
        %s155 = scalar_lea.vmem %s0, %s154
        %s156 = smul.u32 8, %s17
      $region28: #{generator_forward.10} parent=23 // pred_fallthru
        _
    $region24: #{generator_forward.10} parent=5 // pred_fallthru
      _
    %p157 = scmp.le.s32.totalorder 1, %s9
    %p158 = scmp.lt.s32.totalorder %s9, 3
    %p159 = pnand %p157, %p158
    %p160 = pneg %p159
    // Predicated region
    $region29: #{generator_forward.10} parent=5 // pred_check
      _
    $region30: #{generator_forward.10} parent=5 // pred_check_branch
      %162 = sbr.rel (%p159) target = $region32
    $region31: #{generator_forward.10} parent=5 // pred_region
      %s163 = ssub.s32 %s9, 1
      %s164 = smul.u32 8, %s19
      %p165 = scmp.lt.s32.totalorder %s18, 1
      %s166 = scalar_select %p165, %s18, 1
      %p167 = scmp.lt.s32.totalorder %s164, 7
      %s168 = scalar_select %p167, %s164, 7
      %s169 = smul.addr %s166, 32
      %s170 = sadd.s32 %s168, %s169
      %s171 = smul.addr %s170, 8
      %s172 = scalar_lea.vmem %s0, %s171
      %p173 = pneg %p49
      %p174 = pneg %p46
      %p175 = pneg %p70
      %p176 = pneg %p67
      %p177 = pneg %p91
      %p178 = pneg %p88
      %p179 = pneg %p119
      %p180 = pneg %p116
      %s181 = smul.u32 8, %s19
      %p182 = scmp.lt.s32.totalorder %s18, 1
      %s183 = scalar_select %p182, %s18, 1
      %p184 = scmp.lt.s32.totalorder %s181, 7
      %s185 = scalar_select %p184, %s181, 7
      %s186 = smul.addr %s183, 32
      %s187 = sadd.s32 %s185, %s186
      %s188 = smul.addr %s187, 4
      %s189 = scalar_lea.vmem %s3, %s188
      %s190 = smul.u32 8, %s19
      %p191 = scmp.lt.s32.totalorder %s18, 1
      %s192 = scalar_select %p191, %s18, 1
      %p193 = scmp.lt.s32.totalorder %s190, 7
      %s194 = scalar_select %p193, %s190, 7
      %s195 = smul.addr %s192, 32
      %s196 = sadd.s32 %s194, %s195
      %s197 = smul.addr %s196, 8
      %s198 = scalar_lea.vmem %s0, %s197
      %s199 = smul.u32 8, %s19
      %s200 = smul.u32 8, %s19
      %p201 = scmp.lt.s32.totalorder %s18, 1
      %s202 = scalar_select %p201, %s18, 1
      %p203 = scmp.lt.s32.totalorder %s200, 7
      %s204 = scalar_select %p203, %s200, 7
      %s205 = smul.addr %s202, 32
      %s206 = sadd.s32 %s204, %s205
      %s207 = smul.addr %s206, 4
      %s208 = scalar_lea.vmem %s3, %s207
      %s209 = smul.u32 8, %s19
      %v210 = vld [vmem:[%s1] sm:$0x1]
      %v211 = vld [vmem:[%s2] sm:$0x1]
      %v212 = vld [vmem:[%s198] sm:$0xff]
      %v213 = vld [vmem:[%s198 + $0x8] sm:$0xff]
      %v214 = vld [vmem:[%s198 + $0x10] sm:$0xff]
      %v215 = vld [vmem:[%s198 + $0x18] sm:$0xff]
      %v216 = vld [vmem:[%s198 + $0x20] sm:$0xff]
      %v217 = vld [vmem:[%s198 + $0x28] sm:$0xff]
      %v218 = vld [vmem:[%s198 + $0x30] sm:$0xff]
      %v219 = vld [vmem:[%s198 + $0x38] sm:$0xff]
      %v221 = vlaneseq
      %v222 = vshrl.u32 %v221, 7
      %v223 = vsub.s32 0, %v222
      %v224 = vrot.slane %v210, %v223
      %v226 = vmul.f32 %v212, %v224
      %v227 = vmul.f32 %v213, %v224
      %v228 = vmul.f32 %v214, %v224
      %v229 = vmul.f32 %v215, %v224
      %v230 = vmul.f32 %v216, %v224
      %v231 = vmul.f32 %v217, %v224
      %v232 = vmul.f32 %v218, %v224
      %v233 = vmul.f32 %v219, %v224
      %v235 = vlaneseq
      %v236 = vshrl.u32 %v235, 7
      %v237 = vsub.s32 0, %v236
      %v238 = vrot.slane %v211, %v237
      %v240 = vadd.f32 %v226, %v238
      %v241 = vadd.f32 %v227, %v238
      %v242 = vadd.f32 %v228, %v238
      %v243 = vadd.f32 %v229, %v238
      %v244 = vadd.f32 %v230, %v238
      %v245 = vadd.f32 %v231, %v238
      %v246 = vadd.f32 %v232, %v238
      %v247 = vadd.f32 %v233, %v238
      %v248 = vmul.f32 %v240, 0.2
      %v249 = vmul.f32 %v241, 0.2
      %v250 = vmul.f32 %v242, 0.2
      %v251 = vmul.f32 %v243, 0.2
      %v252 = vmul.f32 %v244, 0.2
      %v253 = vmul.f32 %v245, 0.2
      %v254 = vmul.f32 %v246, 0.2
      %v255 = vmul.f32 %v247, 0.2
      %v256 = vmax.f32 %v240, %v248
      %v257 = vmax.f32 %v241, %v249
      %v258 = vmax.f32 %v242, %v250
      %v259 = vmax.f32 %v243, %v251
      %v260 = vmax.f32 %v244, %v252
      %v261 = vmax.f32 %v245, %v253
      %v262 = vmax.f32 %v246, %v254
      %v263 = vmax.f32 %v247, %v255
      %v264 = vpack.c.bf16 %v257, %v256
      %v265 = vpack.c.bf16 %v259, %v258
      %v266 = vpack.c.bf16 %v261, %v260
      %v267 = vpack.c.bf16 %v263, %v262
      %v272 = vunpack.c.l.b16 %v264
      %v273 = vunpack.c.h.b16 %v264
      %v274 = vunpack.c.l.b16 %v265
      %v275 = vunpack.c.h.b16 %v265
      %v276 = vunpack.c.l.b16 %v266
      %v277 = vunpack.c.h.b16 %v266
      %v278 = vunpack.c.l.b16 %v267
      %v279 = vunpack.c.h.b16 %v267
      %v280 = vpack.c.b16 %v272, %v272
      %v281 = vpack.c.b16 %v273, %v273
      %v282 = vpack.c.b16 %v274, %v274
      %v283 = vpack.c.b16 %v275, %v275
      %v284 = vpack.c.b16 %v276, %v276
      %v285 = vpack.c.b16 %v277, %v277
      %v286 = vpack.c.b16 %v278, %v278
      %v287 = vpack.c.b16 %v279, %v279
      %296 = vst [vmem:[%s208] sm:$0xf] %v280
      %297 = vst [vmem:[%s208 + $0x4] sm:$0xf] %v281
      %298 = vst [vmem:[%s208 + $0x8] sm:$0xf] %v282
      %299 = vst [vmem:[%s208 + $0xc] sm:$0xf] %v283
      %300 = vst [vmem:[%s208 + $0x10] sm:$0xf] %v284
      %301 = vst [vmem:[%s208 + $0x14] sm:$0xf] %v285
      %302 = vst [vmem:[%s208 + $0x18] sm:$0xf] %v286
      %303 = vst [vmem:[%s208 + $0x1c] sm:$0xf] %v287
      %s304 = scalar_lea.vmem %s198, 64
      %v305 = vld [vmem:[%s304] sm:$0xff]
      %v306 = vld [vmem:[%s304 + $0x8] sm:$0xff]
      %v307 = vld [vmem:[%s304 + $0x10] sm:$0xff]
      %v308 = vld [vmem:[%s304 + $0x18] sm:$0xff]
      %v309 = vld [vmem:[%s304 + $0x20] sm:$0xff]
      %v310 = vld [vmem:[%s304 + $0x28] sm:$0xff]
      %v311 = vld [vmem:[%s304 + $0x30] sm:$0xff]
      %v312 = vld [vmem:[%s304 + $0x38] sm:$0xff]
      %v313 = vmul.f32 %v305, %v224
      %v314 = vmul.f32 %v306, %v224
      %v315 = vmul.f32 %v307, %v224
      %v316 = vmul.f32 %v308, %v224
      %v317 = vmul.f32 %v309, %v224
      %v318 = vmul.f32 %v310, %v224
      %v319 = vmul.f32 %v311, %v224
      %v320 = vmul.f32 %v312, %v224
      %v321 = vadd.f32 %v313, %v238
      %v322 = vadd.f32 %v314, %v238
      %v323 = vadd.f32 %v315, %v238
      %v324 = vadd.f32 %v316, %v238
      %v325 = vadd.f32 %v317, %v238
      %v326 = vadd.f32 %v318, %v238
      %v327 = vadd.f32 %v319, %v238
      %v328 = vadd.f32 %v320, %v238
      %v329 = vmul.f32 %v321, 0.2
      %v330 = vmul.f32 %v322, 0.2
      %v331 = vmul.f32 %v323, 0.2
      %v332 = vmul.f32 %v324, 0.2
      %v333 = vmul.f32 %v325, 0.2
      %v334 = vmul.f32 %v326, 0.2
      %v335 = vmul.f32 %v327, 0.2
      %v336 = vmul.f32 %v328, 0.2
      %v337 = vmax.f32 %v321, %v329
      %v338 = vmax.f32 %v322, %v330
      %v339 = vmax.f32 %v323, %v331
      %v340 = vmax.f32 %v324, %v332
      %v341 = vmax.f32 %v325, %v333
      %v342 = vmax.f32 %v326, %v334
      %v343 = vmax.f32 %v327, %v335
      %v344 = vmax.f32 %v328, %v336
      %v345 = vpack.c.bf16 %v338, %v337
      %v346 = vpack.c.bf16 %v340, %v339
      %v347 = vpack.c.bf16 %v342, %v341
      %v348 = vpack.c.bf16 %v344, %v343
      %v353 = vunpack.c.l.b16 %v345
      %v354 = vunpack.c.h.b16 %v345
      %v355 = vunpack.c.l.b16 %v346
      %v356 = vunpack.c.h.b16 %v346
      %v357 = vunpack.c.l.b16 %v347
      %v358 = vunpack.c.h.b16 %v347
      %v359 = vunpack.c.l.b16 %v348
      %v360 = vunpack.c.h.b16 %v348
      %v361 = vpack.c.b16 %v353, %v353
      %v362 = vpack.c.b16 %v354, %v354
      %v363 = vpack.c.b16 %v355, %v355
      %v364 = vpack.c.b16 %v356, %v356
      %v365 = vpack.c.b16 %v357, %v357
      %v366 = vpack.c.b16 %v358, %v358
      %v367 = vpack.c.b16 %v359, %v359
      %v368 = vpack.c.b16 %v360, %v360
      %s377 = scalar_lea.vmem %s208, 32
      %378 = vst [vmem:[%s377] sm:$0xf] %v361
      %379 = vst [vmem:[%s377 + $0x4] sm:$0xf] %v362
      %380 = vst [vmem:[%s377 + $0x8] sm:$0xf] %v363
      %381 = vst [vmem:[%s377 + $0xc] sm:$0xf] %v364
      %382 = vst [vmem:[%s377 + $0x10] sm:$0xf] %v365
      %383 = vst [vmem:[%s377 + $0x14] sm:$0xf] %v366
      %384 = vst [vmem:[%s377 + $0x18] sm:$0xf] %v367
      %385 = vst [vmem:[%s377 + $0x1c] sm:$0xf] %v368
      %s386 = scalar_lea.vmem %s198, 128
      %v387 = vld [vmem:[%s386] sm:$0xff]
      %v388 = vld [vmem:[%s386 + $0x8] sm:$0xff]
      %v389 = vld [vmem:[%s386 + $0x10] sm:$0xff]
      %v390 = vld [vmem:[%s386 + $0x18] sm:$0xff]
      %v391 = vld [vmem:[%s386 + $0x20] sm:$0xff]
      %v392 = vld [vmem:[%s386 + $0x28] sm:$0xff]
      %v393 = vld [vmem:[%s386 + $0x30] sm:$0xff]
      %v394 = vld [vmem:[%s386 + $0x38] sm:$0xff]
      %v395 = vmul.f32 %v387, %v224
      %v396 = vmul.f32 %v388, %v224
      %v397 = vmul.f32 %v389, %v224
      %v398 = vmul.f32 %v390, %v224
      %v399 = vmul.f32 %v391, %v224
      %v400 = vmul.f32 %v392, %v224
      %v401 = vmul.f32 %v393, %v224
      %v402 = vmul.f32 %v394, %v224
      %v403 = vadd.f32 %v395, %v238
      %v404 = vadd.f32 %v396, %v238
      %v405 = vadd.f32 %v397, %v238
      %v406 = vadd.f32 %v398, %v238
      %v407 = vadd.f32 %v399, %v238
      %v408 = vadd.f32 %v400, %v238
      %v409 = vadd.f32 %v401, %v238
      %v410 = vadd.f32 %v402, %v238
      %v411 = vmul.f32 %v403, 0.2
      %v412 = vmul.f32 %v404, 0.2
      %v413 = vmul.f32 %v405, 0.2
      %v414 = vmul.f32 %v406, 0.2
      %v415 = vmul.f32 %v407, 0.2
      %v416 = vmul.f32 %v408, 0.2
      %v417 = vmul.f32 %v409, 0.2
      %v418 = vmul.f32 %v410, 0.2
      %v419 = vmax.f32 %v403, %v411
      %v420 = vmax.f32 %v404, %v412
      %v421 = vmax.f32 %v405, %v413
      %v422 = vmax.f32 %v406, %v414
      %v423 = vmax.f32 %v407, %v415
      %v424 = vmax.f32 %v408, %v416
      %v425 = vmax.f32 %v409, %v417
      %v426 = vmax.f32 %v410, %v418
      %v427 = vpack.c.bf16 %v420, %v419
      %v428 = vpack.c.bf16 %v422, %v421
      %v429 = vpack.c.bf16 %v424, %v423
      %v430 = vpack.c.bf16 %v426, %v425
      %v435 = vunpack.c.l.b16 %v427
      %v436 = vunpack.c.h.b16 %v427
      %v437 = vunpack.c.l.b16 %v428
      %v438 = vunpack.c.h.b16 %v428
      %v439 = vunpack.c.l.b16 %v429
      %v440 = vunpack.c.h.b16 %v429
      %v441 = vunpack.c.l.b16 %v430
      %v442 = vunpack.c.h.b16 %v430
      %v443 = vpack.c.b16 %v435, %v435
      %v444 = vpack.c.b16 %v436, %v436
      %v445 = vpack.c.b16 %v437, %v437
      %v446 = vpack.c.b16 %v438, %v438
      %v447 = vpack.c.b16 %v439, %v439
      %v448 = vpack.c.b16 %v440, %v440
      %v449 = vpack.c.b16 %v441, %v441
      %v450 = vpack.c.b16 %v442, %v442
      %s459 = scalar_lea.vmem %s208, 64
      %460 = vst [vmem:[%s459] sm:$0xf] %v443
      %461 = vst [vmem:[%s459 + $0x4] sm:$0xf] %v444
      %462 = vst [vmem:[%s459 + $0x8] sm:$0xf] %v445
      %463 = vst [vmem:[%s459 + $0xc] sm:$0xf] %v446
      %464 = vst [vmem:[%s459 + $0x10] sm:$0xf] %v447
      %465 = vst [vmem:[%s459 + $0x14] sm:$0xf] %v448
      %466 = vst [vmem:[%s459 + $0x18] sm:$0xf] %v449
      %467 = vst [vmem:[%s459 + $0x1c] sm:$0xf] %v450
      %s468 = scalar_lea.vmem %s198, 192
      %v469 = vld [vmem:[%s468] sm:$0xff]
      %v470 = vld [vmem:[%s468 + $0x8] sm:$0xff]
      %v471 = vld [vmem:[%s468 + $0x10] sm:$0xff]
      %v472 = vld [vmem:[%s468 + $0x18] sm:$0xff]
      %v473 = vld [vmem:[%s468 + $0x20] sm:$0xff]
      %v474 = vld [vmem:[%s468 + $0x28] sm:$0xff]
      %v475 = vld [vmem:[%s468 + $0x30] sm:$0xff]
      %v476 = vld [vmem:[%s468 + $0x38] sm:$0xff]
      %v477 = vmul.f32 %v469, %v224
      %v478 = vmul.f32 %v470, %v224
      %v479 = vmul.f32 %v471, %v224
      %v480 = vmul.f32 %v472, %v224
      %v481 = vmul.f32 %v473, %v224
      %v482 = vmul.f32 %v474, %v224
      %v483 = vmul.f32 %v475, %v224
      %v484 = vmul.f32 %v476, %v224
      %v485 = vadd.f32 %v477, %v238
      %v486 = vadd.f32 %v478, %v238
      %v487 = vadd.f32 %v479, %v238
      %v488 = vadd.f32 %v480, %v238
      %v489 = vadd.f32 %v481, %v238
      %v490 = vadd.f32 %v482, %v238
      %v491 = vadd.f32 %v483, %v238
      %v492 = vadd.f32 %v484, %v238
      %v493 = vmul.f32 %v485, 0.2
      %v494 = vmul.f32 %v486, 0.2
      %v495 = vmul.f32 %v487, 0.2
      %v496 = vmul.f32 %v488, 0.2
      %v497 = vmul.f32 %v489, 0.2
      %v498 = vmul.f32 %v490, 0.2
      %v499 = vmul.f32 %v491, 0.2
      %v500 = vmul.f32 %v492, 0.2
      %v501 = vmax.f32 %v485, %v493
      %v502 = vmax.f32 %v486, %v494
      %v503 = vmax.f32 %v487, %v495
      %v504 = vmax.f32 %v488, %v496
      %v505 = vmax.f32 %v489, %v497
      %v506 = vmax.f32 %v490, %v498
      %v507 = vmax.f32 %v491, %v499
      %v508 = vmax.f32 %v492, %v500
      %v509 = vpack.c.bf16 %v502, %v501
      %v510 = vpack.c.bf16 %v504, %v503
      %v511 = vpack.c.bf16 %v506, %v505
      %v512 = vpack.c.bf16 %v508, %v507
      %v517 = vunpack.c.l.b16 %v509
      %v518 = vunpack.c.h.b16 %v509
      %v519 = vunpack.c.l.b16 %v510
      %v520 = vunpack.c.h.b16 %v510
      %v521 = vunpack.c.l.b16 %v511
      %v522 = vunpack.c.h.b16 %v511
      %v523 = vunpack.c.l.b16 %v512
      %v524 = vunpack.c.h.b16 %v512
      %v525 = vpack.c.b16 %v517, %v517
      %v526 = vpack.c.b16 %v518, %v518
      %v527 = vpack.c.b16 %v519, %v519
      %v528 = vpack.c.b16 %v520, %v520
      %v529 = vpack.c.b16 %v521, %v521
      %v530 = vpack.c.b16 %v522, %v522
      %v531 = vpack.c.b16 %v523, %v523
      %v532 = vpack.c.b16 %v524, %v524
      %s541 = scalar_lea.vmem %s208, 96
      %542 = vst [vmem:[%s541] sm:$0xf] %v525
      %543 = vst [vmem:[%s541 + $0x4] sm:$0xf] %v526
      %544 = vst [vmem:[%s541 + $0x8] sm:$0xf] %v527
      %545 = vst [vmem:[%s541 + $0xc] sm:$0xf] %v528
      %546 = vst [vmem:[%s541 + $0x10] sm:$0xf] %v529
      %547 = vst [vmem:[%s541 + $0x14] sm:$0xf] %v530
      %548 = vst [vmem:[%s541 + $0x18] sm:$0xf] %v531
      %549 = vst [vmem:[%s541 + $0x1c] sm:$0xf] %v532
      %s550 = smul.u32 8, %s19
      %p551 = scmp.lt.s32.totalorder %s18, 1
      %s552 = scalar_select %p551, %s18, 1
      %p553 = scmp.lt.s32.totalorder %s550, 7
      %s554 = scalar_select %p553, %s550, 7
      %s555 = smul.addr %s552, 32
      %s556 = sadd.s32 %s554, %s555
      %s557 = smul.addr %s556, 4
      %s558 = scalar_lea.vmem %s3, %s557
      // Predicated region
      $region33: #{generator_forward.10} parent=31 // pred_check
        %p559 = pneg %p116
      $region34: #{generator_forward.10} parent=31 // pred_check_branch
        %561 = sbr.rel (%p559) target = $region36
      $region35: #{generator_forward.10} parent=31 // pred_region
        %s562 = smul.u32 8, %s19
      $region36: #{generator_forward.10} parent=31 // pred_fallthru
        _
    $region32: #{generator_forward.10} parent=5 // pred_fallthru
      _
    %p563 = scmp.le.s32.totalorder 2, %s9
    // Predicated region
    $region37: #{generator_forward.10} parent=5 // pred_check
      %p564 = pneg %p563
    $region38: #{generator_forward.10} parent=5 // pred_check_branch
      %566 = sbr.rel (%p564) target = $region40
    $region39: #{generator_forward.10} parent=5 // pred_region
      %s567 = ssub.s32 %s9, 2
      // Predicated region
      $region41: #{generator_forward.10} parent=39 // pred_check
        %p568 = pneg %p122
      $region42: #{generator_forward.10} parent=39 // pred_check_branch
        %570 = sbr.rel (%p568) target = $region44
      $region43: #{generator_forward.10} parent=39 // pred_region
        %s571 = smul.u32 8, %s21
        %p572 = scmp.lt.s32.totalorder %s20, 1
        %s573 = scalar_select %p572, %s20, 1
        %p574 = scmp.lt.s32.totalorder %s571, 7
        %s575 = scalar_select %p574, %s571, 7
        %s576 = smul.addr %s573, 32
        %s577 = sadd.s32 %s575, %s576
        %s578 = smul.addr %s577, 4
        %s579 = scalar_lea.vmem %s3, %s578
      $region44: #{generator_forward.10} parent=39 // pred_fallthru
        _
    $region40: #{generator_forward.10} parent=5 // pred_fallthru
      _
  $region6: #{generator_forward.10} parent=0 // loop_footer
    %s13 = sadd.s32 1, %s9
  $region7: #{generator_forward.10} parent=0 // loop_footer_branch
    %8 = sbr.rel target = $region3
  $region8: #{generator_forward.10} parent=0 // loop_exit
    _

// kernel: generator_forward.7
$region0: #{generator_forward.7}
  #allocation0 [shape = 'u32[]', space=smem, size = 0x4, offset = 0x4, fixed_abs, tag = 'smem constant byte address 0x4 - core index']
  #allocation1 [shape = 'u32[144,128]{1,0:T(1,128)}', space=vmem, size = 0x12000, scoped, tag = 'internal scratch']
  %s0 = inlined_call_operand.vmem [shape: bf16[2,4,16,1024], index: 0, kind: input, shape index: {}]
  %s1 = inlined_call_operand.vmem [shape: bf16[4,1024,128], index: 1, kind: input, shape index: {}]
  %s2 = inlined_call_operand.vmem [shape: f32[1,128], index: 2, kind: input, shape index: {}]
  %s3 = inlined_call_operand.vmem [shape: f32[2,4,16,128], index: 3, kind: output, shape index: {0}]
  %s4 = inlined_call_operand.vmem [shape: f32[2,1,1,128], index: 4, kind: output, shape index: {1}]
  %s5 = inlined_call_operand.vmem [shape: f32[2,1,1,128], index: 5, kind: output, shape index: {2}]
  %6 = xla_tuple %s3, %s4, %s5
  %s7 = sld [smem:[#allocation0]]
  $region61: #{generator_forward.7} parent=0
    _
  %s9 = ssub.s32 1, %s7
  %s10 = scalar_select 0, %s9, %s7
  loop: start=0, step=1, limit=4
  $region2: #{generator_forward.7} parent=0 // loop_pre_header
    _
  $region3: #{generator_forward.7} parent=0 // loop_header
    %s12 = sphi 0, %s16
    %p13 = scmp.ge.s32.totalorder %s12, 4
    %s19 = sphi 0, %s31
    %s20 = sphi 0, %s27
    %s21 = sphi 0, %s19
    %s22 = sphi 0, %s20
    %s23 = sphi 0, %s21
    %s24 = sphi 0, %s22
    %s36 = sphi 0, %s38
    %s39 = sphi 0, %s36
    %s40 = sphi 0, %s39
    %s56 = sphi 0, %s40
    %s60 = sphi 0, %s60
    %s62 = sphi 0, %s60
    %s63 = sphi 0, %s62
    %s77 = sphi 0, %s63
    %s81 = sphi 0, %s81
    %s83 = sphi 0, %s81
    %s84 = sphi 0, %s83
    %s98 = sphi 0, %s84
    %s106 = sphi 0, %s108
    %s109 = sphi 0, %s106
    %s110 = sphi 0, %s109
    %s126 = sphi 0, %s110
    %s134 = sphi 0, %s136
    %s137 = sphi 0, %s134
    %s138 = sphi 0, %s137
    %s154 = sphi 0, %s138
    %s162 = sphi 0, %s164
    %s165 = sphi 0, %s162
    %s166 = sphi 0, %s165
    %s182 = sphi 0, %s166
  $region4: #{generator_forward.7} parent=0 // loop_header_branch
    %15 = sbr.rel (%p13) target = $region8
  $region5: #{generator_forward.7} parent=0 // loop_body
    %s17 = ssub.s32 %s12, 1
    %s18 = ssub.s32 %s12, 2
    %s25 = sadd.s32 1, %s20
    %p26 = scmp.ge.s32.totalorder %s25, 1
    %s27 = scalar_select %p26, 0, %s25
    %s28 = sadd.s32 1, %s19
    %s29 = scalar_select %p26, %s28, %s19
    %p30 = scmp.ge.s32.totalorder %s29, 2
    %s31 = scalar_select %p30, 0, %s29
    %s32 = ssub.s32 %s19, %s31
    %s33 = ssub.s32 %s20, %s27
    %s34 = sor.u32 %s32, %s33
    %p35 = scmp.eq.s32.totalorder %s34, 0
    %s37 = sadd.s32 %s36, 1
    %s38 = scalar_select %p35, %s36, %s37
    %p41 = pneg %p35
    %p42 = scmp.eq.s32.totalorder %s12, 1
    %p43 = por %p41, %p42
    %p44 = scmp.ne.s32.totalorder %s36, %s39
    %p45 = scmp.eq.s32.totalorder %s12, 0
    %p46 = por %p44, %p45
    %p47 = scmp.ne.s32.totalorder %s36, %s39
    %p48 = scmp.eq.s32.totalorder %s17, 1
    %p49 = por %p47, %p48
    %p50 = scmp.ne.s32.totalorder %s39, %s40
    %p51 = scmp.eq.s32.totalorder %s17, 0
    %p52 = por %p50, %p51
    %p53 = scmp.ne.s32.totalorder %s39, %s40
    %p54 = scmp.eq.s32.totalorder %s18, 1
    %p55 = por %p53, %p54
    %p57 = scmp.ne.s32.totalorder %s40, %s56
    %p58 = scmp.eq.s32.totalorder %s18, 0
    %p59 = por %p57, %p58
    %s61 = sadd.s32 %s60, 1
    %p64 = scmp.eq.s32.totalorder %s12, 1
    %p65 = scmp.ne.s32.totalorder %s60, %s62
    %p66 = scmp.eq.s32.totalorder %s12, 0
    %p67 = por %p65, %p66
    %p68 = scmp.ne.s32.totalorder %s60, %s62
    %p69 = scmp.eq.s32.totalorder %s17, 1
    %p70 = por %p68, %p69
    %p71 = scmp.ne.s32.totalorder %s62, %s63
    %p72 = scmp.eq.s32.totalorder %s17, 0
    %p73 = por %p71, %p72
    %p74 = scmp.ne.s32.totalorder %s62, %s63
    %p75 = scmp.eq.s32.totalorder %s18, 1
    %p76 = por %p74, %p75
    %p78 = scmp.ne.s32.totalorder %s63, %s77
    %p79 = scmp.eq.s32.totalorder %s18, 0
    %p80 = por %p78, %p79
    %s82 = sadd.s32 %s81, 1
    %p85 = scmp.eq.s32.totalorder %s12, 1
    %p86 = scmp.ne.s32.totalorder %s81, %s83
    %p87 = scmp.eq.s32.totalorder %s12, 0
    %p88 = por %p86, %p87
    %p89 = scmp.ne.s32.totalorder %s81, %s83
    %p90 = scmp.eq.s32.totalorder %s17, 1
    %p91 = por %p89, %p90
    %p92 = scmp.ne.s32.totalorder %s83, %s84
    %p93 = scmp.eq.s32.totalorder %s17, 0
    %p94 = por %p92, %p93
    %p95 = scmp.ne.s32.totalorder %s83, %s84
    %p96 = scmp.eq.s32.totalorder %s18, 1
    %p97 = por %p95, %p96
    %p99 = scmp.ne.s32.totalorder %s84, %s98
    %p100 = scmp.eq.s32.totalorder %s18, 0
    %p101 = por %p99, %p100
    %s102 = ssub.s32 %s19, %s31
    %s103 = ssub.s32 %s20, %s27
    %s104 = sor.u32 %s102, %s103
    %p105 = scmp.eq.s32.totalorder %s104, 0
    %s107 = sadd.s32 %s106, 1
    %s108 = scalar_select %p105, %s106, %s107
    %p111 = pneg %p105
    %p112 = scmp.eq.s32.totalorder %s12, 1
    %p113 = por %p111, %p112
    %p114 = scmp.ne.s32.totalorder %s106, %s109
    %p115 = scmp.eq.s32.totalorder %s12, 0
    %p116 = por %p114, %p115
    %p117 = scmp.ne.s32.totalorder %s106, %s109
    %p118 = scmp.eq.s32.totalorder %s17, 1
    %p119 = por %p117, %p118
    %p120 = scmp.ne.s32.totalorder %s109, %s110
    %p121 = scmp.eq.s32.totalorder %s17, 0
    %p122 = por %p120, %p121
    %p123 = scmp.ne.s32.totalorder %s109, %s110
    %p124 = scmp.eq.s32.totalorder %s18, 1
    %p125 = por %p123, %p124
    %p127 = scmp.ne.s32.totalorder %s110, %s126
    %p128 = scmp.eq.s32.totalorder %s18, 0
    %p129 = por %p127, %p128
    %s130 = ssub.s32 %s19, %s31
    %s131 = ssub.s32 %s20, %s27
    %s132 = sor.u32 %s130, %s131
    %p133 = scmp.eq.s32.totalorder %s132, 0
    %s135 = sadd.s32 %s134, 1
    %s136 = scalar_select %p133, %s134, %s135
    %p139 = pneg %p133
    %p140 = scmp.eq.s32.totalorder %s12, 1
    %p141 = por %p139, %p140
    %p142 = scmp.ne.s32.totalorder %s134, %s137
    %p143 = scmp.eq.s32.totalorder %s12, 0
    %p144 = por %p142, %p143
    %p145 = scmp.ne.s32.totalorder %s134, %s137
    %p146 = scmp.eq.s32.totalorder %s17, 1
    %p147 = por %p145, %p146
    %p148 = scmp.ne.s32.totalorder %s137, %s138
    %p149 = scmp.eq.s32.totalorder %s17, 0
    %p150 = por %p148, %p149
    %p151 = scmp.ne.s32.totalorder %s137, %s138
    %p152 = scmp.eq.s32.totalorder %s18, 1
    %p153 = por %p151, %p152
    %p155 = scmp.ne.s32.totalorder %s138, %s154
    %p156 = scmp.eq.s32.totalorder %s18, 0
    %p157 = por %p155, %p156
    %s158 = ssub.s32 %s19, %s31
    %s159 = ssub.s32 %s20, %s27
    %s160 = sor.u32 %s158, %s159
    %p161 = scmp.eq.s32.totalorder %s160, 0
    %s163 = sadd.s32 %s162, 1
    %s164 = scalar_select %p161, %s162, %s163
    %p167 = pneg %p161
    %p168 = scmp.eq.s32.totalorder %s12, 1
    %p169 = por %p167, %p168
    %p170 = scmp.ne.s32.totalorder %s162, %s165
    %p171 = scmp.eq.s32.totalorder %s12, 0
    %p172 = por %p170, %p171
    %p173 = scmp.ne.s32.totalorder %s162, %s165
    %p174 = scmp.eq.s32.totalorder %s17, 1
    %p175 = por %p173, %p174
    %p176 = scmp.ne.s32.totalorder %s165, %s166
    %p177 = scmp.eq.s32.totalorder %s17, 0
    %p178 = por %p176, %p177
    %p179 = scmp.ne.s32.totalorder %s165, %s166
    %p180 = scmp.eq.s32.totalorder %s18, 1
    %p181 = por %p179, %p180
    %p183 = scmp.ne.s32.totalorder %s166, %s182
    %p184 = scmp.eq.s32.totalorder %s18, 0
    %p185 = por %p183, %p184
    %p186 = scmp.le.s32.totalorder 1, %s12
    %p187 = scmp.lt.s32.totalorder %s12, 3
    %p188 = pnand %p186, %p187
    %p189 = pneg %p188
    // Predicated region
    $region9: #{generator_forward.7} parent=5 // pred_check
      _
    $region10: #{generator_forward.7} parent=5 // pred_check_branch
      %191 = sbr.rel (%p188) target = $region12
    $region11: #{generator_forward.7} parent=5 // pred_region
      %s192 = ssub.s32 %s12, 1
      // Predicated region
      $region13: #{generator_forward.7} parent=11 // pred_check
        %p193 = pneg %p73
      $region14: #{generator_forward.7} parent=11 // pred_check_branch
        %195 = sbr.rel (%p193) target = $region16
      $region15: #{generator_forward.7} parent=11 // pred_region
        _
      $region16: #{generator_forward.7} parent=11 // pred_fallthru
        _
      // Predicated region
      $region17: #{generator_forward.7} parent=11 // pred_check
        %p196 = pneg %p94
      $region18: #{generator_forward.7} parent=11 // pred_check_branch
        %198 = sbr.rel (%p196) target = $region20
      $region19: #{generator_forward.7} parent=11 // pred_region
        _
      $region20: #{generator_forward.7} parent=11 // pred_fallthru
        _
    $region12: #{generator_forward.7} parent=5 // pred_fallthru
      _
    %p199 = scmp.lt.s32.totalorder %s12, 2
    // Predicated region
    $region21: #{generator_forward.7} parent=5 // pred_check
      %p200 = pneg %p199
    $region22: #{generator_forward.7} parent=5 // pred_check_branch
      %202 = sbr.rel (%p200) target = $region24
    $region23: #{generator_forward.7} parent=5 // pred_region
      // Predicated region
      $region25: #{generator_forward.7} parent=23 // pred_check
        %p203 = pneg %p46
      $region26: #{generator_forward.7} parent=23 // pred_check_branch
        %205 = sbr.rel (%p203) target = $region28
      $region27: #{generator_forward.7} parent=23 // pred_region
        %s206 = smul.u32 2, %s20
        %p207 = scmp.lt.s32.totalorder %s19, 1
        %s208 = scalar_select %p207, %s19, 1
        %p209 = scmp.lt.s32.totalorder %s206, 1
        %s210 = scalar_select %p209, %s206, 1
        %s211 = smul.addr %s210, 8
        %s212 = smul.addr %s208, 64
        %s213 = sadd.s32 %s211, %s212
        %s214 = smul.addr %s213, 4
        %s215 = scalar_lea.vmem %s0, %s214
        %s216 = smul.u32 2, %s20
      $region28: #{generator_forward.7} parent=23 // pred_fallthru
        _
    $region24: #{generator_forward.7} parent=5 // pred_fallthru
      _
    %p217 = scmp.le.s32.totalorder 1, %s12
    %p218 = scmp.lt.s32.totalorder %s12, 3
    %p219 = pnand %p217, %p218
    %p220 = pneg %p219
    // Predicated region
    $region29: #{generator_forward.7} parent=5 // pred_check
      _
    $region30: #{generator_forward.7} parent=5 // pred_check_branch
      %222 = sbr.rel (%p219) target = $region32
    $region31: #{generator_forward.7} parent=5 // pred_region
      %s223 = ssub.s32 %s12, 1
      %s224 = smul.u32 2, %s22
      %p225 = scmp.lt.s32.totalorder %s21, 1
      %s226 = scalar_select %p225, %s21, 1
      %p227 = scmp.lt.s32.totalorder %s224, 1
      %s228 = scalar_select %p227, %s224, 1
      %s229 = smul.addr %s228, 8
      %s230 = smul.addr %s226, 64
      %s231 = sadd.s32 %s229, %s230
      %s232 = smul.addr %s231, 4
      %s233 = scalar_lea.vmem %s0, %s232
      %p234 = pneg %p52
      %p235 = pneg %p49
      %p236 = pneg %p73
      %p237 = pneg %p70
      %p238 = pneg %p94
      %p239 = pneg %p91
      %p240 = pneg %p122
      %p241 = pneg %p119
      %s242 = smul.u32 2, %s22
      %p243 = scmp.lt.s32.totalorder %s21, 1
      %s244 = scalar_select %p243, %s21, 1
      %p245 = scmp.lt.s32.totalorder %s242, 1
      %s246 = scalar_select %p245, %s242, 1
      %s247 = smul.addr %s244, 8
      %s248 = sadd.s32 %s246, %s247
      %s249 = smul.addr %s248, 8
      %s250 = scalar_lea.vmem %s3, %s249
      %p251 = pneg %p150
      %p252 = pneg %p147
      %p253 = scmp.lt.s32.totalorder %s21, 1
      %s254 = scalar_select %p253, %s21, 1
      %p255 = scmp.lt.s32.totalorder %s22, 0
      %s256 = scalar_select %p255, %s22, 0
      %s257 = sadd.s32 %s256, %s254
      %s258 = scalar_lea.vmem %s4, %s257
      %p259 = pneg %p178
      %p260 = pneg %p175
      %p261 = scmp.lt.s32.totalorder %s21, 1
      %s262 = scalar_select %p261, %s21, 1
      %p263 = scmp.lt.s32.totalorder %s22, 0
      %s264 = scalar_select %p263, %s22, 0
      %s265 = sadd.s32 %s264, %s262
      %s266 = scalar_lea.vmem %s5, %s265
      %s267 = smul.u32 2, %s22
      %p268 = scmp.lt.s32.totalorder %s21, 1
      %s269 = scalar_select %p268, %s21, 1
      %p270 = scmp.lt.s32.totalorder %s267, 1
      %s271 = scalar_select %p270, %s267, 1
      %s272 = smul.addr %s271, 8
      %s273 = smul.addr %s269, 64
      %s274 = sadd.s32 %s272, %s273
      %s275 = smul.addr %s274, 4
      %s276 = scalar_lea.vmem %s0, %s275
      %s277 = smul.u32 2, %s22
      %s278 = smul.u32 2, %s22
      %p279 = scmp.lt.s32.totalorder %s21, 1
      %s280 = scalar_select %p279, %s21, 1
      %p281 = scmp.lt.s32.totalorder %s278, 1
      %s282 = scalar_select %p281, %s278, 1
      %s283 = smul.addr %s280, 8
      %s284 = sadd.s32 %s282, %s283
      %s285 = smul.addr %s284, 8
      %s286 = scalar_lea.vmem %s3, %s285
      %s287 = smul.u32 2, %s22
      %p288 = scmp.lt.s32.totalorder %s21, 1
      %s289 = scalar_select %p288, %s21, 1
      %p290 = scmp.lt.s32.totalorder %s22, 0
      %s291 = scalar_select %p290, %s22, 0
      %s292 = sadd.s32 %s291, %s289
      %s293 = scalar_lea.vmem %s4, %s292
      %p294 = scmp.lt.s32.totalorder %s21, 1
      %s295 = scalar_select %p294, %s21, 1
      %p296 = scmp.lt.s32.totalorder %s22, 0
      %s297 = scalar_select %p296, %s22, 0
      %s298 = sadd.s32 %s297, %s295
      %s299 = scalar_lea.vmem %s5, %s298
      %v301 = vld [vmem:[%s2] sm:$0x1]
      %v302 = vld [vmem:[%s276] sm:$0xff]
      %v303 = vld [vmem:[%s276 + $0x8] sm:$0xff]
      %v304 = vld [vmem:[%s276 + $0x10] sm:$0xff]
      %v305 = vld [vmem:[%s276 + $0x18] sm:$0xff]
      %v306 = vld [vmem:[%s276 + $0x20] sm:$0xff]
      %v307 = vld [vmem:[%s276 + $0x28] sm:$0xff]
      %v308 = vld [vmem:[%s276 + $0x30] sm:$0xff]
      %v309 = vld [vmem:[%s276 + $0x38] sm:$0xff]
      %v310 = vld [vmem:[%s1] sm:$0xf]
      %v311 = vld [vmem:[%s1 + $0x4] sm:$0xf]
      %v312 = vld [vmem:[%s1 + $0x8] sm:$0xf]
      %v313 = vld [vmem:[%s1 + $0xc] sm:$0xf]
      %v314 = vld [vmem:[%s1 + $0x10] sm:$0xf]
      %v315 = vld [vmem:[%s1 + $0x14] sm:$0xf]
      %v316 = vld [vmem:[%s1 + $0x18] sm:$0xf]
      %v317 = vld [vmem:[%s1 + $0x1c] sm:$0xf]
      %v318 = vld [vmem:[%s1 + $0x20] sm:$0xf]
      %v319 = vld [vmem:[%s1 + $0x24] sm:$0xf]
      %v320 = vld [vmem:[%s1 + $0x28] sm:$0xf]
      %v321 = vld [vmem:[%s1 + $0x2c] sm:$0xf]
      %v322 = vld [vmem:[%s1 + $0x30] sm:$0xf]
      %v323 = vld [vmem:[%s1 + $0x34] sm:$0xf]
      %v324 = vld [vmem:[%s1 + $0x38] sm:$0xf]
      %v325 = vld [vmem:[%s1 + $0x3c] sm:$0xf]
      %v326 = vld [vmem:[%s1 + $0x40] sm:$0xf]
      %v327 = vld [vmem:[%s1 + $0x44] sm:$0xf]
      %v328 = vld [vmem:[%s1 + $0x48] sm:$0xf]
      %v329 = vld [vmem:[%s1 + $0x4c] sm:$0xf]
      %v330 = vld [vmem:[%s1 + $0x50] sm:$0xf]
      %v331 = vld [vmem:[%s1 + $0x54] sm:$0xf]
      %v332 = vld [vmem:[%s1 + $0x58] sm:$0xf]
      %v333 = vld [vmem:[%s1 + $0x5c] sm:$0xf]
      %v334 = vld [vmem:[%s1 + $0x60] sm:$0xf]
      %v335 = vld [vmem:[%s1 + $0x64] sm:$0xf]
      %v336 = vld [vmem:[%s1 + $0x68] sm:$0xf]
      %v337 = vld [vmem:[%s1 + $0x6c] sm:$0xf]
      %v338 = vld [vmem:[%s1 + $0x70] sm:$0xf]
      %v339 = vld [vmem:[%s1 + $0x74] sm:$0xf]
      %v340 = vld [vmem:[%s1 + $0x78] sm:$0xf]
      %v341 = vld [vmem:[%s1 + $0x7c] sm:$0xf]
      %v342 = vld [vmem:[%s1 + $0x80] sm:$0xf]
      %v343 = vld [vmem:[%s1 + $0x84] sm:$0xf]
      %v344 = vld [vmem:[%s1 + $0x88] sm:$0xf]
      %v345 = vld [vmem:[%s1 + $0x8c] sm:$0xf]
      %v346 = vld [vmem:[%s1 + $0x90] sm:$0xf]
      %v347 = vld [vmem:[%s1 + $0x94] sm:$0xf]
      %v348 = vld [vmem:[%s1 + $0x98] sm:$0xf]
      %v349 = vld [vmem:[%s1 + $0x9c] sm:$0xf]
      %v350 = vld [vmem:[%s1 + $0xa0] sm:$0xf]
      %v351 = vld [vmem:[%s1 + $0xa4] sm:$0xf]
      %v352 = vld [vmem:[%s1 + $0xa8] sm:$0xf]
      %v353 = vld [vmem:[%s1 + $0xac] sm:$0xf]
      %v354 = vld [vmem:[%s1 + $0xb0] sm:$0xf]
      %v355 = vld [vmem:[%s1 + $0xb4] sm:$0xf]
      %v356 = vld [vmem:[%s1 + $0xb8] sm:$0xf]
      %v357 = vld [vmem:[%s1 + $0xbc] sm:$0xf]
      %v358 = vld [vmem:[%s1 + $0xc0] sm:$0xf]
      %v359 = vld [vmem:[%s1 + $0xc4] sm:$0xf]
      %v360 = vld [vmem:[%s1 + $0xc8] sm:$0xf]
      %v361 = vld [vmem:[%s1 + $0xcc] sm:$0xf]
      %v362 = vld [vmem:[%s1 + $0xd0] sm:$0xf]
      %v363 = vld [vmem:[%s1 + $0xd4] sm:$0xf]
      %v364 = vld [vmem:[%s1 + $0xd8] sm:$0xf]
      %v365 = vld [vmem:[%s1 + $0xdc] sm:$0xf]
      %v366 = vld [vmem:[%s1 + $0xe0] sm:$0xf]
      %v367 = vld [vmem:[%s1 + $0xe4] sm:$0xf]
      %v368 = vld [vmem:[%s1 + $0xe8] sm:$0xf]
      %v369 = vld [vmem:[%s1 + $0xec] sm:$0xf]
      %v370 = vld [vmem:[%s1 + $0xf0] sm:$0xf]
      %v371 = vld [vmem:[%s1 + $0xf4] sm:$0xf]
      %v372 = vld [vmem:[%s1 + $0xf8] sm:$0xf]
      %v373 = vld [vmem:[%s1 + $0xfc] sm:$0xf]
      %v374 = vld [vmem:[%s1 + $0x100] sm:$0xf]
      %v375 = vld [vmem:[%s1 + $0x104] sm:$0xf]
      %v376 = vld [vmem:[%s1 + $0x108] sm:$0xf]
      %v377 = vld [vmem:[%s1 + $0x10c] sm:$0xf]
      %v378 = vld [vmem:[%s1 + $0x110] sm:$0xf]
      %v379 = vld [vmem:[%s1 + $0x114] sm:$0xf]
      %v380 = vld [vmem:[%s1 + $0x118] sm:$0xf]
      %v381 = vld [vmem:[%s1 + $0x11c] sm:$0xf]
      %v382 = vld [vmem:[%s1 + $0x120] sm:$0xf]
      %v383 = vld [vmem:[%s1 + $0x124] sm:$0xf]
      %v384 = vld [vmem:[%s1 + $0x128] sm:$0xf]
      %v385 = vld [vmem:[%s1 + $0x12c] sm:$0xf]
      %v386 = vld [vmem:[%s1 + $0x130] sm:$0xf]
      %v387 = vld [vmem:[%s1 + $0x134] sm:$0xf]
      %v388 = vld [vmem:[%s1 + $0x138] sm:$0xf]
      %v389 = vld [vmem:[%s1 + $0x13c] sm:$0xf]
      %v390 = vld [vmem:[%s1 + $0x140] sm:$0xf]
      %v391 = vld [vmem:[%s1 + $0x144] sm:$0xf]
      %v392 = vld [vmem:[%s1 + $0x148] sm:$0xf]
      %v393 = vld [vmem:[%s1 + $0x14c] sm:$0xf]
      %v394 = vld [vmem:[%s1 + $0x150] sm:$0xf]
      %v395 = vld [vmem:[%s1 + $0x154] sm:$0xf]
      %v396 = vld [vmem:[%s1 + $0x158] sm:$0xf]
      %v397 = vld [vmem:[%s1 + $0x15c] sm:$0xf]
      %v398 = vld [vmem:[%s1 + $0x160] sm:$0xf]
      %v399 = vld [vmem:[%s1 + $0x164] sm:$0xf]
      %v400 = vld [vmem:[%s1 + $0x168] sm:$0xf]
      %v401 = vld [vmem:[%s1 + $0x16c] sm:$0xf]
      %v402 = vld [vmem:[%s1 + $0x170] sm:$0xf]
      %v403 = vld [vmem:[%s1 + $0x174] sm:$0xf]
      %v404 = vld [vmem:[%s1 + $0x178] sm:$0xf]
      %v405 = vld [vmem:[%s1 + $0x17c] sm:$0xf]
      %v406 = vld [vmem:[%s1 + $0x180] sm:$0xf]
      %v407 = vld [vmem:[%s1 + $0x184] sm:$0xf]
      %v408 = vld [vmem:[%s1 + $0x188] sm:$0xf]
      %v409 = vld [vmem:[%s1 + $0x18c] sm:$0xf]
      %v410 = vld [vmem:[%s1 + $0x190] sm:$0xf]
      %v411 = vld [vmem:[%s1 + $0x194] sm:$0xf]
      %v412 = vld [vmem:[%s1 + $0x198] sm:$0xf]
      %v413 = vld [vmem:[%s1 + $0x19c] sm:$0xf]
      %v414 = vld [vmem:[%s1 + $0x1a0] sm:$0xf]
      %v415 = vld [vmem:[%s1 + $0x1a4] sm:$0xf]
      %v416 = vld [vmem:[%s1 + $0x1a8] sm:$0xf]
      %v417 = vld [vmem:[%s1 + $0x1ac] sm:$0xf]
      %v418 = vld [vmem:[%s1 + $0x1b0] sm:$0xf]
      %v419 = vld [vmem:[%s1 + $0x1b4] sm:$0xf]
      %v420 = vld [vmem:[%s1 + $0x1b8] sm:$0xf]
      %v421 = vld [vmem:[%s1 + $0x1bc] sm:$0xf]
      %v422 = vld [vmem:[%s1 + $0x1c0] sm:$0xf]
      %v423 = vld [vmem:[%s1 + $0x1c4] sm:$0xf]
      %v424 = vld [vmem:[%s1 + $0x1c8] sm:$0xf]
      %v425 = vld [vmem:[%s1 + $0x1cc] sm:$0xf]
      %v426 = vld [vmem:[%s1 + $0x1d0] sm:$0xf]
      %v427 = vld [vmem:[%s1 + $0x1d4] sm:$0xf]
      %v428 = vld [vmem:[%s1 + $0x1d8] sm:$0xf]
      %v429 = vld [vmem:[%s1 + $0x1dc] sm:$0xf]
      %v430 = vld [vmem:[%s1 + $0x1e0] sm:$0xf]
      %v431 = vld [vmem:[%s1 + $0x1e4] sm:$0xf]
      %v432 = vld [vmem:[%s1 + $0x1e8] sm:$0xf]
      %v433 = vld [vmem:[%s1 + $0x1ec] sm:$0xf]
      %v434 = vld [vmem:[%s1 + $0x1f0] sm:$0xf]
      %v435 = vld [vmem:[%s1 + $0x1f4] sm:$0xf]
      %v436 = vld [vmem:[%s1 + $0x1f8] sm:$0xf]
      %v437 = vld [vmem:[%s1 + $0x1fc] sm:$0xf]
      %v439 = vlaneseq
      %v440 = vshrl.u32 %v439, 7
      %v441 = vsub.s32 0, %v440
      %v442 = vrot.slane %v301, %v441
      %v452 = vunpack.c.l.b16 %v302
      %v453 = vunpack.c.h.b16 %v302
      %v454 = vunpack.c.l.b16 %v303
      %v455 = vunpack.c.h.b16 %v303
      %v456 = vunpack.c.l.b16 %v304
      %v457 = vunpack.c.h.b16 %v304
      %v458 = vunpack.c.l.b16 %v305
      %v459 = vunpack.c.h.b16 %v305
      %v460 = vunpack.c.l.b16 %v306
      %v461 = vunpack.c.h.b16 %v306
      %v462 = vunpack.c.l.b16 %v307
      %v463 = vunpack.c.h.b16 %v307
      %v464 = vunpack.c.l.b16 %v308
      %v465 = vunpack.c.h.b16 %v308
      %v466 = vunpack.c.l.b16 %v309
      %v467 = vunpack.c.h.b16 %v309
      %v468 = vpack.c.b16 %v460, %v452
      %v469 = vpack.c.b16 %v461, %v453
      %v470 = vpack.c.b16 %v462, %v454
      %v471 = vpack.c.b16 %v463, %v455
      %v472 = vpack.c.b16 %v464, %v456
      %v473 = vpack.c.b16 %v465, %v457
      %v474 = vpack.c.b16 %v466, %v458
      %v475 = vpack.c.b16 %v467, %v459
      %v612 = vunpack.c.l.b16 %v310
      %v613 = vunpack.c.l.b16 %v311
      %v614 = vunpack.c.l.b16 %v312
      %v615 = vunpack.c.l.b16 %v313
      %v616 = vunpack.c.l.b16 %v314
      %v617 = vunpack.c.l.b16 %v315
      %v618 = vunpack.c.l.b16 %v316
      %v619 = vunpack.c.l.b16 %v317
      %v620 = vunpack.c.l.b16 %v318
      %v621 = vunpack.c.l.b16 %v319
      %v622 = vunpack.c.l.b16 %v320
      %v623 = vunpack.c.l.b16 %v321
      %v624 = vunpack.c.l.b16 %v322
      %v625 = vunpack.c.l.b16 %v323
      %v626 = vunpack.c.l.b16 %v324
      %v627 = vunpack.c.l.b16 %v325
      %v628 = vunpack.c.l.b16 %v326
      %v629 = vunpack.c.l.b16 %v327
      %v630 = vunpack.c.l.b16 %v328
      %v631 = vunpack.c.l.b16 %v329
      %v632 = vunpack.c.l.b16 %v330
      %v633 = vunpack.c.l.b16 %v331
      %v634 = vunpack.c.l.b16 %v332
      %v635 = vunpack.c.l.b16 %v333
      %v636 = vunpack.c.l.b16 %v334
      %v637 = vunpack.c.l.b16 %v335
      %v638 = vunpack.c.l.b16 %v336
      %v639 = vunpack.c.l.b16 %v337
      %v640 = vunpack.c.l.b16 %v338
      %v641 = vunpack.c.l.b16 %v339
      %v642 = vunpack.c.l.b16 %v340
      %v643 = vunpack.c.l.b16 %v341
      %v644 = vunpack.c.l.b16 %v342
      %v645 = vunpack.c.l.b16 %v343
      %v646 = vunpack.c.l.b16 %v344
      %v647 = vunpack.c.l.b16 %v345
      %v648 = vunpack.c.l.b16 %v346
      %v649 = vunpack.c.l.b16 %v347
      %v650 = vunpack.c.l.b16 %v348
      %v651 = vunpack.c.l.b16 %v349
      %v652 = vunpack.c.l.b16 %v350
      %v653 = vunpack.c.l.b16 %v351
      %v654 = vunpack.c.l.b16 %v352
      %v655 = vunpack.c.l.b16 %v353
      %v656 = vunpack.c.l.b16 %v354
      %v657 = vunpack.c.l.b16 %v355
      %v658 = vunpack.c.l.b16 %v356
      %v659 = vunpack.c.l.b16 %v357
      %v660 = vunpack.c.l.b16 %v358
      %v661 = vunpack.c.l.b16 %v359
      %v662 = vunpack.c.l.b16 %v360
      %v663 = vunpack.c.l.b16 %v361
      %v664 = vunpack.c.l.b16 %v362
      %v665 = vunpack.c.l.b16 %v363
      %v666 = vunpack.c.l.b16 %v364
      %v667 = vunpack.c.l.b16 %v365
      %v668 = vunpack.c.l.b16 %v366
      %v669 = vunpack.c.l.b16 %v367
      %v670 = vunpack.c.l.b16 %v368
      %v671 = vunpack.c.l.b16 %v369
      %v672 = vunpack.c.l.b16 %v370
      %v673 = vunpack.c.l.b16 %v371
      %v674 = vunpack.c.l.b16 %v372
      %v675 = vunpack.c.l.b16 %v373
      %v676 = vunpack.c.l.b16 %v374
      %v677 = vunpack.c.l.b16 %v375
      %v678 = vunpack.c.l.b16 %v376
      %v679 = vunpack.c.l.b16 %v377
      %v680 = vunpack.c.l.b16 %v378
      %v681 = vunpack.c.l.b16 %v379
      %v682 = vunpack.c.l.b16 %v380
      %v683 = vunpack.c.l.b16 %v381
      %v684 = vunpack.c.l.b16 %v382
      %v685 = vunpack.c.l.b16 %v383
      %v686 = vunpack.c.l.b16 %v384
      %v687 = vunpack.c.l.b16 %v385
      %v688 = vunpack.c.l.b16 %v386
      %v689 = vunpack.c.l.b16 %v387
      %v690 = vunpack.c.l.b16 %v388
      %v691 = vunpack.c.l.b16 %v389
      %v692 = vunpack.c.l.b16 %v390
      %v693 = vunpack.c.l.b16 %v391
      %v694 = vunpack.c.l.b16 %v392
      %v695 = vunpack.c.l.b16 %v393
      %v696 = vunpack.c.l.b16 %v394
      %v697 = vunpack.c.l.b16 %v395
      %v698 = vunpack.c.l.b16 %v396
      %v699 = vunpack.c.l.b16 %v397
      %v700 = vunpack.c.l.b16 %v398
      %v701 = vunpack.c.l.b16 %v399
      %v702 = vunpack.c.l.b16 %v400
      %v703 = vunpack.c.l.b16 %v401
      %v704 = vunpack.c.l.b16 %v402
      %v705 = vunpack.c.l.b16 %v403
      %v706 = vunpack.c.l.b16 %v404
      %v707 = vunpack.c.l.b16 %v405
      %v708 = vunpack.c.l.b16 %v406
      %v709 = vunpack.c.l.b16 %v407
      %v710 = vunpack.c.l.b16 %v408
      %v711 = vunpack.c.l.b16 %v409
      %v712 = vunpack.c.l.b16 %v410
      %v713 = vunpack.c.l.b16 %v411
      %v714 = vunpack.c.l.b16 %v412
      %v715 = vunpack.c.l.b16 %v413
      %v716 = vunpack.c.l.b16 %v414
      %v717 = vunpack.c.l.b16 %v415
      %v718 = vunpack.c.l.b16 %v416
      %v719 = vunpack.c.l.b16 %v417
      %v720 = vunpack.c.l.b16 %v418
      %v721 = vunpack.c.l.b16 %v419
      %v722 = vunpack.c.l.b16 %v420
      %v723 = vunpack.c.l.b16 %v421
      %v724 = vunpack.c.l.b16 %v422
      %v725 = vunpack.c.l.b16 %v423
      %v726 = vunpack.c.l.b16 %v424
      %v727 = vunpack.c.l.b16 %v425
      %v728 = vunpack.c.l.b16 %v426
      %v729 = vunpack.c.l.b16 %v427
      %v730 = vunpack.c.l.b16 %v428
      %v731 = vunpack.c.l.b16 %v429
      %v732 = vunpack.c.l.b16 %v430
      %v733 = vunpack.c.l.b16 %v431
      %v734 = vunpack.c.l.b16 %v432
      %v735 = vunpack.c.l.b16 %v433
      %v736 = vunpack.c.l.b16 %v434
      %v737 = vunpack.c.l.b16 %v435
      %v738 = vunpack.c.l.b16 %v436
      %v739 = vunpack.c.l.b16 %v437
      %v740 = vpack.c.b16 %v613, %v612
      %v741 = vpack.c.b16 %v615, %v614
      %v742 = vpack.c.b16 %v617, %v616
      %v743 = vpack.c.b16 %v619, %v618
      %v744 = vpack.c.b16 %v621, %v620
      %v745 = vpack.c.b16 %v623, %v622
      %v746 = vpack.c.b16 %v625, %v624
      %v747 = vpack.c.b16 %v627, %v626
      %v748 = vpack.c.b16 %v629, %v628
      %v749 = vpack.c.b16 %v631, %v630
      %v750 = vpack.c.b16 %v633, %v632
      %v751 = vpack.c.b16 %v635, %v634
      %v752 = vpack.c.b16 %v637, %v636
      %v753 = vpack.c.b16 %v639, %v638
      %v754 = vpack.c.b16 %v641, %v640
      %v755 = vpack.c.b16 %v643, %v642
      %v756 = vpack.c.b16 %v645, %v644
      %v757 = vpack.c.b16 %v647, %v646
      %v758 = vpack.c.b16 %v649, %v648
      %v759 = vpack.c.b16 %v651, %v650
      %v760 = vpack.c.b16 %v653, %v652
      %v761 = vpack.c.b16 %v655, %v654
      %v762 = vpack.c.b16 %v657, %v656
      %v763 = vpack.c.b16 %v659, %v658
      %v764 = vpack.c.b16 %v661, %v660
      %v765 = vpack.c.b16 %v663, %v662
      %v766 = vpack.c.b16 %v665, %v664
      %v767 = vpack.c.b16 %v667, %v666
      %v768 = vpack.c.b16 %v669, %v668
      %v769 = vpack.c.b16 %v671, %v670
      %v770 = vpack.c.b16 %v673, %v672
      %v771 = vpack.c.b16 %v675, %v674
      %v772 = vpack.c.b16 %v677, %v676
      %v773 = vpack.c.b16 %v679, %v678
      %v774 = vpack.c.b16 %v681, %v680
      %v775 = vpack.c.b16 %v683, %v682
      %v776 = vpack.c.b16 %v685, %v684
      %v777 = vpack.c.b16 %v687, %v686
      %v778 = vpack.c.b16 %v689, %v688
      %v779 = vpack.c.b16 %v691, %v690
      %v780 = vpack.c.b16 %v693, %v692
      %v781 = vpack.c.b16 %v695, %v694
      %v782 = vpack.c.b16 %v697, %v696
      %v783 = vpack.c.b16 %v699, %v698
      %v784 = vpack.c.b16 %v701, %v700
      %v785 = vpack.c.b16 %v703, %v702
      %v786 = vpack.c.b16 %v705, %v704
      %v787 = vpack.c.b16 %v707, %v706
      %v788 = vpack.c.b16 %v709, %v708
      %v789 = vpack.c.b16 %v711, %v710
      %v790 = vpack.c.b16 %v713, %v712
      %v791 = vpack.c.b16 %v715, %v714
      %v792 = vpack.c.b16 %v717, %v716
      %v793 = vpack.c.b16 %v719, %v718
      %v794 = vpack.c.b16 %v721, %v720
      %v795 = vpack.c.b16 %v723, %v722
      %v796 = vpack.c.b16 %v725, %v724
      %v797 = vpack.c.b16 %v727, %v726
      %v798 = vpack.c.b16 %v729, %v728
      %v799 = vpack.c.b16 %v731, %v730
      %v800 = vpack.c.b16 %v733, %v732
      %v801 = vpack.c.b16 %v735, %v734
      %v802 = vpack.c.b16 %v737, %v736
      %v803 = vpack.c.b16 %v739, %v738
      %868 = vmatprep.subr.bf16.mxu0 0
      %869 = vmatpush1.bf16.msra.mxu0 %v747
      %870 = vmatprep.subr.bf16.mxu0 0
      %871 = vmatpush1.bf16.msra.mxu0 %v746
      %872 = vmatprep.subr.bf16.mxu0 0
      %873 = vmatpush1.bf16.msra.mxu0 %v745
      %874 = vmatprep.subr.bf16.mxu0 0
      %875 = vmatpush1.bf16.msra.mxu0 %v744
      %876 = vmatprep.subr.bf16.mxu0 0
      %877 = vmatpush1.bf16.msra.mxu0 %v743
      %878 = vmatprep.subr.bf16.mxu0 0
      %879 = vmatpush1.bf16.msra.mxu0 %v742
      %880 = vmatprep.subr.bf16.mxu0 0
      %881 = vmatpush1.bf16.msra.mxu0 %v741
      %882 = vmatprep.subr.bf16.mxu0 0
      %883 = vmatpush1.bf16.msra.mxu0 %v740
      %884 = vmatprep.subr.bf16.mxu0 0
      %885 = vmatpush2.bf16.msra.mxu0 %v755
      %886 = vmatprep.subr.bf16.mxu0 0
      %887 = vmatpush2.bf16.msra.mxu0 %v754
      %888 = vmatprep.subr.bf16.mxu0 0
      %889 = vmatpush2.bf16.msra.mxu0 %v753
      %890 = vmatprep.subr.bf16.mxu0 0
      %891 = vmatpush2.bf16.msra.mxu0 %v752
      %892 = vmatprep.subr.bf16.mxu0 0
      %893 = vmatpush2.bf16.msra.mxu0 %v751
      %894 = vmatprep.subr.bf16.mxu0 0
      %895 = vmatpush2.bf16.msra.mxu0 %v750
      %896 = vmatprep.subr.bf16.mxu0 0
      %897 = vmatpush2.bf16.msra.mxu0 %v749
      %898 = vmatprep.subr.bf16.mxu0 0
      %899 = vmatpush2.bf16.msra.mxu0 %v748
      %900 = vmatprep.mubr.bf16.mxu0 %v469
      %901 = vmatmul.mubr.bf16.gmra.mxu0 %v468
      %v902 = vpop.f32.mrf.mxu0
      %v903 = vadd.f32 %v442, %v902
      %v904 = vpop.f32.mrf.mxu0
      %v905 = vpop.f32.mrf.mxu0
      %v906 = vadd.f32 %v442, %v905
      %v907 = vpop.f32.mrf.mxu0
      %908 = vdwg.mxu0
      %909 = vmatprep.subr.bf16.mxu0 0
      %910 = vmatpush1.bf16.msra.mxu0 %v763
      %911 = vmatprep.subr.bf16.mxu0 0
      %912 = vmatpush1.bf16.msra.mxu0 %v762
      %913 = vmatprep.subr.bf16.mxu0 0
      %914 = vmatpush1.bf16.msra.mxu0 %v761
      %915 = vmatprep.subr.bf16.mxu0 0
      %916 = vmatpush1.bf16.msra.mxu0 %v760
      %917 = vmatprep.subr.bf16.mxu0 0
      %918 = vmatpush1.bf16.msra.mxu0 %v759
      %919 = vmatprep.subr.bf16.mxu0 0
      %920 = vmatpush1.bf16.msra.mxu0 %v758
      %921 = vmatprep.subr.bf16.mxu0 0
      %922 = vmatpush1.bf16.msra.mxu0 %v757
      %923 = vmatprep.subr.bf16.mxu0 0
      %924 = vmatpush1.bf16.msra.mxu0 %v756
      %925 = vmatprep.subr.bf16.mxu0 0
      %926 = vmatpush2.bf16.msra.mxu0 %v771
      %927 = vmatprep.subr.bf16.mxu0 0
      %928 = vmatpush2.bf16.msra.mxu0 %v770
      %929 = vmatprep.subr.bf16.mxu0 0
      %930 = vmatpush2.bf16.msra.mxu0 %v769
      %931 = vmatprep.subr.bf16.mxu0 0
      %932 = vmatpush2.bf16.msra.mxu0 %v768
      %933 = vmatprep.subr.bf16.mxu0 0
      %934 = vmatpush2.bf16.msra.mxu0 %v767
      %935 = vmatprep.subr.bf16.mxu0 0
      %936 = vmatpush2.bf16.msra.mxu0 %v766
      %937 = vmatprep.subr.bf16.mxu0 0
      %938 = vmatpush2.bf16.msra.mxu0 %v765
      %939 = vmatprep.subr.bf16.mxu0 0
      %940 = vmatpush2.bf16.msra.mxu0 %v764
      %941 = vmatprep.mubr.bf16.mxu0 %v471
      %942 = vmatmul.mubr.bf16.gmra.mxu0 %v470
      %v943 = vpop.f32.mrf.mxu0
      %v944 = vadd.f32 %v903, %v943
      %v945 = vpop.f32.mrf.mxu0
      %v946 = vpop.f32.mrf.mxu0
      %v947 = vadd.f32 %v906, %v946
      %v948 = vpop.f32.mrf.mxu0
      %949 = vdwg.mxu0
      %950 = vmatprep.subr.bf16.mxu0 0
      %951 = vmatpush1.bf16.msra.mxu0 %v779
      %952 = vmatprep.subr.bf16.mxu0 0
      %953 = vmatpush1.bf16.msra.mxu0 %v778
      %954 = vmatprep.subr.bf16.mxu0 0
      %955 = vmatpush1.bf16.msra.mxu0 %v777
      %956 = vmatprep.subr.bf16.mxu0 0
      %957 = vmatpush1.bf16.msra.mxu0 %v776
      %958 = vmatprep.subr.bf16.mxu0 0
      %959 = vmatpush1.bf16.msra.mxu0 %v775
      %960 = vmatprep.subr.bf16.mxu0 0
      %961 = vmatpush1.bf16.msra.mxu0 %v774
      %962 = vmatprep.subr.bf16.mxu0 0
      %963 = vmatpush1.bf16.msra.mxu0 %v773
      %964 = vmatprep.subr.bf16.mxu0 0
      %965 = vmatpush1.bf16.msra.mxu0 %v772
      %966 = vmatprep.subr.bf16.mxu0 0
      %967 = vmatpush2.bf16.msra.mxu0 %v787
      %968 = vmatprep.subr.bf16.mxu0 0
      %969 = vmatpush2.bf16.msra.mxu0 %v786
      %970 = vmatprep.subr.bf16.mxu0 0
      %971 = vmatpush2.bf16.msra.mxu0 %v785
      %972 = vmatprep.subr.bf16.mxu0 0
      %973 = vmatpush2.bf16.msra.mxu0 %v784
      %974 = vmatprep.subr.bf16.mxu0 0
      %975 = vmatpush2.bf16.msra.mxu0 %v783
      %976 = vmatprep.subr.bf16.mxu0 0
      %977 = vmatpush2.bf16.msra.mxu0 %v782
      %978 = vmatprep.subr.bf16.mxu0 0
      %979 = vmatpush2.bf16.msra.mxu0 %v781
      %980 = vmatprep.subr.bf16.mxu0 0
      %981 = vmatpush2.bf16.msra.mxu0 %v780
      %982 = vmatprep.mubr.bf16.mxu0 %v473
      %983 = vmatmul.mubr.bf16.gmra.mxu0 %v472
      %v984 = vpop.f32.mrf.mxu0
      %v985 = vadd.f32 %v944, %v984
      %v986 = vpop.f32.mrf.mxu0
      %v987 = vpop.f32.mrf.mxu0
      %v988 = vadd.f32 %v947, %v987
      %v989 = vpop.f32.mrf.mxu0
      %990 = vdwg.mxu0
      %991 = vmatprep.subr.bf16.mxu0 0
      %992 = vmatpush1.bf16.msra.mxu0 %v795
      %993 = vmatprep.subr.bf16.mxu0 0
      %994 = vmatpush1.bf16.msra.mxu0 %v794
      %995 = vmatprep.subr.bf16.mxu0 0
      %996 = vmatpush1.bf16.msra.mxu0 %v793
      %997 = vmatprep.subr.bf16.mxu0 0
      %998 = vmatpush1.bf16.msra.mxu0 %v792
      %999 = vmatprep.subr.bf16.mxu0 0
      %1000 = vmatpush1.bf16.msra.mxu0 %v791
      %1001 = vmatprep.subr.bf16.mxu0 0
      %1002 = vmatpush1.bf16.msra.mxu0 %v790
      %1003 = vmatprep.subr.bf16.mxu0 0
      %1004 = vmatpush1.bf16.msra.mxu0 %v789
      %1005 = vmatprep.subr.bf16.mxu0 0
      %1006 = vmatpush1.bf16.msra.mxu0 %v788
      %1007 = vmatprep.subr.bf16.mxu0 0
      %1008 = vmatpush2.bf16.msra.mxu0 %v803
      %1009 = vmatprep.subr.bf16.mxu0 0
      %1010 = vmatpush2.bf16.msra.mxu0 %v802
      %1011 = vmatprep.subr.bf16.mxu0 0
      %1012 = vmatpush2.bf16.msra.mxu0 %v801
      %1013 = vmatprep.subr.bf16.mxu0 0
      %1014 = vmatpush2.bf16.msra.mxu0 %v800
      %1015 = vmatprep.subr.bf16.mxu0 0
      %1016 = vmatpush2.bf16.msra.mxu0 %v799
      %1017 = vmatprep.subr.bf16.mxu0 0
      %1018 = vmatpush2.bf16.msra.mxu0 %v798
      %1019 = vmatprep.subr.bf16.mxu0 0
      %1020 = vmatpush2.bf16.msra.mxu0 %v797
      %1021 = vmatprep.subr.bf16.mxu0 0
      %1022 = vmatpush2.bf16.msra.mxu0 %v796
      %1023 = vmatprep.mubr.bf16.mxu0 %v475
      %1024 = vmatmul.mubr.bf16.gmra.mxu0 %v474
      %v1025 = vpop.f32.mrf.mxu0
      %v1026 = vadd.f32 %v985, %v1025
      %v1027 = vpop.f32.mrf.mxu0
      %v1028 = vpop.f32.mrf.mxu0
      %v1029 = vadd.f32 %v988, %v1028
      %v1030 = vpop.f32.mrf.mxu0
      %1031 = vdwg.mxu0
      %1032 = vst [vmem:[%s286] sm:$0xff] %v1026
      %1033 = vst [vmem:[%s286 + $0x8] sm:$0xff] %v1029
      %v1034 = vadd.f32 %v1026, %v1029
      %v1035 = vrot.slane %v1034, 4
      %v1036 = vadd.f32 %v1034, %v1035
      %v1037 = vrot.slane %v1036, 2
      %v1038 = vadd.f32 %v1036, %v1037
      %v1039 = vrot.slane %v1038, 1
      %v1040 = vadd.f32 %v1038, %v1039
      %v1041 = vadd.f32 %v1040, 0.0
      %v1042 = vmul.f32 %v1026, %v1026
      %v1043 = vmul.f32 %v1029, %v1029
      %v1044 = vadd.f32 %v1042, %v1043
      %v1045 = vrot.slane %v1044, 4
      %v1046 = vadd.f32 %v1044, %v1045
      %v1047 = vrot.slane %v1046, 2
      %v1048 = vadd.f32 %v1046, %v1047
      %v1049 = vrot.slane %v1048, 1
      %v1050 = vadd.f32 %v1048, %v1049
      %v1051 = vadd.f32 %v1050, 0.0
      %s1052 = scalar_lea.vmem %s276, 64
      %v1053 = vld [vmem:[%s1052] sm:$0xff]
      %v1054 = vld [vmem:[%s1052 + $0x8] sm:$0xff]
      %v1055 = vld [vmem:[%s1052 + $0x10] sm:$0xff]
      %v1056 = vld [vmem:[%s1052 + $0x18] sm:$0xff]
      %v1057 = vld [vmem:[%s1052 + $0x20] sm:$0xff]
      %v1058 = vld [vmem:[%s1052 + $0x28] sm:$0xff]
      %v1059 = vld [vmem:[%s1052 + $0x30] sm:$0xff]
      %v1060 = vld [vmem:[%s1052 + $0x38] sm:$0xff]
      %s1061 = scalar_lea.vmem %s1, 512
      %v1062 = vld [vmem:[%s1061] sm:$0xf]
      %v1063 = vld [vmem:[%s1061 + $0x4] sm:$0xf]
      %v1064 = vld [vmem:[%s1061 + $0x8] sm:$0xf]
      %v1065 = vld [vmem:[%s1061 + $0xc] sm:$0xf]
      %v1066 = vld [vmem:[%s1061 + $0x10] sm:$0xf]
      %v1067 = vld [vmem:[%s1061 + $0x14] sm:$0xf]
      %v1068 = vld [vmem:[%s1061 + $0x18] sm:$0xf]
      %v1069 = vld [vmem:[%s1061 + $0x1c] sm:$0xf]
      %v1070 = vld [vmem:[%s1061 + $0x20] sm:$0xf]
      %v1071 = vld [vmem:[%s1061 + $0x24] sm:$0xf]
      %v1072 = vld [vmem:[%s1061 + $0x28] sm:$0xf]
      %v1073 = vld [vmem:[%s1061 + $0x2c] sm:$0xf]
      %v1074 = vld [vmem:[%s1061 + $0x30] sm:$0xf]
      %v1075 = vld [vmem:[%s1061 + $0x34] sm:$0xf]
      %v1076 = vld [vmem:[%s1061 + $0x38] sm:$0xf]
      %v1077 = vld [vmem:[%s1061 + $0x3c] sm:$0xf]
      %v1078 = vld [vmem:[%s1061 + $0x40] sm:$0xf]
      %v1079 = vld [vmem:[%s1061 + $0x44] sm:$0xf]
      %v1080 = vld [vmem:[%s1061 + $0x48] sm:$0xf]
      %v1081 = vld [vmem:[%s1061 + $0x4c] sm:$0xf]
      %v1082 = vld [vmem:[%s1061 + $0x50] sm:$0xf]
      %v1083 = vld [vmem:[%s1061 + $0x54] sm:$0xf]
      %v1084 = vld [vmem:[%s1061 + $0x58] sm:$0xf]
      %v1085 = vld [vmem:[%s1061 + $0x5c] sm:$0xf]
      %v1086 = vld [vmem:[%s1061 + $0x60] sm:$0xf]
      %v1087 = vld [vmem:[%s1061 + $0x64] sm:$0xf]
      %v1088 = vld [vmem:[%s1061 + $0x68] sm:$0xf]
      %v1089 = vld [vmem:[%s1061 + $0x6c] sm:$0xf]
      %v1090 = vld [vmem:[%s1061 + $0x70] sm:$0xf]
      %v1091 = vld [vmem:[%s1061 + $0x74] sm:$0xf]
      %v1092 = vld [vmem:[%s1061 + $0x78] sm:$0xf]
      %v1093 = vld [vmem:[%s1061 + $0x7c] sm:$0xf]
      %v1094 = vld [vmem:[%s1061 + $0x80] sm:$0xf]
      %v1095 = vld [vmem:[%s1061 + $0x84] sm:$0xf]
      %v1096 = vld [vmem:[%s1061 + $0x88] sm:$0xf]
      %v1097 = vld [vmem:[%s1061 + $0x8c] sm:$0xf]
      %v1098 = vld [vmem:[%s1061 + $0x90] sm:$0xf]
      %v1099 = vld [vmem:[%s1061 + $0x94] sm:$0xf]
      %v1100 = vld [vmem:[%s1061 + $0x98] sm:$0xf]
      %v1101 = vld [vmem:[%s1061 + $0x9c] sm:$0xf]
      %v1102 = vld [vmem:[%s1061 + $0xa0] sm:$0xf]
      %v1103 = vld [vmem:[%s1061 + $0xa4] sm:$0xf]
      %v1104 = vld [vmem:[%s1061 + $0xa8] sm:$0xf]
      %v1105 = vld [vmem:[%s1061 + $0xac] sm:$0xf]
      %v1106 = vld [vmem:[%s1061 + $0xb0] sm:$0xf]
      %v1107 = vld [vmem:[%s1061 + $0xb4] sm:$0xf]
      %v1108 = vld [vmem:[%s1061 + $0xb8] sm:$0xf]
      %v1109 = vld [vmem:[%s1061 + $0xbc] sm:$0xf]
      %v1110 = vld [vmem:[%s1061 + $0xc0] sm:$0xf]
      %v1111 = vld [vmem:[%s1061 + $0xc4] sm:$0xf]
      %v1112 = vld [vmem:[%s1061 + $0xc8] sm:$0xf]
      %v1113 = vld [vmem:[%s1061 + $0xcc] sm:$0xf]
      %v1114 = vld [vmem:[%s1061 + $0xd0] sm:$0xf]
      %v1115 = vld [vmem:[%s1061 + $0xd4] sm:$0xf]
      %v1116 = vld [vmem:[%s1061 + $0xd8] sm:$0xf]
      %v1117 = vld [vmem:[%s1061 + $0xdc] sm:$0xf]
      %v1118 = vld [vmem:[%s1061 + $0xe0] sm:$0xf]
      %v1119 = vld [vmem:[%s1061 + $0xe4] sm:$0xf]
      %v1120 = vld [vmem:[%s1061 + $0xe8] sm:$0xf]
      %v1121 = vld [vmem:[%s1061 + $0xec] sm:$0xf]
      %v1122 = vld [vmem:[%s1061 + $0xf0] sm:$0xf]
      %v1123 = vld [vmem:[%s1061 + $0xf4] sm:$0xf]
      %v1124 = vld [vmem:[%s1061 + $0xf8] sm:$0xf]
      %v1125 = vld [vmem:[%s1061 + $0xfc] sm:$0xf]
      %v1126 = vld [vmem:[%s1061 + $0x100] sm:$0xf]
      %v1127 = vld [vmem:[%s1061 + $0x104] sm:$0xf]
      %v1128 = vld [vmem:[%s1061 + $0x108] sm:$0xf]
      %v1129 = vld [vmem:[%s1061 + $0x10c] sm:$0xf]
      %v1130 = vld [vmem:[%s1061 + $0x110] sm:$0xf]
      %v1131 = vld [vmem:[%s1061 + $0x114] sm:$0xf]
      %v1132 = vld [vmem:[%s1061 + $0x118] sm:$0xf]
      %v1133 = vld [vmem:[%s1061 + $0x11c] sm:$0xf]
      %v1134 = vld [vmem:[%s1061 + $0x120] sm:$0xf]
      %v1135 = vld [vmem:[%s1061 + $0x124] sm:$0xf]
      %v1136 = vld [vmem:[%s1061 + $0x128] sm:$0xf]
      %v1137 = vld [vmem:[%s1061 + $0x12c] sm:$0xf]
      %v1138 = vld [vmem:[%s1061 + $0x130] sm:$0xf]
      %v1139 = vld [vmem:[%s1061 + $0x134] sm:$0xf]
      %v1140 = vld [vmem:[%s1061 + $0x138] sm:$0xf]
      %v1141 = vld [vmem:[%s1061 + $0x13c] sm:$0xf]
      %v1142 = vld [vmem:[%s1061 + $0x140] sm:$0xf]
      %v1143 = vld [vmem:[%s1061 + $0x144] sm:$0xf]
      %v1144 = vld [vmem:[%s1061 + $0x148] sm:$0xf]
      %v1145 = vld [vmem:[%s1061 + $0x14c] sm:$0xf]
      %v1146 = vld [vmem:[%s1061 + $0x150] sm:$0xf]
      %v1147 = vld [vmem:[%s1061 + $0x154] sm:$0xf]
      %v1148 = vld [vmem:[%s1061 + $0x158] sm:$0xf]
      %v1149 = vld [vmem:[%s1061 + $0x15c] sm:$0xf]
      %v1150 = vld [vmem:[%s1061 + $0x160] sm:$0xf]
      %v1151 = vld [vmem:[%s1061 + $0x164] sm:$0xf]
      %v1152 = vld [vmem:[%s1061 + $0x168] sm:$0xf]
      %v1153 = vld [vmem:[%s1061 + $0x16c] sm:$0xf]
      %v1154 = vld [vmem:[%s1061 + $0x170] sm:$0xf]
      %v1155 = vld [vmem:[%s1061 + $0x174] sm:$0xf]
      %v1156 = vld [vmem:[%s1061 + $0x178] sm:$0xf]
      %v1157 = vld [vmem:[%s1061 + $0x17c] sm:$0xf]
      %v1158 = vld [vmem:[%s1061 + $0x180] sm:$0xf]
      %v1159 = vld [vmem:[%s1061 + $0x184] sm:$0xf]
      %v1160 = vld [vmem:[%s1061 + $0x188] sm:$0xf]
      %v1161 = vld [vmem:[%s1061 + $0x18c] sm:$0xf]
      %v1162 = vld [vmem:[%s1061 + $0x190] sm:$0xf]
      %v1163 = vld [vmem:[%s1061 + $0x194] sm:$0xf]
      %v1164 = vld [vmem:[%s1061 + $0x198] sm:$0xf]
      %v1165 = vld [vmem:[%s1061 + $0x19c] sm:$0xf]
      %v1166 = vld [vmem:[%s1061 + $0x1a0] sm:$0xf]
      %v1167 = vld [vmem:[%s1061 + $0x1a4] sm:$0xf]
      %v1168 = vld [vmem:[%s1061 + $0x1a8] sm:$0xf]
      %v1169 = vld [vmem:[%s1061 + $0x1ac] sm:$0xf]
      %v1170 = vld [vmem:[%s1061 + $0x1b0] sm:$0xf]
      %v1171 = vld [vmem:[%s1061 + $0x1b4] sm:$0xf]
      %v1172 = vld [vmem:[%s1061 + $0x1b8] sm:$0xf]
      %v1173 = vld [vmem:[%s1061 + $0x1bc] sm:$0xf]
      %v1174 = vld [vmem:[%s1061 + $0x1c0] sm:$0xf]
      %v1175 = vld [vmem:[%s1061 + $0x1c4] sm:$0xf]
      %v1176 = vld [vmem:[%s1061 + $0x1c8] sm:$0xf]
      %v1177 = vld [vmem:[%s1061 + $0x1cc] sm:$0xf]
      %v1178 = vld [vmem:[%s1061 + $0x1d0] sm:$0xf]
      %v1179 = vld [vmem:[%s1061 + $0x1d4] sm:$0xf]
      %v1180 = vld [vmem:[%s1061 + $0x1d8] sm:$0xf]
      %v1181 = vld [vmem:[%s1061 + $0x1dc] sm:$0xf]
      %v1182 = vld [vmem:[%s1061 + $0x1e0] sm:$0xf]
      %v1183 = vld [vmem:[%s1061 + $0x1e4] sm:$0xf]
      %v1184 = vld [vmem:[%s1061 + $0x1e8] sm:$0xf]
      %v1185 = vld [vmem:[%s1061 + $0x1ec] sm:$0xf]
      %v1186 = vld [vmem:[%s1061 + $0x1f0] sm:$0xf]
      %v1187 = vld [vmem:[%s1061 + $0x1f4] sm:$0xf]
      %v1188 = vld [vmem:[%s1061 + $0x1f8] sm:$0xf]
      %v1189 = vld [vmem:[%s1061 + $0x1fc] sm:$0xf]
      %v1198 = vunpack.c.l.b16 %v1053
      %v1199 = vunpack.c.h.b16 %v1053
      %v1200 = vunpack.c.l.b16 %v1054
      %v1201 = vunpack.c.h.b16 %v1054
      %v1202 = vunpack.c.l.b16 %v1055
      %v1203 = vunpack.c.h.b16 %v1055
      %v1204 = vunpack.c.l.b16 %v1056
      %v1205 = vunpack.c.h.b16 %v1056
      %v1206 = vunpack.c.l.b16 %v1057
      %v1207 = vunpack.c.h.b16 %v1057
      %v1208 = vunpack.c.l.b16 %v1058
      %v1209 = vunpack.c.h.b16 %v1058
      %v1210 = vunpack.c.l.b16 %v1059
      %v1211 = vunpack.c.h.b16 %v1059
      %v1212 = vunpack.c.l.b16 %v1060
      %v1213 = vunpack.c.h.b16 %v1060
      %v1214 = vpack.c.b16 %v1206, %v1198
      %v1215 = vpack.c.b16 %v1207, %v1199
      %v1216 = vpack.c.b16 %v1208, %v1200
      %v1217 = vpack.c.b16 %v1209, %v1201
      %v1218 = vpack.c.b16 %v1210, %v1202
      %v1219 = vpack.c.b16 %v1211, %v1203
      %v1220 = vpack.c.b16 %v1212, %v1204
      %v1221 = vpack.c.b16 %v1213, %v1205
      %v1358 = vunpack.c.l.b16 %v1062
      %v1359 = vunpack.c.l.b16 %v1063
      %v1360 = vunpack.c.l.b16 %v1064
      %v1361 = vunpack.c.l.b16 %v1065
      %v1362 = vunpack.c.l.b16 %v1066
      %v1363 = vunpack.c.l.b16 %v1067
      %v1364 = vunpack.c.l.b16 %v1068
      %v1365 = vunpack.c.l.b16 %v1069
      %v1366 = vunpack.c.l.b16 %v1070
      %v1367 = vunpack.c.l.b16 %v1071
      %v1368 = vunpack.c.l.b16 %v1072
      %v1369 = vunpack.c.l.b16 %v1073
      %v1370 = vunpack.c.l.b16 %v1074
      %v1371 = vunpack.c.l.b16 %v1075
      %v1372 = vunpack.c.l.b16 %v1076
      %v1373 = vunpack.c.l.b16 %v1077
      %v1374 = vunpack.c.l.b16 %v1078
      %v1375 = vunpack.c.l.b16 %v1079
      %v1376 = vunpack.c.l.b16 %v1080
      %v1377 = vunpack.c.l.b16 %v1081
      %v1378 = vunpack.c.l.b16 %v1082
      %v1379 = vunpack.c.l.b16 %v1083
      %v1380 = vunpack.c.l.b16 %v1084
      %v1381 = vunpack.c.l.b16 %v1085
      %v1382 = vunpack.c.l.b16 %v1086
      %v1383 = vunpack.c.l.b16 %v1087
      %v1384 = vunpack.c.l.b16 %v1088
      %v1385 = vunpack.c.l.b16 %v1089
      %v1386 = vunpack.c.l.b16 %v1090
      %v1387 = vunpack.c.l.b16 %v1091
      %v1388 = vunpack.c.l.b16 %v1092
      %v1389 = vunpack.c.l.b16 %v1093
      %v1390 = vunpack.c.l.b16 %v1094
      %v1391 = vunpack.c.l.b16 %v1095
      %v1392 = vunpack.c.l.b16 %v1096
      %v1393 = vunpack.c.l.b16 %v1097
      %v1394 = vunpack.c.l.b16 %v1098
      %v1395 = vunpack.c.l.b16 %v1099
      %v1396 = vunpack.c.l.b16 %v1100
      %v1397 = vunpack.c.l.b16 %v1101
      %v1398 = vunpack.c.l.b16 %v1102
      %v1399 = vunpack.c.l.b16 %v1103
      %v1400 = vunpack.c.l.b16 %v1104
      %v1401 = vunpack.c.l.b16 %v1105
      %v1402 = vunpack.c.l.b16 %v1106
      %v1403 = vunpack.c.l.b16 %v1107
      %v1404 = vunpack.c.l.b16 %v1108
      %v1405 = vunpack.c.l.b16 %v1109
      %v1406 = vunpack.c.l.b16 %v1110
      %v1407 = vunpack.c.l.b16 %v1111
      %v1408 = vunpack.c.l.b16 %v1112
      %v1409 = vunpack.c.l.b16 %v1113
      %v1410 = vunpack.c.l.b16 %v1114
      %v1411 = vunpack.c.l.b16 %v1115
      %v1412 = vunpack.c.l.b16 %v1116
      %v1413 = vunpack.c.l.b16 %v1117
      %v1414 = vunpack.c.l.b16 %v1118
      %v1415 = vunpack.c.l.b16 %v1119
      %v1416 = vunpack.c.l.b16 %v1120
      %v1417 = vunpack.c.l.b16 %v1121
      %v1418 = vunpack.c.l.b16 %v1122
      %v1419 = vunpack.c.l.b16 %v1123
      %v1420 = vunpack.c.l.b16 %v1124
      %v1421 = vunpack.c.l.b16 %v1125
      %v1422 = vunpack.c.l.b16 %v1126
      %v1423 = vunpack.c.l.b16 %v1127
      %v1424 = vunpack.c.l.b16 %v1128
      %v1425 = vunpack.c.l.b16 %v1129
      %v1426 = vunpack.c.l.b16 %v1130
      %v1427 = vunpack.c.l.b16 %v1131
      %v1428 = vunpack.c.l.b16 %v1132
      %v1429 = vunpack.c.l.b16 %v1133
      %v1430 = vunpack.c.l.b16 %v1134
      %v1431 = vunpack.c.l.b16 %v1135
      %v1432 = vunpack.c.l.b16 %v1136
      %v1433 = vunpack.c.l.b16 %v1137
      %v1434 = vunpack.c.l.b16 %v1138
      %v1435 = vunpack.c.l.b16 %v1139
      %v1436 = vunpack.c.l.b16 %v1140
      %v1437 = vunpack.c.l.b16 %v1141
      %v1438 = vunpack.c.l.b16 %v1142
      %v1439 = vunpack.c.l.b16 %v1143
      %v1440 = vunpack.c.l.b16 %v1144
      %v1441 = vunpack.c.l.b16 %v1145
      %v1442 = vunpack.c.l.b16 %v1146
      %v1443 = vunpack.c.l.b16 %v1147
      %v1444 = vunpack.c.l.b16 %v1148
      %v1445 = vunpack.c.l.b16 %v1149
      %v1446 = vunpack.c.l.b16 %v1150
      %v1447 = vunpack.c.l.b16 %v1151
      %v1448 = vunpack.c.l.b16 %v1152
      %v1449 = vunpack.c.l.b16 %v1153
      %v1450 = vunpack.c.l.b16 %v1154
      %v1451 = vunpack.c.l.b16 %v1155
      %v1452 = vunpack.c.l.b16 %v1156
      %v1453 = vunpack.c.l.b16 %v1157
      %v1454 = vunpack.c.l.b16 %v1158
      %v1455 = vunpack.c.l.b16 %v1159
      %v1456 = vunpack.c.l.b16 %v1160
      %v1457 = vunpack.c.l.b16 %v1161
      %v1458 = vunpack.c.l.b16 %v1162
      %v1459 = vunpack.c.l.b16 %v1163
      %v1460 = vunpack.c.l.b16 %v1164
      %v1461 = vunpack.c.l.b16 %v1165
      %v1462 = vunpack.c.l.b16 %v1166
      %v1463 = vunpack.c.l.b16 %v1167
      %v1464 = vunpack.c.l.b16 %v1168
      %v1465 = vunpack.c.l.b16 %v1169
      %v1466 = vunpack.c.l.b16 %v1170
      %v1467 = vunpack.c.l.b16 %v1171
      %v1468 = vunpack.c.l.b16 %v1172
      %v1469 = vunpack.c.l.b16 %v1173
      %v1470 = vunpack.c.l.b16 %v1174
      %v1471 = vunpack.c.l.b16 %v1175
      %v1472 = vunpack.c.l.b16 %v1176
      %v1473 = vunpack.c.l.b16 %v1177
      %v1474 = vunpack.c.l.b16 %v1178
      %v1475 = vunpack.c.l.b16 %v1179
      %v1476 = vunpack.c.l.b16 %v1180
      %v1477 = vunpack.c.l.b16 %v1181
      %v1478 = vunpack.c.l.b16 %v1182
      %v1479 = vunpack.c.l.b16 %v1183
      %v1480 = vunpack.c.l.b16 %v1184
      %v1481 = vunpack.c.l.b16 %v1185
      %v1482 = vunpack.c.l.b16 %v1186
      %v1483 = vunpack.c.l.b16 %v1187
      %v1484 = vunpack.c.l.b16 %v1188
      %v1485 = vunpack.c.l.b16 %v1189
      %v1486 = vpack.c.b16 %v1359, %v1358
      %v1487 = vpack.c.b16 %v1361, %v1360
      %v1488 = vpack.c.b16 %v1363, %v1362
      %v1489 = vpack.c.b16 %v1365, %v1364
      %v1490 = vpack.c.b16 %v1367, %v1366
      %v1491 = vpack.c.b16 %v1369, %v1368
      %v1492 = vpack.c.b16 %v1371, %v1370
      %v1493 = vpack.c.b16 %v1373, %v1372
      %v1494 = vpack.c.b16 %v1375, %v1374
      %v1495 = vpack.c.b16 %v1377, %v1376
      %v1496 = vpack.c.b16 %v1379, %v1378
      %v1497 = vpack.c.b16 %v1381, %v1380
      %v1498 = vpack.c.b16 %v1383, %v1382
      %v1499 = vpack.c.b16 %v1385, %v1384
      %v1500 = vpack.c.b16 %v1387, %v1386
      %v1501 = vpack.c.b16 %v1389, %v1388
      %v1502 = vpack.c.b16 %v1391, %v1390
      %v1503 = vpack.c.b16 %v1393, %v1392
      %v1504 = vpack.c.b16 %v1395, %v1394
      %v1505 = vpack.c.b16 %v1397, %v1396
      %v1506 = vpack.c.b16 %v1399, %v1398
      %v1507 = vpack.c.b16 %v1401, %v1400
      %v1508 = vpack.c.b16 %v1403, %v1402
      %v1509 = vpack.c.b16 %v1405, %v1404
      %v1510 = vpack.c.b16 %v1407, %v1406
      %v1511 = vpack.c.b16 %v1409, %v1408
      %v1512 = vpack.c.b16 %v1411, %v1410
      %v1513 = vpack.c.b16 %v1413, %v1412
      %v1514 = vpack.c.b16 %v1415, %v1414
      %v1515 = vpack.c.b16 %v1417, %v1416
      %v1516 = vpack.c.b16 %v1419, %v1418
      %v1517 = vpack.c.b16 %v1421, %v1420
      %v1518 = vpack.c.b16 %v1423, %v1422
      %v1519 = vpack.c.b16 %v1425, %v1424
      %v1520 = vpack.c.b16 %v1427, %v1426
      %v1521 = vpack.c.b16 %v1429, %v1428
      %v1522 = vpack.c.b16 %v1431, %v1430
      %v1523 = vpack.c.b16 %v1433, %v1432
      %v1524 = vpack.c.b16 %v1435, %v1434
      %v1525 = vpack.c.b16 %v1437, %v1436
      %v1526 = vpack.c.b16 %v1439, %v1438
      %v1527 = vpack.c.b16 %v1441, %v1440
      %v1528 = vpack.c.b16 %v1443, %v1442
      %v1529 = vpack.c.b16 %v1445, %v1444
      %v1530 = vpack.c.b16 %v1447, %v1446
      %v1531 = vpack.c.b16 %v1449, %v1448
      %v1532 = vpack.c.b16 %v1451, %v1450
      %v1533 = vpack.c.b16 %v1453, %v1452
      %v1534 = vpack.c.b16 %v1455, %v1454
      %v1535 = vpack.c.b16 %v1457, %v1456
      %v1536 = vpack.c.b16 %v1459, %v1458
      %v1537 = vpack.c.b16 %v1461, %v1460
      %v1538 = vpack.c.b16 %v1463, %v1462
      %v1539 = vpack.c.b16 %v1465, %v1464
      %v1540 = vpack.c.b16 %v1467, %v1466
      %v1541 = vpack.c.b16 %v1469, %v1468
      %v1542 = vpack.c.b16 %v1471, %v1470
      %v1543 = vpack.c.b16 %v1473, %v1472
      %v1544 = vpack.c.b16 %v1475, %v1474
      %v1545 = vpack.c.b16 %v1477, %v1476
      %v1546 = vpack.c.b16 %v1479, %v1478
      %v1547 = vpack.c.b16 %v1481, %v1480
      %v1548 = vpack.c.b16 %v1483, %v1482
      %v1549 = vpack.c.b16 %v1485, %v1484
      %1614 = vmatprep.subr.bf16.mxu0 0
      %1615 = vmatpush1.bf16.msra.mxu0 %v1493
      %1616 = vmatprep.subr.bf16.mxu0 0
      %1617 = vmatpush1.bf16.msra.mxu0 %v1492
      %1618 = vmatprep.subr.bf16.mxu0 0
      %1619 = vmatpush1.bf16.msra.mxu0 %v1491
      %1620 = vmatprep.subr.bf16.mxu0 0
      %1621 = vmatpush1.bf16.msra.mxu0 %v1490
      %1622 = vmatprep.subr.bf16.mxu0 0
      %1623 = vmatpush1.bf16.msra.mxu0 %v1489
      %1624 = vmatprep.subr.bf16.mxu0 0
      %1625 = vmatpush1.bf16.msra.mxu0 %v1488
      %1626 = vmatprep.subr.bf16.mxu0 0
      %1627 = vmatpush1.bf16.msra.mxu0 %v1487
      %1628 = vmatprep.subr.bf16.mxu0 0
      %1629 = vmatpush1.bf16.msra.mxu0 %v1486
      %1630 = vmatprep.subr.bf16.mxu0 0
      %1631 = vmatpush2.bf16.msra.mxu0 %v1501
      %1632 = vmatprep.subr.bf16.mxu0 0
      %1633 = vmatpush2.bf16.msra.mxu0 %v1500
      %1634 = vmatprep.subr.bf16.mxu0 0
      %1635 = vmatpush2.bf16.msra.mxu0 %v1499
      %1636 = vmatprep.subr.bf16.mxu0 0
      %1637 = vmatpush2.bf16.msra.mxu0 %v1498
      %1638 = vmatprep.subr.bf16.mxu0 0
      %1639 = vmatpush2.bf16.msra.mxu0 %v1497
      %1640 = vmatprep.subr.bf16.mxu0 0
      %1641 = vmatpush2.bf16.msra.mxu0 %v1496
      %1642 = vmatprep.subr.bf16.mxu0 0
      %1643 = vmatpush2.bf16.msra.mxu0 %v1495
      %1644 = vmatprep.subr.bf16.mxu0 0
      %1645 = vmatpush2.bf16.msra.mxu0 %v1494
      %1646 = vmatprep.mubr.bf16.mxu0 %v1215
      %1647 = vmatmul.mubr.bf16.gmra.mxu0 %v1214
      %v1648 = vpop.f32.mrf.mxu0
      %v1649 = vadd.f32 %v442, %v1648
      %v1650 = vpop.f32.mrf.mxu0
      %v1651 = vpop.f32.mrf.mxu0
      %v1652 = vadd.f32 %v442, %v1651
      %v1653 = vpop.f32.mrf.mxu0
      %1654 = vdwg.mxu0
      %1655 = vmatprep.subr.bf16.mxu0 0
      %1656 = vmatpush1.bf16.msra.mxu0 %v1509
      %1657 = vmatprep.subr.bf16.mxu0 0
      %1658 = vmatpush1.bf16.msra.mxu0 %v1508
      %1659 = vmatprep.subr.bf16.mxu0 0
      %1660 = vmatpush1.bf16.msra.mxu0 %v1507
      %1661 = vmatprep.subr.bf16.mxu0 0
      %1662 = vmatpush1.bf16.msra.mxu0 %v1506
      %1663 = vmatprep.subr.bf16.mxu0 0
      %1664 = vmatpush1.bf16.msra.mxu0 %v1505
      %1665 = vmatprep.subr.bf16.mxu0 0
      %1666 = vmatpush1.bf16.msra.mxu0 %v1504
      %1667 = vmatprep.subr.bf16.mxu0 0
      %1668 = vmatpush1.bf16.msra.mxu0 %v1503
      %1669 = vmatprep.subr.bf16.mxu0 0
      %1670 = vmatpush1.bf16.msra.mxu0 %v1502
      %1671 = vmatprep.subr.bf16.mxu0 0
      %1672 = vmatpush2.bf16.msra.mxu0 %v1517
      %1673 = vmatprep.subr.bf16.mxu0 0
      %1674 = vmatpush2.bf16.msra.mxu0 %v1516
      %1675 = vmatprep.subr.bf16.mxu0 0
      %1676 = vmatpush2.bf16.msra.mxu0 %v1515
      %1677 = vmatprep.subr.bf16.mxu0 0
      %1678 = vmatpush2.bf16.msra.mxu0 %v1514
      %1679 = vmatprep.subr.bf16.mxu0 0
      %1680 = vmatpush2.bf16.msra.mxu0 %v1513
      %1681 = vmatprep.subr.bf16.mxu0 0
      %1682 = vmatpush2.bf16.msra.mxu0 %v1512
      %1683 = vmatprep.subr.bf16.mxu0 0
      %1684 = vmatpush2.bf16.msra.mxu0 %v1511
      %1685 = vmatprep.subr.bf16.mxu0 0
      %1686 = vmatpush2.bf16.msra.mxu0 %v1510
      %1687 = vmatprep.mubr.bf16.mxu0 %v1217
      %1688 = vmatmul.mubr.bf16.gmra.mxu0 %v1216
      %v1689 = vpop.f32.mrf.mxu0
      %v1690 = vadd.f32 %v1649, %v1689
      %v1691 = vpop.f32.mrf.mxu0
      %v1692 = vpop.f32.mrf.mxu0
      %v1693 = vadd.f32 %v1652, %v1692
      %v1694 = vpop.f32.mrf.mxu0
      %1695 = vdwg.mxu0
      %1696 = vmatprep.subr.bf16.mxu0 0
      %1697 = vmatpush1.bf16.msra.mxu0 %v1525
      %1698 = vmatprep.subr.bf16.mxu0 0
      %1699 = vmatpush1.bf16.msra.mxu0 %v1524
      %1700 = vmatprep.subr.bf16.mxu0 0
      %1701 = vmatpush1.bf16.msra.mxu0 %v1523
      %1702 = vmatprep.subr.bf16.mxu0 0
      %1703 = vmatpush1.bf16.msra.mxu0 %v1522
      %1704 = vmatprep.subr.bf16.mxu0 0
      %1705 = vmatpush1.bf16.msra.mxu0 %v1521
      %1706 = vmatprep.subr.bf16.mxu0 0
      %1707 = vmatpush1.bf16.msra.mxu0 %v1520
      %1708 = vmatprep.subr.bf16.mxu0 0
      %1709 = vmatpush1.bf16.msra.mxu0 %v1519
      %1710 = vmatprep.subr.bf16.mxu0 0
      %1711 = vmatpush1.bf16.msra.mxu0 %v1518
      %1712 = vmatprep.subr.bf16.mxu0 0
      %1713 = vmatpush2.bf16.msra.mxu0 %v1533
      %1714 = vmatprep.subr.bf16.mxu0 0
      %1715 = vmatpush2.bf16.msra.mxu0 %v1532
      %1716 = vmatprep.subr.bf16.mxu0 0
      %1717 = vmatpush2.bf16.msra.mxu0 %v1531
      %1718 = vmatprep.subr.bf16.mxu0 0
      %1719 = vmatpush2.bf16.msra.mxu0 %v1530
      %1720 = vmatprep.subr.bf16.mxu0 0
      %1721 = vmatpush2.bf16.msra.mxu0 %v1529
      %1722 = vmatprep.subr.bf16.mxu0 0
      %1723 = vmatpush2.bf16.msra.mxu0 %v1528
      %1724 = vmatprep.subr.bf16.mxu0 0
      %1725 = vmatpush2.bf16.msra.mxu0 %v1527
      %1726 = vmatprep.subr.bf16.mxu0 0
      %1727 = vmatpush2.bf16.msra.mxu0 %v1526
      %1728 = vmatprep.mubr.bf16.mxu0 %v1219
      %1729 = vmatmul.mubr.bf16.gmra.mxu0 %v1218
      %v1730 = vpop.f32.mrf.mxu0
      %v1731 = vadd.f32 %v1690, %v1730
      %v1732 = vpop.f32.mrf.mxu0
      %v1733 = vpop.f32.mrf.mxu0
      %v1734 = vadd.f32 %v1693, %v1733
      %v1735 = vpop.f32.mrf.mxu0
      %1736 = vdwg.mxu0
      %1737 = vmatprep.subr.bf16.mxu0 0
      %1738 = vmatpush1.bf16.msra.mxu0 %v1541
      %1739 = vmatprep.subr.bf16.mxu0 0
      %1740 = vmatpush1.bf16.msra.mxu0 %v1540
      %1741 = vmatprep.subr.bf16.mxu0 0
      %1742 = vmatpush1.bf16.msra.mxu0 %v1539
      %1743 = vmatprep.subr.bf16.mxu0 0
      %1744 = vmatpush1.bf16.msra.mxu0 %v1538
      %1745 = vmatprep.subr.bf16.mxu0 0
      %1746 = vmatpush1.bf16.msra.mxu0 %v1537
      %1747 = vmatprep.subr.bf16.mxu0 0
      %1748 = vmatpush1.bf16.msra.mxu0 %v1536
      %1749 = vmatprep.subr.bf16.mxu0 0
      %1750 = vmatpush1.bf16.msra.mxu0 %v1535
      %1751 = vmatprep.subr.bf16.mxu0 0
      %1752 = vmatpush1.bf16.msra.mxu0 %v1534
      %1753 = vmatprep.subr.bf16.mxu0 0
      %1754 = vmatpush2.bf16.msra.mxu0 %v1549
      %1755 = vmatprep.subr.bf16.mxu0 0
      %1756 = vmatpush2.bf16.msra.mxu0 %v1548
      %1757 = vmatprep.subr.bf16.mxu0 0
      %1758 = vmatpush2.bf16.msra.mxu0 %v1547
      %1759 = vmatprep.subr.bf16.mxu0 0
      %1760 = vmatpush2.bf16.msra.mxu0 %v1546
      %1761 = vmatprep.subr.bf16.mxu0 0
      %1762 = vmatpush2.bf16.msra.mxu0 %v1545
      %1763 = vmatprep.subr.bf16.mxu0 0
      %1764 = vmatpush2.bf16.msra.mxu0 %v1544
      %1765 = vmatprep.subr.bf16.mxu0 0
      %1766 = vmatpush2.bf16.msra.mxu0 %v1543
      %1767 = vmatprep.subr.bf16.mxu0 0
      %1768 = vmatpush2.bf16.msra.mxu0 %v1542
      %1769 = vmatprep.mubr.bf16.mxu0 %v1221
      %1770 = vmatmul.mubr.bf16.gmra.mxu0 %v1220
      %v1771 = vpop.f32.mrf.mxu0
      %v1772 = vadd.f32 %v1731, %v1771
      %v1773 = vpop.f32.mrf.mxu0
      %v1774 = vpop.f32.mrf.mxu0
      %v1775 = vadd.f32 %v1734, %v1774
      %v1776 = vpop.f32.mrf.mxu0
      %1777 = vdwg.mxu0
      %s1778 = scalar_lea.vmem %s286, 16
      %1779 = vst [vmem:[%s1778] sm:$0xff] %v1772
      %1780 = vst [vmem:[%s1778 + $0x8] sm:$0xff] %v1775
      %v1781 = vadd.f32 %v1772, %v1775
      %v1782 = vrot.slane %v1781, 4
      %v1783 = vadd.f32 %v1781, %v1782
      %v1784 = vrot.slane %v1783, 2
      %v1785 = vadd.f32 %v1783, %v1784
      %v1786 = vrot.slane %v1785, 1
      %v1787 = vadd.f32 %v1785, %v1786
      %v1788 = vadd.f32 %v1041, %v1787
      %v1789 = vmul.f32 %v1772, %v1772
      %v1790 = vmul.f32 %v1775, %v1775
      %v1791 = vadd.f32 %v1789, %v1790
      %v1792 = vrot.slane %v1791, 4
      %v1793 = vadd.f32 %v1791, %v1792
      %v1794 = vrot.slane %v1793, 2
      %v1795 = vadd.f32 %v1793, %v1794
      %v1796 = vrot.slane %v1795, 1
      %v1797 = vadd.f32 %v1795, %v1796
      %v1798 = vadd.f32 %v1051, %v1797
      %s1799 = scalar_lea.vmem %s276, 128
      %v1800 = vld [vmem:[%s1799] sm:$0xff]
      %v1801 = vld [vmem:[%s1799 + $0x8] sm:$0xff]
      %v1802 = vld [vmem:[%s1799 + $0x10] sm:$0xff]
      %v1803 = vld [vmem:[%s1799 + $0x18] sm:$0xff]
      %v1804 = vld [vmem:[%s1799 + $0x20] sm:$0xff]
      %v1805 = vld [vmem:[%s1799 + $0x28] sm:$0xff]
      %v1806 = vld [vmem:[%s1799 + $0x30] sm:$0xff]
      %v1807 = vld [vmem:[%s1799 + $0x38] sm:$0xff]
      %s1808 = scalar_lea.vmem %s1, 1024
      %v1809 = vld [vmem:[%s1808] sm:$0xf]
      %v1810 = vld [vmem:[%s1808 + $0x4] sm:$0xf]
      %v1811 = vld [vmem:[%s1808 + $0x8] sm:$0xf]
      %v1812 = vld [vmem:[%s1808 + $0xc] sm:$0xf]
      %v1813 = vld [vmem:[%s1808 + $0x10] sm:$0xf]
      %v1814 = vld [vmem:[%s1808 + $0x14] sm:$0xf]
      %v1815 = vld [vmem:[%s1808 + $0x18] sm:$0xf]
      %v1816 = vld [vmem:[%s1808 + $0x1c] sm:$0xf]
      %v1817 = vld [vmem:[%s1808 + $0x20] sm:$0xf]
      %v1818 = vld [vmem:[%s1808 + $0x24] sm:$0xf]
      %v1819 = vld [vmem:[%s1808 + $0x28] sm:$0xf]
      %v1820 = vld [vmem:[%s1808 + $0x2c] sm:$0xf]
      %v1821 = vld [vmem:[%s1808 + $0x30] sm:$0xf]
      %v1822 = vld [vmem:[%s1808 + $0x34] sm:$0xf]
      %v1823 = vld [vmem:[%s1808 + $0x38] sm:$0xf]
      %v1824 = vld [vmem:[%s1808 + $0x3c] sm:$0xf]
      %v1825 = vld [vmem:[%s1808 + $0x40] sm:$0xf]
      %v1826 = vld [vmem:[%s1808 + $0x44] sm:$0xf]
      %v1827 = vld [vmem:[%s1808 + $0x48] sm:$0xf]
      %v1828 = vld [vmem:[%s1808 + $0x4c] sm:$0xf]
      %v1829 = vld [vmem:[%s1808 + $0x50] sm:$0xf]
      %v1830 = vld [vmem:[%s1808 + $0x54] sm:$0xf]
      %v1831 = vld [vmem:[%s1808 + $0x58] sm:$0xf]
      %v1832 = vld [vmem:[%s1808 + $0x5c] sm:$0xf]
      %v1833 = vld [vmem:[%s1808 + $0x60] sm:$0xf]
      %v1834 = vld [vmem:[%s1808 + $0x64] sm:$0xf]
      %v1835 = vld [vmem:[%s1808 + $0x68] sm:$0xf]
      %v1836 = vld [vmem:[%s1808 + $0x6c] sm:$0xf]
      %v1837 = vld [vmem:[%s1808 + $0x70] sm:$0xf]
      %v1838 = vld [vmem:[%s1808 + $0x74] sm:$0xf]
      %v1839 = vld [vmem:[%s1808 + $0x78] sm:$0xf]
      %v1840 = vld [vmem:[%s1808 + $0x7c] sm:$0xf]
      %v1841 = vld [vmem:[%s1808 + $0x80] sm:$0xf]
      %v1842 = vld [vmem:[%s1808 + $0x84] sm:$0xf]
      %v1843 = vld [vmem:[%s1808 + $0x88] sm:$0xf]
      %v1844 = vld [vmem:[%s1808 + $0x8c] sm:$0xf]
      %v1845 = vld [vmem:[%s1808 + $0x90] sm:$0xf]
      %v1846 = vld [vmem:[%s1808 + $0x94] sm:$0xf]
      %v1847 = vld [vmem:[%s1808 + $0x98] sm:$0xf]
      %v1848 = vld [vmem:[%s1808 + $0x9c] sm:$0xf]
      %v1849 = vld [vmem:[%s1808 + $0xa0] sm:$0xf]
      %v1850 = vld [vmem:[%s1808 + $0xa4] sm:$0xf]
      %v1851 = vld [vmem:[%s1808 + $0xa8] sm:$0xf]
      %v1852 = vld [vmem:[%s1808 + $0xac] sm:$0xf]
      %v1853 = vld [vmem:[%s1808 + $0xb0] sm:$0xf]
      %v1854 = vld [vmem:[%s1808 + $0xb4] sm:$0xf]
      %v1855 = vld [vmem:[%s1808 + $0xb8] sm:$0xf]
      %v1856 = vld [vmem:[%s1808 + $0xbc] sm:$0xf]
      %v1857 = vld [vmem:[%s1808 + $0xc0] sm:$0xf]
      %v1858 = vld [vmem:[%s1808 + $0xc4] sm:$0xf]
      %v1859 = vld [vmem:[%s1808 + $0xc8] sm:$0xf]
      %v1860 = vld [vmem:[%s1808 + $0xcc] sm:$0xf]
      %v1861 = vld [vmem:[%s1808 + $0xd0] sm:$0xf]
      %v1862 = vld [vmem:[%s1808 + $0xd4] sm:$0xf]
      %v1863 = vld [vmem:[%s1808 + $0xd8] sm:$0xf]
      %v1864 = vld [vmem:[%s1808 + $0xdc] sm:$0xf]
      %v1865 = vld [vmem:[%s1808 + $0xe0] sm:$0xf]
      %v1866 = vld [vmem:[%s1808 + $0xe4] sm:$0xf]
      %v1867 = vld [vmem:[%s1808 + $0xe8] sm:$0xf]
      %v1868 = vld [vmem:[%s1808 + $0xec] sm:$0xf]
      %v1869 = vld [vmem:[%s1808 + $0xf0] sm:$0xf]
      %v1870 = vld [vmem:[%s1808 + $0xf4] sm:$0xf]
      %v1871 = vld [vmem:[%s1808 + $0xf8] sm:$0xf]
      %v1872 = vld [vmem:[%s1808 + $0xfc] sm:$0xf]
      %v1873 = vld [vmem:[%s1808 + $0x100] sm:$0xf]
      %v1874 = vld [vmem:[%s1808 + $0x104] sm:$0xf]
      %v1875 = vld [vmem:[%s1808 + $0x108] sm:$0xf]
      %v1876 = vld [vmem:[%s1808 + $0x10c] sm:$0xf]
      %v1877 = vld [vmem:[%s1808 + $0x110] sm:$0xf]
      %v1878 = vld [vmem:[%s1808 + $0x114] sm:$0xf]
      %v1879 = vld [vmem:[%s1808 + $0x118] sm:$0xf]
      %v1880 = vld [vmem:[%s1808 + $0x11c] sm:$0xf]
      %v1881 = vld [vmem:[%s1808 + $0x120] sm:$0xf]
      %v1882 = vld [vmem:[%s1808 + $0x124] sm:$0xf]
      %v1883 = vld [vmem:[%s1808 + $0x128] sm:$0xf]
      %v1884 = vld [vmem:[%s1808 + $0x12c] sm:$0xf]
      %v1885 = vld [vmem:[%s1808 + $0x130] sm:$0xf]
      %v1886 = vld [vmem:[%s1808 + $0x134] sm:$0xf]
      %v1887 = vld [vmem:[%s1808 + $0x138] sm:$0xf]
      %v1888 = vld [vmem:[%s1808 + $0x13c] sm:$0xf]
      %v1889 = vld [vmem:[%s1808 + $0x140] sm:$0xf]
      %v1890 = vld [vmem:[%s1808 + $0x144] sm:$0xf]
      %v1891 = vld [vmem:[%s1808 + $0x148] sm:$0xf]
      %v1892 = vld [vmem:[%s1808 + $0x14c] sm:$0xf]
      %v1893 = vld [vmem:[%s1808 + $0x150] sm:$0xf]
      %v1894 = vld [vmem:[%s1808 + $0x154] sm:$0xf]
      %v1895 = vld [vmem:[%s1808 + $0x158] sm:$0xf]
      %v1896 = vld [vmem:[%s1808 + $0x15c] sm:$0xf]
      %v1897 = vld [vmem:[%s1808 + $0x160] sm:$0xf]
      %v1898 = vld [vmem:[%s1808 + $0x164] sm:$0xf]
      %v1899 = vld [vmem:[%s1808 + $0x168] sm:$0xf]
      %v1900 = vld [vmem:[%s1808 + $0x16c] sm:$0xf]
      %v1901 = vld [vmem:[%s1808 + $0x170] sm:$0xf]
      %v1902 = vld [vmem:[%s1808 + $0x174] sm:$0xf]
      %v1903 = vld [vmem:[%s1808 + $0x178] sm:$0xf]
      %v1904 = vld [vmem:[%s1808 + $0x17c] sm:$0xf]
      %v1905 = vld [vmem:[%s1808 + $0x180] sm:$0xf]
      %v1906 = vld [vmem:[%s1808 + $0x184] sm:$0xf]
      %v1907 = vld [vmem:[%s1808 + $0x188] sm:$0xf]
      %v1908 = vld [vmem:[%s1808 + $0x18c] sm:$0xf]
      %v1909 = vld [vmem:[%s1808 + $0x190] sm:$0xf]
      %v1910 = vld [vmem:[%s1808 + $0x194] sm:$0xf]
      %v1911 = vld [vmem:[%s1808 + $0x198] sm:$0xf]
      %v1912 = vld [vmem:[%s1808 + $0x19c] sm:$0xf]
      %v1913 = vld [vmem:[%s1808 + $0x1a0] sm:$0xf]
      %v1914 = vld [vmem:[%s1808 + $0x1a4] sm:$0xf]
      %v1915 = vld [vmem:[%s1808 + $0x1a8] sm:$0xf]
      %v1916 = vld [vmem:[%s1808 + $0x1ac] sm:$0xf]
      %v1917 = vld [vmem:[%s1808 + $0x1b0] sm:$0xf]
      %v1918 = vld [vmem:[%s1808 + $0x1b4] sm:$0xf]
      %v1919 = vld [vmem:[%s1808 + $0x1b8] sm:$0xf]
      %v1920 = vld [vmem:[%s1808 + $0x1bc] sm:$0xf]
      %v1921 = vld [vmem:[%s1808 + $0x1c0] sm:$0xf]
      %v1922 = vld [vmem:[%s1808 + $0x1c4] sm:$0xf]
      %v1923 = vld [vmem:[%s1808 + $0x1c8] sm:$0xf]
      %v1924 = vld [vmem:[%s1808 + $0x1cc] sm:$0xf]
      %v1925 = vld [vmem:[%s1808 + $0x1d0] sm:$0xf]
      %v1926 = vld [vmem:[%s1808 + $0x1d4] sm:$0xf]
      %v1927 = vld [vmem:[%s1808 + $0x1d8] sm:$0xf]
      %v1928 = vld [vmem:[%s1808 + $0x1dc] sm:$0xf]
      %v1929 = vld [vmem:[%s1808 + $0x1e0] sm:$0xf]
      %v1930 = vld [vmem:[%s1808 + $0x1e4] sm:$0xf]
      %v1931 = vld [vmem:[%s1808 + $0x1e8] sm:$0xf]
      %v1932 = vld [vmem:[%s1808 + $0x1ec] sm:$0xf]
      %v1933 = vld [vmem:[%s1808 + $0x1f0] sm:$0xf]
      %v1934 = vld [vmem:[%s1808 + $0x1f4] sm:$0xf]
      %v1935 = vld [vmem:[%s1808 + $0x1f8] sm:$0xf]
      %v1936 = vld [vmem:[%s1808 + $0x1fc] sm:$0xf]
      %v1945 = vunpack.c.l.b16 %v1800
      %v1946 = vunpack.c.h.b16 %v1800
      %v1947 = vunpack.c.l.b16 %v1801
      %v1948 = vunpack.c.h.b16 %v1801
      %v1949 = vunpack.c.l.b16 %v1802
      %v1950 = vunpack.c.h.b16 %v1802
      %v1951 = vunpack.c.l.b16 %v1803
      %v1952 = vunpack.c.h.b16 %v1803
      %v1953 = vunpack.c.l.b16 %v1804
      %v1954 = vunpack.c.h.b16 %v1804
      %v1955 = vunpack.c.l.b16 %v1805
      %v1956 = vunpack.c.h.b16 %v1805
      %v1957 = vunpack.c.l.b16 %v1806
      %v1958 = vunpack.c.h.b16 %v1806
      %v1959 = vunpack.c.l.b16 %v1807
      %v1960 = vunpack.c.h.b16 %v1807
      %v1961 = vpack.c.b16 %v1953, %v1945
      %v1962 = vpack.c.b16 %v1954, %v1946
      %v1963 = vpack.c.b16 %v1955, %v1947
      %v1964 = vpack.c.b16 %v1956, %v1948
      %v1965 = vpack.c.b16 %v1957, %v1949
      %v1966 = vpack.c.b16 %v1958, %v1950
      %v1967 = vpack.c.b16 %v1959, %v1951
      %v1968 = vpack.c.b16 %v1960, %v1952
      %v2105 = vunpack.c.l.b16 %v1809
      %v2106 = vunpack.c.l.b16 %v1810
      %v2107 = vunpack.c.l.b16 %v1811
      %v2108 = vunpack.c.l.b16 %v1812
      %v2109 = vunpack.c.l.b16 %v1813
      %v2110 = vunpack.c.l.b16 %v1814
      %v2111 = vunpack.c.l.b16 %v1815
      %v2112 = vunpack.c.l.b16 %v1816
      %v2113 = vunpack.c.l.b16 %v1817
      %v2114 = vunpack.c.l.b16 %v1818
      %v2115 = vunpack.c.l.b16 %v1819
      %v2116 = vunpack.c.l.b16 %v1820
      %v2117 = vunpack.c.l.b16 %v1821
      %v2118 = vunpack.c.l.b16 %v1822
      %v2119 = vunpack.c.l.b16 %v1823
      %v2120 = vunpack.c.l.b16 %v1824
      %v2121 = vunpack.c.l.b16 %v1825
      %v2122 = vunpack.c.l.b16 %v1826
      %v2123 = vunpack.c.l.b16 %v1827
      %v2124 = vunpack.c.l.b16 %v1828
      %v2125 = vunpack.c.l.b16 %v1829
      %v2126 = vunpack.c.l.b16 %v1830
      %v2127 = vunpack.c.l.b16 %v1831
      %v2128 = vunpack.c.l.b16 %v1832
      %v2129 = vunpack.c.l.b16 %v1833
      %v2130 = vunpack.c.l.b16 %v1834
      %v2131 = vunpack.c.l.b16 %v1835
      %v2132 = vunpack.c.l.b16 %v1836
      %v2133 = vunpack.c.l.b16 %v1837
      %v2134 = vunpack.c.l.b16 %v1838
      %v2135 = vunpack.c.l.b16 %v1839
      %v2136 = vunpack.c.l.b16 %v1840
      %v2137 = vunpack.c.l.b16 %v1841
      %v2138 = vunpack.c.l.b16 %v1842
      %v2139 = vunpack.c.l.b16 %v1843
      %v2140 = vunpack.c.l.b16 %v1844
      %v2141 = vunpack.c.l.b16 %v1845
      %v2142 = vunpack.c.l.b16 %v1846
      %v2143 = vunpack.c.l.b16 %v1847
      %v2144 = vunpack.c.l.b16 %v1848
      %v2145 = vunpack.c.l.b16 %v1849
      %v2146 = vunpack.c.l.b16 %v1850
      %v2147 = vunpack.c.l.b16 %v1851
      %v2148 = vunpack.c.l.b16 %v1852
      %v2149 = vunpack.c.l.b16 %v1853
      %v2150 = vunpack.c.l.b16 %v1854
      %v2151 = vunpack.c.l.b16 %v1855
      %v2152 = vunpack.c.l.b16 %v1856
      %v2153 = vunpack.c.l.b16 %v1857
      %v2154 = vunpack.c.l.b16 %v1858
      %v2155 = vunpack.c.l.b16 %v1859
      %v2156 = vunpack.c.l.b16 %v1860
      %v2157 = vunpack.c.l.b16 %v1861
      %v2158 = vunpack.c.l.b16 %v1862
      %v2159 = vunpack.c.l.b16 %v1863
      %v2160 = vunpack.c.l.b16 %v1864
      %v2161 = vunpack.c.l.b16 %v1865
      %v2162 = vunpack.c.l.b16 %v1866
      %v2163 = vunpack.c.l.b16 %v1867
      %v2164 = vunpack.c.l.b16 %v1868
      %v2165 = vunpack.c.l.b16 %v1869
      %v2166 = vunpack.c.l.b16 %v1870
      %v2167 = vunpack.c.l.b16 %v1871
      %v2168 = vunpack.c.l.b16 %v1872
      %v2169 = vunpack.c.l.b16 %v1873
      %v2170 = vunpack.c.l.b16 %v1874
      %v2171 = vunpack.c.l.b16 %v1875
      %v2172 = vunpack.c.l.b16 %v1876
      %v2173 = vunpack.c.l.b16 %v1877
      %v2174 = vunpack.c.l.b16 %v1878
      %v2175 = vunpack.c.l.b16 %v1879
      %v2176 = vunpack.c.l.b16 %v1880
      %v2177 = vunpack.c.l.b16 %v1881
      %v2178 = vunpack.c.l.b16 %v1882
      %v2179 = vunpack.c.l.b16 %v1883
      %v2180 = vunpack.c.l.b16 %v1884
      %v2181 = vunpack.c.l.b16 %v1885
      %v2182 = vunpack.c.l.b16 %v1886
      %v2183 = vunpack.c.l.b16 %v1887
      %v2184 = vunpack.c.l.b16 %v1888
      %v2185 = vunpack.c.l.b16 %v1889
      %v2186 = vunpack.c.l.b16 %v1890
      %v2187 = vunpack.c.l.b16 %v1891
      %v2188 = vunpack.c.l.b16 %v1892
      %v2189 = vunpack.c.l.b16 %v1893
      %v2190 = vunpack.c.l.b16 %v1894
      %v2191 = vunpack.c.l.b16 %v1895
      %v2192 = vunpack.c.l.b16 %v1896
      %v2193 = vunpack.c.l.b16 %v1897
      %v2194 = vunpack.c.l.b16 %v1898
      %v2195 = vunpack.c.l.b16 %v1899
      %v2196 = vunpack.c.l.b16 %v1900
      %v2197 = vunpack.c.l.b16 %v1901
      %v2198 = vunpack.c.l.b16 %v1902
      %v2199 = vunpack.c.l.b16 %v1903
      %v2200 = vunpack.c.l.b16 %v1904
      %v2201 = vunpack.c.l.b16 %v1905
      %v2202 = vunpack.c.l.b16 %v1906
      %v2203 = vunpack.c.l.b16 %v1907
      %v2204 = vunpack.c.l.b16 %v1908
      %v2205 = vunpack.c.l.b16 %v1909
      %v2206 = vunpack.c.l.b16 %v1910
      %v2207 = vunpack.c.l.b16 %v1911
      %v2208 = vunpack.c.l.b16 %v1912
      %v2209 = vunpack.c.l.b16 %v1913
      %v2210 = vunpack.c.l.b16 %v1914
      %v2211 = vunpack.c.l.b16 %v1915
      %v2212 = vunpack.c.l.b16 %v1916
      %v2213 = vunpack.c.l.b16 %v1917
      %v2214 = vunpack.c.l.b16 %v1918
      %v2215 = vunpack.c.l.b16 %v1919
      %v2216 = vunpack.c.l.b16 %v1920
      %v2217 = vunpack.c.l.b16 %v1921
      %v2218 = vunpack.c.l.b16 %v1922
      %v2219 = vunpack.c.l.b16 %v1923
      %v2220 = vunpack.c.l.b16 %v1924
      %v2221 = vunpack.c.l.b16 %v1925
      %v2222 = vunpack.c.l.b16 %v1926
      %v2223 = vunpack.c.l.b16 %v1927
      %v2224 = vunpack.c.l.b16 %v1928
      %v2225 = vunpack.c.l.b16 %v1929
      %v2226 = vunpack.c.l.b16 %v1930
      %v2227 = vunpack.c.l.b16 %v1931
      %v2228 = vunpack.c.l.b16 %v1932
      %v2229 = vunpack.c.l.b16 %v1933
      %v2230 = vunpack.c.l.b16 %v1934
      %v2231 = vunpack.c.l.b16 %v1935
      %v2232 = vunpack.c.l.b16 %v1936
      %v2233 = vpack.c.b16 %v2106, %v2105
      %v2234 = vpack.c.b16 %v2108, %v2107
      %v2235 = vpack.c.b16 %v2110, %v2109
      %v2236 = vpack.c.b16 %v2112, %v2111
      %v2237 = vpack.c.b16 %v2114, %v2113
      %v2238 = vpack.c.b16 %v2116, %v2115
      %v2239 = vpack.c.b16 %v2118, %v2117
      %v2240 = vpack.c.b16 %v2120, %v2119
      %v2241 = vpack.c.b16 %v2122, %v2121
      %v2242 = vpack.c.b16 %v2124, %v2123
      %v2243 = vpack.c.b16 %v2126, %v2125
      %v2244 = vpack.c.b16 %v2128, %v2127
      %v2245 = vpack.c.b16 %v2130, %v2129
      %v2246 = vpack.c.b16 %v2132, %v2131
      %v2247 = vpack.c.b16 %v2134, %v2133
      %v2248 = vpack.c.b16 %v2136, %v2135
      %v2249 = vpack.c.b16 %v2138, %v2137
      %v2250 = vpack.c.b16 %v2140, %v2139
      %v2251 = vpack.c.b16 %v2142, %v2141
      %v2252 = vpack.c.b16 %v2144, %v2143
      %v2253 = vpack.c.b16 %v2146, %v2145
      %v2254 = vpack.c.b16 %v2148, %v2147
      %v2255 = vpack.c.b16 %v2150, %v2149
      %v2256 = vpack.c.b16 %v2152, %v2151
      %v2257 = vpack.c.b16 %v2154, %v2153
      %v2258 = vpack.c.b16 %v2156, %v2155
      %v2259 = vpack.c.b16 %v2158, %v2157
      %v2260 = vpack.c.b16 %v2160, %v2159
      %v2261 = vpack.c.b16 %v2162, %v2161
      %v2262 = vpack.c.b16 %v2164, %v2163
      %v2263 = vpack.c.b16 %v2166, %v2165
      %v2264 = vpack.c.b16 %v2168, %v2167
      %v2265 = vpack.c.b16 %v2170, %v2169
      %v2266 = vpack.c.b16 %v2172, %v2171
      %v2267 = vpack.c.b16 %v2174, %v2173
      %v2268 = vpack.c.b16 %v2176, %v2175
      %v2269 = vpack.c.b16 %v2178, %v2177
      %v2270 = vpack.c.b16 %v2180, %v2179
      %v2271 = vpack.c.b16 %v2182, %v2181
      %v2272 = vpack.c.b16 %v2184, %v2183
      %v2273 = vpack.c.b16 %v2186, %v2185
      %v2274 = vpack.c.b16 %v2188, %v2187
      %v2275 = vpack.c.b16 %v2190, %v2189
      %v2276 = vpack.c.b16 %v2192, %v2191
      %v2277 = vpack.c.b16 %v2194, %v2193
      %v2278 = vpack.c.b16 %v2196, %v2195
      %v2279 = vpack.c.b16 %v2198, %v2197
      %v2280 = vpack.c.b16 %v2200, %v2199
      %v2281 = vpack.c.b16 %v2202, %v2201
      %v2282 = vpack.c.b16 %v2204, %v2203
      %v2283 = vpack.c.b16 %v2206, %v2205
      %v2284 = vpack.c.b16 %v2208, %v2207
      %v2285 = vpack.c.b16 %v2210, %v2209
      %v2286 = vpack.c.b16 %v2212, %v2211
      %v2287 = vpack.c.b16 %v2214, %v2213
      %v2288 = vpack.c.b16 %v2216, %v2215
      %v2289 = vpack.c.b16 %v2218, %v2217
      %v2290 = vpack.c.b16 %v2220, %v2219
      %v2291 = vpack.c.b16 %v2222, %v2221
      %v2292 = vpack.c.b16 %v2224, %v2223
      %v2293 = vpack.c.b16 %v2226, %v2225
      %v2294 = vpack.c.b16 %v2228, %v2227
      %v2295 = vpack.c.b16 %v2230, %v2229
      %v2296 = vpack.c.b16 %v2232, %v2231
      %2361 = vmatprep.subr.bf16.mxu0 0
      %2362 = vmatpush1.bf16.msra.mxu0 %v2240
      %2363 = vmatprep.subr.bf16.mxu0 0
      %2364 = vmatpush1.bf16.msra.mxu0 %v2239
      %2365 = vmatprep.subr.bf16.mxu0 0
      %2366 = vmatpush1.bf16.msra.mxu0 %v2238
      %2367 = vmatprep.subr.bf16.mxu0 0
      %2368 = vmatpush1.bf16.msra.mxu0 %v2237
      %2369 = vmatprep.subr.bf16.mxu0 0
      %2370 = vmatpush1.bf16.msra.mxu0 %v2236
      %2371 = vmatprep.subr.bf16.mxu0 0
      %2372 = vmatpush1.bf16.msra.mxu0 %v2235
      %2373 = vmatprep.subr.bf16.mxu0 0
      %2374 = vmatpush1.bf16.msra.mxu0 %v2234
      %2375 = vmatprep.subr.bf16.mxu0 0
      %2376 = vmatpush1.bf16.msra.mxu0 %v2233
      %2377 = vmatprep.subr.bf16.mxu0 0
      %2378 = vmatpush2.bf16.msra.mxu0 %v2248
      %2379 = vmatprep.subr.bf16.mxu0 0
      %2380 = vmatpush2.bf16.msra.mxu0 %v2247
      %2381 = vmatprep.subr.bf16.mxu0 0
      %2382 = vmatpush2.bf16.msra.mxu0 %v2246
      %2383 = vmatprep.subr.bf16.mxu0 0
      %2384 = vmatpush2.bf16.msra.mxu0 %v2245
      %2385 = vmatprep.subr.bf16.mxu0 0
      %2386 = vmatpush2.bf16.msra.mxu0 %v2244
      %2387 = vmatprep.subr.bf16.mxu0 0
      %2388 = vmatpush2.bf16.msra.mxu0 %v2243
      %2389 = vmatprep.subr.bf16.mxu0 0
      %2390 = vmatpush2.bf16.msra.mxu0 %v2242
      %2391 = vmatprep.subr.bf16.mxu0 0
      %2392 = vmatpush2.bf16.msra.mxu0 %v2241
      %2393 = vmatprep.mubr.bf16.mxu0 %v1962
      %2394 = vmatmul.mubr.bf16.gmra.mxu0 %v1961
      %v2395 = vpop.f32.mrf.mxu0
      %v2396 = vadd.f32 %v442, %v2395
      %v2397 = vpop.f32.mrf.mxu0
      %v2398 = vpop.f32.mrf.mxu0
      %v2399 = vadd.f32 %v442, %v2398
      %v2400 = vpop.f32.mrf.mxu0
      %2401 = vdwg.mxu0
      %2402 = vmatprep.subr.bf16.mxu0 0
      %2403 = vmatpush1.bf16.msra.mxu0 %v2256
      %2404 = vmatprep.subr.bf16.mxu0 0
      %2405 = vmatpush1.bf16.msra.mxu0 %v2255
      %2406 = vmatprep.subr.bf16.mxu0 0
      %2407 = vmatpush1.bf16.msra.mxu0 %v2254
      %2408 = vmatprep.subr.bf16.mxu0 0
      %2409 = vmatpush1.bf16.msra.mxu0 %v2253
      %2410 = vmatprep.subr.bf16.mxu0 0
      %2411 = vmatpush1.bf16.msra.mxu0 %v2252
      %2412 = vmatprep.subr.bf16.mxu0 0
      %2413 = vmatpush1.bf16.msra.mxu0 %v2251
      %2414 = vmatprep.subr.bf16.mxu0 0
      %2415 = vmatpush1.bf16.msra.mxu0 %v2250
      %2416 = vmatprep.subr.bf16.mxu0 0
      %2417 = vmatpush1.bf16.msra.mxu0 %v2249
      %2418 = vmatprep.subr.bf16.mxu0 0
      %2419 = vmatpush2.bf16.msra.mxu0 %v2264
      %2420 = vmatprep.subr.bf16.mxu0 0
      %2421 = vmatpush2.bf16.msra.mxu0 %v2263
      %2422 = vmatprep.subr.bf16.mxu0 0
      %2423 = vmatpush2.bf16.msra.mxu0 %v2262
      %2424 = vmatprep.subr.bf16.mxu0 0
      %2425 = vmatpush2.bf16.msra.mxu0 %v2261
      %2426 = vmatprep.subr.bf16.mxu0 0
      %2427 = vmatpush2.bf16.msra.mxu0 %v2260
      %2428 = vmatprep.subr.bf16.mxu0 0
      %2429 = vmatpush2.bf16.msra.mxu0 %v2259
      %2430 = vmatprep.subr.bf16.mxu0 0
      %2431 = vmatpush2.bf16.msra.mxu0 %v2258
      %2432 = vmatprep.subr.bf16.mxu0 0
      %2433 = vmatpush2.bf16.msra.mxu0 %v2257
      %2434 = vmatprep.mubr.bf16.mxu0 %v1964
      %2435 = vmatmul.mubr.bf16.gmra.mxu0 %v1963
      %v2436 = vpop.f32.mrf.mxu0
      %v2437 = vadd.f32 %v2396, %v2436
      %v2438 = vpop.f32.mrf.mxu0
      %v2439 = vpop.f32.mrf.mxu0
      %v2440 = vadd.f32 %v2399, %v2439
      %v2441 = vpop.f32.mrf.mxu0
      %2442 = vdwg.mxu0
      %2443 = vmatprep.subr.bf16.mxu0 0
      %2444 = vmatpush1.bf16.msra.mxu0 %v2272
      %2445 = vmatprep.subr.bf16.mxu0 0
      %2446 = vmatpush1.bf16.msra.mxu0 %v2271
      %2447 = vmatprep.subr.bf16.mxu0 0
      %2448 = vmatpush1.bf16.msra.mxu0 %v2270
      %2449 = vmatprep.subr.bf16.mxu0 0
      %2450 = vmatpush1.bf16.msra.mxu0 %v2269
      %2451 = vmatprep.subr.bf16.mxu0 0
      %2452 = vmatpush1.bf16.msra.mxu0 %v2268
      %2453 = vmatprep.subr.bf16.mxu0 0
      %2454 = vmatpush1.bf16.msra.mxu0 %v2267
      %2455 = vmatprep.subr.bf16.mxu0 0
      %2456 = vmatpush1.bf16.msra.mxu0 %v2266
      %2457 = vmatprep.subr.bf16.mxu0 0
      %2458 = vmatpush1.bf16.msra.mxu0 %v2265
      %2459 = vmatprep.subr.bf16.mxu0 0
      %2460 = vmatpush2.bf16.msra.mxu0 %v2280
      %2461 = vmatprep.subr.bf16.mxu0 0
      %2462 = vmatpush2.bf16.msra.mxu0 %v2279
      %2463 = vmatprep.subr.bf16.mxu0 0
      %2464 = vmatpush2.bf16.msra.mxu0 %v2278
      %2465 = vmatprep.subr.bf16.mxu0 0
      %2466 = vmatpush2.bf16.msra.mxu0 %v2277
      %2467 = vmatprep.subr.bf16.mxu0 0
      %2468 = vmatpush2.bf16.msra.mxu0 %v2276
      %2469 = vmatprep.subr.bf16.mxu0 0
      %2470 = vmatpush2.bf16.msra.mxu0 %v2275
      %2471 = vmatprep.subr.bf16.mxu0 0
      %2472 = vmatpush2.bf16.msra.mxu0 %v2274
      %2473 = vmatprep.subr.bf16.mxu0 0
      %2474 = vmatpush2.bf16.msra.mxu0 %v2273
      %2475 = vmatprep.mubr.bf16.mxu0 %v1966
      %2476 = vmatmul.mubr.bf16.gmra.mxu0 %v1965
      %v2477 = vpop.f32.mrf.mxu0
      %v2478 = vadd.f32 %v2437, %v2477
      %v2479 = vpop.f32.mrf.mxu0
      %v2480 = vpop.f32.mrf.mxu0
      %v2481 = vadd.f32 %v2440, %v2480
      %v2482 = vpop.f32.mrf.mxu0
      %2483 = vdwg.mxu0
      %2484 = vmatprep.subr.bf16.mxu0 0
      %2485 = vmatpush1.bf16.msra.mxu0 %v2288
      %2486 = vmatprep.subr.bf16.mxu0 0
      %2487 = vmatpush1.bf16.msra.mxu0 %v2287
      %2488 = vmatprep.subr.bf16.mxu0 0
      %2489 = vmatpush1.bf16.msra.mxu0 %v2286
      %2490 = vmatprep.subr.bf16.mxu0 0
      %2491 = vmatpush1.bf16.msra.mxu0 %v2285
      %2492 = vmatprep.subr.bf16.mxu0 0
      %2493 = vmatpush1.bf16.msra.mxu0 %v2284
      %2494 = vmatprep.subr.bf16.mxu0 0
      %2495 = vmatpush1.bf16.msra.mxu0 %v2283
      %2496 = vmatprep.subr.bf16.mxu0 0
      %2497 = vmatpush1.bf16.msra.mxu0 %v2282
      %2498 = vmatprep.subr.bf16.mxu0 0
      %2499 = vmatpush1.bf16.msra.mxu0 %v2281
      %2500 = vmatprep.subr.bf16.mxu0 0
      %2501 = vmatpush2.bf16.msra.mxu0 %v2296
      %2502 = vmatprep.subr.bf16.mxu0 0
      %2503 = vmatpush2.bf16.msra.mxu0 %v2295
      %2504 = vmatprep.subr.bf16.mxu0 0
      %2505 = vmatpush2.bf16.msra.mxu0 %v2294
      %2506 = vmatprep.subr.bf16.mxu0 0
      %2507 = vmatpush2.bf16.msra.mxu0 %v2293
      %2508 = vmatprep.subr.bf16.mxu0 0
      %2509 = vmatpush2.bf16.msra.mxu0 %v2292
      %2510 = vmatprep.subr.bf16.mxu0 0
      %2511 = vmatpush2.bf16.msra.mxu0 %v2291
      %2512 = vmatprep.subr.bf16.mxu0 0
      %2513 = vmatpush2.bf16.msra.mxu0 %v2290
      %2514 = vmatprep.subr.bf16.mxu0 0
      %2515 = vmatpush2.bf16.msra.mxu0 %v2289
      %2516 = vmatprep.mubr.bf16.mxu0 %v1968
      %2517 = vmatmul.mubr.bf16.gmra.mxu0 %v1967
      %v2518 = vpop.f32.mrf.mxu0
      %v2519 = vadd.f32 %v2478, %v2518
      %v2520 = vpop.f32.mrf.mxu0
      %v2521 = vpop.f32.mrf.mxu0
      %v2522 = vadd.f32 %v2481, %v2521
      %v2523 = vpop.f32.mrf.mxu0
      %2524 = vdwg.mxu0
      %s2525 = scalar_lea.vmem %s286, 32
      %2526 = vst [vmem:[%s2525] sm:$0xff] %v2519
      %2527 = vst [vmem:[%s2525 + $0x8] sm:$0xff] %v2522
      %v2528 = vadd.f32 %v2519, %v2522
      %v2529 = vrot.slane %v2528, 4
      %v2530 = vadd.f32 %v2528, %v2529
      %v2531 = vrot.slane %v2530, 2
      %v2532 = vadd.f32 %v2530, %v2531
      %v2533 = vrot.slane %v2532, 1
      %v2534 = vadd.f32 %v2532, %v2533
      %v2535 = vadd.f32 %v1788, %v2534
      %v2536 = vmul.f32 %v2519, %v2519
      %v2537 = vmul.f32 %v2522, %v2522
      %v2538 = vadd.f32 %v2536, %v2537
      %v2539 = vrot.slane %v2538, 4
      %v2540 = vadd.f32 %v2538, %v2539
      %v2541 = vrot.slane %v2540, 2
      %v2542 = vadd.f32 %v2540, %v2541
      %v2543 = vrot.slane %v2542, 1
      %v2544 = vadd.f32 %v2542, %v2543
      %v2545 = vadd.f32 %v1798, %v2544
      %s2546 = scalar_lea.vmem %s276, 192
      %v2547 = vld [vmem:[%s2546] sm:$0xff]
      %v2548 = vld [vmem:[%s2546 + $0x8] sm:$0xff]
      %v2549 = vld [vmem:[%s2546 + $0x10] sm:$0xff]
      %v2550 = vld [vmem:[%s2546 + $0x18] sm:$0xff]
      %v2551 = vld [vmem:[%s2546 + $0x20] sm:$0xff]
      %v2552 = vld [vmem:[%s2546 + $0x28] sm:$0xff]
      %v2553 = vld [vmem:[%s2546 + $0x30] sm:$0xff]
      %v2554 = vld [vmem:[%s2546 + $0x38] sm:$0xff]
      %s2555 = scalar_lea.vmem %s1, 1536
      %v2556 = vld [vmem:[%s2555] sm:$0xf]
      %v2557 = vld [vmem:[%s2555 + $0x4] sm:$0xf]
      %v2558 = vld [vmem:[%s2555 + $0x8] sm:$0xf]
      %v2559 = vld [vmem:[%s2555 + $0xc] sm:$0xf]
      %v2560 = vld [vmem:[%s2555 + $0x10] sm:$0xf]
      %v2561 = vld [vmem:[%s2555 + $0x14] sm:$0xf]
      %v2562 = vld [vmem:[%s2555 + $0x18] sm:$0xf]
      %v2563 = vld [vmem:[%s2555 + $0x1c] sm:$0xf]
      %v2564 = vld [vmem:[%s2555 + $0x20] sm:$0xf]
      %v2565 = vld [vmem:[%s2555 + $0x24] sm:$0xf]
      %v2566 = vld [vmem:[%s2555 + $0x28] sm:$0xf]
      %v2567 = vld [vmem:[%s2555 + $0x2c] sm:$0xf]
      %v2568 = vld [vmem:[%s2555 + $0x30] sm:$0xf]
      %v2569 = vld [vmem:[%s2555 + $0x34] sm:$0xf]
      %v2570 = vld [vmem:[%s2555 + $0x38] sm:$0xf]
      %v2571 = vld [vmem:[%s2555 + $0x3c] sm:$0xf]
      %v2572 = vld [vmem:[%s2555 + $0x40] sm:$0xf]
      %v2573 = vld [vmem:[%s2555 + $0x44] sm:$0xf]
      %v2574 = vld [vmem:[%s2555 + $0x48] sm:$0xf]
      %v2575 = vld [vmem:[%s2555 + $0x4c] sm:$0xf]
      %v2576 = vld [vmem:[%s2555 + $0x50] sm:$0xf]
      %v2577 = vld [vmem:[%s2555 + $0x54] sm:$0xf]
      %v2578 = vld [vmem:[%s2555 + $0x58] sm:$0xf]
      %v2579 = vld [vmem:[%s2555 + $0x5c] sm:$0xf]
      %v2580 = vld [vmem:[%s2555 + $0x60] sm:$0xf]
      %v2581 = vld [vmem:[%s2555 + $0x64] sm:$0xf]
      %v2582 = vld [vmem:[%s2555 + $0x68] sm:$0xf]
      %v2583 = vld [vmem:[%s2555 + $0x6c] sm:$0xf]
      %v2584 = vld [vmem:[%s2555 + $0x70] sm:$0xf]
      %v2585 = vld [vmem:[%s2555 + $0x74] sm:$0xf]
      %v2586 = vld [vmem:[%s2555 + $0x78] sm:$0xf]
      %v2587 = vld [vmem:[%s2555 + $0x7c] sm:$0xf]
      %v2588 = vld [vmem:[%s2555 + $0x80] sm:$0xf]
      %v2589 = vld [vmem:[%s2555 + $0x84] sm:$0xf]
      %v2590 = vld [vmem:[%s2555 + $0x88] sm:$0xf]
      %v2591 = vld [vmem:[%s2555 + $0x8c] sm:$0xf]
      %v2592 = vld [vmem:[%s2555 + $0x90] sm:$0xf]
      %v2593 = vld [vmem:[%s2555 + $0x94] sm:$0xf]
      %v2594 = vld [vmem:[%s2555 + $0x98] sm:$0xf]
      %v2595 = vld [vmem:[%s2555 + $0x9c] sm:$0xf]
      %v2596 = vld [vmem:[%s2555 + $0xa0] sm:$0xf]
      %v2597 = vld [vmem:[%s2555 + $0xa4] sm:$0xf]
      %v2598 = vld [vmem:[%s2555 + $0xa8] sm:$0xf]
      %v2599 = vld [vmem:[%s2555 + $0xac] sm:$0xf]
      %v2600 = vld [vmem:[%s2555 + $0xb0] sm:$0xf]
      %v2601 = vld [vmem:[%s2555 + $0xb4] sm:$0xf]
      %v2602 = vld [vmem:[%s2555 + $0xb8] sm:$0xf]
      %v2603 = vld [vmem:[%s2555 + $0xbc] sm:$0xf]
      %v2604 = vld [vmem:[%s2555 + $0xc0] sm:$0xf]
      %v2605 = vld [vmem:[%s2555 + $0xc4] sm:$0xf]
      %v2606 = vld [vmem:[%s2555 + $0xc8] sm:$0xf]
      %v2607 = vld [vmem:[%s2555 + $0xcc] sm:$0xf]
      %v2608 = vld [vmem:[%s2555 + $0xd0] sm:$0xf]
      %v2609 = vld [vmem:[%s2555 + $0xd4] sm:$0xf]
      %v2610 = vld [vmem:[%s2555 + $0xd8] sm:$0xf]
      %v2611 = vld [vmem:[%s2555 + $0xdc] sm:$0xf]
      %v2612 = vld [vmem:[%s2555 + $0xe0] sm:$0xf]
      %v2613 = vld [vmem:[%s2555 + $0xe4] sm:$0xf]
      %v2614 = vld [vmem:[%s2555 + $0xe8] sm:$0xf]
      %v2615 = vld [vmem:[%s2555 + $0xec] sm:$0xf]
      %v2616 = vld [vmem:[%s2555 + $0xf0] sm:$0xf]
      %v2617 = vld [vmem:[%s2555 + $0xf4] sm:$0xf]
      %v2618 = vld [vmem:[%s2555 + $0xf8] sm:$0xf]
      %v2619 = vld [vmem:[%s2555 + $0xfc] sm:$0xf]
      %v2620 = vld [vmem:[%s2555 + $0x100] sm:$0xf]
      %v2621 = vld [vmem:[%s2555 + $0x104] sm:$0xf]
      %v2622 = vld [vmem:[%s2555 + $0x108] sm:$0xf]
      %v2623 = vld [vmem:[%s2555 + $0x10c] sm:$0xf]
      %v2624 = vld [vmem:[%s2555 + $0x110] sm:$0xf]
      %v2625 = vld [vmem:[%s2555 + $0x114] sm:$0xf]
      %v2626 = vld [vmem:[%s2555 + $0x118] sm:$0xf]
      %v2627 = vld [vmem:[%s2555 + $0x11c] sm:$0xf]
      %v2628 = vld [vmem:[%s2555 + $0x120] sm:$0xf]
      %v2629 = vld [vmem:[%s2555 + $0x124] sm:$0xf]
      %v2630 = vld [vmem:[%s2555 + $0x128] sm:$0xf]
      %v2631 = vld [vmem:[%s2555 + $0x12c] sm:$0xf]
      %v2632 = vld [vmem:[%s2555 + $0x130] sm:$0xf]
      %v2633 = vld [vmem:[%s2555 + $0x134] sm:$0xf]
      %v2634 = vld [vmem:[%s2555 + $0x138] sm:$0xf]
      %v2635 = vld [vmem:[%s2555 + $0x13c] sm:$0xf]
      %v2636 = vld [vmem:[%s2555 + $0x140] sm:$0xf]
      %v2637 = vld [vmem:[%s2555 + $0x144] sm:$0xf]
      %v2638 = vld [vmem:[%s2555 + $0x148] sm:$0xf]
      %v2639 = vld [vmem:[%s2555 + $0x14c] sm:$0xf]
      %v2640 = vld [vmem:[%s2555 + $0x150] sm:$0xf]
      %v2641 = vld [vmem:[%s2555 + $0x154] sm:$0xf]
      %v2642 = vld [vmem:[%s2555 + $0x158] sm:$0xf]
      %v2643 = vld [vmem:[%s2555 + $0x15c] sm:$0xf]
      %v2644 = vld [vmem:[%s2555 + $0x160] sm:$0xf]
      %v2645 = vld [vmem:[%s2555 + $0x164] sm:$0xf]
      %v2646 = vld [vmem:[%s2555 + $0x168] sm:$0xf]
      %v2647 = vld [vmem:[%s2555 + $0x16c] sm:$0xf]
      %v2648 = vld [vmem:[%s2555 + $0x170] sm:$0xf]
      %v2649 = vld [vmem:[%s2555 + $0x174] sm:$0xf]
      %v2650 = vld [vmem:[%s2555 + $0x178] sm:$0xf]
      %v2651 = vld [vmem:[%s2555 + $0x17c] sm:$0xf]
      %v2652 = vld [vmem:[%s2555 + $0x180] sm:$0xf]
      %v2653 = vld [vmem:[%s2555 + $0x184] sm:$0xf]
      %v2654 = vld [vmem:[%s2555 + $0x188] sm:$0xf]
      %v2655 = vld [vmem:[%s2555 + $0x18c] sm:$0xf]
      %v2656 = vld [vmem:[%s2555 + $0x190] sm:$0xf]
      %v2657 = vld [vmem:[%s2555 + $0x194] sm:$0xf]
      %v2658 = vld [vmem:[%s2555 + $0x198] sm:$0xf]
      %v2659 = vld [vmem:[%s2555 + $0x19c] sm:$0xf]
      %v2660 = vld [vmem:[%s2555 + $0x1a0] sm:$0xf]
      %v2661 = vld [vmem:[%s2555 + $0x1a4] sm:$0xf]
      %v2662 = vld [vmem:[%s2555 + $0x1a8] sm:$0xf]
      %v2663 = vld [vmem:[%s2555 + $0x1ac] sm:$0xf]
      %v2664 = vld [vmem:[%s2555 + $0x1b0] sm:$0xf]
      %v2665 = vld [vmem:[%s2555 + $0x1b4] sm:$0xf]
      %v2666 = vld [vmem:[%s2555 + $0x1b8] sm:$0xf]
      %v2667 = vld [vmem:[%s2555 + $0x1bc] sm:$0xf]
      %v2668 = vld [vmem:[%s2555 + $0x1c0] sm:$0xf]
      %v2669 = vld [vmem:[%s2555 + $0x1c4] sm:$0xf]
      %v2670 = vld [vmem:[%s2555 + $0x1c8] sm:$0xf]
      %v2671 = vld [vmem:[%s2555 + $0x1cc] sm:$0xf]
      %v2672 = vld [vmem:[%s2555 + $0x1d0] sm:$0xf]
      %v2673 = vld [vmem:[%s2555 + $0x1d4] sm:$0xf]
      %v2674 = vld [vmem:[%s2555 + $0x1d8] sm:$0xf]
      %v2675 = vld [vmem:[%s2555 + $0x1dc] sm:$0xf]
      %v2676 = vld [vmem:[%s2555 + $0x1e0] sm:$0xf]
      %v2677 = vld [vmem:[%s2555 + $0x1e4] sm:$0xf]
      %v2678 = vld [vmem:[%s2555 + $0x1e8] sm:$0xf]
      %v2679 = vld [vmem:[%s2555 + $0x1ec] sm:$0xf]
      %v2680 = vld [vmem:[%s2555 + $0x1f0] sm:$0xf]
      %v2681 = vld [vmem:[%s2555 + $0x1f4] sm:$0xf]
      %v2682 = vld [vmem:[%s2555 + $0x1f8] sm:$0xf]
      %v2683 = vld [vmem:[%s2555 + $0x1fc] sm:$0xf]
      %v2692 = vunpack.c.l.b16 %v2547
      %v2693 = vunpack.c.h.b16 %v2547
      %v2694 = vunpack.c.l.b16 %v2548
      %v2695 = vunpack.c.h.b16 %v2548
      %v2696 = vunpack.c.l.b16 %v2549
      %v2697 = vunpack.c.h.b16 %v2549
      %v2698 = vunpack.c.l.b16 %v2550
      %v2699 = vunpack.c.h.b16 %v2550
      %v2700 = vunpack.c.l.b16 %v2551
      %v2701 = vunpack.c.h.b16 %v2551
      %v2702 = vunpack.c.l.b16 %v2552
      %v2703 = vunpack.c.h.b16 %v2552
      %v2704 = vunpack.c.l.b16 %v2553
      %v2705 = vunpack.c.h.b16 %v2553
      %v2706 = vunpack.c.l.b16 %v2554
      %v2707 = vunpack.c.h.b16 %v2554
      %v2708 = vpack.c.b16 %v2700, %v2692
      %v2709 = vpack.c.b16 %v2701, %v2693
      %v2710 = vpack.c.b16 %v2702, %v2694
      %v2711 = vpack.c.b16 %v2703, %v2695
      %v2712 = vpack.c.b16 %v2704, %v2696
      %v2713 = vpack.c.b16 %v2705, %v2697
      %v2714 = vpack.c.b16 %v2706, %v2698
      %v2715 = vpack.c.b16 %v2707, %v2699
      %v2852 = vunpack.c.l.b16 %v2556
      %v2853 = vunpack.c.l.b16 %v2557
      %v2854 = vunpack.c.l.b16 %v2558
      %v2855 = vunpack.c.l.b16 %v2559
      %v2856 = vunpack.c.l.b16 %v2560
      %v2857 = vunpack.c.l.b16 %v2561
      %v2858 = vunpack.c.l.b16 %v2562
      %v2859 = vunpack.c.l.b16 %v2563
      %v2860 = vunpack.c.l.b16 %v2564
      %v2861 = vunpack.c.l.b16 %v2565
      %v2862 = vunpack.c.l.b16 %v2566
      %v2863 = vunpack.c.l.b16 %v2567
      %v2864 = vunpack.c.l.b16 %v2568
      %v2865 = vunpack.c.l.b16 %v2569
      %v2866 = vunpack.c.l.b16 %v2570
      %v2867 = vunpack.c.l.b16 %v2571
      %v2868 = vunpack.c.l.b16 %v2572
      %v2869 = vunpack.c.l.b16 %v2573
      %v2870 = vunpack.c.l.b16 %v2574
      %v2871 = vunpack.c.l.b16 %v2575
      %v2872 = vunpack.c.l.b16 %v2576
      %v2873 = vunpack.c.l.b16 %v2577
      %v2874 = vunpack.c.l.b16 %v2578
      %v2875 = vunpack.c.l.b16 %v2579
      %v2876 = vunpack.c.l.b16 %v2580
      %v2877 = vunpack.c.l.b16 %v2581
      %v2878 = vunpack.c.l.b16 %v2582
      %v2879 = vunpack.c.l.b16 %v2583
      %v2880 = vunpack.c.l.b16 %v2584
      %v2881 = vunpack.c.l.b16 %v2585
      %v2882 = vunpack.c.l.b16 %v2586
      %v2883 = vunpack.c.l.b16 %v2587
      %v2884 = vunpack.c.l.b16 %v2588
      %v2885 = vunpack.c.l.b16 %v2589
      %v2886 = vunpack.c.l.b16 %v2590
      %v2887 = vunpack.c.l.b16 %v2591
      %v2888 = vunpack.c.l.b16 %v2592
      %v2889 = vunpack.c.l.b16 %v2593
      %v2890 = vunpack.c.l.b16 %v2594
      %v2891 = vunpack.c.l.b16 %v2595
      %v2892 = vunpack.c.l.b16 %v2596
      %v2893 = vunpack.c.l.b16 %v2597
      %v2894 = vunpack.c.l.b16 %v2598
      %v2895 = vunpack.c.l.b16 %v2599
      %v2896 = vunpack.c.l.b16 %v2600
      %v2897 = vunpack.c.l.b16 %v2601
      %v2898 = vunpack.c.l.b16 %v2602
      %v2899 = vunpack.c.l.b16 %v2603
      %v2900 = vunpack.c.l.b16 %v2604
      %v2901 = vunpack.c.l.b16 %v2605
      %v2902 = vunpack.c.l.b16 %v2606
      %v2903 = vunpack.c.l.b16 %v2607
      %v2904 = vunpack.c.l.b16 %v2608
      %v2905 = vunpack.c.l.b16 %v2609
      %v2906 = vunpack.c.l.b16 %v2610
      %v2907 = vunpack.c.l.b16 %v2611
      %v2908 = vunpack.c.l.b16 %v2612
      %v2909 = vunpack.c.l.b16 %v2613
      %v2910 = vunpack.c.l.b16 %v2614
      %v2911 = vunpack.c.l.b16 %v2615
      %v2912 = vunpack.c.l.b16 %v2616
      %v2913 = vunpack.c.l.b16 %v2617
      %v2914 = vunpack.c.l.b16 %v2618
      %v2915 = vunpack.c.l.b16 %v2619
      %v2916 = vunpack.c.l.b16 %v2620
      %v2917 = vunpack.c.l.b16 %v2621
      %v2918 = vunpack.c.l.b16 %v2622
      %v2919 = vunpack.c.l.b16 %v2623
      %v2920 = vunpack.c.l.b16 %v2624
      %v2921 = vunpack.c.l.b16 %v2625
      %v2922 = vunpack.c.l.b16 %v2626
      %v2923 = vunpack.c.l.b16 %v2627
      %v2924 = vunpack.c.l.b16 %v2628
      %v2925 = vunpack.c.l.b16 %v2629
      %v2926 = vunpack.c.l.b16 %v2630
      %v2927 = vunpack.c.l.b16 %v2631
      %v2928 = vunpack.c.l.b16 %v2632
      %v2929 = vunpack.c.l.b16 %v2633
      %v2930 = vunpack.c.l.b16 %v2634
      %v2931 = vunpack.c.l.b16 %v2635
      %v2932 = vunpack.c.l.b16 %v2636
      %v2933 = vunpack.c.l.b16 %v2637
      %v2934 = vunpack.c.l.b16 %v2638
      %v2935 = vunpack.c.l.b16 %v2639
      %v2936 = vunpack.c.l.b16 %v2640
      %v2937 = vunpack.c.l.b16 %v2641
      %v2938 = vunpack.c.l.b16 %v2642
      %v2939 = vunpack.c.l.b16 %v2643
      %v2940 = vunpack.c.l.b16 %v2644
      %v2941 = vunpack.c.l.b16 %v2645
      %v2942 = vunpack.c.l.b16 %v2646
      %v2943 = vunpack.c.l.b16 %v2647
      %v2944 = vunpack.c.l.b16 %v2648
      %v2945 = vunpack.c.l.b16 %v2649
      %v2946 = vunpack.c.l.b16 %v2650
      %v2947 = vunpack.c.l.b16 %v2651
      %v2948 = vunpack.c.l.b16 %v2652
      %v2949 = vunpack.c.l.b16 %v2653
      %v2950 = vunpack.c.l.b16 %v2654
      %v2951 = vunpack.c.l.b16 %v2655
      %v2952 = vunpack.c.l.b16 %v2656
      %v2953 = vunpack.c.l.b16 %v2657
      %v2954 = vunpack.c.l.b16 %v2658
      %v2955 = vunpack.c.l.b16 %v2659
      %v2956 = vunpack.c.l.b16 %v2660
      %v2957 = vunpack.c.l.b16 %v2661
      %v2958 = vunpack.c.l.b16 %v2662
      %v2959 = vunpack.c.l.b16 %v2663
      %v2960 = vunpack.c.l.b16 %v2664
      %v2961 = vunpack.c.l.b16 %v2665
      %v2962 = vunpack.c.l.b16 %v2666
      %v2963 = vunpack.c.l.b16 %v2667
      %v2964 = vunpack.c.l.b16 %v2668
      %v2965 = vunpack.c.l.b16 %v2669
      %v2966 = vunpack.c.l.b16 %v2670
      %v2967 = vunpack.c.l.b16 %v2671
      %v2968 = vunpack.c.l.b16 %v2672
      %v2969 = vunpack.c.l.b16 %v2673
      %v2970 = vunpack.c.l.b16 %v2674
      %v2971 = vunpack.c.l.b16 %v2675
      %v2972 = vunpack.c.l.b16 %v2676
      %v2973 = vunpack.c.l.b16 %v2677
      %v2974 = vunpack.c.l.b16 %v2678
      %v2975 = vunpack.c.l.b16 %v2679
      %v2976 = vunpack.c.l.b16 %v2680
      %v2977 = vunpack.c.l.b16 %v2681
      %v2978 = vunpack.c.l.b16 %v2682
      %v2979 = vunpack.c.l.b16 %v2683
      %v2980 = vpack.c.b16 %v2853, %v2852
      %v2981 = vpack.c.b16 %v2855, %v2854
      %v2982 = vpack.c.b16 %v2857, %v2856
      %v2983 = vpack.c.b16 %v2859, %v2858
      %v2984 = vpack.c.b16 %v2861, %v2860
      %v2985 = vpack.c.b16 %v2863, %v2862
      %v2986 = vpack.c.b16 %v2865, %v2864
      %v2987 = vpack.c.b16 %v2867, %v2866
      %v2988 = vpack.c.b16 %v2869, %v2868
      %v2989 = vpack.c.b16 %v2871, %v2870
      %v2990 = vpack.c.b16 %v2873, %v2872
      %v2991 = vpack.c.b16 %v2875, %v2874
      %v2992 = vpack.c.b16 %v2877, %v2876
      %v2993 = vpack.c.b16 %v2879, %v2878
      %v2994 = vpack.c.b16 %v2881, %v2880
      %v2995 = vpack.c.b16 %v2883, %v2882
      %v2996 = vpack.c.b16 %v2885, %v2884
      %v2997 = vpack.c.b16 %v2887, %v2886
      %v2998 = vpack.c.b16 %v2889, %v2888
      %v2999 = vpack.c.b16 %v2891, %v2890
      %v3000 = vpack.c.b16 %v2893, %v2892
      %v3001 = vpack.c.b16 %v2895, %v2894
      %v3002 = vpack.c.b16 %v2897, %v2896
      %v3003 = vpack.c.b16 %v2899, %v2898
      %v3004 = vpack.c.b16 %v2901, %v2900
      %v3005 = vpack.c.b16 %v2903, %v2902
      %v3006 = vpack.c.b16 %v2905, %v2904
      %v3007 = vpack.c.b16 %v2907, %v2906
      %v3008 = vpack.c.b16 %v2909, %v2908
      %v3009 = vpack.c.b16 %v2911, %v2910
      %v3010 = vpack.c.b16 %v2913, %v2912
      %v3011 = vpack.c.b16 %v2915, %v2914
      %v3012 = vpack.c.b16 %v2917, %v2916
      %v3013 = vpack.c.b16 %v2919, %v2918
      %v3014 = vpack.c.b16 %v2921, %v2920
      %v3015 = vpack.c.b16 %v2923, %v2922
      %v3016 = vpack.c.b16 %v2925, %v2924
      %v3017 = vpack.c.b16 %v2927, %v2926
      %v3018 = vpack.c.b16 %v2929, %v2928
      %v3019 = vpack.c.b16 %v2931, %v2930
      %v3020 = vpack.c.b16 %v2933, %v2932
      %v3021 = vpack.c.b16 %v2935, %v2934
      %v3022 = vpack.c.b16 %v2937, %v2936
      %v3023 = vpack.c.b16 %v2939, %v2938
      %v3024 = vpack.c.b16 %v2941, %v2940
      %v3025 = vpack.c.b16 %v2943, %v2942
      %v3026 = vpack.c.b16 %v2945, %v2944
      %v3027 = vpack.c.b16 %v2947, %v2946
      %v3028 = vpack.c.b16 %v2949, %v2948
      %v3029 = vpack.c.b16 %v2951, %v2950
      %v3030 = vpack.c.b16 %v2953, %v2952
      %v3031 = vpack.c.b16 %v2955, %v2954
      %v3032 = vpack.c.b16 %v2957, %v2956
      %v3033 = vpack.c.b16 %v2959, %v2958
      %v3034 = vpack.c.b16 %v2961, %v2960
      %v3035 = vpack.c.b16 %v2963, %v2962
      %v3036 = vpack.c.b16 %v2965, %v2964
      %v3037 = vpack.c.b16 %v2967, %v2966
      %v3038 = vpack.c.b16 %v2969, %v2968
      %v3039 = vpack.c.b16 %v2971, %v2970
      %v3040 = vpack.c.b16 %v2973, %v2972
      %v3041 = vpack.c.b16 %v2975, %v2974
      %v3042 = vpack.c.b16 %v2977, %v2976
      %v3043 = vpack.c.b16 %v2979, %v2978
      %3108 = vmatprep.subr.bf16.mxu0 0
      %3109 = vmatpush1.bf16.msra.mxu0 %v2987
      %3110 = vmatprep.subr.bf16.mxu0 0
      %3111 = vmatpush1.bf16.msra.mxu0 %v2986
      %3112 = vmatprep.subr.bf16.mxu0 0
      %3113 = vmatpush1.bf16.msra.mxu0 %v2985
      %3114 = vmatprep.subr.bf16.mxu0 0
      %3115 = vmatpush1.bf16.msra.mxu0 %v2984
      %3116 = vmatprep.subr.bf16.mxu0 0
      %3117 = vmatpush1.bf16.msra.mxu0 %v2983
      %3118 = vmatprep.subr.bf16.mxu0 0
      %3119 = vmatpush1.bf16.msra.mxu0 %v2982
      %3120 = vmatprep.subr.bf16.mxu0 0
      %3121 = vmatpush1.bf16.msra.mxu0 %v2981
      %3122 = vmatprep.subr.bf16.mxu0 0
      %3123 = vmatpush1.bf16.msra.mxu0 %v2980
      %3124 = vmatprep.subr.bf16.mxu0 0
      %3125 = vmatpush2.bf16.msra.mxu0 %v2995
      %3126 = vmatprep.subr.bf16.mxu0 0
      %3127 = vmatpush2.bf16.msra.mxu0 %v2994
      %3128 = vmatprep.subr.bf16.mxu0 0
      %3129 = vmatpush2.bf16.msra.mxu0 %v2993
      %3130 = vmatprep.subr.bf16.mxu0 0
      %3131 = vmatpush2.bf16.msra.mxu0 %v2992
      %3132 = vmatprep.subr.bf16.mxu0 0
      %3133 = vmatpush2.bf16.msra.mxu0 %v2991
      %3134 = vmatprep.subr.bf16.mxu0 0
      %3135 = vmatpush2.bf16.msra.mxu0 %v2990
      %3136 = vmatprep.subr.bf16.mxu0 0
      %3137 = vmatpush2.bf16.msra.mxu0 %v2989
      %3138 = vmatprep.subr.bf16.mxu0 0
      %3139 = vmatpush2.bf16.msra.mxu0 %v2988
      %3140 = vmatprep.mubr.bf16.mxu0 %v2709
      %3141 = vmatmul.mubr.bf16.gmra.mxu0 %v2708
      %v3142 = vpop.f32.mrf.mxu0
      %v3143 = vadd.f32 %v442, %v3142
      %v3144 = vpop.f32.mrf.mxu0
      %v3145 = vpop.f32.mrf.mxu0
      %v3146 = vadd.f32 %v442, %v3145
      %v3147 = vpop.f32.mrf.mxu0
      %3148 = vdwg.mxu0
      %3149 = vmatprep.subr.bf16.mxu0 0
      %3150 = vmatpush1.bf16.msra.mxu0 %v3003
      %3151 = vmatprep.subr.bf16.mxu0 0
      %3152 = vmatpush1.bf16.msra.mxu0 %v3002
      %3153 = vmatprep.subr.bf16.mxu0 0
      %3154 = vmatpush1.bf16.msra.mxu0 %v3001
      %3155 = vmatprep.subr.bf16.mxu0 0
      %3156 = vmatpush1.bf16.msra.mxu0 %v3000
      %3157 = vmatprep.subr.bf16.mxu0 0
      %3158 = vmatpush1.bf16.msra.mxu0 %v2999
      %3159 = vmatprep.subr.bf16.mxu0 0
      %3160 = vmatpush1.bf16.msra.mxu0 %v2998
      %3161 = vmatprep.subr.bf16.mxu0 0
      %3162 = vmatpush1.bf16.msra.mxu0 %v2997
      %3163 = vmatprep.subr.bf16.mxu0 0
      %3164 = vmatpush1.bf16.msra.mxu0 %v2996
      %3165 = vmatprep.subr.bf16.mxu0 0
      %3166 = vmatpush2.bf16.msra.mxu0 %v3011
      %3167 = vmatprep.subr.bf16.mxu0 0
      %3168 = vmatpush2.bf16.msra.mxu0 %v3010
      %3169 = vmatprep.subr.bf16.mxu0 0
      %3170 = vmatpush2.bf16.msra.mxu0 %v3009
      %3171 = vmatprep.subr.bf16.mxu0 0
      %3172 = vmatpush2.bf16.msra.mxu0 %v3008
      %3173 = vmatprep.subr.bf16.mxu0 0
      %3174 = vmatpush2.bf16.msra.mxu0 %v3007
      %3175 = vmatprep.subr.bf16.mxu0 0
      %3176 = vmatpush2.bf16.msra.mxu0 %v3006
      %3177 = vmatprep.subr.bf16.mxu0 0
      %3178 = vmatpush2.bf16.msra.mxu0 %v3005
      %3179 = vmatprep.subr.bf16.mxu0 0
      %3180 = vmatpush2.bf16.msra.mxu0 %v3004
      %3181 = vmatprep.mubr.bf16.mxu0 %v2711
      %3182 = vmatmul.mubr.bf16.gmra.mxu0 %v2710
      %v3183 = vpop.f32.mrf.mxu0
      %v3184 = vadd.f32 %v3143, %v3183
      %v3185 = vpop.f32.mrf.mxu0
      %v3186 = vpop.f32.mrf.mxu0
      %v3187 = vadd.f32 %v3146, %v3186
      %v3188 = vpop.f32.mrf.mxu0
      %3189 = vdwg.mxu0
      %3190 = vmatprep.subr.bf16.mxu0 0
      %3191 = vmatpush1.bf16.msra.mxu0 %v3019
      %3192 = vmatprep.subr.bf16.mxu0 0
      %3193 = vmatpush1.bf16.msra.mxu0 %v3018
      %3194 = vmatprep.subr.bf16.mxu0 0
      %3195 = vmatpush1.bf16.msra.mxu0 %v3017
      %3196 = vmatprep.subr.bf16.mxu0 0
      %3197 = vmatpush1.bf16.msra.mxu0 %v3016
      %3198 = vmatprep.subr.bf16.mxu0 0
      %3199 = vmatpush1.bf16.msra.mxu0 %v3015
      %3200 = vmatprep.subr.bf16.mxu0 0
      %3201 = vmatpush1.bf16.msra.mxu0 %v3014
      %3202 = vmatprep.subr.bf16.mxu0 0
      %3203 = vmatpush1.bf16.msra.mxu0 %v3013
      %3204 = vmatprep.subr.bf16.mxu0 0
      %3205 = vmatpush1.bf16.msra.mxu0 %v3012
      %3206 = vmatprep.subr.bf16.mxu0 0
      %3207 = vmatpush2.bf16.msra.mxu0 %v3027
      %3208 = vmatprep.subr.bf16.mxu0 0
      %3209 = vmatpush2.bf16.msra.mxu0 %v3026
      %3210 = vmatprep.subr.bf16.mxu0 0
      %3211 = vmatpush2.bf16.msra.mxu0 %v3025
      %3212 = vmatprep.subr.bf16.mxu0 0
      %3213 = vmatpush2.bf16.msra.mxu0 %v3024
      %3214 = vmatprep.subr.bf16.mxu0 0
      %3215 = vmatpush2.bf16.msra.mxu0 %v3023
      %3216 = vmatprep.subr.bf16.mxu0 0
      %3217 = vmatpush2.bf16.msra.mxu0 %v3022
      %3218 = vmatprep.subr.bf16.mxu0 0
      %3219 = vmatpush2.bf16.msra.mxu0 %v3021
      %3220 = vmatprep.subr.bf16.mxu0 0
      %3221 = vmatpush2.bf16.msra.mxu0 %v3020
      %3222 = vmatprep.mubr.bf16.mxu0 %v2713
      %3223 = vmatmul.mubr.bf16.gmra.mxu0 %v2712
      %v3224 = vpop.f32.mrf.mxu0
      %v3225 = vadd.f32 %v3184, %v3224
      %v3226 = vpop.f32.mrf.mxu0
      %v3227 = vpop.f32.mrf.mxu0
      %v3228 = vadd.f32 %v3187, %v3227
      %v3229 = vpop.f32.mrf.mxu0
      %3230 = vdwg.mxu0
      %3231 = vmatprep.subr.bf16.mxu0 0
      %3232 = vmatpush1.bf16.msra.mxu0 %v3035
      %3233 = vmatprep.subr.bf16.mxu0 0
      %3234 = vmatpush1.bf16.msra.mxu0 %v3034
      %3235 = vmatprep.subr.bf16.mxu0 0
      %3236 = vmatpush1.bf16.msra.mxu0 %v3033
      %3237 = vmatprep.subr.bf16.mxu0 0
      %3238 = vmatpush1.bf16.msra.mxu0 %v3032
      %3239 = vmatprep.subr.bf16.mxu0 0
      %3240 = vmatpush1.bf16.msra.mxu0 %v3031
      %3241 = vmatprep.subr.bf16.mxu0 0
      %3242 = vmatpush1.bf16.msra.mxu0 %v3030
      %3243 = vmatprep.subr.bf16.mxu0 0
      %3244 = vmatpush1.bf16.msra.mxu0 %v3029
      %3245 = vmatprep.subr.bf16.mxu0 0
      %3246 = vmatpush1.bf16.msra.mxu0 %v3028
      %3247 = vmatprep.subr.bf16.mxu0 0
      %3248 = vmatpush2.bf16.msra.mxu0 %v3043
      %3249 = vmatprep.subr.bf16.mxu0 0
      %3250 = vmatpush2.bf16.msra.mxu0 %v3042
      %3251 = vmatprep.subr.bf16.mxu0 0
      %3252 = vmatpush2.bf16.msra.mxu0 %v3041
      %3253 = vmatprep.subr.bf16.mxu0 0
      %3254 = vmatpush2.bf16.msra.mxu0 %v3040
      %3255 = vmatprep.subr.bf16.mxu0 0
      %3256 = vmatpush2.bf16.msra.mxu0 %v3039
      %3257 = vmatprep.subr.bf16.mxu0 0
      %3258 = vmatpush2.bf16.msra.mxu0 %v3038
      %3259 = vmatprep.subr.bf16.mxu0 0
      %3260 = vmatpush2.bf16.msra.mxu0 %v3037
      %3261 = vmatprep.subr.bf16.mxu0 0
      %3262 = vmatpush2.bf16.msra.mxu0 %v3036
      %3263 = vmatprep.mubr.bf16.mxu0 %v2715
      %3264 = vmatmul.mubr.bf16.gmra.mxu0 %v2714
      %v3265 = vpop.f32.mrf.mxu0
      %v3266 = vadd.f32 %v3225, %v3265
      %v3267 = vpop.f32.mrf.mxu0
      %v3268 = vpop.f32.mrf.mxu0
      %v3269 = vadd.f32 %v3228, %v3268
      %v3270 = vpop.f32.mrf.mxu0
      %3271 = vdwg.mxu0
      %s3272 = scalar_lea.vmem %s286, 48
      %3273 = vst [vmem:[%s3272] sm:$0xff] %v3266
      %3274 = vst [vmem:[%s3272 + $0x8] sm:$0xff] %v3269
      %v3275 = vadd.f32 %v3266, %v3269
      %v3276 = vrot.slane %v3275, 4
      %v3277 = vadd.f32 %v3275, %v3276
      %v3278 = vrot.slane %v3277, 2
      %v3279 = vadd.f32 %v3277, %v3278
      %v3280 = vrot.slane %v3279, 1
      %v3281 = vadd.f32 %v3279, %v3280
      %v3282 = vadd.f32 %v2535, %v3281
      %v3283 = vmul.f32 %v3266, %v3266
      %v3284 = vmul.f32 %v3269, %v3269
      %v3285 = vadd.f32 %v3283, %v3284
      %v3286 = vrot.slane %v3285, 4
      %v3287 = vadd.f32 %v3285, %v3286
      %v3288 = vrot.slane %v3287, 2
      %v3289 = vadd.f32 %v3287, %v3288
      %v3290 = vrot.slane %v3289, 1
      %v3291 = vadd.f32 %v3289, %v3290
      %v3292 = vadd.f32 %v2545, %v3291
      %3293 = vst [vmem:[%s293] sm:$0x1] %v3282
      %3294 = vst [vmem:[%s299] sm:$0x1] %v3292
      %s3295 = smul.u32 2, %s22
      %p3296 = scmp.lt.s32.totalorder %s21, 1
      %s3297 = scalar_select %p3296, %s21, 1
      %p3298 = scmp.lt.s32.totalorder %s3295, 1
      %s3299 = scalar_select %p3298, %s3295, 1
      %s3300 = smul.addr %s3297, 8
      %s3301 = sadd.s32 %s3299, %s3300
      %s3302 = smul.addr %s3301, 8
      %s3303 = scalar_lea.vmem %s3, %s3302
      %p3304 = scmp.lt.s32.totalorder %s21, 1
      %s3305 = scalar_select %p3304, %s21, 1
      %p3306 = scmp.lt.s32.totalorder %s22, 0
      %s3307 = scalar_select %p3306, %s22, 0
      %s3308 = sadd.s32 %s3307, %s3305
      %s3309 = scalar_lea.vmem %s4, %s3308
      %p3310 = scmp.lt.s32.totalorder %s21, 1
      %s3311 = scalar_select %p3310, %s21, 1
      %p3312 = scmp.lt.s32.totalorder %s22, 0
      %s3313 = scalar_select %p3312, %s22, 0
      %s3314 = sadd.s32 %s3313, %s3311
      %s3315 = scalar_lea.vmem %s5, %s3314
      // Predicated region
      $region33: #{generator_forward.7} parent=31 // pred_check
        %p3316 = pneg %p119
      $region34: #{generator_forward.7} parent=31 // pred_check_branch
        %3318 = sbr.rel (%p3316) target = $region36
      $region35: #{generator_forward.7} parent=31 // pred_region
        %s3319 = smul.u32 2, %s22
      $region36: #{generator_forward.7} parent=31 // pred_fallthru
        _
      // Predicated region
      $region37: #{generator_forward.7} parent=31 // pred_check
        %p3320 = pneg %p147
      $region38: #{generator_forward.7} parent=31 // pred_check_branch
        %3322 = sbr.rel (%p3320) target = $region40
      $region39: #{generator_forward.7} parent=31 // pred_region
        _
      $region40: #{generator_forward.7} parent=31 // pred_fallthru
        _
      // Predicated region
      $region41: #{generator_forward.7} parent=31 // pred_check
        %p3323 = pneg %p175
      $region42: #{generator_forward.7} parent=31 // pred_check_branch
        %3325 = sbr.rel (%p3323) target = $region44
      $region43: #{generator_forward.7} parent=31 // pred_region
        _
      $region44: #{generator_forward.7} parent=31 // pred_fallthru
        _
    $region32: #{generator_forward.7} parent=5 // pred_fallthru
      _
    %p3326 = scmp.le.s32.totalorder 2, %s12
    // Predicated region
    $region45: #{generator_forward.7} parent=5 // pred_check
      %p3327 = pneg %p3326
    $region46: #{generator_forward.7} parent=5 // pred_check_branch
      %3329 = sbr.rel (%p3327) target = $region48
    $region47: #{generator_forward.7} parent=5 // pred_region
      %s3330 = ssub.s32 %s12, 2
      // Predicated region
      $region49: #{generator_forward.7} parent=47 // pred_check
        %p3331 = pneg %p125
      $region50: #{generator_forward.7} parent=47 // pred_check_branch
        %3333 = sbr.rel (%p3331) target = $region52
      $region51: #{generator_forward.7} parent=47 // pred_region
        %s3334 = smul.u32 2, %s24
        %p3335 = scmp.lt.s32.totalorder %s23, 1
        %s3336 = scalar_select %p3335, %s23, 1
        %p3337 = scmp.lt.s32.totalorder %s3334, 1
        %s3338 = scalar_select %p3337, %s3334, 1
        %s3339 = smul.addr %s3336, 8
        %s3340 = sadd.s32 %s3338, %s3339
        %s3341 = smul.addr %s3340, 8
        %s3342 = scalar_lea.vmem %s3, %s3341
      $region52: #{generator_forward.7} parent=47 // pred_fallthru
        _
      // Predicated region
      $region53: #{generator_forward.7} parent=47 // pred_check
        %p3343 = pneg %p153
      $region54: #{generator_forward.7} parent=47 // pred_check_branch
        %3345 = sbr.rel (%p3343) target = $region56
      $region55: #{generator_forward.7} parent=47 // pred_region
        %p3346 = scmp.lt.s32.totalorder %s23, 1
        %s3347 = scalar_select %p3346, %s23, 1
        %p3348 = scmp.lt.s32.totalorder %s24, 0
        %s3349 = scalar_select %p3348, %s24, 0
        %s3350 = sadd.s32 %s3349, %s3347
        %s3351 = scalar_lea.vmem %s4, %s3350
      $region56: #{generator_forward.7} parent=47 // pred_fallthru
        _
      // Predicated region
      $region57: #{generator_forward.7} parent=47 // pred_check
        %p3352 = pneg %p181
      $region58: #{generator_forward.7} parent=47 // pred_check_branch
        %3354 = sbr.rel (%p3352) target = $region60
      $region59: #{generator_forward.7} parent=47 // pred_region
        %p3355 = scmp.lt.s32.totalorder %s23, 1
        %s3356 = scalar_select %p3355, %s23, 1
        %p3357 = scmp.lt.s32.totalorder %s24, 0
        %s3358 = scalar_select %p3357, %s24, 0
        %s3359 = sadd.s32 %s3358, %s3356
        %s3360 = scalar_lea.vmem %s5, %s3359
      $region60: #{generator_forward.7} parent=47 // pred_fallthru
        _
    $region48: #{generator_forward.7} parent=5 // pred_fallthru
      _
  $region6: #{generator_forward.7} parent=0 // loop_footer
    %s16 = sadd.s32 1, %s12
  $region7: #{generator_forward.7} parent=0 // loop_footer_branch
    %11 = sbr.rel target = $region3
  $region8: #{generator_forward.7} parent=0 // loop_exit
    _

// kernel: generator_forward.9
$region0: #{generator_forward.9}
  #allocation0 [shape = 'u32[]', space=smem, size = 0x4, offset = 0x4, fixed_abs, tag = 'smem constant byte address 0x4 - core index']
  #allocation1 [shape = 'u32[144,128]{1,0:T(1,128)}', space=vmem, size = 0x12000, scoped, tag = 'internal scratch']
  %s0 = inlined_call_operand.vmem [shape: bf16[2,4,64,512], index: 0, kind: input, shape index: {}]
  %s1 = inlined_call_operand.vmem [shape: bf16[4,512,128], index: 1, kind: input, shape index: {}]
  %s2 = inlined_call_operand.vmem [shape: f32[1,128], index: 2, kind: input, shape index: {}]
  %s3 = inlined_call_operand.vmem [shape: f32[2,4,64,128], index: 3, kind: output, shape index: {0}]
  %s4 = inlined_call_operand.vmem [shape: f32[2,1,1,128], index: 4, kind: output, shape index: {1}]
  %s5 = inlined_call_operand.vmem [shape: f32[2,1,1,128], index: 5, kind: output, shape index: {2}]
  %6 = xla_tuple %s3, %s4, %s5
  %s7 = sld [smem:[#allocation0]]
  $region61: #{generator_forward.9} parent=0
    _
  %s9 = ssub.s32 1, %s7
  %s10 = scalar_select 0, %s9, %s7
  loop: start=0, step=1, limit=4
  $region2: #{generator_forward.9} parent=0 // loop_pre_header
    _
  $region3: #{generator_forward.9} parent=0 // loop_header
    %s12 = sphi 0, %s16
    %p13 = scmp.ge.s32.totalorder %s12, 4
    %s19 = sphi 0, %s31
    %s20 = sphi 0, %s27
    %s21 = sphi 0, %s19
    %s22 = sphi 0, %s20
    %s23 = sphi 0, %s21
    %s24 = sphi 0, %s22
    %s36 = sphi 0, %s38
    %s39 = sphi 0, %s36
    %s40 = sphi 0, %s39
    %s56 = sphi 0, %s40
    %s60 = sphi 0, %s60
    %s62 = sphi 0, %s60
    %s63 = sphi 0, %s62
    %s77 = sphi 0, %s63
    %s81 = sphi 0, %s81
    %s83 = sphi 0, %s81
    %s84 = sphi 0, %s83
    %s98 = sphi 0, %s84
    %s106 = sphi 0, %s108
    %s109 = sphi 0, %s106
    %s110 = sphi 0, %s109
    %s126 = sphi 0, %s110
    %s134 = sphi 0, %s136
    %s137 = sphi 0, %s134
    %s138 = sphi 0, %s137
    %s154 = sphi 0, %s138
    %s162 = sphi 0, %s164
    %s165 = sphi 0, %s162
    %s166 = sphi 0, %s165
    %s182 = sphi 0, %s166
  $region4: #{generator_forward.9} parent=0 // loop_header_branch
    %15 = sbr.rel (%p13) target = $region8
  $region5: #{generator_forward.9} parent=0 // loop_body
    %s17 = ssub.s32 %s12, 1
    %s18 = ssub.s32 %s12, 2
    %s25 = sadd.s32 1, %s20
    %p26 = scmp.ge.s32.totalorder %s25, 1
    %s27 = scalar_select %p26, 0, %s25
    %s28 = sadd.s32 1, %s19
    %s29 = scalar_select %p26, %s28, %s19
    %p30 = scmp.ge.s32.totalorder %s29, 2
    %s31 = scalar_select %p30, 0, %s29
    %s32 = ssub.s32 %s19, %s31
    %s33 = ssub.s32 %s20, %s27
    %s34 = sor.u32 %s32, %s33
    %p35 = scmp.eq.s32.totalorder %s34, 0
    %s37 = sadd.s32 %s36, 1
    %s38 = scalar_select %p35, %s36, %s37
    %p41 = pneg %p35
    %p42 = scmp.eq.s32.totalorder %s12, 1
    %p43 = por %p41, %p42
    %p44 = scmp.ne.s32.totalorder %s36, %s39
    %p45 = scmp.eq.s32.totalorder %s12, 0
    %p46 = por %p44, %p45
    %p47 = scmp.ne.s32.totalorder %s36, %s39
    %p48 = scmp.eq.s32.totalorder %s17, 1
    %p49 = por %p47, %p48
    %p50 = scmp.ne.s32.totalorder %s39, %s40
    %p51 = scmp.eq.s32.totalorder %s17, 0
    %p52 = por %p50, %p51
    %p53 = scmp.ne.s32.totalorder %s39, %s40
    %p54 = scmp.eq.s32.totalorder %s18, 1
    %p55 = por %p53, %p54
    %p57 = scmp.ne.s32.totalorder %s40, %s56
    %p58 = scmp.eq.s32.totalorder %s18, 0
    %p59 = por %p57, %p58
    %s61 = sadd.s32 %s60, 1
    %p64 = scmp.eq.s32.totalorder %s12, 1
    %p65 = scmp.ne.s32.totalorder %s60, %s62
    %p66 = scmp.eq.s32.totalorder %s12, 0
    %p67 = por %p65, %p66
    %p68 = scmp.ne.s32.totalorder %s60, %s62
    %p69 = scmp.eq.s32.totalorder %s17, 1
    %p70 = por %p68, %p69
    %p71 = scmp.ne.s32.totalorder %s62, %s63
    %p72 = scmp.eq.s32.totalorder %s17, 0
    %p73 = por %p71, %p72
    %p74 = scmp.ne.s32.totalorder %s62, %s63
    %p75 = scmp.eq.s32.totalorder %s18, 1
    %p76 = por %p74, %p75
    %p78 = scmp.ne.s32.totalorder %s63, %s77
    %p79 = scmp.eq.s32.totalorder %s18, 0
    %p80 = por %p78, %p79
    %s82 = sadd.s32 %s81, 1
    %p85 = scmp.eq.s32.totalorder %s12, 1
    %p86 = scmp.ne.s32.totalorder %s81, %s83
    %p87 = scmp.eq.s32.totalorder %s12, 0
    %p88 = por %p86, %p87
    %p89 = scmp.ne.s32.totalorder %s81, %s83
    %p90 = scmp.eq.s32.totalorder %s17, 1
    %p91 = por %p89, %p90
    %p92 = scmp.ne.s32.totalorder %s83, %s84
    %p93 = scmp.eq.s32.totalorder %s17, 0
    %p94 = por %p92, %p93
    %p95 = scmp.ne.s32.totalorder %s83, %s84
    %p96 = scmp.eq.s32.totalorder %s18, 1
    %p97 = por %p95, %p96
    %p99 = scmp.ne.s32.totalorder %s84, %s98
    %p100 = scmp.eq.s32.totalorder %s18, 0
    %p101 = por %p99, %p100
    %s102 = ssub.s32 %s19, %s31
    %s103 = ssub.s32 %s20, %s27
    %s104 = sor.u32 %s102, %s103
    %p105 = scmp.eq.s32.totalorder %s104, 0
    %s107 = sadd.s32 %s106, 1
    %s108 = scalar_select %p105, %s106, %s107
    %p111 = pneg %p105
    %p112 = scmp.eq.s32.totalorder %s12, 1
    %p113 = por %p111, %p112
    %p114 = scmp.ne.s32.totalorder %s106, %s109
    %p115 = scmp.eq.s32.totalorder %s12, 0
    %p116 = por %p114, %p115
    %p117 = scmp.ne.s32.totalorder %s106, %s109
    %p118 = scmp.eq.s32.totalorder %s17, 1
    %p119 = por %p117, %p118
    %p120 = scmp.ne.s32.totalorder %s109, %s110
    %p121 = scmp.eq.s32.totalorder %s17, 0
    %p122 = por %p120, %p121
    %p123 = scmp.ne.s32.totalorder %s109, %s110
    %p124 = scmp.eq.s32.totalorder %s18, 1
    %p125 = por %p123, %p124
    %p127 = scmp.ne.s32.totalorder %s110, %s126
    %p128 = scmp.eq.s32.totalorder %s18, 0
    %p129 = por %p127, %p128
    %s130 = ssub.s32 %s19, %s31
    %s131 = ssub.s32 %s20, %s27
    %s132 = sor.u32 %s130, %s131
    %p133 = scmp.eq.s32.totalorder %s132, 0
    %s135 = sadd.s32 %s134, 1
    %s136 = scalar_select %p133, %s134, %s135
    %p139 = pneg %p133
    %p140 = scmp.eq.s32.totalorder %s12, 1
    %p141 = por %p139, %p140
    %p142 = scmp.ne.s32.totalorder %s134, %s137
    %p143 = scmp.eq.s32.totalorder %s12, 0
    %p144 = por %p142, %p143
    %p145 = scmp.ne.s32.totalorder %s134, %s137
    %p146 = scmp.eq.s32.totalorder %s17, 1
    %p147 = por %p145, %p146
    %p148 = scmp.ne.s32.totalorder %s137, %s138
    %p149 = scmp.eq.s32.totalorder %s17, 0
    %p150 = por %p148, %p149
    %p151 = scmp.ne.s32.totalorder %s137, %s138
    %p152 = scmp.eq.s32.totalorder %s18, 1
    %p153 = por %p151, %p152
    %p155 = scmp.ne.s32.totalorder %s138, %s154
    %p156 = scmp.eq.s32.totalorder %s18, 0
    %p157 = por %p155, %p156
    %s158 = ssub.s32 %s19, %s31
    %s159 = ssub.s32 %s20, %s27
    %s160 = sor.u32 %s158, %s159
    %p161 = scmp.eq.s32.totalorder %s160, 0
    %s163 = sadd.s32 %s162, 1
    %s164 = scalar_select %p161, %s162, %s163
    %p167 = pneg %p161
    %p168 = scmp.eq.s32.totalorder %s12, 1
    %p169 = por %p167, %p168
    %p170 = scmp.ne.s32.totalorder %s162, %s165
    %p171 = scmp.eq.s32.totalorder %s12, 0
    %p172 = por %p170, %p171
    %p173 = scmp.ne.s32.totalorder %s162, %s165
    %p174 = scmp.eq.s32.totalorder %s17, 1
    %p175 = por %p173, %p174
    %p176 = scmp.ne.s32.totalorder %s165, %s166
    %p177 = scmp.eq.s32.totalorder %s17, 0
    %p178 = por %p176, %p177
    %p179 = scmp.ne.s32.totalorder %s165, %s166
    %p180 = scmp.eq.s32.totalorder %s18, 1
    %p181 = por %p179, %p180
    %p183 = scmp.ne.s32.totalorder %s166, %s182
    %p184 = scmp.eq.s32.totalorder %s18, 0
    %p185 = por %p183, %p184
    %p186 = scmp.le.s32.totalorder 1, %s12
    %p187 = scmp.lt.s32.totalorder %s12, 3
    %p188 = pnand %p186, %p187
    %p189 = pneg %p188
    // Predicated region
    $region9: #{generator_forward.9} parent=5 // pred_check
      _
    $region10: #{generator_forward.9} parent=5 // pred_check_branch
      %191 = sbr.rel (%p188) target = $region12
    $region11: #{generator_forward.9} parent=5 // pred_region
      %s192 = ssub.s32 %s12, 1
      // Predicated region
      $region13: #{generator_forward.9} parent=11 // pred_check
        %p193 = pneg %p73
      $region14: #{generator_forward.9} parent=11 // pred_check_branch
        %195 = sbr.rel (%p193) target = $region16
      $region15: #{generator_forward.9} parent=11 // pred_region
        _
      $region16: #{generator_forward.9} parent=11 // pred_fallthru
        _
      // Predicated region
      $region17: #{generator_forward.9} parent=11 // pred_check
        %p196 = pneg %p94
      $region18: #{generator_forward.9} parent=11 // pred_check_branch
        %198 = sbr.rel (%p196) target = $region20
      $region19: #{generator_forward.9} parent=11 // pred_region
        _
      $region20: #{generator_forward.9} parent=11 // pred_fallthru
        _
    $region12: #{generator_forward.9} parent=5 // pred_fallthru
      _
    %p199 = scmp.lt.s32.totalorder %s12, 2
    // Predicated region
    $region21: #{generator_forward.9} parent=5 // pred_check
      %p200 = pneg %p199
    $region22: #{generator_forward.9} parent=5 // pred_check_branch
      %202 = sbr.rel (%p200) target = $region24
    $region23: #{generator_forward.9} parent=5 // pred_region
      // Predicated region
      $region25: #{generator_forward.9} parent=23 // pred_check
        %p203 = pneg %p46
      $region26: #{generator_forward.9} parent=23 // pred_check_branch
        %205 = sbr.rel (%p203) target = $region28
      $region27: #{generator_forward.9} parent=23 // pred_region
        %s206 = smul.u32 8, %s20
        %p207 = scmp.lt.s32.totalorder %s19, 1
        %s208 = scalar_select %p207, %s19, 1
        %p209 = scmp.lt.s32.totalorder %s206, 7
        %s210 = scalar_select %p209, %s206, 7
        %s211 = smul.addr %s210, 4
        %s212 = smul.addr %s208, 128
        %s213 = sadd.s32 %s211, %s212
        %s214 = smul.addr %s213, 4
        %s215 = scalar_lea.vmem %s0, %s214
        %s216 = smul.u32 8, %s20
      $region28: #{generator_forward.9} parent=23 // pred_fallthru
        _
    $region24: #{generator_forward.9} parent=5 // pred_fallthru
      _
    %p217 = scmp.le.s32.totalorder 1, %s12
    %p218 = scmp.lt.s32.totalorder %s12, 3
    %p219 = pnand %p217, %p218
    %p220 = pneg %p219
    // Predicated region
    $region29: #{generator_forward.9} parent=5 // pred_check
      _
    $region30: #{generator_forward.9} parent=5 // pred_check_branch
      %222 = sbr.rel (%p219) target = $region32
    $region31: #{generator_forward.9} parent=5 // pred_region
      %s223 = ssub.s32 %s12, 1
      %s224 = smul.u32 8, %s22
      %p225 = scmp.lt.s32.totalorder %s21, 1
      %s226 = scalar_select %p225, %s21, 1
      %p227 = scmp.lt.s32.totalorder %s224, 7
      %s228 = scalar_select %p227, %s224, 7
      %s229 = smul.addr %s228, 4
      %s230 = smul.addr %s226, 128
      %s231 = sadd.s32 %s229, %s230
      %s232 = smul.addr %s231, 4
      %s233 = scalar_lea.vmem %s0, %s232
      %p234 = pneg %p52
      %p235 = pneg %p49
      %p236 = pneg %p73
      %p237 = pneg %p70
      %p238 = pneg %p94
      %p239 = pneg %p91
      %p240 = pneg %p122
      %p241 = pneg %p119
      %s242 = smul.u32 8, %s22
      %p243 = scmp.lt.s32.totalorder %s21, 1
      %s244 = scalar_select %p243, %s21, 1
      %p245 = scmp.lt.s32.totalorder %s242, 7
      %s246 = scalar_select %p245, %s242, 7
      %s247 = smul.addr %s244, 32
      %s248 = sadd.s32 %s246, %s247
      %s249 = smul.addr %s248, 8
      %s250 = scalar_lea.vmem %s3, %s249
      %p251 = pneg %p150
      %p252 = pneg %p147
      %p253 = scmp.lt.s32.totalorder %s21, 1
      %s254 = scalar_select %p253, %s21, 1
      %p255 = scmp.lt.s32.totalorder %s22, 0
      %s256 = scalar_select %p255, %s22, 0
      %s257 = sadd.s32 %s256, %s254
      %s258 = scalar_lea.vmem %s4, %s257
      %p259 = pneg %p178
      %p260 = pneg %p175
      %p261 = scmp.lt.s32.totalorder %s21, 1
      %s262 = scalar_select %p261, %s21, 1
      %p263 = scmp.lt.s32.totalorder %s22, 0
      %s264 = scalar_select %p263, %s22, 0
      %s265 = sadd.s32 %s264, %s262
      %s266 = scalar_lea.vmem %s5, %s265
      %s267 = smul.u32 8, %s22
      %p268 = scmp.lt.s32.totalorder %s21, 1
      %s269 = scalar_select %p268, %s21, 1
      %p270 = scmp.lt.s32.totalorder %s267, 7
      %s271 = scalar_select %p270, %s267, 7
      %s272 = smul.addr %s271, 4
      %s273 = smul.addr %s269, 128
      %s274 = sadd.s32 %s272, %s273
      %s275 = smul.addr %s274, 4
      %s276 = scalar_lea.vmem %s0, %s275
      %s277 = smul.u32 8, %s22
      %s278 = smul.u32 8, %s22
      %p279 = scmp.lt.s32.totalorder %s21, 1
      %s280 = scalar_select %p279, %s21, 1
      %p281 = scmp.lt.s32.totalorder %s278, 7
      %s282 = scalar_select %p281, %s278, 7
      %s283 = smul.addr %s280, 32
      %s284 = sadd.s32 %s282, %s283
      %s285 = smul.addr %s284, 8
      %s286 = scalar_lea.vmem %s3, %s285
      %s287 = smul.u32 8, %s22
      %p288 = scmp.lt.s32.totalorder %s21, 1
      %s289 = scalar_select %p288, %s21, 1
      %p290 = scmp.lt.s32.totalorder %s22, 0
      %s291 = scalar_select %p290, %s22, 0
      %s292 = sadd.s32 %s291, %s289
      %s293 = scalar_lea.vmem %s4, %s292
      %p294 = scmp.lt.s32.totalorder %s21, 1
      %s295 = scalar_select %p294, %s21, 1
      %p296 = scmp.lt.s32.totalorder %s22, 0
      %s297 = scalar_select %p296, %s22, 0
      %s298 = sadd.s32 %s297, %s295
      %s299 = scalar_lea.vmem %s5, %s298
      %v301 = vld [vmem:[%s2] sm:$0x1]
      %v302 = vld [vmem:[%s276] sm:$0xff]
      %v303 = vld [vmem:[%s276 + $0x8] sm:$0xff]
      %v304 = vld [vmem:[%s276 + $0x10] sm:$0xff]
      %v305 = vld [vmem:[%s276 + $0x18] sm:$0xff]
      %v306 = vld [vmem:[%s276 + $0x20] sm:$0xff]
      %v307 = vld [vmem:[%s276 + $0x28] sm:$0xff]
      %v308 = vld [vmem:[%s276 + $0x30] sm:$0xff]
      %v309 = vld [vmem:[%s276 + $0x38] sm:$0xff]
      %v310 = vld [vmem:[%s276 + $0x40] sm:$0xff]
      %v311 = vld [vmem:[%s276 + $0x48] sm:$0xff]
      %v312 = vld [vmem:[%s276 + $0x50] sm:$0xff]
      %v313 = vld [vmem:[%s276 + $0x58] sm:$0xff]
      %v314 = vld [vmem:[%s276 + $0x60] sm:$0xff]
      %v315 = vld [vmem:[%s276 + $0x68] sm:$0xff]
      %v316 = vld [vmem:[%s276 + $0x70] sm:$0xff]
      %v317 = vld [vmem:[%s276 + $0x78] sm:$0xff]
      %v318 = vld [vmem:[%s1] sm:$0xf]
      %v319 = vld [vmem:[%s1 + $0x4] sm:$0xf]
      %v320 = vld [vmem:[%s1 + $0x8] sm:$0xf]
      %v321 = vld [vmem:[%s1 + $0xc] sm:$0xf]
      %v322 = vld [vmem:[%s1 + $0x10] sm:$0xf]
      %v323 = vld [vmem:[%s1 + $0x14] sm:$0xf]
      %v324 = vld [vmem:[%s1 + $0x18] sm:$0xf]
      %v325 = vld [vmem:[%s1 + $0x1c] sm:$0xf]
      %v326 = vld [vmem:[%s1 + $0x20] sm:$0xf]
      %v327 = vld [vmem:[%s1 + $0x24] sm:$0xf]
      %v328 = vld [vmem:[%s1 + $0x28] sm:$0xf]
      %v329 = vld [vmem:[%s1 + $0x2c] sm:$0xf]
      %v330 = vld [vmem:[%s1 + $0x30] sm:$0xf]
      %v331 = vld [vmem:[%s1 + $0x34] sm:$0xf]
      %v332 = vld [vmem:[%s1 + $0x38] sm:$0xf]
      %v333 = vld [vmem:[%s1 + $0x3c] sm:$0xf]
      %v334 = vld [vmem:[%s1 + $0x40] sm:$0xf]
      %v335 = vld [vmem:[%s1 + $0x44] sm:$0xf]
      %v336 = vld [vmem:[%s1 + $0x48] sm:$0xf]
      %v337 = vld [vmem:[%s1 + $0x4c] sm:$0xf]
      %v338 = vld [vmem:[%s1 + $0x50] sm:$0xf]
      %v339 = vld [vmem:[%s1 + $0x54] sm:$0xf]
      %v340 = vld [vmem:[%s1 + $0x58] sm:$0xf]
      %v341 = vld [vmem:[%s1 + $0x5c] sm:$0xf]
      %v342 = vld [vmem:[%s1 + $0x60] sm:$0xf]
      %v343 = vld [vmem:[%s1 + $0x64] sm:$0xf]
      %v344 = vld [vmem:[%s1 + $0x68] sm:$0xf]
      %v345 = vld [vmem:[%s1 + $0x6c] sm:$0xf]
      %v346 = vld [vmem:[%s1 + $0x70] sm:$0xf]
      %v347 = vld [vmem:[%s1 + $0x74] sm:$0xf]
      %v348 = vld [vmem:[%s1 + $0x78] sm:$0xf]
      %v349 = vld [vmem:[%s1 + $0x7c] sm:$0xf]
      %v350 = vld [vmem:[%s1 + $0x80] sm:$0xf]
      %v351 = vld [vmem:[%s1 + $0x84] sm:$0xf]
      %v352 = vld [vmem:[%s1 + $0x88] sm:$0xf]
      %v353 = vld [vmem:[%s1 + $0x8c] sm:$0xf]
      %v354 = vld [vmem:[%s1 + $0x90] sm:$0xf]
      %v355 = vld [vmem:[%s1 + $0x94] sm:$0xf]
      %v356 = vld [vmem:[%s1 + $0x98] sm:$0xf]
      %v357 = vld [vmem:[%s1 + $0x9c] sm:$0xf]
      %v358 = vld [vmem:[%s1 + $0xa0] sm:$0xf]
      %v359 = vld [vmem:[%s1 + $0xa4] sm:$0xf]
      %v360 = vld [vmem:[%s1 + $0xa8] sm:$0xf]
      %v361 = vld [vmem:[%s1 + $0xac] sm:$0xf]
      %v362 = vld [vmem:[%s1 + $0xb0] sm:$0xf]
      %v363 = vld [vmem:[%s1 + $0xb4] sm:$0xf]
      %v364 = vld [vmem:[%s1 + $0xb8] sm:$0xf]
      %v365 = vld [vmem:[%s1 + $0xbc] sm:$0xf]
      %v366 = vld [vmem:[%s1 + $0xc0] sm:$0xf]
      %v367 = vld [vmem:[%s1 + $0xc4] sm:$0xf]
      %v368 = vld [vmem:[%s1 + $0xc8] sm:$0xf]
      %v369 = vld [vmem:[%s1 + $0xcc] sm:$0xf]
      %v370 = vld [vmem:[%s1 + $0xd0] sm:$0xf]
      %v371 = vld [vmem:[%s1 + $0xd4] sm:$0xf]
      %v372 = vld [vmem:[%s1 + $0xd8] sm:$0xf]
      %v373 = vld [vmem:[%s1 + $0xdc] sm:$0xf]
      %v374 = vld [vmem:[%s1 + $0xe0] sm:$0xf]
      %v375 = vld [vmem:[%s1 + $0xe4] sm:$0xf]
      %v376 = vld [vmem:[%s1 + $0xe8] sm:$0xf]
      %v377 = vld [vmem:[%s1 + $0xec] sm:$0xf]
      %v378 = vld [vmem:[%s1 + $0xf0] sm:$0xf]
      %v379 = vld [vmem:[%s1 + $0xf4] sm:$0xf]
      %v380 = vld [vmem:[%s1 + $0xf8] sm:$0xf]
      %v381 = vld [vmem:[%s1 + $0xfc] sm:$0xf]
      %v383 = vlaneseq
      %v384 = vshrl.u32 %v383, 7
      %v385 = vsub.s32 0, %v384
      %v386 = vrot.slane %v301, %v385
      %v404 = vunpack.c.l.b16 %v302
      %v405 = vunpack.c.h.b16 %v302
      %v406 = vunpack.c.l.b16 %v303
      %v407 = vunpack.c.h.b16 %v303
      %v408 = vunpack.c.l.b16 %v304
      %v409 = vunpack.c.h.b16 %v304
      %v410 = vunpack.c.l.b16 %v305
      %v411 = vunpack.c.h.b16 %v305
      %v412 = vunpack.c.l.b16 %v306
      %v413 = vunpack.c.h.b16 %v306
      %v414 = vunpack.c.l.b16 %v307
      %v415 = vunpack.c.h.b16 %v307
      %v416 = vunpack.c.l.b16 %v308
      %v417 = vunpack.c.h.b16 %v308
      %v418 = vunpack.c.l.b16 %v309
      %v419 = vunpack.c.h.b16 %v309
      %v420 = vunpack.c.l.b16 %v310
      %v421 = vunpack.c.h.b16 %v310
      %v422 = vunpack.c.l.b16 %v311
      %v423 = vunpack.c.h.b16 %v311
      %v424 = vunpack.c.l.b16 %v312
      %v425 = vunpack.c.h.b16 %v312
      %v426 = vunpack.c.l.b16 %v313
      %v427 = vunpack.c.h.b16 %v313
      %v428 = vunpack.c.l.b16 %v314
      %v429 = vunpack.c.h.b16 %v314
      %v430 = vunpack.c.l.b16 %v315
      %v431 = vunpack.c.h.b16 %v315
      %v432 = vunpack.c.l.b16 %v316
      %v433 = vunpack.c.h.b16 %v316
      %v434 = vunpack.c.l.b16 %v317
      %v435 = vunpack.c.h.b16 %v317
      %v436 = vpack.c.b16 %v408, %v404
      %v437 = vpack.c.b16 %v409, %v405
      %v438 = vpack.c.b16 %v410, %v406
      %v439 = vpack.c.b16 %v411, %v407
      %v440 = vpack.c.b16 %v416, %v412
      %v441 = vpack.c.b16 %v417, %v413
      %v442 = vpack.c.b16 %v418, %v414
      %v443 = vpack.c.b16 %v419, %v415
      %v444 = vpack.c.b16 %v424, %v420
      %v445 = vpack.c.b16 %v425, %v421
      %v446 = vpack.c.b16 %v426, %v422
      %v447 = vpack.c.b16 %v427, %v423
      %v448 = vpack.c.b16 %v432, %v428
      %v449 = vpack.c.b16 %v433, %v429
      %v450 = vpack.c.b16 %v434, %v430
      %v451 = vpack.c.b16 %v435, %v431
      %v532 = vunpack.c.l.b16 %v318
      %v533 = vunpack.c.l.b16 %v319
      %v534 = vunpack.c.l.b16 %v320
      %v535 = vunpack.c.l.b16 %v321
      %v536 = vunpack.c.l.b16 %v322
      %v537 = vunpack.c.l.b16 %v323
      %v538 = vunpack.c.l.b16 %v324
      %v539 = vunpack.c.l.b16 %v325
      %v540 = vunpack.c.l.b16 %v326
      %v541 = vunpack.c.l.b16 %v327
      %v542 = vunpack.c.l.b16 %v328
      %v543 = vunpack.c.l.b16 %v329
      %v544 = vunpack.c.l.b16 %v330
      %v545 = vunpack.c.l.b16 %v331
      %v546 = vunpack.c.l.b16 %v332
      %v547 = vunpack.c.l.b16 %v333
      %v548 = vunpack.c.l.b16 %v334
      %v549 = vunpack.c.l.b16 %v335
      %v550 = vunpack.c.l.b16 %v336
      %v551 = vunpack.c.l.b16 %v337
      %v552 = vunpack.c.l.b16 %v338
      %v553 = vunpack.c.l.b16 %v339
      %v554 = vunpack.c.l.b16 %v340
      %v555 = vunpack.c.l.b16 %v341
      %v556 = vunpack.c.l.b16 %v342
      %v557 = vunpack.c.l.b16 %v343
      %v558 = vunpack.c.l.b16 %v344
      %v559 = vunpack.c.l.b16 %v345
      %v560 = vunpack.c.l.b16 %v346
      %v561 = vunpack.c.l.b16 %v347
      %v562 = vunpack.c.l.b16 %v348
      %v563 = vunpack.c.l.b16 %v349
      %v564 = vunpack.c.l.b16 %v350
      %v565 = vunpack.c.l.b16 %v351
      %v566 = vunpack.c.l.b16 %v352
      %v567 = vunpack.c.l.b16 %v353
      %v568 = vunpack.c.l.b16 %v354
      %v569 = vunpack.c.l.b16 %v355
      %v570 = vunpack.c.l.b16 %v356
      %v571 = vunpack.c.l.b16 %v357
      %v572 = vunpack.c.l.b16 %v358
      %v573 = vunpack.c.l.b16 %v359
      %v574 = vunpack.c.l.b16 %v360
      %v575 = vunpack.c.l.b16 %v361
      %v576 = vunpack.c.l.b16 %v362
      %v577 = vunpack.c.l.b16 %v363
      %v578 = vunpack.c.l.b16 %v364
      %v579 = vunpack.c.l.b16 %v365
      %v580 = vunpack.c.l.b16 %v366
      %v581 = vunpack.c.l.b16 %v367
      %v582 = vunpack.c.l.b16 %v368
      %v583 = vunpack.c.l.b16 %v369
      %v584 = vunpack.c.l.b16 %v370
      %v585 = vunpack.c.l.b16 %v371
      %v586 = vunpack.c.l.b16 %v372
      %v587 = vunpack.c.l.b16 %v373
      %v588 = vunpack.c.l.b16 %v374
      %v589 = vunpack.c.l.b16 %v375
      %v590 = vunpack.c.l.b16 %v376
      %v591 = vunpack.c.l.b16 %v377
      %v592 = vunpack.c.l.b16 %v378
      %v593 = vunpack.c.l.b16 %v379
      %v594 = vunpack.c.l.b16 %v380
      %v595 = vunpack.c.l.b16 %v381
      %v596 = vpack.c.b16 %v533, %v532
      %v597 = vpack.c.b16 %v535, %v534
      %v598 = vpack.c.b16 %v537, %v536
      %v599 = vpack.c.b16 %v539, %v538
      %v600 = vpack.c.b16 %v541, %v540
      %v601 = vpack.c.b16 %v543, %v542
      %v602 = vpack.c.b16 %v545, %v544
      %v603 = vpack.c.b16 %v547, %v546
      %v604 = vpack.c.b16 %v549, %v548
      %v605 = vpack.c.b16 %v551, %v550
      %v606 = vpack.c.b16 %v553, %v552
      %v607 = vpack.c.b16 %v555, %v554
      %v608 = vpack.c.b16 %v557, %v556
      %v609 = vpack.c.b16 %v559, %v558
      %v610 = vpack.c.b16 %v561, %v560
      %v611 = vpack.c.b16 %v563, %v562
      %v612 = vpack.c.b16 %v565, %v564
      %v613 = vpack.c.b16 %v567, %v566
      %v614 = vpack.c.b16 %v569, %v568
      %v615 = vpack.c.b16 %v571, %v570
      %v616 = vpack.c.b16 %v573, %v572
      %v617 = vpack.c.b16 %v575, %v574
      %v618 = vpack.c.b16 %v577, %v576
      %v619 = vpack.c.b16 %v579, %v578
      %v620 = vpack.c.b16 %v581, %v580
      %v621 = vpack.c.b16 %v583, %v582
      %v622 = vpack.c.b16 %v585, %v584
      %v623 = vpack.c.b16 %v587, %v586
      %v624 = vpack.c.b16 %v589, %v588
      %v625 = vpack.c.b16 %v591, %v590
      %v626 = vpack.c.b16 %v593, %v592
      %v627 = vpack.c.b16 %v595, %v594
      %660 = vmatprep.subr.bf16.mxu0 0
      %661 = vmatpush1.bf16.msra.mxu0 %v603
      %662 = vmatprep.subr.bf16.mxu0 0
      %663 = vmatpush1.bf16.msra.mxu0 %v602
      %664 = vmatprep.subr.bf16.mxu0 0
      %665 = vmatpush1.bf16.msra.mxu0 %v601
      %666 = vmatprep.subr.bf16.mxu0 0
      %667 = vmatpush1.bf16.msra.mxu0 %v600
      %668 = vmatprep.subr.bf16.mxu0 0
      %669 = vmatpush1.bf16.msra.mxu0 %v599
      %670 = vmatprep.subr.bf16.mxu0 0
      %671 = vmatpush1.bf16.msra.mxu0 %v598
      %672 = vmatprep.subr.bf16.mxu0 0
      %673 = vmatpush1.bf16.msra.mxu0 %v597
      %674 = vmatprep.subr.bf16.mxu0 0
      %675 = vmatpush1.bf16.msra.mxu0 %v596
      %676 = vmatprep.subr.bf16.mxu0 0
      %677 = vmatpush2.bf16.msra.mxu0 %v611
      %678 = vmatprep.subr.bf16.mxu0 0
      %679 = vmatpush2.bf16.msra.mxu0 %v610
      %680 = vmatprep.subr.bf16.mxu0 0
      %681 = vmatpush2.bf16.msra.mxu0 %v609
      %682 = vmatprep.subr.bf16.mxu0 0
      %683 = vmatpush2.bf16.msra.mxu0 %v608
      %684 = vmatprep.subr.bf16.mxu0 0
      %685 = vmatpush2.bf16.msra.mxu0 %v607
      %686 = vmatprep.subr.bf16.mxu0 0
      %687 = vmatpush2.bf16.msra.mxu0 %v606
      %688 = vmatprep.subr.bf16.mxu0 0
      %689 = vmatpush2.bf16.msra.mxu0 %v605
      %690 = vmatprep.subr.bf16.mxu0 0
      %691 = vmatpush2.bf16.msra.mxu0 %v604
      %692 = vmatprep.mubr.bf16.mxu0 %v437
      %693 = vmatmul.mubr.bf16.gmra.mxu0 %v436
      %v694 = vpop.f32.mrf.mxu0
      %v695 = vadd.f32 %v386, %v694
      %v696 = vpop.f32.mrf.mxu0
      %v697 = vpop.f32.mrf.mxu0
      %v698 = vadd.f32 %v386, %v697
      %v699 = vpop.f32.mrf.mxu0
      %700 = vmatprep.mubr.bf16.mxu0 %v441
      %701 = vmatmul.mubr.bf16.gmra.mxu0 %v440
      %v702 = vpop.f32.mrf.mxu0
      %v703 = vadd.f32 %v386, %v702
      %v704 = vpop.f32.mrf.mxu0
      %v705 = vpop.f32.mrf.mxu0
      %v706 = vadd.f32 %v386, %v705
      %v707 = vpop.f32.mrf.mxu0
      %708 = vmatprep.mubr.bf16.mxu0 %v445
      %709 = vmatmul.mubr.bf16.gmra.mxu0 %v444
      %v710 = vpop.f32.mrf.mxu0
      %v711 = vadd.f32 %v386, %v710
      %v712 = vpop.f32.mrf.mxu0
      %v713 = vpop.f32.mrf.mxu0
      %v714 = vadd.f32 %v386, %v713
      %v715 = vpop.f32.mrf.mxu0
      %716 = vmatprep.mubr.bf16.mxu0 %v449
      %717 = vmatmul.mubr.bf16.gmra.mxu0 %v448
      %v718 = vpop.f32.mrf.mxu0
      %v719 = vadd.f32 %v386, %v718
      %v720 = vpop.f32.mrf.mxu0
      %v721 = vpop.f32.mrf.mxu0
      %v722 = vadd.f32 %v386, %v721
      %v723 = vpop.f32.mrf.mxu0
      %724 = vdwg.mxu0
      %725 = vmatprep.subr.bf16.mxu0 0
      %726 = vmatpush1.bf16.msra.mxu0 %v619
      %727 = vmatprep.subr.bf16.mxu0 0
      %728 = vmatpush1.bf16.msra.mxu0 %v618
      %729 = vmatprep.subr.bf16.mxu0 0
      %730 = vmatpush1.bf16.msra.mxu0 %v617
      %731 = vmatprep.subr.bf16.mxu0 0
      %732 = vmatpush1.bf16.msra.mxu0 %v616
      %733 = vmatprep.subr.bf16.mxu0 0
      %734 = vmatpush1.bf16.msra.mxu0 %v615
      %735 = vmatprep.subr.bf16.mxu0 0
      %736 = vmatpush1.bf16.msra.mxu0 %v614
      %737 = vmatprep.subr.bf16.mxu0 0
      %738 = vmatpush1.bf16.msra.mxu0 %v613
      %739 = vmatprep.subr.bf16.mxu0 0
      %740 = vmatpush1.bf16.msra.mxu0 %v612
      %741 = vmatprep.subr.bf16.mxu0 0
      %742 = vmatpush2.bf16.msra.mxu0 %v627
      %743 = vmatprep.subr.bf16.mxu0 0
      %744 = vmatpush2.bf16.msra.mxu0 %v626
      %745 = vmatprep.subr.bf16.mxu0 0
      %746 = vmatpush2.bf16.msra.mxu0 %v625
      %747 = vmatprep.subr.bf16.mxu0 0
      %748 = vmatpush2.bf16.msra.mxu0 %v624
      %749 = vmatprep.subr.bf16.mxu0 0
      %750 = vmatpush2.bf16.msra.mxu0 %v623
      %751 = vmatprep.subr.bf16.mxu0 0
      %752 = vmatpush2.bf16.msra.mxu0 %v622
      %753 = vmatprep.subr.bf16.mxu0 0
      %754 = vmatpush2.bf16.msra.mxu0 %v621
      %755 = vmatprep.subr.bf16.mxu0 0
      %756 = vmatpush2.bf16.msra.mxu0 %v620
      %757 = vmatprep.mubr.bf16.mxu0 %v439
      %758 = vmatmul.mubr.bf16.gmra.mxu0 %v438
      %v759 = vpop.f32.mrf.mxu0
      %v760 = vadd.f32 %v695, %v759
      %v761 = vpop.f32.mrf.mxu0
      %v762 = vpop.f32.mrf.mxu0
      %v763 = vadd.f32 %v698, %v762
      %v764 = vpop.f32.mrf.mxu0
      %765 = vmatprep.mubr.bf16.mxu0 %v443
      %766 = vmatmul.mubr.bf16.gmra.mxu0 %v442
      %v767 = vpop.f32.mrf.mxu0
      %v768 = vadd.f32 %v703, %v767
      %v769 = vpop.f32.mrf.mxu0
      %v770 = vpop.f32.mrf.mxu0
      %v771 = vadd.f32 %v706, %v770
      %v772 = vpop.f32.mrf.mxu0
      %773 = vmatprep.mubr.bf16.mxu0 %v447
      %774 = vmatmul.mubr.bf16.gmra.mxu0 %v446
      %v775 = vpop.f32.mrf.mxu0
      %v776 = vadd.f32 %v711, %v775
      %v777 = vpop.f32.mrf.mxu0
      %v778 = vpop.f32.mrf.mxu0
      %v779 = vadd.f32 %v714, %v778
      %v780 = vpop.f32.mrf.mxu0
      %781 = vmatprep.mubr.bf16.mxu0 %v451
      %782 = vmatmul.mubr.bf16.gmra.mxu0 %v450
      %v783 = vpop.f32.mrf.mxu0
      %v784 = vadd.f32 %v719, %v783
      %v785 = vpop.f32.mrf.mxu0
      %v786 = vpop.f32.mrf.mxu0
      %v787 = vadd.f32 %v722, %v786
      %v788 = vpop.f32.mrf.mxu0
      %789 = vdwg.mxu0
      %790 = vst [vmem:[%s286] sm:$0xff] %v760
      %791 = vst [vmem:[%s286 + $0x8] sm:$0xff] %v763
      %792 = vst [vmem:[%s286 + $0x10] sm:$0xff] %v768
      %793 = vst [vmem:[%s286 + $0x18] sm:$0xff] %v771
      %794 = vst [vmem:[%s286 + $0x20] sm:$0xff] %v776
      %795 = vst [vmem:[%s286 + $0x28] sm:$0xff] %v779
      %796 = vst [vmem:[%s286 + $0x30] sm:$0xff] %v784
      %797 = vst [vmem:[%s286 + $0x38] sm:$0xff] %v787
      %v798 = vadd.f32 %v760, %v763
      %v799 = vadd.f32 %v798, %v768
      %v800 = vadd.f32 %v799, %v771
      %v801 = vadd.f32 %v800, %v776
      %v802 = vadd.f32 %v801, %v779
      %v803 = vadd.f32 %v802, %v784
      %v804 = vadd.f32 %v803, %v787
      %v805 = vrot.slane %v804, 4
      %v806 = vadd.f32 %v804, %v805
      %v807 = vrot.slane %v806, 2
      %v808 = vadd.f32 %v806, %v807
      %v809 = vrot.slane %v808, 1
      %v810 = vadd.f32 %v808, %v809
      %v811 = vadd.f32 %v810, 0.0
      %v812 = vmul.f32 %v760, %v760
      %v813 = vmul.f32 %v763, %v763
      %v814 = vmul.f32 %v768, %v768
      %v815 = vmul.f32 %v771, %v771
      %v816 = vmul.f32 %v776, %v776
      %v817 = vmul.f32 %v779, %v779
      %v818 = vmul.f32 %v784, %v784
      %v819 = vmul.f32 %v787, %v787
      %v820 = vadd.f32 %v812, %v813
      %v821 = vadd.f32 %v820, %v814
      %v822 = vadd.f32 %v821, %v815
      %v823 = vadd.f32 %v822, %v816
      %v824 = vadd.f32 %v823, %v817
      %v825 = vadd.f32 %v824, %v818
      %v826 = vadd.f32 %v825, %v819
      %v827 = vrot.slane %v826, 4
      %v828 = vadd.f32 %v826, %v827
      %v829 = vrot.slane %v828, 2
      %v830 = vadd.f32 %v828, %v829
      %v831 = vrot.slane %v830, 1
      %v832 = vadd.f32 %v830, %v831
      %v833 = vadd.f32 %v832, 0.0
      %s834 = scalar_lea.vmem %s276, 128
      %v835 = vld [vmem:[%s834] sm:$0xff]
      %v836 = vld [vmem:[%s834 + $0x8] sm:$0xff]
      %v837 = vld [vmem:[%s834 + $0x10] sm:$0xff]
      %v838 = vld [vmem:[%s834 + $0x18] sm:$0xff]
      %v839 = vld [vmem:[%s834 + $0x20] sm:$0xff]
      %v840 = vld [vmem:[%s834 + $0x28] sm:$0xff]
      %v841 = vld [vmem:[%s834 + $0x30] sm:$0xff]
      %v842 = vld [vmem:[%s834 + $0x38] sm:$0xff]
      %v843 = vld [vmem:[%s834 + $0x40] sm:$0xff]
      %v844 = vld [vmem:[%s834 + $0x48] sm:$0xff]
      %v845 = vld [vmem:[%s834 + $0x50] sm:$0xff]
      %v846 = vld [vmem:[%s834 + $0x58] sm:$0xff]
      %v847 = vld [vmem:[%s834 + $0x60] sm:$0xff]
      %v848 = vld [vmem:[%s834 + $0x68] sm:$0xff]
      %v849 = vld [vmem:[%s834 + $0x70] sm:$0xff]
      %v850 = vld [vmem:[%s834 + $0x78] sm:$0xff]
      %s851 = scalar_lea.vmem %s1, 256
      %v852 = vld [vmem:[%s851] sm:$0xf]
      %v853 = vld [vmem:[%s851 + $0x4] sm:$0xf]
      %v854 = vld [vmem:[%s851 + $0x8] sm:$0xf]
      %v855 = vld [vmem:[%s851 + $0xc] sm:$0xf]
      %v856 = vld [vmem:[%s851 + $0x10] sm:$0xf]
      %v857 = vld [vmem:[%s851 + $0x14] sm:$0xf]
      %v858 = vld [vmem:[%s851 + $0x18] sm:$0xf]
      %v859 = vld [vmem:[%s851 + $0x1c] sm:$0xf]
      %v860 = vld [vmem:[%s851 + $0x20] sm:$0xf]
      %v861 = vld [vmem:[%s851 + $0x24] sm:$0xf]
      %v862 = vld [vmem:[%s851 + $0x28] sm:$0xf]
      %v863 = vld [vmem:[%s851 + $0x2c] sm:$0xf]
      %v864 = vld [vmem:[%s851 + $0x30] sm:$0xf]
      %v865 = vld [vmem:[%s851 + $0x34] sm:$0xf]
      %v866 = vld [vmem:[%s851 + $0x38] sm:$0xf]
      %v867 = vld [vmem:[%s851 + $0x3c] sm:$0xf]
      %v868 = vld [vmem:[%s851 + $0x40] sm:$0xf]
      %v869 = vld [vmem:[%s851 + $0x44] sm:$0xf]
      %v870 = vld [vmem:[%s851 + $0x48] sm:$0xf]
      %v871 = vld [vmem:[%s851 + $0x4c] sm:$0xf]
      %v872 = vld [vmem:[%s851 + $0x50] sm:$0xf]
      %v873 = vld [vmem:[%s851 + $0x54] sm:$0xf]
      %v874 = vld [vmem:[%s851 + $0x58] sm:$0xf]
      %v875 = vld [vmem:[%s851 + $0x5c] sm:$0xf]
      %v876 = vld [vmem:[%s851 + $0x60] sm:$0xf]
      %v877 = vld [vmem:[%s851 + $0x64] sm:$0xf]
      %v878 = vld [vmem:[%s851 + $0x68] sm:$0xf]
      %v879 = vld [vmem:[%s851 + $0x6c] sm:$0xf]
      %v880 = vld [vmem:[%s851 + $0x70] sm:$0xf]
      %v881 = vld [vmem:[%s851 + $0x74] sm:$0xf]
      %v882 = vld [vmem:[%s851 + $0x78] sm:$0xf]
      %v883 = vld [vmem:[%s851 + $0x7c] sm:$0xf]
      %v884 = vld [vmem:[%s851 + $0x80] sm:$0xf]
      %v885 = vld [vmem:[%s851 + $0x84] sm:$0xf]
      %v886 = vld [vmem:[%s851 + $0x88] sm:$0xf]
      %v887 = vld [vmem:[%s851 + $0x8c] sm:$0xf]
      %v888 = vld [vmem:[%s851 + $0x90] sm:$0xf]
      %v889 = vld [vmem:[%s851 + $0x94] sm:$0xf]
      %v890 = vld [vmem:[%s851 + $0x98] sm:$0xf]
      %v891 = vld [vmem:[%s851 + $0x9c] sm:$0xf]
      %v892 = vld [vmem:[%s851 + $0xa0] sm:$0xf]
      %v893 = vld [vmem:[%s851 + $0xa4] sm:$0xf]
      %v894 = vld [vmem:[%s851 + $0xa8] sm:$0xf]
      %v895 = vld [vmem:[%s851 + $0xac] sm:$0xf]
      %v896 = vld [vmem:[%s851 + $0xb0] sm:$0xf]
      %v897 = vld [vmem:[%s851 + $0xb4] sm:$0xf]
      %v898 = vld [vmem:[%s851 + $0xb8] sm:$0xf]
      %v899 = vld [vmem:[%s851 + $0xbc] sm:$0xf]
      %v900 = vld [vmem:[%s851 + $0xc0] sm:$0xf]
      %v901 = vld [vmem:[%s851 + $0xc4] sm:$0xf]
      %v902 = vld [vmem:[%s851 + $0xc8] sm:$0xf]
      %v903 = vld [vmem:[%s851 + $0xcc] sm:$0xf]
      %v904 = vld [vmem:[%s851 + $0xd0] sm:$0xf]
      %v905 = vld [vmem:[%s851 + $0xd4] sm:$0xf]
      %v906 = vld [vmem:[%s851 + $0xd8] sm:$0xf]
      %v907 = vld [vmem:[%s851 + $0xdc] sm:$0xf]
      %v908 = vld [vmem:[%s851 + $0xe0] sm:$0xf]
      %v909 = vld [vmem:[%s851 + $0xe4] sm:$0xf]
      %v910 = vld [vmem:[%s851 + $0xe8] sm:$0xf]
      %v911 = vld [vmem:[%s851 + $0xec] sm:$0xf]
      %v912 = vld [vmem:[%s851 + $0xf0] sm:$0xf]
      %v913 = vld [vmem:[%s851 + $0xf4] sm:$0xf]
      %v914 = vld [vmem:[%s851 + $0xf8] sm:$0xf]
      %v915 = vld [vmem:[%s851 + $0xfc] sm:$0xf]
      %v932 = vunpack.c.l.b16 %v835
      %v933 = vunpack.c.h.b16 %v835
      %v934 = vunpack.c.l.b16 %v836
      %v935 = vunpack.c.h.b16 %v836
      %v936 = vunpack.c.l.b16 %v837
      %v937 = vunpack.c.h.b16 %v837
      %v938 = vunpack.c.l.b16 %v838
      %v939 = vunpack.c.h.b16 %v838
      %v940 = vunpack.c.l.b16 %v839
      %v941 = vunpack.c.h.b16 %v839
      %v942 = vunpack.c.l.b16 %v840
      %v943 = vunpack.c.h.b16 %v840
      %v944 = vunpack.c.l.b16 %v841
      %v945 = vunpack.c.h.b16 %v841
      %v946 = vunpack.c.l.b16 %v842
      %v947 = vunpack.c.h.b16 %v842
      %v948 = vunpack.c.l.b16 %v843
      %v949 = vunpack.c.h.b16 %v843
      %v950 = vunpack.c.l.b16 %v844
      %v951 = vunpack.c.h.b16 %v844
      %v952 = vunpack.c.l.b16 %v845
      %v953 = vunpack.c.h.b16 %v845
      %v954 = vunpack.c.l.b16 %v846
      %v955 = vunpack.c.h.b16 %v846
      %v956 = vunpack.c.l.b16 %v847
      %v957 = vunpack.c.h.b16 %v847
      %v958 = vunpack.c.l.b16 %v848
      %v959 = vunpack.c.h.b16 %v848
      %v960 = vunpack.c.l.b16 %v849
      %v961 = vunpack.c.h.b16 %v849
      %v962 = vunpack.c.l.b16 %v850
      %v963 = vunpack.c.h.b16 %v850
      %v964 = vpack.c.b16 %v936, %v932
      %v965 = vpack.c.b16 %v937, %v933
      %v966 = vpack.c.b16 %v938, %v934
      %v967 = vpack.c.b16 %v939, %v935
      %v968 = vpack.c.b16 %v944, %v940
      %v969 = vpack.c.b16 %v945, %v941
      %v970 = vpack.c.b16 %v946, %v942
      %v971 = vpack.c.b16 %v947, %v943
      %v972 = vpack.c.b16 %v952, %v948
      %v973 = vpack.c.b16 %v953, %v949
      %v974 = vpack.c.b16 %v954, %v950
      %v975 = vpack.c.b16 %v955, %v951
      %v976 = vpack.c.b16 %v960, %v956
      %v977 = vpack.c.b16 %v961, %v957
      %v978 = vpack.c.b16 %v962, %v958
      %v979 = vpack.c.b16 %v963, %v959
      %v1060 = vunpack.c.l.b16 %v852
      %v1061 = vunpack.c.l.b16 %v853
      %v1062 = vunpack.c.l.b16 %v854
      %v1063 = vunpack.c.l.b16 %v855
      %v1064 = vunpack.c.l.b16 %v856
      %v1065 = vunpack.c.l.b16 %v857
      %v1066 = vunpack.c.l.b16 %v858
      %v1067 = vunpack.c.l.b16 %v859
      %v1068 = vunpack.c.l.b16 %v860
      %v1069 = vunpack.c.l.b16 %v861
      %v1070 = vunpack.c.l.b16 %v862
      %v1071 = vunpack.c.l.b16 %v863
      %v1072 = vunpack.c.l.b16 %v864
      %v1073 = vunpack.c.l.b16 %v865
      %v1074 = vunpack.c.l.b16 %v866
      %v1075 = vunpack.c.l.b16 %v867
      %v1076 = vunpack.c.l.b16 %v868
      %v1077 = vunpack.c.l.b16 %v869
      %v1078 = vunpack.c.l.b16 %v870
      %v1079 = vunpack.c.l.b16 %v871
      %v1080 = vunpack.c.l.b16 %v872
      %v1081 = vunpack.c.l.b16 %v873
      %v1082 = vunpack.c.l.b16 %v874
      %v1083 = vunpack.c.l.b16 %v875
      %v1084 = vunpack.c.l.b16 %v876
      %v1085 = vunpack.c.l.b16 %v877
      %v1086 = vunpack.c.l.b16 %v878
      %v1087 = vunpack.c.l.b16 %v879
      %v1088 = vunpack.c.l.b16 %v880
      %v1089 = vunpack.c.l.b16 %v881
      %v1090 = vunpack.c.l.b16 %v882
      %v1091 = vunpack.c.l.b16 %v883
      %v1092 = vunpack.c.l.b16 %v884
      %v1093 = vunpack.c.l.b16 %v885
      %v1094 = vunpack.c.l.b16 %v886
      %v1095 = vunpack.c.l.b16 %v887
      %v1096 = vunpack.c.l.b16 %v888
      %v1097 = vunpack.c.l.b16 %v889
      %v1098 = vunpack.c.l.b16 %v890
      %v1099 = vunpack.c.l.b16 %v891
      %v1100 = vunpack.c.l.b16 %v892
      %v1101 = vunpack.c.l.b16 %v893
      %v1102 = vunpack.c.l.b16 %v894
      %v1103 = vunpack.c.l.b16 %v895
      %v1104 = vunpack.c.l.b16 %v896
      %v1105 = vunpack.c.l.b16 %v897
      %v1106 = vunpack.c.l.b16 %v898
      %v1107 = vunpack.c.l.b16 %v899
      %v1108 = vunpack.c.l.b16 %v900
      %v1109 = vunpack.c.l.b16 %v901
      %v1110 = vunpack.c.l.b16 %v902
      %v1111 = vunpack.c.l.b16 %v903
      %v1112 = vunpack.c.l.b16 %v904
      %v1113 = vunpack.c.l.b16 %v905
      %v1114 = vunpack.c.l.b16 %v906
      %v1115 = vunpack.c.l.b16 %v907
      %v1116 = vunpack.c.l.b16 %v908
      %v1117 = vunpack.c.l.b16 %v909
      %v1118 = vunpack.c.l.b16 %v910
      %v1119 = vunpack.c.l.b16 %v911
      %v1120 = vunpack.c.l.b16 %v912
      %v1121 = vunpack.c.l.b16 %v913
      %v1122 = vunpack.c.l.b16 %v914
      %v1123 = vunpack.c.l.b16 %v915
      %v1124 = vpack.c.b16 %v1061, %v1060
      %v1125 = vpack.c.b16 %v1063, %v1062
      %v1126 = vpack.c.b16 %v1065, %v1064
      %v1127 = vpack.c.b16 %v1067, %v1066
      %v1128 = vpack.c.b16 %v1069, %v1068
      %v1129 = vpack.c.b16 %v1071, %v1070
      %v1130 = vpack.c.b16 %v1073, %v1072
      %v1131 = vpack.c.b16 %v1075, %v1074
      %v1132 = vpack.c.b16 %v1077, %v1076
      %v1133 = vpack.c.b16 %v1079, %v1078
      %v1134 = vpack.c.b16 %v1081, %v1080
      %v1135 = vpack.c.b16 %v1083, %v1082
      %v1136 = vpack.c.b16 %v1085, %v1084
      %v1137 = vpack.c.b16 %v1087, %v1086
      %v1138 = vpack.c.b16 %v1089, %v1088
      %v1139 = vpack.c.b16 %v1091, %v1090
      %v1140 = vpack.c.b16 %v1093, %v1092
      %v1141 = vpack.c.b16 %v1095, %v1094
      %v1142 = vpack.c.b16 %v1097, %v1096
      %v1143 = vpack.c.b16 %v1099, %v1098
      %v1144 = vpack.c.b16 %v1101, %v1100
      %v1145 = vpack.c.b16 %v1103, %v1102
      %v1146 = vpack.c.b16 %v1105, %v1104
      %v1147 = vpack.c.b16 %v1107, %v1106
      %v1148 = vpack.c.b16 %v1109, %v1108
      %v1149 = vpack.c.b16 %v1111, %v1110
      %v1150 = vpack.c.b16 %v1113, %v1112
      %v1151 = vpack.c.b16 %v1115, %v1114
      %v1152 = vpack.c.b16 %v1117, %v1116
      %v1153 = vpack.c.b16 %v1119, %v1118
      %v1154 = vpack.c.b16 %v1121, %v1120
      %v1155 = vpack.c.b16 %v1123, %v1122
      %1188 = vmatprep.subr.bf16.mxu0 0
      %1189 = vmatpush1.bf16.msra.mxu0 %v1131
      %1190 = vmatprep.subr.bf16.mxu0 0
      %1191 = vmatpush1.bf16.msra.mxu0 %v1130
      %1192 = vmatprep.subr.bf16.mxu0 0
      %1193 = vmatpush1.bf16.msra.mxu0 %v1129
      %1194 = vmatprep.subr.bf16.mxu0 0
      %1195 = vmatpush1.bf16.msra.mxu0 %v1128
      %1196 = vmatprep.subr.bf16.mxu0 0
      %1197 = vmatpush1.bf16.msra.mxu0 %v1127
      %1198 = vmatprep.subr.bf16.mxu0 0
      %1199 = vmatpush1.bf16.msra.mxu0 %v1126
      %1200 = vmatprep.subr.bf16.mxu0 0
      %1201 = vmatpush1.bf16.msra.mxu0 %v1125
      %1202 = vmatprep.subr.bf16.mxu0 0
      %1203 = vmatpush1.bf16.msra.mxu0 %v1124
      %1204 = vmatprep.subr.bf16.mxu0 0
      %1205 = vmatpush2.bf16.msra.mxu0 %v1139
      %1206 = vmatprep.subr.bf16.mxu0 0
      %1207 = vmatpush2.bf16.msra.mxu0 %v1138
      %1208 = vmatprep.subr.bf16.mxu0 0
      %1209 = vmatpush2.bf16.msra.mxu0 %v1137
      %1210 = vmatprep.subr.bf16.mxu0 0
      %1211 = vmatpush2.bf16.msra.mxu0 %v1136
      %1212 = vmatprep.subr.bf16.mxu0 0
      %1213 = vmatpush2.bf16.msra.mxu0 %v1135
      %1214 = vmatprep.subr.bf16.mxu0 0
      %1215 = vmatpush2.bf16.msra.mxu0 %v1134
      %1216 = vmatprep.subr.bf16.mxu0 0
      %1217 = vmatpush2.bf16.msra.mxu0 %v1133
      %1218 = vmatprep.subr.bf16.mxu0 0
      %1219 = vmatpush2.bf16.msra.mxu0 %v1132
      %1220 = vmatprep.mubr.bf16.mxu0 %v965
      %1221 = vmatmul.mubr.bf16.gmra.mxu0 %v964
      %v1222 = vpop.f32.mrf.mxu0
      %v1223 = vadd.f32 %v386, %v1222
      %v1224 = vpop.f32.mrf.mxu0
      %v1225 = vpop.f32.mrf.mxu0
      %v1226 = vadd.f32 %v386, %v1225
      %v1227 = vpop.f32.mrf.mxu0
      %1228 = vmatprep.mubr.bf16.mxu0 %v969
      %1229 = vmatmul.mubr.bf16.gmra.mxu0 %v968
      %v1230 = vpop.f32.mrf.mxu0
      %v1231 = vadd.f32 %v386, %v1230
      %v1232 = vpop.f32.mrf.mxu0
      %v1233 = vpop.f32.mrf.mxu0
      %v1234 = vadd.f32 %v386, %v1233
      %v1235 = vpop.f32.mrf.mxu0
      %1236 = vmatprep.mubr.bf16.mxu0 %v973
      %1237 = vmatmul.mubr.bf16.gmra.mxu0 %v972
      %v1238 = vpop.f32.mrf.mxu0
      %v1239 = vadd.f32 %v386, %v1238
      %v1240 = vpop.f32.mrf.mxu0
      %v1241 = vpop.f32.mrf.mxu0
      %v1242 = vadd.f32 %v386, %v1241
      %v1243 = vpop.f32.mrf.mxu0
      %1244 = vmatprep.mubr.bf16.mxu0 %v977
      %1245 = vmatmul.mubr.bf16.gmra.mxu0 %v976
      %v1246 = vpop.f32.mrf.mxu0
      %v1247 = vadd.f32 %v386, %v1246
      %v1248 = vpop.f32.mrf.mxu0
      %v1249 = vpop.f32.mrf.mxu0
      %v1250 = vadd.f32 %v386, %v1249
      %v1251 = vpop.f32.mrf.mxu0
      %1252 = vdwg.mxu0
      %1253 = vmatprep.subr.bf16.mxu0 0
      %1254 = vmatpush1.bf16.msra.mxu0 %v1147
      %1255 = vmatprep.subr.bf16.mxu0 0
      %1256 = vmatpush1.bf16.msra.mxu0 %v1146
      %1257 = vmatprep.subr.bf16.mxu0 0
      %1258 = vmatpush1.bf16.msra.mxu0 %v1145
      %1259 = vmatprep.subr.bf16.mxu0 0
      %1260 = vmatpush1.bf16.msra.mxu0 %v1144
      %1261 = vmatprep.subr.bf16.mxu0 0
      %1262 = vmatpush1.bf16.msra.mxu0 %v1143
      %1263 = vmatprep.subr.bf16.mxu0 0
      %1264 = vmatpush1.bf16.msra.mxu0 %v1142
      %1265 = vmatprep.subr.bf16.mxu0 0
      %1266 = vmatpush1.bf16.msra.mxu0 %v1141
      %1267 = vmatprep.subr.bf16.mxu0 0
      %1268 = vmatpush1.bf16.msra.mxu0 %v1140
      %1269 = vmatprep.subr.bf16.mxu0 0
      %1270 = vmatpush2.bf16.msra.mxu0 %v1155
      %1271 = vmatprep.subr.bf16.mxu0 0
      %1272 = vmatpush2.bf16.msra.mxu0 %v1154
      %1273 = vmatprep.subr.bf16.mxu0 0
      %1274 = vmatpush2.bf16.msra.mxu0 %v1153
      %1275 = vmatprep.subr.bf16.mxu0 0
      %1276 = vmatpush2.bf16.msra.mxu0 %v1152
      %1277 = vmatprep.subr.bf16.mxu0 0
      %1278 = vmatpush2.bf16.msra.mxu0 %v1151
      %1279 = vmatprep.subr.bf16.mxu0 0
      %1280 = vmatpush2.bf16.msra.mxu0 %v1150
      %1281 = vmatprep.subr.bf16.mxu0 0
      %1282 = vmatpush2.bf16.msra.mxu0 %v1149
      %1283 = vmatprep.subr.bf16.mxu0 0
      %1284 = vmatpush2.bf16.msra.mxu0 %v1148
      %1285 = vmatprep.mubr.bf16.mxu0 %v967
      %1286 = vmatmul.mubr.bf16.gmra.mxu0 %v966
      %v1287 = vpop.f32.mrf.mxu0
      %v1288 = vadd.f32 %v1223, %v1287
      %v1289 = vpop.f32.mrf.mxu0
      %v1290 = vpop.f32.mrf.mxu0
      %v1291 = vadd.f32 %v1226, %v1290
      %v1292 = vpop.f32.mrf.mxu0
      %1293 = vmatprep.mubr.bf16.mxu0 %v971
      %1294 = vmatmul.mubr.bf16.gmra.mxu0 %v970
      %v1295 = vpop.f32.mrf.mxu0
      %v1296 = vadd.f32 %v1231, %v1295
      %v1297 = vpop.f32.mrf.mxu0
      %v1298 = vpop.f32.mrf.mxu0
      %v1299 = vadd.f32 %v1234, %v1298
      %v1300 = vpop.f32.mrf.mxu0
      %1301 = vmatprep.mubr.bf16.mxu0 %v975
      %1302 = vmatmul.mubr.bf16.gmra.mxu0 %v974
      %v1303 = vpop.f32.mrf.mxu0
      %v1304 = vadd.f32 %v1239, %v1303
      %v1305 = vpop.f32.mrf.mxu0
      %v1306 = vpop.f32.mrf.mxu0
      %v1307 = vadd.f32 %v1242, %v1306
      %v1308 = vpop.f32.mrf.mxu0
      %1309 = vmatprep.mubr.bf16.mxu0 %v979
      %1310 = vmatmul.mubr.bf16.gmra.mxu0 %v978
      %v1311 = vpop.f32.mrf.mxu0
      %v1312 = vadd.f32 %v1247, %v1311
      %v1313 = vpop.f32.mrf.mxu0
      %v1314 = vpop.f32.mrf.mxu0
      %v1315 = vadd.f32 %v1250, %v1314
      %v1316 = vpop.f32.mrf.mxu0
      %1317 = vdwg.mxu0
      %s1318 = scalar_lea.vmem %s286, 64
      %1319 = vst [vmem:[%s1318] sm:$0xff] %v1288
      %1320 = vst [vmem:[%s1318 + $0x8] sm:$0xff] %v1291
      %1321 = vst [vmem:[%s1318 + $0x10] sm:$0xff] %v1296
      %1322 = vst [vmem:[%s1318 + $0x18] sm:$0xff] %v1299
      %1323 = vst [vmem:[%s1318 + $0x20] sm:$0xff] %v1304
      %1324 = vst [vmem:[%s1318 + $0x28] sm:$0xff] %v1307
      %1325 = vst [vmem:[%s1318 + $0x30] sm:$0xff] %v1312
      %1326 = vst [vmem:[%s1318 + $0x38] sm:$0xff] %v1315
      %v1327 = vadd.f32 %v1288, %v1291
      %v1328 = vadd.f32 %v1327, %v1296
      %v1329 = vadd.f32 %v1328, %v1299
      %v1330 = vadd.f32 %v1329, %v1304
      %v1331 = vadd.f32 %v1330, %v1307
      %v1332 = vadd.f32 %v1331, %v1312
      %v1333 = vadd.f32 %v1332, %v1315
      %v1334 = vrot.slane %v1333, 4
      %v1335 = vadd.f32 %v1333, %v1334
      %v1336 = vrot.slane %v1335, 2
      %v1337 = vadd.f32 %v1335, %v1336
      %v1338 = vrot.slane %v1337, 1
      %v1339 = vadd.f32 %v1337, %v1338
      %v1340 = vadd.f32 %v811, %v1339
      %v1341 = vmul.f32 %v1288, %v1288
      %v1342 = vmul.f32 %v1291, %v1291
      %v1343 = vmul.f32 %v1296, %v1296
      %v1344 = vmul.f32 %v1299, %v1299
      %v1345 = vmul.f32 %v1304, %v1304
      %v1346 = vmul.f32 %v1307, %v1307
      %v1347 = vmul.f32 %v1312, %v1312
      %v1348 = vmul.f32 %v1315, %v1315
      %v1349 = vadd.f32 %v1341, %v1342
      %v1350 = vadd.f32 %v1349, %v1343
      %v1351 = vadd.f32 %v1350, %v1344
      %v1352 = vadd.f32 %v1351, %v1345
      %v1353 = vadd.f32 %v1352, %v1346
      %v1354 = vadd.f32 %v1353, %v1347
      %v1355 = vadd.f32 %v1354, %v1348
      %v1356 = vrot.slane %v1355, 4
      %v1357 = vadd.f32 %v1355, %v1356
      %v1358 = vrot.slane %v1357, 2
      %v1359 = vadd.f32 %v1357, %v1358
      %v1360 = vrot.slane %v1359, 1
      %v1361 = vadd.f32 %v1359, %v1360
      %v1362 = vadd.f32 %v833, %v1361
      %s1363 = scalar_lea.vmem %s276, 256
      %v1364 = vld [vmem:[%s1363] sm:$0xff]
      %v1365 = vld [vmem:[%s1363 + $0x8] sm:$0xff]
      %v1366 = vld [vmem:[%s1363 + $0x10] sm:$0xff]
      %v1367 = vld [vmem:[%s1363 + $0x18] sm:$0xff]
      %v1368 = vld [vmem:[%s1363 + $0x20] sm:$0xff]
      %v1369 = vld [vmem:[%s1363 + $0x28] sm:$0xff]
      %v1370 = vld [vmem:[%s1363 + $0x30] sm:$0xff]
      %v1371 = vld [vmem:[%s1363 + $0x38] sm:$0xff]
      %v1372 = vld [vmem:[%s1363 + $0x40] sm:$0xff]
      %v1373 = vld [vmem:[%s1363 + $0x48] sm:$0xff]
      %v1374 = vld [vmem:[%s1363 + $0x50] sm:$0xff]
      %v1375 = vld [vmem:[%s1363 + $0x58] sm:$0xff]
      %v1376 = vld [vmem:[%s1363 + $0x60] sm:$0xff]
      %v1377 = vld [vmem:[%s1363 + $0x68] sm:$0xff]
      %v1378 = vld [vmem:[%s1363 + $0x70] sm:$0xff]
      %v1379 = vld [vmem:[%s1363 + $0x78] sm:$0xff]
      %s1380 = scalar_lea.vmem %s1, 512
      %v1381 = vld [vmem:[%s1380] sm:$0xf]
      %v1382 = vld [vmem:[%s1380 + $0x4] sm:$0xf]
      %v1383 = vld [vmem:[%s1380 + $0x8] sm:$0xf]
      %v1384 = vld [vmem:[%s1380 + $0xc] sm:$0xf]
      %v1385 = vld [vmem:[%s1380 + $0x10] sm:$0xf]
      %v1386 = vld [vmem:[%s1380 + $0x14] sm:$0xf]
      %v1387 = vld [vmem:[%s1380 + $0x18] sm:$0xf]
      %v1388 = vld [vmem:[%s1380 + $0x1c] sm:$0xf]
      %v1389 = vld [vmem:[%s1380 + $0x20] sm:$0xf]
      %v1390 = vld [vmem:[%s1380 + $0x24] sm:$0xf]
      %v1391 = vld [vmem:[%s1380 + $0x28] sm:$0xf]
      %v1392 = vld [vmem:[%s1380 + $0x2c] sm:$0xf]
      %v1393 = vld [vmem:[%s1380 + $0x30] sm:$0xf]
      %v1394 = vld [vmem:[%s1380 + $0x34] sm:$0xf]
      %v1395 = vld [vmem:[%s1380 + $0x38] sm:$0xf]
      %v1396 = vld [vmem:[%s1380 + $0x3c] sm:$0xf]
      %v1397 = vld [vmem:[%s1380 + $0x40] sm:$0xf]
      %v1398 = vld [vmem:[%s1380 + $0x44] sm:$0xf]
      %v1399 = vld [vmem:[%s1380 + $0x48] sm:$0xf]
      %v1400 = vld [vmem:[%s1380 + $0x4c] sm:$0xf]
      %v1401 = vld [vmem:[%s1380 + $0x50] sm:$0xf]
      %v1402 = vld [vmem:[%s1380 + $0x54] sm:$0xf]
      %v1403 = vld [vmem:[%s1380 + $0x58] sm:$0xf]
      %v1404 = vld [vmem:[%s1380 + $0x5c] sm:$0xf]
      %v1405 = vld [vmem:[%s1380 + $0x60] sm:$0xf]
      %v1406 = vld [vmem:[%s1380 + $0x64] sm:$0xf]
      %v1407 = vld [vmem:[%s1380 + $0x68] sm:$0xf]
      %v1408 = vld [vmem:[%s1380 + $0x6c] sm:$0xf]
      %v1409 = vld [vmem:[%s1380 + $0x70] sm:$0xf]
      %v1410 = vld [vmem:[%s1380 + $0x74] sm:$0xf]
      %v1411 = vld [vmem:[%s1380 + $0x78] sm:$0xf]
      %v1412 = vld [vmem:[%s1380 + $0x7c] sm:$0xf]
      %v1413 = vld [vmem:[%s1380 + $0x80] sm:$0xf]
      %v1414 = vld [vmem:[%s1380 + $0x84] sm:$0xf]
      %v1415 = vld [vmem:[%s1380 + $0x88] sm:$0xf]
      %v1416 = vld [vmem:[%s1380 + $0x8c] sm:$0xf]
      %v1417 = vld [vmem:[%s1380 + $0x90] sm:$0xf]
      %v1418 = vld [vmem:[%s1380 + $0x94] sm:$0xf]
      %v1419 = vld [vmem:[%s1380 + $0x98] sm:$0xf]
      %v1420 = vld [vmem:[%s1380 + $0x9c] sm:$0xf]
      %v1421 = vld [vmem:[%s1380 + $0xa0] sm:$0xf]
      %v1422 = vld [vmem:[%s1380 + $0xa4] sm:$0xf]
      %v1423 = vld [vmem:[%s1380 + $0xa8] sm:$0xf]
      %v1424 = vld [vmem:[%s1380 + $0xac] sm:$0xf]
      %v1425 = vld [vmem:[%s1380 + $0xb0] sm:$0xf]
      %v1426 = vld [vmem:[%s1380 + $0xb4] sm:$0xf]
      %v1427 = vld [vmem:[%s1380 + $0xb8] sm:$0xf]
      %v1428 = vld [vmem:[%s1380 + $0xbc] sm:$0xf]
      %v1429 = vld [vmem:[%s1380 + $0xc0] sm:$0xf]
      %v1430 = vld [vmem:[%s1380 + $0xc4] sm:$0xf]
      %v1431 = vld [vmem:[%s1380 + $0xc8] sm:$0xf]
      %v1432 = vld [vmem:[%s1380 + $0xcc] sm:$0xf]
      %v1433 = vld [vmem:[%s1380 + $0xd0] sm:$0xf]
      %v1434 = vld [vmem:[%s1380 + $0xd4] sm:$0xf]
      %v1435 = vld [vmem:[%s1380 + $0xd8] sm:$0xf]
      %v1436 = vld [vmem:[%s1380 + $0xdc] sm:$0xf]
      %v1437 = vld [vmem:[%s1380 + $0xe0] sm:$0xf]
      %v1438 = vld [vmem:[%s1380 + $0xe4] sm:$0xf]
      %v1439 = vld [vmem:[%s1380 + $0xe8] sm:$0xf]
      %v1440 = vld [vmem:[%s1380 + $0xec] sm:$0xf]
      %v1441 = vld [vmem:[%s1380 + $0xf0] sm:$0xf]
      %v1442 = vld [vmem:[%s1380 + $0xf4] sm:$0xf]
      %v1443 = vld [vmem:[%s1380 + $0xf8] sm:$0xf]
      %v1444 = vld [vmem:[%s1380 + $0xfc] sm:$0xf]
      %v1461 = vunpack.c.l.b16 %v1364
      %v1462 = vunpack.c.h.b16 %v1364
      %v1463 = vunpack.c.l.b16 %v1365
      %v1464 = vunpack.c.h.b16 %v1365
      %v1465 = vunpack.c.l.b16 %v1366
      %v1466 = vunpack.c.h.b16 %v1366
      %v1467 = vunpack.c.l.b16 %v1367
      %v1468 = vunpack.c.h.b16 %v1367
      %v1469 = vunpack.c.l.b16 %v1368
      %v1470 = vunpack.c.h.b16 %v1368
      %v1471 = vunpack.c.l.b16 %v1369
      %v1472 = vunpack.c.h.b16 %v1369
      %v1473 = vunpack.c.l.b16 %v1370
      %v1474 = vunpack.c.h.b16 %v1370
      %v1475 = vunpack.c.l.b16 %v1371
      %v1476 = vunpack.c.h.b16 %v1371
      %v1477 = vunpack.c.l.b16 %v1372
      %v1478 = vunpack.c.h.b16 %v1372
      %v1479 = vunpack.c.l.b16 %v1373
      %v1480 = vunpack.c.h.b16 %v1373
      %v1481 = vunpack.c.l.b16 %v1374
      %v1482 = vunpack.c.h.b16 %v1374
      %v1483 = vunpack.c.l.b16 %v1375
      %v1484 = vunpack.c.h.b16 %v1375
      %v1485 = vunpack.c.l.b16 %v1376
      %v1486 = vunpack.c.h.b16 %v1376
      %v1487 = vunpack.c.l.b16 %v1377
      %v1488 = vunpack.c.h.b16 %v1377
      %v1489 = vunpack.c.l.b16 %v1378
      %v1490 = vunpack.c.h.b16 %v1378
      %v1491 = vunpack.c.l.b16 %v1379
      %v1492 = vunpack.c.h.b16 %v1379
      %v1493 = vpack.c.b16 %v1465, %v1461
      %v1494 = vpack.c.b16 %v1466, %v1462
      %v1495 = vpack.c.b16 %v1467, %v1463
      %v1496 = vpack.c.b16 %v1468, %v1464
      %v1497 = vpack.c.b16 %v1473, %v1469
      %v1498 = vpack.c.b16 %v1474, %v1470
      %v1499 = vpack.c.b16 %v1475, %v1471
      %v1500 = vpack.c.b16 %v1476, %v1472
      %v1501 = vpack.c.b16 %v1481, %v1477
      %v1502 = vpack.c.b16 %v1482, %v1478
      %v1503 = vpack.c.b16 %v1483, %v1479
      %v1504 = vpack.c.b16 %v1484, %v1480
      %v1505 = vpack.c.b16 %v1489, %v1485
      %v1506 = vpack.c.b16 %v1490, %v1486
      %v1507 = vpack.c.b16 %v1491, %v1487
      %v1508 = vpack.c.b16 %v1492, %v1488
      %v1589 = vunpack.c.l.b16 %v1381
      %v1590 = vunpack.c.l.b16 %v1382
      %v1591 = vunpack.c.l.b16 %v1383
      %v1592 = vunpack.c.l.b16 %v1384
      %v1593 = vunpack.c.l.b16 %v1385
      %v1594 = vunpack.c.l.b16 %v1386
      %v1595 = vunpack.c.l.b16 %v1387
      %v1596 = vunpack.c.l.b16 %v1388
      %v1597 = vunpack.c.l.b16 %v1389
      %v1598 = vunpack.c.l.b16 %v1390
      %v1599 = vunpack.c.l.b16 %v1391
      %v1600 = vunpack.c.l.b16 %v1392
      %v1601 = vunpack.c.l.b16 %v1393
      %v1602 = vunpack.c.l.b16 %v1394
      %v1603 = vunpack.c.l.b16 %v1395
      %v1604 = vunpack.c.l.b16 %v1396
      %v1605 = vunpack.c.l.b16 %v1397
      %v1606 = vunpack.c.l.b16 %v1398
      %v1607 = vunpack.c.l.b16 %v1399
      %v1608 = vunpack.c.l.b16 %v1400
      %v1609 = vunpack.c.l.b16 %v1401
      %v1610 = vunpack.c.l.b16 %v1402
      %v1611 = vunpack.c.l.b16 %v1403
      %v1612 = vunpack.c.l.b16 %v1404
      %v1613 = vunpack.c.l.b16 %v1405
      %v1614 = vunpack.c.l.b16 %v1406
      %v1615 = vunpack.c.l.b16 %v1407
      %v1616 = vunpack.c.l.b16 %v1408
      %v1617 = vunpack.c.l.b16 %v1409
      %v1618 = vunpack.c.l.b16 %v1410
      %v1619 = vunpack.c.l.b16 %v1411
      %v1620 = vunpack.c.l.b16 %v1412
      %v1621 = vunpack.c.l.b16 %v1413
      %v1622 = vunpack.c.l.b16 %v1414
      %v1623 = vunpack.c.l.b16 %v1415
      %v1624 = vunpack.c.l.b16 %v1416
      %v1625 = vunpack.c.l.b16 %v1417
      %v1626 = vunpack.c.l.b16 %v1418
      %v1627 = vunpack.c.l.b16 %v1419
      %v1628 = vunpack.c.l.b16 %v1420
      %v1629 = vunpack.c.l.b16 %v1421
      %v1630 = vunpack.c.l.b16 %v1422
      %v1631 = vunpack.c.l.b16 %v1423
      %v1632 = vunpack.c.l.b16 %v1424
      %v1633 = vunpack.c.l.b16 %v1425
      %v1634 = vunpack.c.l.b16 %v1426
      %v1635 = vunpack.c.l.b16 %v1427
      %v1636 = vunpack.c.l.b16 %v1428
      %v1637 = vunpack.c.l.b16 %v1429
      %v1638 = vunpack.c.l.b16 %v1430
      %v1639 = vunpack.c.l.b16 %v1431
      %v1640 = vunpack.c.l.b16 %v1432
      %v1641 = vunpack.c.l.b16 %v1433
      %v1642 = vunpack.c.l.b16 %v1434
      %v1643 = vunpack.c.l.b16 %v1435
      %v1644 = vunpack.c.l.b16 %v1436
      %v1645 = vunpack.c.l.b16 %v1437
      %v1646 = vunpack.c.l.b16 %v1438
      %v1647 = vunpack.c.l.b16 %v1439
      %v1648 = vunpack.c.l.b16 %v1440
      %v1649 = vunpack.c.l.b16 %v1441
      %v1650 = vunpack.c.l.b16 %v1442
      %v1651 = vunpack.c.l.b16 %v1443
      %v1652 = vunpack.c.l.b16 %v1444
      %v1653 = vpack.c.b16 %v1590, %v1589
      %v1654 = vpack.c.b16 %v1592, %v1591
      %v1655 = vpack.c.b16 %v1594, %v1593
      %v1656 = vpack.c.b16 %v1596, %v1595
      %v1657 = vpack.c.b16 %v1598, %v1597
      %v1658 = vpack.c.b16 %v1600, %v1599
      %v1659 = vpack.c.b16 %v1602, %v1601
      %v1660 = vpack.c.b16 %v1604, %v1603
      %v1661 = vpack.c.b16 %v1606, %v1605
      %v1662 = vpack.c.b16 %v1608, %v1607
      %v1663 = vpack.c.b16 %v1610, %v1609
      %v1664 = vpack.c.b16 %v1612, %v1611
      %v1665 = vpack.c.b16 %v1614, %v1613
      %v1666 = vpack.c.b16 %v1616, %v1615
      %v1667 = vpack.c.b16 %v1618, %v1617
      %v1668 = vpack.c.b16 %v1620, %v1619
      %v1669 = vpack.c.b16 %v1622, %v1621
      %v1670 = vpack.c.b16 %v1624, %v1623
      %v1671 = vpack.c.b16 %v1626, %v1625
      %v1672 = vpack.c.b16 %v1628, %v1627
      %v1673 = vpack.c.b16 %v1630, %v1629
      %v1674 = vpack.c.b16 %v1632, %v1631
      %v1675 = vpack.c.b16 %v1634, %v1633
      %v1676 = vpack.c.b16 %v1636, %v1635
      %v1677 = vpack.c.b16 %v1638, %v1637
      %v1678 = vpack.c.b16 %v1640, %v1639
      %v1679 = vpack.c.b16 %v1642, %v1641
      %v1680 = vpack.c.b16 %v1644, %v1643
      %v1681 = vpack.c.b16 %v1646, %v1645
      %v1682 = vpack.c.b16 %v1648, %v1647
      %v1683 = vpack.c.b16 %v1650, %v1649
      %v1684 = vpack.c.b16 %v1652, %v1651
      %1717 = vmatprep.subr.bf16.mxu0 0
      %1718 = vmatpush1.bf16.msra.mxu0 %v1660
      %1719 = vmatprep.subr.bf16.mxu0 0
      %1720 = vmatpush1.bf16.msra.mxu0 %v1659
      %1721 = vmatprep.subr.bf16.mxu0 0
      %1722 = vmatpush1.bf16.msra.mxu0 %v1658
      %1723 = vmatprep.subr.bf16.mxu0 0
      %1724 = vmatpush1.bf16.msra.mxu0 %v1657
      %1725 = vmatprep.subr.bf16.mxu0 0
      %1726 = vmatpush1.bf16.msra.mxu0 %v1656
      %1727 = vmatprep.subr.bf16.mxu0 0
      %1728 = vmatpush1.bf16.msra.mxu0 %v1655
      %1729 = vmatprep.subr.bf16.mxu0 0
      %1730 = vmatpush1.bf16.msra.mxu0 %v1654
      %1731 = vmatprep.subr.bf16.mxu0 0
      %1732 = vmatpush1.bf16.msra.mxu0 %v1653
      %1733 = vmatprep.subr.bf16.mxu0 0
      %1734 = vmatpush2.bf16.msra.mxu0 %v1668
      %1735 = vmatprep.subr.bf16.mxu0 0
      %1736 = vmatpush2.bf16.msra.mxu0 %v1667
      %1737 = vmatprep.subr.bf16.mxu0 0
      %1738 = vmatpush2.bf16.msra.mxu0 %v1666
      %1739 = vmatprep.subr.bf16.mxu0 0
      %1740 = vmatpush2.bf16.msra.mxu0 %v1665
      %1741 = vmatprep.subr.bf16.mxu0 0
      %1742 = vmatpush2.bf16.msra.mxu0 %v1664
      %1743 = vmatprep.subr.bf16.mxu0 0
      %1744 = vmatpush2.bf16.msra.mxu0 %v1663
      %1745 = vmatprep.subr.bf16.mxu0 0
      %1746 = vmatpush2.bf16.msra.mxu0 %v1662
      %1747 = vmatprep.subr.bf16.mxu0 0
      %1748 = vmatpush2.bf16.msra.mxu0 %v1661
      %1749 = vmatprep.mubr.bf16.mxu0 %v1494
      %1750 = vmatmul.mubr.bf16.gmra.mxu0 %v1493
      %v1751 = vpop.f32.mrf.mxu0
      %v1752 = vadd.f32 %v386, %v1751
      %v1753 = vpop.f32.mrf.mxu0
      %v1754 = vpop.f32.mrf.mxu0
      %v1755 = vadd.f32 %v386, %v1754
      %v1756 = vpop.f32.mrf.mxu0
      %1757 = vmatprep.mubr.bf16.mxu0 %v1498
      %1758 = vmatmul.mubr.bf16.gmra.mxu0 %v1497
      %v1759 = vpop.f32.mrf.mxu0
      %v1760 = vadd.f32 %v386, %v1759
      %v1761 = vpop.f32.mrf.mxu0
      %v1762 = vpop.f32.mrf.mxu0
      %v1763 = vadd.f32 %v386, %v1762
      %v1764 = vpop.f32.mrf.mxu0
      %1765 = vmatprep.mubr.bf16.mxu0 %v1502
      %1766 = vmatmul.mubr.bf16.gmra.mxu0 %v1501
      %v1767 = vpop.f32.mrf.mxu0
      %v1768 = vadd.f32 %v386, %v1767
      %v1769 = vpop.f32.mrf.mxu0
      %v1770 = vpop.f32.mrf.mxu0
      %v1771 = vadd.f32 %v386, %v1770
      %v1772 = vpop.f32.mrf.mxu0
      %1773 = vmatprep.mubr.bf16.mxu0 %v1506
      %1774 = vmatmul.mubr.bf16.gmra.mxu0 %v1505
      %v1775 = vpop.f32.mrf.mxu0
      %v1776 = vadd.f32 %v386, %v1775
      %v1777 = vpop.f32.mrf.mxu0
      %v1778 = vpop.f32.mrf.mxu0
      %v1779 = vadd.f32 %v386, %v1778
      %v1780 = vpop.f32.mrf.mxu0
      %1781 = vdwg.mxu0
      %1782 = vmatprep.subr.bf16.mxu0 0
      %1783 = vmatpush1.bf16.msra.mxu0 %v1676
      %1784 = vmatprep.subr.bf16.mxu0 0
      %1785 = vmatpush1.bf16.msra.mxu0 %v1675
      %1786 = vmatprep.subr.bf16.mxu0 0
      %1787 = vmatpush1.bf16.msra.mxu0 %v1674
      %1788 = vmatprep.subr.bf16.mxu0 0
      %1789 = vmatpush1.bf16.msra.mxu0 %v1673
      %1790 = vmatprep.subr.bf16.mxu0 0
      %1791 = vmatpush1.bf16.msra.mxu0 %v1672
      %1792 = vmatprep.subr.bf16.mxu0 0
      %1793 = vmatpush1.bf16.msra.mxu0 %v1671
      %1794 = vmatprep.subr.bf16.mxu0 0
      %1795 = vmatpush1.bf16.msra.mxu0 %v1670
      %1796 = vmatprep.subr.bf16.mxu0 0
      %1797 = vmatpush1.bf16.msra.mxu0 %v1669
      %1798 = vmatprep.subr.bf16.mxu0 0
      %1799 = vmatpush2.bf16.msra.mxu0 %v1684
      %1800 = vmatprep.subr.bf16.mxu0 0
      %1801 = vmatpush2.bf16.msra.mxu0 %v1683
      %1802 = vmatprep.subr.bf16.mxu0 0
      %1803 = vmatpush2.bf16.msra.mxu0 %v1682
      %1804 = vmatprep.subr.bf16.mxu0 0
      %1805 = vmatpush2.bf16.msra.mxu0 %v1681
      %1806 = vmatprep.subr.bf16.mxu0 0
      %1807 = vmatpush2.bf16.msra.mxu0 %v1680
      %1808 = vmatprep.subr.bf16.mxu0 0
      %1809 = vmatpush2.bf16.msra.mxu0 %v1679
      %1810 = vmatprep.subr.bf16.mxu0 0
      %1811 = vmatpush2.bf16.msra.mxu0 %v1678
      %1812 = vmatprep.subr.bf16.mxu0 0
      %1813 = vmatpush2.bf16.msra.mxu0 %v1677
      %1814 = vmatprep.mubr.bf16.mxu0 %v1496
      %1815 = vmatmul.mubr.bf16.gmra.mxu0 %v1495
      %v1816 = vpop.f32.mrf.mxu0
      %v1817 = vadd.f32 %v1752, %v1816
      %v1818 = vpop.f32.mrf.mxu0
      %v1819 = vpop.f32.mrf.mxu0
      %v1820 = vadd.f32 %v1755, %v1819
      %v1821 = vpop.f32.mrf.mxu0
      %1822 = vmatprep.mubr.bf16.mxu0 %v1500
      %1823 = vmatmul.mubr.bf16.gmra.mxu0 %v1499
      %v1824 = vpop.f32.mrf.mxu0
      %v1825 = vadd.f32 %v1760, %v1824
      %v1826 = vpop.f32.mrf.mxu0
      %v1827 = vpop.f32.mrf.mxu0
      %v1828 = vadd.f32 %v1763, %v1827
      %v1829 = vpop.f32.mrf.mxu0
      %1830 = vmatprep.mubr.bf16.mxu0 %v1504
      %1831 = vmatmul.mubr.bf16.gmra.mxu0 %v1503
      %v1832 = vpop.f32.mrf.mxu0
      %v1833 = vadd.f32 %v1768, %v1832
      %v1834 = vpop.f32.mrf.mxu0
      %v1835 = vpop.f32.mrf.mxu0
      %v1836 = vadd.f32 %v1771, %v1835
      %v1837 = vpop.f32.mrf.mxu0
      %1838 = vmatprep.mubr.bf16.mxu0 %v1508
      %1839 = vmatmul.mubr.bf16.gmra.mxu0 %v1507
      %v1840 = vpop.f32.mrf.mxu0
      %v1841 = vadd.f32 %v1776, %v1840
      %v1842 = vpop.f32.mrf.mxu0
      %v1843 = vpop.f32.mrf.mxu0
      %v1844 = vadd.f32 %v1779, %v1843
      %v1845 = vpop.f32.mrf.mxu0
      %1846 = vdwg.mxu0
      %s1847 = scalar_lea.vmem %s286, 128
      %1848 = vst [vmem:[%s1847] sm:$0xff] %v1817
      %1849 = vst [vmem:[%s1847 + $0x8] sm:$0xff] %v1820
      %1850 = vst [vmem:[%s1847 + $0x10] sm:$0xff] %v1825
      %1851 = vst [vmem:[%s1847 + $0x18] sm:$0xff] %v1828
      %1852 = vst [vmem:[%s1847 + $0x20] sm:$0xff] %v1833
      %1853 = vst [vmem:[%s1847 + $0x28] sm:$0xff] %v1836
      %1854 = vst [vmem:[%s1847 + $0x30] sm:$0xff] %v1841
      %1855 = vst [vmem:[%s1847 + $0x38] sm:$0xff] %v1844
      %v1856 = vadd.f32 %v1817, %v1820
      %v1857 = vadd.f32 %v1856, %v1825
      %v1858 = vadd.f32 %v1857, %v1828
      %v1859 = vadd.f32 %v1858, %v1833
      %v1860 = vadd.f32 %v1859, %v1836
      %v1861 = vadd.f32 %v1860, %v1841
      %v1862 = vadd.f32 %v1861, %v1844
      %v1863 = vrot.slane %v1862, 4
      %v1864 = vadd.f32 %v1862, %v1863
      %v1865 = vrot.slane %v1864, 2
      %v1866 = vadd.f32 %v1864, %v1865
      %v1867 = vrot.slane %v1866, 1
      %v1868 = vadd.f32 %v1866, %v1867
      %v1869 = vadd.f32 %v1340, %v1868
      %v1870 = vmul.f32 %v1817, %v1817
      %v1871 = vmul.f32 %v1820, %v1820
      %v1872 = vmul.f32 %v1825, %v1825
      %v1873 = vmul.f32 %v1828, %v1828
      %v1874 = vmul.f32 %v1833, %v1833
      %v1875 = vmul.f32 %v1836, %v1836
      %v1876 = vmul.f32 %v1841, %v1841
      %v1877 = vmul.f32 %v1844, %v1844
      %v1878 = vadd.f32 %v1870, %v1871
      %v1879 = vadd.f32 %v1878, %v1872
      %v1880 = vadd.f32 %v1879, %v1873
      %v1881 = vadd.f32 %v1880, %v1874
      %v1882 = vadd.f32 %v1881, %v1875
      %v1883 = vadd.f32 %v1882, %v1876
      %v1884 = vadd.f32 %v1883, %v1877
      %v1885 = vrot.slane %v1884, 4
      %v1886 = vadd.f32 %v1884, %v1885
      %v1887 = vrot.slane %v1886, 2
      %v1888 = vadd.f32 %v1886, %v1887
      %v1889 = vrot.slane %v1888, 1
      %v1890 = vadd.f32 %v1888, %v1889
      %v1891 = vadd.f32 %v1362, %v1890
      %s1892 = scalar_lea.vmem %s276, 384
      %v1893 = vld [vmem:[%s1892] sm:$0xff]
      %v1894 = vld [vmem:[%s1892 + $0x8] sm:$0xff]
      %v1895 = vld [vmem:[%s1892 + $0x10] sm:$0xff]
      %v1896 = vld [vmem:[%s1892 + $0x18] sm:$0xff]
      %v1897 = vld [vmem:[%s1892 + $0x20] sm:$0xff]
      %v1898 = vld [vmem:[%s1892 + $0x28] sm:$0xff]
      %v1899 = vld [vmem:[%s1892 + $0x30] sm:$0xff]
      %v1900 = vld [vmem:[%s1892 + $0x38] sm:$0xff]
      %v1901 = vld [vmem:[%s1892 + $0x40] sm:$0xff]
      %v1902 = vld [vmem:[%s1892 + $0x48] sm:$0xff]
      %v1903 = vld [vmem:[%s1892 + $0x50] sm:$0xff]
      %v1904 = vld [vmem:[%s1892 + $0x58] sm:$0xff]
      %v1905 = vld [vmem:[%s1892 + $0x60] sm:$0xff]
      %v1906 = vld [vmem:[%s1892 + $0x68] sm:$0xff]
      %v1907 = vld [vmem:[%s1892 + $0x70] sm:$0xff]
      %v1908 = vld [vmem:[%s1892 + $0x78] sm:$0xff]
      %s1909 = scalar_lea.vmem %s1, 768
      %v1910 = vld [vmem:[%s1909] sm:$0xf]
      %v1911 = vld [vmem:[%s1909 + $0x4] sm:$0xf]
      %v1912 = vld [vmem:[%s1909 + $0x8] sm:$0xf]
      %v1913 = vld [vmem:[%s1909 + $0xc] sm:$0xf]
      %v1914 = vld [vmem:[%s1909 + $0x10] sm:$0xf]
      %v1915 = vld [vmem:[%s1909 + $0x14] sm:$0xf]
      %v1916 = vld [vmem:[%s1909 + $0x18] sm:$0xf]
      %v1917 = vld [vmem:[%s1909 + $0x1c] sm:$0xf]
      %v1918 = vld [vmem:[%s1909 + $0x20] sm:$0xf]
      %v1919 = vld [vmem:[%s1909 + $0x24] sm:$0xf]
      %v1920 = vld [vmem:[%s1909 + $0x28] sm:$0xf]
      %v1921 = vld [vmem:[%s1909 + $0x2c] sm:$0xf]
      %v1922 = vld [vmem:[%s1909 + $0x30] sm:$0xf]
      %v1923 = vld [vmem:[%s1909 + $0x34] sm:$0xf]
      %v1924 = vld [vmem:[%s1909 + $0x38] sm:$0xf]
      %v1925 = vld [vmem:[%s1909 + $0x3c] sm:$0xf]
      %v1926 = vld [vmem:[%s1909 + $0x40] sm:$0xf]
      %v1927 = vld [vmem:[%s1909 + $0x44] sm:$0xf]
      %v1928 = vld [vmem:[%s1909 + $0x48] sm:$0xf]
      %v1929 = vld [vmem:[%s1909 + $0x4c] sm:$0xf]
      %v1930 = vld [vmem:[%s1909 + $0x50] sm:$0xf]
      %v1931 = vld [vmem:[%s1909 + $0x54] sm:$0xf]
      %v1932 = vld [vmem:[%s1909 + $0x58] sm:$0xf]
      %v1933 = vld [vmem:[%s1909 + $0x5c] sm:$0xf]
      %v1934 = vld [vmem:[%s1909 + $0x60] sm:$0xf]
      %v1935 = vld [vmem:[%s1909 + $0x64] sm:$0xf]
      %v1936 = vld [vmem:[%s1909 + $0x68] sm:$0xf]
      %v1937 = vld [vmem:[%s1909 + $0x6c] sm:$0xf]
      %v1938 = vld [vmem:[%s1909 + $0x70] sm:$0xf]
      %v1939 = vld [vmem:[%s1909 + $0x74] sm:$0xf]
      %v1940 = vld [vmem:[%s1909 + $0x78] sm:$0xf]
      %v1941 = vld [vmem:[%s1909 + $0x7c] sm:$0xf]
      %v1942 = vld [vmem:[%s1909 + $0x80] sm:$0xf]
      %v1943 = vld [vmem:[%s1909 + $0x84] sm:$0xf]
      %v1944 = vld [vmem:[%s1909 + $0x88] sm:$0xf]
      %v1945 = vld [vmem:[%s1909 + $0x8c] sm:$0xf]
      %v1946 = vld [vmem:[%s1909 + $0x90] sm:$0xf]
      %v1947 = vld [vmem:[%s1909 + $0x94] sm:$0xf]
      %v1948 = vld [vmem:[%s1909 + $0x98] sm:$0xf]
      %v1949 = vld [vmem:[%s1909 + $0x9c] sm:$0xf]
      %v1950 = vld [vmem:[%s1909 + $0xa0] sm:$0xf]
      %v1951 = vld [vmem:[%s1909 + $0xa4] sm:$0xf]
      %v1952 = vld [vmem:[%s1909 + $0xa8] sm:$0xf]
      %v1953 = vld [vmem:[%s1909 + $0xac] sm:$0xf]
      %v1954 = vld [vmem:[%s1909 + $0xb0] sm:$0xf]
      %v1955 = vld [vmem:[%s1909 + $0xb4] sm:$0xf]
      %v1956 = vld [vmem:[%s1909 + $0xb8] sm:$0xf]
      %v1957 = vld [vmem:[%s1909 + $0xbc] sm:$0xf]
      %v1958 = vld [vmem:[%s1909 + $0xc0] sm:$0xf]
      %v1959 = vld [vmem:[%s1909 + $0xc4] sm:$0xf]
      %v1960 = vld [vmem:[%s1909 + $0xc8] sm:$0xf]
      %v1961 = vld [vmem:[%s1909 + $0xcc] sm:$0xf]
      %v1962 = vld [vmem:[%s1909 + $0xd0] sm:$0xf]
      %v1963 = vld [vmem:[%s1909 + $0xd4] sm:$0xf]
      %v1964 = vld [vmem:[%s1909 + $0xd8] sm:$0xf]
      %v1965 = vld [vmem:[%s1909 + $0xdc] sm:$0xf]
      %v1966 = vld [vmem:[%s1909 + $0xe0] sm:$0xf]
      %v1967 = vld [vmem:[%s1909 + $0xe4] sm:$0xf]
      %v1968 = vld [vmem:[%s1909 + $0xe8] sm:$0xf]
      %v1969 = vld [vmem:[%s1909 + $0xec] sm:$0xf]
      %v1970 = vld [vmem:[%s1909 + $0xf0] sm:$0xf]
      %v1971 = vld [vmem:[%s1909 + $0xf4] sm:$0xf]
      %v1972 = vld [vmem:[%s1909 + $0xf8] sm:$0xf]
      %v1973 = vld [vmem:[%s1909 + $0xfc] sm:$0xf]
      %v1990 = vunpack.c.l.b16 %v1893
      %v1991 = vunpack.c.h.b16 %v1893
      %v1992 = vunpack.c.l.b16 %v1894
      %v1993 = vunpack.c.h.b16 %v1894
      %v1994 = vunpack.c.l.b16 %v1895
      %v1995 = vunpack.c.h.b16 %v1895
      %v1996 = vunpack.c.l.b16 %v1896
      %v1997 = vunpack.c.h.b16 %v1896
      %v1998 = vunpack.c.l.b16 %v1897
      %v1999 = vunpack.c.h.b16 %v1897
      %v2000 = vunpack.c.l.b16 %v1898
      %v2001 = vunpack.c.h.b16 %v1898
      %v2002 = vunpack.c.l.b16 %v1899
      %v2003 = vunpack.c.h.b16 %v1899
      %v2004 = vunpack.c.l.b16 %v1900
      %v2005 = vunpack.c.h.b16 %v1900
      %v2006 = vunpack.c.l.b16 %v1901
      %v2007 = vunpack.c.h.b16 %v1901
      %v2008 = vunpack.c.l.b16 %v1902
      %v2009 = vunpack.c.h.b16 %v1902
      %v2010 = vunpack.c.l.b16 %v1903
      %v2011 = vunpack.c.h.b16 %v1903
      %v2012 = vunpack.c.l.b16 %v1904
      %v2013 = vunpack.c.h.b16 %v1904
      %v2014 = vunpack.c.l.b16 %v1905
      %v2015 = vunpack.c.h.b16 %v1905
      %v2016 = vunpack.c.l.b16 %v1906
      %v2017 = vunpack.c.h.b16 %v1906
      %v2018 = vunpack.c.l.b16 %v1907
      %v2019 = vunpack.c.h.b16 %v1907
      %v2020 = vunpack.c.l.b16 %v1908
      %v2021 = vunpack.c.h.b16 %v1908
      %v2022 = vpack.c.b16 %v1994, %v1990
      %v2023 = vpack.c.b16 %v1995, %v1991
      %v2024 = vpack.c.b16 %v1996, %v1992
      %v2025 = vpack.c.b16 %v1997, %v1993
      %v2026 = vpack.c.b16 %v2002, %v1998
      %v2027 = vpack.c.b16 %v2003, %v1999
      %v2028 = vpack.c.b16 %v2004, %v2000
      %v2029 = vpack.c.b16 %v2005, %v2001
      %v2030 = vpack.c.b16 %v2010, %v2006
      %v2031 = vpack.c.b16 %v2011, %v2007
      %v2032 = vpack.c.b16 %v2012, %v2008
      %v2033 = vpack.c.b16 %v2013, %v2009
      %v2034 = vpack.c.b16 %v2018, %v2014
      %v2035 = vpack.c.b16 %v2019, %v2015
      %v2036 = vpack.c.b16 %v2020, %v2016
      %v2037 = vpack.c.b16 %v2021, %v2017
      %v2118 = vunpack.c.l.b16 %v1910
      %v2119 = vunpack.c.l.b16 %v1911
      %v2120 = vunpack.c.l.b16 %v1912
      %v2121 = vunpack.c.l.b16 %v1913
      %v2122 = vunpack.c.l.b16 %v1914
      %v2123 = vunpack.c.l.b16 %v1915
      %v2124 = vunpack.c.l.b16 %v1916
      %v2125 = vunpack.c.l.b16 %v1917
      %v2126 = vunpack.c.l.b16 %v1918
      %v2127 = vunpack.c.l.b16 %v1919
      %v2128 = vunpack.c.l.b16 %v1920
      %v2129 = vunpack.c.l.b16 %v1921
      %v2130 = vunpack.c.l.b16 %v1922
      %v2131 = vunpack.c.l.b16 %v1923
      %v2132 = vunpack.c.l.b16 %v1924
      %v2133 = vunpack.c.l.b16 %v1925
      %v2134 = vunpack.c.l.b16 %v1926
      %v2135 = vunpack.c.l.b16 %v1927
      %v2136 = vunpack.c.l.b16 %v1928
      %v2137 = vunpack.c.l.b16 %v1929
      %v2138 = vunpack.c.l.b16 %v1930
      %v2139 = vunpack.c.l.b16 %v1931
      %v2140 = vunpack.c.l.b16 %v1932
      %v2141 = vunpack.c.l.b16 %v1933
      %v2142 = vunpack.c.l.b16 %v1934
      %v2143 = vunpack.c.l.b16 %v1935
      %v2144 = vunpack.c.l.b16 %v1936
      %v2145 = vunpack.c.l.b16 %v1937
      %v2146 = vunpack.c.l.b16 %v1938
      %v2147 = vunpack.c.l.b16 %v1939
      %v2148 = vunpack.c.l.b16 %v1940
      %v2149 = vunpack.c.l.b16 %v1941
      %v2150 = vunpack.c.l.b16 %v1942
      %v2151 = vunpack.c.l.b16 %v1943
      %v2152 = vunpack.c.l.b16 %v1944
      %v2153 = vunpack.c.l.b16 %v1945
      %v2154 = vunpack.c.l.b16 %v1946
      %v2155 = vunpack.c.l.b16 %v1947
      %v2156 = vunpack.c.l.b16 %v1948
      %v2157 = vunpack.c.l.b16 %v1949
      %v2158 = vunpack.c.l.b16 %v1950
      %v2159 = vunpack.c.l.b16 %v1951
      %v2160 = vunpack.c.l.b16 %v1952
      %v2161 = vunpack.c.l.b16 %v1953
      %v2162 = vunpack.c.l.b16 %v1954
      %v2163 = vunpack.c.l.b16 %v1955
      %v2164 = vunpack.c.l.b16 %v1956
      %v2165 = vunpack.c.l.b16 %v1957
      %v2166 = vunpack.c.l.b16 %v1958
      %v2167 = vunpack.c.l.b16 %v1959
      %v2168 = vunpack.c.l.b16 %v1960
      %v2169 = vunpack.c.l.b16 %v1961
      %v2170 = vunpack.c.l.b16 %v1962
      %v2171 = vunpack.c.l.b16 %v1963
      %v2172 = vunpack.c.l.b16 %v1964
      %v2173 = vunpack.c.l.b16 %v1965
      %v2174 = vunpack.c.l.b16 %v1966
      %v2175 = vunpack.c.l.b16 %v1967
      %v2176 = vunpack.c.l.b16 %v1968
      %v2177 = vunpack.c.l.b16 %v1969
      %v2178 = vunpack.c.l.b16 %v1970
      %v2179 = vunpack.c.l.b16 %v1971
      %v2180 = vunpack.c.l.b16 %v1972
      %v2181 = vunpack.c.l.b16 %v1973
      %v2182 = vpack.c.b16 %v2119, %v2118
      %v2183 = vpack.c.b16 %v2121, %v2120
      %v2184 = vpack.c.b16 %v2123, %v2122
      %v2185 = vpack.c.b16 %v2125, %v2124
      %v2186 = vpack.c.b16 %v2127, %v2126
      %v2187 = vpack.c.b16 %v2129, %v2128
      %v2188 = vpack.c.b16 %v2131, %v2130
      %v2189 = vpack.c.b16 %v2133, %v2132
      %v2190 = vpack.c.b16 %v2135, %v2134
      %v2191 = vpack.c.b16 %v2137, %v2136
      %v2192 = vpack.c.b16 %v2139, %v2138
      %v2193 = vpack.c.b16 %v2141, %v2140
      %v2194 = vpack.c.b16 %v2143, %v2142
      %v2195 = vpack.c.b16 %v2145, %v2144
      %v2196 = vpack.c.b16 %v2147, %v2146
      %v2197 = vpack.c.b16 %v2149, %v2148
      %v2198 = vpack.c.b16 %v2151, %v2150
      %v2199 = vpack.c.b16 %v2153, %v2152
      %v2200 = vpack.c.b16 %v2155, %v2154
      %v2201 = vpack.c.b16 %v2157, %v2156
      %v2202 = vpack.c.b16 %v2159, %v2158
      %v2203 = vpack.c.b16 %v2161, %v2160
      %v2204 = vpack.c.b16 %v2163, %v2162
      %v2205 = vpack.c.b16 %v2165, %v2164
      %v2206 = vpack.c.b16 %v2167, %v2166
      %v2207 = vpack.c.b16 %v2169, %v2168
      %v2208 = vpack.c.b16 %v2171, %v2170
      %v2209 = vpack.c.b16 %v2173, %v2172
      %v2210 = vpack.c.b16 %v2175, %v2174
      %v2211 = vpack.c.b16 %v2177, %v2176
      %v2212 = vpack.c.b16 %v2179, %v2178
      %v2213 = vpack.c.b16 %v2181, %v2180
      %2246 = vmatprep.subr.bf16.mxu0 0
      %2247 = vmatpush1.bf16.msra.mxu0 %v2189
      %2248 = vmatprep.subr.bf16.mxu0 0
      %2249 = vmatpush1.bf16.msra.mxu0 %v2188
      %2250 = vmatprep.subr.bf16.mxu0 0
      %2251 = vmatpush1.bf16.msra.mxu0 %v2187
      %2252 = vmatprep.subr.bf16.mxu0 0
      %2253 = vmatpush1.bf16.msra.mxu0 %v2186
      %2254 = vmatprep.subr.bf16.mxu0 0
      %2255 = vmatpush1.bf16.msra.mxu0 %v2185
      %2256 = vmatprep.subr.bf16.mxu0 0
      %2257 = vmatpush1.bf16.msra.mxu0 %v2184
      %2258 = vmatprep.subr.bf16.mxu0 0
      %2259 = vmatpush1.bf16.msra.mxu0 %v2183
      %2260 = vmatprep.subr.bf16.mxu0 0
      %2261 = vmatpush1.bf16.msra.mxu0 %v2182
      %2262 = vmatprep.subr.bf16.mxu0 0
      %2263 = vmatpush2.bf16.msra.mxu0 %v2197
      %2264 = vmatprep.subr.bf16.mxu0 0
      %2265 = vmatpush2.bf16.msra.mxu0 %v2196
      %2266 = vmatprep.subr.bf16.mxu0 0
      %2267 = vmatpush2.bf16.msra.mxu0 %v2195
      %2268 = vmatprep.subr.bf16.mxu0 0
      %2269 = vmatpush2.bf16.msra.mxu0 %v2194
      %2270 = vmatprep.subr.bf16.mxu0 0
      %2271 = vmatpush2.bf16.msra.mxu0 %v2193
      %2272 = vmatprep.subr.bf16.mxu0 0
      %2273 = vmatpush2.bf16.msra.mxu0 %v2192
      %2274 = vmatprep.subr.bf16.mxu0 0
      %2275 = vmatpush2.bf16.msra.mxu0 %v2191
      %2276 = vmatprep.subr.bf16.mxu0 0
      %2277 = vmatpush2.bf16.msra.mxu0 %v2190
      %2278 = vmatprep.mubr.bf16.mxu0 %v2023
      %2279 = vmatmul.mubr.bf16.gmra.mxu0 %v2022
      %v2280 = vpop.f32.mrf.mxu0
      %v2281 = vadd.f32 %v386, %v2280
      %v2282 = vpop.f32.mrf.mxu0
      %v2283 = vpop.f32.mrf.mxu0
      %v2284 = vadd.f32 %v386, %v2283
      %v2285 = vpop.f32.mrf.mxu0
      %2286 = vmatprep.mubr.bf16.mxu0 %v2027
      %2287 = vmatmul.mubr.bf16.gmra.mxu0 %v2026
      %v2288 = vpop.f32.mrf.mxu0
      %v2289 = vadd.f32 %v386, %v2288
      %v2290 = vpop.f32.mrf.mxu0
      %v2291 = vpop.f32.mrf.mxu0
      %v2292 = vadd.f32 %v386, %v2291
      %v2293 = vpop.f32.mrf.mxu0
      %2294 = vmatprep.mubr.bf16.mxu0 %v2031
      %2295 = vmatmul.mubr.bf16.gmra.mxu0 %v2030
      %v2296 = vpop.f32.mrf.mxu0
      %v2297 = vadd.f32 %v386, %v2296
      %v2298 = vpop.f32.mrf.mxu0
      %v2299 = vpop.f32.mrf.mxu0
      %v2300 = vadd.f32 %v386, %v2299
      %v2301 = vpop.f32.mrf.mxu0
      %2302 = vmatprep.mubr.bf16.mxu0 %v2035
      %2303 = vmatmul.mubr.bf16.gmra.mxu0 %v2034
      %v2304 = vpop.f32.mrf.mxu0
      %v2305 = vadd.f32 %v386, %v2304
      %v2306 = vpop.f32.mrf.mxu0
      %v2307 = vpop.f32.mrf.mxu0
      %v2308 = vadd.f32 %v386, %v2307
      %v2309 = vpop.f32.mrf.mxu0
      %2310 = vdwg.mxu0
      %2311 = vmatprep.subr.bf16.mxu0 0
      %2312 = vmatpush1.bf16.msra.mxu0 %v2205
      %2313 = vmatprep.subr.bf16.mxu0 0
      %2314 = vmatpush1.bf16.msra.mxu0 %v2204
      %2315 = vmatprep.subr.bf16.mxu0 0
      %2316 = vmatpush1.bf16.msra.mxu0 %v2203
      %2317 = vmatprep.subr.bf16.mxu0 0
      %2318 = vmatpush1.bf16.msra.mxu0 %v2202
      %2319 = vmatprep.subr.bf16.mxu0 0
      %2320 = vmatpush1.bf16.msra.mxu0 %v2201
      %2321 = vmatprep.subr.bf16.mxu0 0
      %2322 = vmatpush1.bf16.msra.mxu0 %v2200
      %2323 = vmatprep.subr.bf16.mxu0 0
      %2324 = vmatpush1.bf16.msra.mxu0 %v2199
      %2325 = vmatprep.subr.bf16.mxu0 0
      %2326 = vmatpush1.bf16.msra.mxu0 %v2198
      %2327 = vmatprep.subr.bf16.mxu0 0
      %2328 = vmatpush2.bf16.msra.mxu0 %v2213
      %2329 = vmatprep.subr.bf16.mxu0 0
      %2330 = vmatpush2.bf16.msra.mxu0 %v2212
      %2331 = vmatprep.subr.bf16.mxu0 0
      %2332 = vmatpush2.bf16.msra.mxu0 %v2211
      %2333 = vmatprep.subr.bf16.mxu0 0
      %2334 = vmatpush2.bf16.msra.mxu0 %v2210
      %2335 = vmatprep.subr.bf16.mxu0 0
      %2336 = vmatpush2.bf16.msra.mxu0 %v2209
      %2337 = vmatprep.subr.bf16.mxu0 0
      %2338 = vmatpush2.bf16.msra.mxu0 %v2208
      %2339 = vmatprep.subr.bf16.mxu0 0
      %2340 = vmatpush2.bf16.msra.mxu0 %v2207
      %2341 = vmatprep.subr.bf16.mxu0 0
      %2342 = vmatpush2.bf16.msra.mxu0 %v2206
      %2343 = vmatprep.mubr.bf16.mxu0 %v2025
      %2344 = vmatmul.mubr.bf16.gmra.mxu0 %v2024
      %v2345 = vpop.f32.mrf.mxu0
      %v2346 = vadd.f32 %v2281, %v2345
      %v2347 = vpop.f32.mrf.mxu0
      %v2348 = vpop.f32.mrf.mxu0
      %v2349 = vadd.f32 %v2284, %v2348
      %v2350 = vpop.f32.mrf.mxu0
      %2351 = vmatprep.mubr.bf16.mxu0 %v2029
      %2352 = vmatmul.mubr.bf16.gmra.mxu0 %v2028
      %v2353 = vpop.f32.mrf.mxu0
      %v2354 = vadd.f32 %v2289, %v2353
      %v2355 = vpop.f32.mrf.mxu0
      %v2356 = vpop.f32.mrf.mxu0
      %v2357 = vadd.f32 %v2292, %v2356
      %v2358 = vpop.f32.mrf.mxu0
      %2359 = vmatprep.mubr.bf16.mxu0 %v2033
      %2360 = vmatmul.mubr.bf16.gmra.mxu0 %v2032
      %v2361 = vpop.f32.mrf.mxu0
      %v2362 = vadd.f32 %v2297, %v2361
      %v2363 = vpop.f32.mrf.mxu0
      %v2364 = vpop.f32.mrf.mxu0
      %v2365 = vadd.f32 %v2300, %v2364
      %v2366 = vpop.f32.mrf.mxu0
      %2367 = vmatprep.mubr.bf16.mxu0 %v2037
      %2368 = vmatmul.mubr.bf16.gmra.mxu0 %v2036
      %v2369 = vpop.f32.mrf.mxu0
      %v2370 = vadd.f32 %v2305, %v2369
      %v2371 = vpop.f32.mrf.mxu0
      %v2372 = vpop.f32.mrf.mxu0
      %v2373 = vadd.f32 %v2308, %v2372
      %v2374 = vpop.f32.mrf.mxu0
      %2375 = vdwg.mxu0
      %s2376 = scalar_lea.vmem %s286, 192
      %2377 = vst [vmem:[%s2376] sm:$0xff] %v2346
      %2378 = vst [vmem:[%s2376 + $0x8] sm:$0xff] %v2349
      %2379 = vst [vmem:[%s2376 + $0x10] sm:$0xff] %v2354
      %2380 = vst [vmem:[%s2376 + $0x18] sm:$0xff] %v2357
      %2381 = vst [vmem:[%s2376 + $0x20] sm:$0xff] %v2362
      %2382 = vst [vmem:[%s2376 + $0x28] sm:$0xff] %v2365
      %2383 = vst [vmem:[%s2376 + $0x30] sm:$0xff] %v2370
      %2384 = vst [vmem:[%s2376 + $0x38] sm:$0xff] %v2373
      %v2385 = vadd.f32 %v2346, %v2349
      %v2386 = vadd.f32 %v2385, %v2354
      %v2387 = vadd.f32 %v2386, %v2357
      %v2388 = vadd.f32 %v2387, %v2362
      %v2389 = vadd.f32 %v2388, %v2365
      %v2390 = vadd.f32 %v2389, %v2370
      %v2391 = vadd.f32 %v2390, %v2373
      %v2392 = vrot.slane %v2391, 4
      %v2393 = vadd.f32 %v2391, %v2392
      %v2394 = vrot.slane %v2393, 2
      %v2395 = vadd.f32 %v2393, %v2394
      %v2396 = vrot.slane %v2395, 1
      %v2397 = vadd.f32 %v2395, %v2396
      %v2398 = vadd.f32 %v1869, %v2397
      %v2399 = vmul.f32 %v2346, %v2346
      %v2400 = vmul.f32 %v2349, %v2349
      %v2401 = vmul.f32 %v2354, %v2354
      %v2402 = vmul.f32 %v2357, %v2357
      %v2403 = vmul.f32 %v2362, %v2362
      %v2404 = vmul.f32 %v2365, %v2365
      %v2405 = vmul.f32 %v2370, %v2370
      %v2406 = vmul.f32 %v2373, %v2373
      %v2407 = vadd.f32 %v2399, %v2400
      %v2408 = vadd.f32 %v2407, %v2401
      %v2409 = vadd.f32 %v2408, %v2402
      %v2410 = vadd.f32 %v2409, %v2403
      %v2411 = vadd.f32 %v2410, %v2404
      %v2412 = vadd.f32 %v2411, %v2405
      %v2413 = vadd.f32 %v2412, %v2406
      %v2414 = vrot.slane %v2413, 4
      %v2415 = vadd.f32 %v2413, %v2414
      %v2416 = vrot.slane %v2415, 2
      %v2417 = vadd.f32 %v2415, %v2416
      %v2418 = vrot.slane %v2417, 1
      %v2419 = vadd.f32 %v2417, %v2418
      %v2420 = vadd.f32 %v1891, %v2419
      %2421 = vst [vmem:[%s293] sm:$0x1] %v2398
      %2422 = vst [vmem:[%s299] sm:$0x1] %v2420
      %s2423 = smul.u32 8, %s22
      %p2424 = scmp.lt.s32.totalorder %s21, 1
      %s2425 = scalar_select %p2424, %s21, 1
      %p2426 = scmp.lt.s32.totalorder %s2423, 7
      %s2427 = scalar_select %p2426, %s2423, 7
      %s2428 = smul.addr %s2425, 32
      %s2429 = sadd.s32 %s2427, %s2428
      %s2430 = smul.addr %s2429, 8
      %s2431 = scalar_lea.vmem %s3, %s2430
      %p2432 = scmp.lt.s32.totalorder %s21, 1
      %s2433 = scalar_select %p2432, %s21, 1
      %p2434 = scmp.lt.s32.totalorder %s22, 0
      %s2435 = scalar_select %p2434, %s22, 0
      %s2436 = sadd.s32 %s2435, %s2433
      %s2437 = scalar_lea.vmem %s4, %s2436
      %p2438 = scmp.lt.s32.totalorder %s21, 1
      %s2439 = scalar_select %p2438, %s21, 1
      %p2440 = scmp.lt.s32.totalorder %s22, 0
      %s2441 = scalar_select %p2440, %s22, 0
      %s2442 = sadd.s32 %s2441, %s2439
      %s2443 = scalar_lea.vmem %s5, %s2442
      // Predicated region
      $region33: #{generator_forward.9} parent=31 // pred_check
        %p2444 = pneg %p119
      $region34: #{generator_forward.9} parent=31 // pred_check_branch
        %2446 = sbr.rel (%p2444) target = $region36
      $region35: #{generator_forward.9} parent=31 // pred_region
        %s2447 = smul.u32 8, %s22
      $region36: #{generator_forward.9} parent=31 // pred_fallthru
        _
      // Predicated region
      $region37: #{generator_forward.9} parent=31 // pred_check
        %p2448 = pneg %p147
      $region38: #{generator_forward.9} parent=31 // pred_check_branch
        %2450 = sbr.rel (%p2448) target = $region40
      $region39: #{generator_forward.9} parent=31 // pred_region
        _
      $region40: #{generator_forward.9} parent=31 // pred_fallthru
        _
      // Predicated region
      $region41: #{generator_forward.9} parent=31 // pred_check
        %p2451 = pneg %p175
      $region42: #{generator_forward.9} parent=31 // pred_check_branch
        %2453 = sbr.rel (%p2451) target = $region44
      $region43: #{generator_forward.9} parent=31 // pred_region
        _
      $region44: #{generator_forward.9} parent=31 // pred_fallthru
        _
    $region32: #{generator_forward.9} parent=5 // pred_fallthru
      _
    %p2454 = scmp.le.s32.totalorder 2, %s12
    // Predicated region
    $region45: #{generator_forward.9} parent=5 // pred_check
      %p2455 = pneg %p2454
    $region46: #{generator_forward.9} parent=5 // pred_check_branch
      %2457 = sbr.rel (%p2455) target = $region48
    $region47: #{generator_forward.9} parent=5 // pred_region
      %s2458 = ssub.s32 %s12, 2
      // Predicated region
      $region49: #{generator_forward.9} parent=47 // pred_check
        %p2459 = pneg %p125
      $region50: #{generator_forward.9} parent=47 // pred_check_branch
        %2461 = sbr.rel (%p2459) target = $region52
      $region51: #{generator_forward.9} parent=47 // pred_region
        %s2462 = smul.u32 8, %s24
        %p2463 = scmp.lt.s32.totalorder %s23, 1
        %s2464 = scalar_select %p2463, %s23, 1
        %p2465 = scmp.lt.s32.totalorder %s2462, 7
        %s2466 = scalar_select %p2465, %s2462, 7
        %s2467 = smul.addr %s2464, 32
        %s2468 = sadd.s32 %s2466, %s2467
        %s2469 = smul.addr %s2468, 8
        %s2470 = scalar_lea.vmem %s3, %s2469
      $region52: #{generator_forward.9} parent=47 // pred_fallthru
        _
      // Predicated region
      $region53: #{generator_forward.9} parent=47 // pred_check
        %p2471 = pneg %p153
      $region54: #{generator_forward.9} parent=47 // pred_check_branch
        %2473 = sbr.rel (%p2471) target = $region56
      $region55: #{generator_forward.9} parent=47 // pred_region
        %p2474 = scmp.lt.s32.totalorder %s23, 1
        %s2475 = scalar_select %p2474, %s23, 1
        %p2476 = scmp.lt.s32.totalorder %s24, 0
        %s2477 = scalar_select %p2476, %s24, 0
        %s2478 = sadd.s32 %s2477, %s2475
        %s2479 = scalar_lea.vmem %s4, %s2478
      $region56: #{generator_forward.9} parent=47 // pred_fallthru
        _
      // Predicated region
      $region57: #{generator_forward.9} parent=47 // pred_check
        %p2480 = pneg %p181
      $region58: #{generator_forward.9} parent=47 // pred_check_branch
        %2482 = sbr.rel (%p2480) target = $region60
      $region59: #{generator_forward.9} parent=47 // pred_region
        %p2483 = scmp.lt.s32.totalorder %s23, 1
        %s2484 = scalar_select %p2483, %s23, 1
        %p2485 = scmp.lt.s32.totalorder %s24, 0
        %s2486 = scalar_select %p2485, %s24, 0
        %s2487 = sadd.s32 %s2486, %s2484
        %s2488 = scalar_lea.vmem %s5, %s2487
      $region60: #{generator_forward.9} parent=47 // pred_fallthru
        _
    $region48: #{generator_forward.9} parent=5 // pred_fallthru
      _
  $region6: #{generator_forward.9} parent=0 // loop_footer
    %s16 = sadd.s32 1, %s12
  $region7: #{generator_forward.9} parent=0 // loop_footer_branch
    %11 = sbr.rel target = $region3
  $region8: #{generator_forward.9} parent=0 // loop_exit
    _

// kernel: generator_forward.11
$region0: #{generator_forward.11}
  #allocation0 [shape = 'u32[]', space=smem, size = 0x4, offset = 0x4, fixed_abs, tag = 'smem constant byte address 0x4 - core index']
  #allocation1 [shape = 'u32[144,128]{1,0:T(1,128)}', space=vmem, size = 0x12000, scoped, tag = 'internal scratch']
  %s0 = inlined_call_operand.vmem [shape: bf16[2,256,1152], index: 0, kind: input, shape index: {}]
  %s1 = inlined_call_operand.vmem [shape: bf16[1152,128], index: 1, kind: input, shape index: {}]
  %s2 = inlined_call_operand.vmem [shape: f32[1,128], index: 2, kind: input, shape index: {}]
  %s3 = inlined_call_operand.vmem [shape: f32[2,256,128], index: 3, kind: output, shape index: {}]
  %s4 = sld [smem:[#allocation0]]
  $region45: #{generator_forward.11} parent=0
    _
  %s6 = ssub.s32 1, %s4
  %s7 = scalar_select 0, %s6, %s4
  loop: start=0, step=1, limit=4
  $region2: #{generator_forward.11} parent=0 // loop_pre_header
    _
  $region3: #{generator_forward.11} parent=0 // loop_header
    %s9 = sphi 0, %s13
    %p10 = scmp.ge.s32.totalorder %s9, 4
    %s16 = sphi 0, %s28
    %s17 = sphi 0, %s24
    %s18 = sphi 0, %s16
    %s19 = sphi 0, %s17
    %s20 = sphi 0, %s18
    %s21 = sphi 0, %s19
    %s33 = sphi 0, %s35
    %s36 = sphi 0, %s33
    %s37 = sphi 0, %s36
    %s53 = sphi 0, %s37
    %s57 = sphi 0, %s57
    %s59 = sphi 0, %s57
    %s60 = sphi 0, %s59
    %s74 = sphi 0, %s60
    %s78 = sphi 0, %s78
    %s80 = sphi 0, %s78
    %s81 = sphi 0, %s80
    %s95 = sphi 0, %s81
    %s103 = sphi 0, %s105
    %s106 = sphi 0, %s103
    %s107 = sphi 0, %s106
    %s123 = sphi 0, %s107
  $region4: #{generator_forward.11} parent=0 // loop_header_branch
    %12 = sbr.rel (%p10) target = $region8
  $region5: #{generator_forward.11} parent=0 // loop_body
    %s14 = ssub.s32 %s9, 1
    %s15 = ssub.s32 %s9, 2
    %s22 = sadd.s32 1, %s17
    %p23 = scmp.ge.s32.totalorder %s22, 1
    %s24 = scalar_select %p23, 0, %s22
    %s25 = sadd.s32 1, %s16
    %s26 = scalar_select %p23, %s25, %s16
    %p27 = scmp.ge.s32.totalorder %s26, 2
    %s28 = scalar_select %p27, 0, %s26
    %s29 = ssub.s32 %s16, %s28
    %s30 = ssub.s32 %s17, %s24
    %s31 = sor.u32 %s29, %s30
    %p32 = scmp.eq.s32.totalorder %s31, 0
    %s34 = sadd.s32 %s33, 1
    %s35 = scalar_select %p32, %s33, %s34
    %p38 = pneg %p32
    %p39 = scmp.eq.s32.totalorder %s9, 1
    %p40 = por %p38, %p39
    %p41 = scmp.ne.s32.totalorder %s33, %s36
    %p42 = scmp.eq.s32.totalorder %s9, 0
    %p43 = por %p41, %p42
    %p44 = scmp.ne.s32.totalorder %s33, %s36
    %p45 = scmp.eq.s32.totalorder %s14, 1
    %p46 = por %p44, %p45
    %p47 = scmp.ne.s32.totalorder %s36, %s37
    %p48 = scmp.eq.s32.totalorder %s14, 0
    %p49 = por %p47, %p48
    %p50 = scmp.ne.s32.totalorder %s36, %s37
    %p51 = scmp.eq.s32.totalorder %s15, 1
    %p52 = por %p50, %p51
    %p54 = scmp.ne.s32.totalorder %s37, %s53
    %p55 = scmp.eq.s32.totalorder %s15, 0
    %p56 = por %p54, %p55
    %s58 = sadd.s32 %s57, 1
    %p61 = scmp.eq.s32.totalorder %s9, 1
    %p62 = scmp.ne.s32.totalorder %s57, %s59
    %p63 = scmp.eq.s32.totalorder %s9, 0
    %p64 = por %p62, %p63
    %p65 = scmp.ne.s32.totalorder %s57, %s59
    %p66 = scmp.eq.s32.totalorder %s14, 1
    %p67 = por %p65, %p66
    %p68 = scmp.ne.s32.totalorder %s59, %s60
    %p69 = scmp.eq.s32.totalorder %s14, 0
    %p70 = por %p68, %p69
    %p71 = scmp.ne.s32.totalorder %s59, %s60
    %p72 = scmp.eq.s32.totalorder %s15, 1
    %p73 = por %p71, %p72
    %p75 = scmp.ne.s32.totalorder %s60, %s74
    %p76 = scmp.eq.s32.totalorder %s15, 0
    %p77 = por %p75, %p76
    %s79 = sadd.s32 %s78, 1
    %p82 = scmp.eq.s32.totalorder %s9, 1
    %p83 = scmp.ne.s32.totalorder %s78, %s80
    %p84 = scmp.eq.s32.totalorder %s9, 0
    %p85 = por %p83, %p84
    %p86 = scmp.ne.s32.totalorder %s78, %s80
    %p87 = scmp.eq.s32.totalorder %s14, 1
    %p88 = por %p86, %p87
    %p89 = scmp.ne.s32.totalorder %s80, %s81
    %p90 = scmp.eq.s32.totalorder %s14, 0
    %p91 = por %p89, %p90
    %p92 = scmp.ne.s32.totalorder %s80, %s81
    %p93 = scmp.eq.s32.totalorder %s15, 1
    %p94 = por %p92, %p93
    %p96 = scmp.ne.s32.totalorder %s81, %s95
    %p97 = scmp.eq.s32.totalorder %s15, 0
    %p98 = por %p96, %p97
    %s99 = ssub.s32 %s16, %s28
    %s100 = ssub.s32 %s17, %s24
    %s101 = sor.u32 %s99, %s100
    %p102 = scmp.eq.s32.totalorder %s101, 0
    %s104 = sadd.s32 %s103, 1
    %s105 = scalar_select %p102, %s103, %s104
    %p108 = pneg %p102
    %p109 = scmp.eq.s32.totalorder %s9, 1
    %p110 = por %p108, %p109
    %p111 = scmp.ne.s32.totalorder %s103, %s106
    %p112 = scmp.eq.s32.totalorder %s9, 0
    %p113 = por %p111, %p112
    %p114 = scmp.ne.s32.totalorder %s103, %s106
    %p115 = scmp.eq.s32.totalorder %s14, 1
    %p116 = por %p114, %p115
    %p117 = scmp.ne.s32.totalorder %s106, %s107
    %p118 = scmp.eq.s32.totalorder %s14, 0
    %p119 = por %p117, %p118
    %p120 = scmp.ne.s32.totalorder %s106, %s107
    %p121 = scmp.eq.s32.totalorder %s15, 1
    %p122 = por %p120, %p121
    %p124 = scmp.ne.s32.totalorder %s107, %s123
    %p125 = scmp.eq.s32.totalorder %s15, 0
    %p126 = por %p124, %p125
    %p127 = scmp.le.s32.totalorder 1, %s9
    %p128 = scmp.lt.s32.totalorder %s9, 3
    %p129 = pnand %p127, %p128
    %p130 = pneg %p129
    // Predicated region
    $region9: #{generator_forward.11} parent=5 // pred_check
      _
    $region10: #{generator_forward.11} parent=5 // pred_check_branch
      %132 = sbr.rel (%p129) target = $region12
    $region11: #{generator_forward.11} parent=5 // pred_region
      %s133 = ssub.s32 %s9, 1
      // Predicated region
      $region13: #{generator_forward.11} parent=11 // pred_check
        %p134 = pneg %p70
      $region14: #{generator_forward.11} parent=11 // pred_check_branch
        %136 = sbr.rel (%p134) target = $region16
      $region15: #{generator_forward.11} parent=11 // pred_region
        _
      $region16: #{generator_forward.11} parent=11 // pred_fallthru
        _
      // Predicated region
      $region17: #{generator_forward.11} parent=11 // pred_check
        %p137 = pneg %p91
      $region18: #{generator_forward.11} parent=11 // pred_check_branch
        %139 = sbr.rel (%p137) target = $region20
      $region19: #{generator_forward.11} parent=11 // pred_region
        _
      $region20: #{generator_forward.11} parent=11 // pred_fallthru
        _
    $region12: #{generator_forward.11} parent=5 // pred_fallthru
      _
    %p140 = scmp.lt.s32.totalorder %s9, 2
    // Predicated region
    $region21: #{generator_forward.11} parent=5 // pred_check
      %p141 = pneg %p140
    $region22: #{generator_forward.11} parent=5 // pred_check_branch
      %143 = sbr.rel (%p141) target = $region24
    $region23: #{generator_forward.11} parent=5 // pred_region
      // Predicated region
      $region25: #{generator_forward.11} parent=23 // pred_check
        %p144 = pneg %p43
      $region26: #{generator_forward.11} parent=23 // pred_check_branch
        %146 = sbr.rel (%p144) target = $region28
      $region27: #{generator_forward.11} parent=23 // pred_region
        %s147 = smul.u32 32, %s17
        %p148 = scmp.lt.s32.totalorder %s16, 1
        %s149 = scalar_select %p148, %s16, 1
        %p150 = scmp.lt.s32.totalorder %s147, 31
        %s151 = scalar_select %p150, %s147, 31
        %s152 = smul.addr %s151, 9
        %s153 = smul.addr %s149, 288
        %s154 = sadd.s32 %s152, %s153
        %s155 = smul.addr %s154, 4
        %s156 = scalar_lea.vmem %s0, %s155
        %s157 = smul.u32 32, %s17
      $region28: #{generator_forward.11} parent=23 // pred_fallthru
        _
    $region24: #{generator_forward.11} parent=5 // pred_fallthru
      _
    %p158 = scmp.le.s32.totalorder 1, %s9
    %p159 = scmp.lt.s32.totalorder %s9, 3
    %p160 = pnand %p158, %p159
    %p161 = pneg %p160
    // Predicated region
    $region29: #{generator_forward.11} parent=5 // pred_check
      _
    $region30: #{generator_forward.11} parent=5 // pred_check_branch
      %163 = sbr.rel (%p160) target = $region32
    $region31: #{generator_forward.11} parent=5 // pred_region
      %s164 = ssub.s32 %s9, 1
      %s165 = smul.u32 32, %s19
      %p166 = scmp.lt.s32.totalorder %s18, 1
      %s167 = scalar_select %p166, %s18, 1
      %p168 = scmp.lt.s32.totalorder %s165, 31
      %s169 = scalar_select %p168, %s165, 31
      %s170 = smul.addr %s169, 9
      %s171 = smul.addr %s167, 288
      %s172 = sadd.s32 %s170, %s171
      %s173 = smul.addr %s172, 4
      %s174 = scalar_lea.vmem %s0, %s173
      %p175 = pneg %p49
      %p176 = pneg %p46
      %p177 = pneg %p70
      %p178 = pneg %p67
      %p179 = pneg %p91
      %p180 = pneg %p88
      %p181 = pneg %p119
      %p182 = pneg %p116
      %s183 = smul.u32 32, %s19
      %p184 = scmp.lt.s32.totalorder %s18, 1
      %s185 = scalar_select %p184, %s18, 1
      %p186 = scmp.lt.s32.totalorder %s183, 31
      %s187 = scalar_select %p186, %s183, 31
      %s188 = smul.addr %s185, 32
      %s189 = sadd.s32 %s187, %s188
      %s190 = smul.addr %s189, 8
      %s191 = scalar_lea.vmem %s3, %s190
      %s192 = smul.u32 32, %s19
      %p193 = scmp.lt.s32.totalorder %s18, 1
      %s194 = scalar_select %p193, %s18, 1
      %p195 = scmp.lt.s32.totalorder %s192, 31
      %s196 = scalar_select %p195, %s192, 31
      %s197 = smul.addr %s196, 9
      %s198 = smul.addr %s194, 288
      %s199 = sadd.s32 %s197, %s198
      %s200 = smul.addr %s199, 4
      %s201 = scalar_lea.vmem %s0, %s200
      %s202 = smul.u32 32, %s19
      %s203 = smul.u32 32, %s19
      %p204 = scmp.lt.s32.totalorder %s18, 1
      %s205 = scalar_select %p204, %s18, 1
      %p206 = scmp.lt.s32.totalorder %s203, 31
      %s207 = scalar_select %p206, %s203, 31
      %s208 = smul.addr %s205, 32
      %s209 = sadd.s32 %s207, %s208
      %s210 = smul.addr %s209, 8
      %s211 = scalar_lea.vmem %s3, %s210
      %s212 = smul.u32 32, %s19
      %v214 = vld [vmem:[%s201] sm:$0xff]
      %v215 = vld [vmem:[%s201 + $0x8] sm:$0xff]
      %v216 = vld [vmem:[%s201 + $0x10] sm:$0xff]
      %v217 = vld [vmem:[%s201 + $0x18] sm:$0xff]
      %v218 = vld [vmem:[%s201 + $0x20] sm:$0xf]
      %v219 = vld [vmem:[%s201 + $0x24] sm:$0xff]
      %v220 = vld [vmem:[%s201 + $0x2c] sm:$0xff]
      %v221 = vld [vmem:[%s201 + $0x34] sm:$0xff]
      %v222 = vld [vmem:[%s201 + $0x3c] sm:$0xff]
      %v223 = vld [vmem:[%s201 + $0x44] sm:$0xf]
      %v224 = vld [vmem:[%s201 + $0x48] sm:$0xff]
      %v225 = vld [vmem:[%s201 + $0x50] sm:$0xff]
      %v226 = vld [vmem:[%s201 + $0x58] sm:$0xff]
      %v227 = vld [vmem:[%s201 + $0x60] sm:$0xff]
      %v228 = vld [vmem:[%s201 + $0x68] sm:$0xf]
      %v229 = vld [vmem:[%s201 + $0x6c] sm:$0xff]
      %v230 = vld [vmem:[%s201 + $0x74] sm:$0xff]
      %v231 = vld [vmem:[%s201 + $0x7c] sm:$0xff]
      %v232 = vld [vmem:[%s201 + $0x84] sm:$0xff]
      %v233 = vld [vmem:[%s201 + $0x8c] sm:$0xf]
      %v234 = vld [vmem:[%s201 + $0x90] sm:$0xff]
      %v235 = vld [vmem:[%s201 + $0x98] sm:$0xff]
      %v236 = vld [vmem:[%s201 + $0xa0] sm:$0xff]
      %v237 = vld [vmem:[%s201 + $0xa8] sm:$0xff]
      %v238 = vld [vmem:[%s201 + $0xb0] sm:$0xf]
      %v239 = vld [vmem:[%s201 + $0xb4] sm:$0xff]
      %v240 = vld [vmem:[%s201 + $0xbc] sm:$0xff]
      %v241 = vld [vmem:[%s201 + $0xc4] sm:$0xff]
      %v242 = vld [vmem:[%s201 + $0xcc] sm:$0xff]
      %v243 = vld [vmem:[%s201 + $0xd4] sm:$0xf]
      %v244 = vld [vmem:[%s201 + $0xd8] sm:$0xff]
      %v245 = vld [vmem:[%s201 + $0xe0] sm:$0xff]
      %v246 = vld [vmem:[%s201 + $0xe8] sm:$0xff]
      %v247 = vld [vmem:[%s201 + $0xf0] sm:$0xff]
      %v248 = vld [vmem:[%s201 + $0xf8] sm:$0xf]
      %v249 = vld [vmem:[%s201 + $0xfc] sm:$0xff]
      %v250 = vld [vmem:[%s201 + $0x104] sm:$0xff]
      %v251 = vld [vmem:[%s201 + $0x10c] sm:$0xff]
      %v252 = vld [vmem:[%s201 + $0x114] sm:$0xff]
      %v253 = vld [vmem:[%s201 + $0x11c] sm:$0xf]
      %v254 = vld [vmem:[%s201 + $0x120] sm:$0xff]
      %v255 = vld [vmem:[%s201 + $0x128] sm:$0xff]
      %v256 = vld [vmem:[%s201 + $0x130] sm:$0xff]
      %v257 = vld [vmem:[%s201 + $0x138] sm:$0xff]
      %v258 = vld [vmem:[%s201 + $0x140] sm:$0xf]
      %v259 = vld [vmem:[%s201 + $0x144] sm:$0xff]
      %v260 = vld [vmem:[%s201 + $0x14c] sm:$0xff]
      %v261 = vld [vmem:[%s201 + $0x154] sm:$0xff]
      %v262 = vld [vmem:[%s201 + $0x15c] sm:$0xff]
      %v263 = vld [vmem:[%s201 + $0x164] sm:$0xf]
      %v264 = vld [vmem:[%s201 + $0x168] sm:$0xff]
      %v265 = vld [vmem:[%s201 + $0x170] sm:$0xff]
      %v266 = vld [vmem:[%s201 + $0x178] sm:$0xff]
      %v267 = vld [vmem:[%s201 + $0x180] sm:$0xff]
      %v268 = vld [vmem:[%s201 + $0x188] sm:$0xf]
      %v269 = vld [vmem:[%s201 + $0x18c] sm:$0xff]
      %v270 = vld [vmem:[%s201 + $0x194] sm:$0xff]
      %v271 = vld [vmem:[%s201 + $0x19c] sm:$0xff]
      %v272 = vld [vmem:[%s201 + $0x1a4] sm:$0xff]
      %v273 = vld [vmem:[%s201 + $0x1ac] sm:$0xf]
      %v274 = vld [vmem:[%s201 + $0x1b0] sm:$0xff]
      %v275 = vld [vmem:[%s201 + $0x1b8] sm:$0xff]
      %v276 = vld [vmem:[%s201 + $0x1c0] sm:$0xff]
      %v277 = vld [vmem:[%s201 + $0x1c8] sm:$0xff]
      %v278 = vld [vmem:[%s201 + $0x1d0] sm:$0xf]
      %v279 = vld [vmem:[%s201 + $0x1d4] sm:$0xff]
      %v280 = vld [vmem:[%s201 + $0x1dc] sm:$0xff]
      %v281 = vld [vmem:[%s201 + $0x1e4] sm:$0xff]
      %v282 = vld [vmem:[%s201 + $0x1ec] sm:$0xff]
      %v283 = vld [vmem:[%s201 + $0x1f4] sm:$0xf]
      %v284 = vld [vmem:[%s201 + $0x1f8] sm:$0xff]
      %v285 = vld [vmem:[%s201 + $0x200] sm:$0xff]
      %v286 = vld [vmem:[%s201 + $0x208] sm:$0xff]
      %v287 = vld [vmem:[%s201 + $0x210] sm:$0xff]
      %v288 = vld [vmem:[%s201 + $0x218] sm:$0xf]
      %v289 = vld [vmem:[%s201 + $0x21c] sm:$0xff]
      %v290 = vld [vmem:[%s201 + $0x224] sm:$0xff]
      %v291 = vld [vmem:[%s201 + $0x22c] sm:$0xff]
      %v292 = vld [vmem:[%s201 + $0x234] sm:$0xff]
      %v293 = vld [vmem:[%s201 + $0x23c] sm:$0xf]
      %v294 = vld [vmem:[%s201 + $0x240] sm:$0xff]
      %v295 = vld [vmem:[%s201 + $0x248] sm:$0xff]
      %v296 = vld [vmem:[%s201 + $0x250] sm:$0xff]
      %v297 = vld [vmem:[%s201 + $0x258] sm:$0xff]
      %v298 = vld [vmem:[%s201 + $0x260] sm:$0xf]
      %v299 = vld [vmem:[%s201 + $0x264] sm:$0xff]
      %v300 = vld [vmem:[%s201 + $0x26c] sm:$0xff]
      %v301 = vld [vmem:[%s201 + $0x274] sm:$0xff]
      %v302 = vld [vmem:[%s201 + $0x27c] sm:$0xff]
      %v303 = vld [vmem:[%s201 + $0x284] sm:$0xf]
      %v304 = vld [vmem:[%s201 + $0x288] sm:$0xff]
      %v305 = vld [vmem:[%s201 + $0x290] sm:$0xff]
      %v306 = vld [vmem:[%s201 + $0x298] sm:$0xff]
      %v307 = vld [vmem:[%s201 + $0x2a0] sm:$0xff]
      %v308 = vld [vmem:[%s201 + $0x2a8] sm:$0xf]
      %v309 = vld [vmem:[%s201 + $0x2ac] sm:$0xff]
      %v310 = vld [vmem:[%s201 + $0x2b4] sm:$0xff]
      %v311 = vld [vmem:[%s201 + $0x2bc] sm:$0xff]
      %v312 = vld [vmem:[%s201 + $0x2c4] sm:$0xff]
      %v313 = vld [vmem:[%s201 + $0x2cc] sm:$0xf]
      %v314 = vld [vmem:[%s201 + $0x2d0] sm:$0xff]
      %v315 = vld [vmem:[%s201 + $0x2d8] sm:$0xff]
      %v316 = vld [vmem:[%s201 + $0x2e0] sm:$0xff]
      %v317 = vld [vmem:[%s201 + $0x2e8] sm:$0xff]
      %v318 = vld [vmem:[%s201 + $0x2f0] sm:$0xf]
      %v319 = vld [vmem:[%s201 + $0x2f4] sm:$0xff]
      %v320 = vld [vmem:[%s201 + $0x2fc] sm:$0xff]
      %v321 = vld [vmem:[%s201 + $0x304] sm:$0xff]
      %v322 = vld [vmem:[%s201 + $0x30c] sm:$0xff]
      %v323 = vld [vmem:[%s201 + $0x314] sm:$0xf]
      %v324 = vld [vmem:[%s201 + $0x318] sm:$0xff]
      %v325 = vld [vmem:[%s201 + $0x320] sm:$0xff]
      %v326 = vld [vmem:[%s201 + $0x328] sm:$0xff]
      %v327 = vld [vmem:[%s201 + $0x330] sm:$0xff]
      %v328 = vld [vmem:[%s201 + $0x338] sm:$0xf]
      %v329 = vld [vmem:[%s201 + $0x33c] sm:$0xff]
      %v330 = vld [vmem:[%s201 + $0x344] sm:$0xff]
      %v331 = vld [vmem:[%s201 + $0x34c] sm:$0xff]
      %v332 = vld [vmem:[%s201 + $0x354] sm:$0xff]
      %v333 = vld [vmem:[%s201 + $0x35c] sm:$0xf]
      %v334 = vld [vmem:[%s201 + $0x360] sm:$0xff]
      %v335 = vld [vmem:[%s201 + $0x368] sm:$0xff]
      %v336 = vld [vmem:[%s201 + $0x370] sm:$0xff]
      %v337 = vld [vmem:[%s201 + $0x378] sm:$0xff]
      %v338 = vld [vmem:[%s201 + $0x380] sm:$0xf]
      %v339 = vld [vmem:[%s201 + $0x384] sm:$0xff]
      %v340 = vld [vmem:[%s201 + $0x38c] sm:$0xff]
      %v341 = vld [vmem:[%s201 + $0x394] sm:$0xff]
      %v342 = vld [vmem:[%s201 + $0x39c] sm:$0xff]
      %v343 = vld [vmem:[%s201 + $0x3a4] sm:$0xf]
      %v344 = vld [vmem:[%s201 + $0x3a8] sm:$0xff]
      %v345 = vld [vmem:[%s201 + $0x3b0] sm:$0xff]
      %v346 = vld [vmem:[%s201 + $0x3b8] sm:$0xff]
      %v347 = vld [vmem:[%s201 + $0x3c0] sm:$0xff]
      %v348 = vld [vmem:[%s201 + $0x3c8] sm:$0xf]
      %v349 = vld [vmem:[%s201 + $0x3cc] sm:$0xff]
      %v350 = vld [vmem:[%s201 + $0x3d4] sm:$0xff]
      %v351 = vld [vmem:[%s201 + $0x3dc] sm:$0xff]
      %v352 = vld [vmem:[%s201 + $0x3e4] sm:$0xff]
      %v353 = vld [vmem:[%s201 + $0x3ec] sm:$0xf]
      %v354 = vld [vmem:[%s201 + $0x3f0] sm:$0xff]
      %v355 = vld [vmem:[%s201 + $0x3f8] sm:$0xff]
      %v356 = vld [vmem:[%s201 + $0x400] sm:$0xff]
      %v357 = vld [vmem:[%s201 + $0x408] sm:$0xff]
      %v358 = vld [vmem:[%s201 + $0x410] sm:$0xf]
      %v359 = vld [vmem:[%s201 + $0x414] sm:$0xff]
      %v360 = vld [vmem:[%s201 + $0x41c] sm:$0xff]
      %v361 = vld [vmem:[%s201 + $0x424] sm:$0xff]
      %v362 = vld [vmem:[%s201 + $0x42c] sm:$0xff]
      %v363 = vld [vmem:[%s201 + $0x434] sm:$0xf]
      %v364 = vld [vmem:[%s201 + $0x438] sm:$0xff]
      %v365 = vld [vmem:[%s201 + $0x440] sm:$0xff]
      %v366 = vld [vmem:[%s201 + $0x448] sm:$0xff]
      %v367 = vld [vmem:[%s201 + $0x450] sm:$0xff]
      %v368 = vld [vmem:[%s201 + $0x458] sm:$0xf]
      %v369 = vld [vmem:[%s201 + $0x45c] sm:$0xff]
      %v370 = vld [vmem:[%s201 + $0x464] sm:$0xff]
      %v371 = vld [vmem:[%s201 + $0x46c] sm:$0xff]
      %v372 = vld [vmem:[%s201 + $0x474] sm:$0xff]
      %v373 = vld [vmem:[%s201 + $0x47c] sm:$0xf]
      %v374 = vld [vmem:[%s1] sm:$0xf]
      %v375 = vld [vmem:[%s1 + $0x4] sm:$0xf]
      %v376 = vld [vmem:[%s1 + $0x8] sm:$0xf]
      %v377 = vld [vmem:[%s1 + $0xc] sm:$0xf]
      %v378 = vld [vmem:[%s1 + $0x10] sm:$0xf]
      %v379 = vld [vmem:[%s1 + $0x14] sm:$0xf]
      %v380 = vld [vmem:[%s1 + $0x18] sm:$0xf]
      %v381 = vld [vmem:[%s1 + $0x1c] sm:$0xf]
      %v382 = vld [vmem:[%s1 + $0x20] sm:$0xf]
      %v383 = vld [vmem:[%s1 + $0x24] sm:$0xf]
      %v384 = vld [vmem:[%s1 + $0x28] sm:$0xf]
      %v385 = vld [vmem:[%s1 + $0x2c] sm:$0xf]
      %v386 = vld [vmem:[%s1 + $0x30] sm:$0xf]
      %v387 = vld [vmem:[%s1 + $0x34] sm:$0xf]
      %v388 = vld [vmem:[%s1 + $0x38] sm:$0xf]
      %v389 = vld [vmem:[%s1 + $0x3c] sm:$0xf]
      %v390 = vld [vmem:[%s1 + $0x40] sm:$0xf]
      %v391 = vld [vmem:[%s1 + $0x44] sm:$0xf]
      %v392 = vld [vmem:[%s1 + $0x48] sm:$0xf]
      %v393 = vld [vmem:[%s1 + $0x4c] sm:$0xf]
      %v394 = vld [vmem:[%s1 + $0x50] sm:$0xf]
      %v395 = vld [vmem:[%s1 + $0x54] sm:$0xf]
      %v396 = vld [vmem:[%s1 + $0x58] sm:$0xf]
      %v397 = vld [vmem:[%s1 + $0x5c] sm:$0xf]
      %v398 = vld [vmem:[%s1 + $0x60] sm:$0xf]
      %v399 = vld [vmem:[%s1 + $0x64] sm:$0xf]
      %v400 = vld [vmem:[%s1 + $0x68] sm:$0xf]
      %v401 = vld [vmem:[%s1 + $0x6c] sm:$0xf]
      %v402 = vld [vmem:[%s1 + $0x70] sm:$0xf]
      %v403 = vld [vmem:[%s1 + $0x74] sm:$0xf]
      %v404 = vld [vmem:[%s1 + $0x78] sm:$0xf]
      %v405 = vld [vmem:[%s1 + $0x7c] sm:$0xf]
      %v406 = vld [vmem:[%s1 + $0x80] sm:$0xf]
      %v407 = vld [vmem:[%s1 + $0x84] sm:$0xf]
      %v408 = vld [vmem:[%s1 + $0x88] sm:$0xf]
      %v409 = vld [vmem:[%s1 + $0x8c] sm:$0xf]
      %v410 = vld [vmem:[%s1 + $0x90] sm:$0xf]
      %v411 = vld [vmem:[%s1 + $0x94] sm:$0xf]
      %v412 = vld [vmem:[%s1 + $0x98] sm:$0xf]
      %v413 = vld [vmem:[%s1 + $0x9c] sm:$0xf]
      %v414 = vld [vmem:[%s1 + $0xa0] sm:$0xf]
      %v415 = vld [vmem:[%s1 + $0xa4] sm:$0xf]
      %v416 = vld [vmem:[%s1 + $0xa8] sm:$0xf]
      %v417 = vld [vmem:[%s1 + $0xac] sm:$0xf]
      %v418 = vld [vmem:[%s1 + $0xb0] sm:$0xf]
      %v419 = vld [vmem:[%s1 + $0xb4] sm:$0xf]
      %v420 = vld [vmem:[%s1 + $0xb8] sm:$0xf]
      %v421 = vld [vmem:[%s1 + $0xbc] sm:$0xf]
      %v422 = vld [vmem:[%s1 + $0xc0] sm:$0xf]
      %v423 = vld [vmem:[%s1 + $0xc4] sm:$0xf]
      %v424 = vld [vmem:[%s1 + $0xc8] sm:$0xf]
      %v425 = vld [vmem:[%s1 + $0xcc] sm:$0xf]
      %v426 = vld [vmem:[%s1 + $0xd0] sm:$0xf]
      %v427 = vld [vmem:[%s1 + $0xd4] sm:$0xf]
      %v428 = vld [vmem:[%s1 + $0xd8] sm:$0xf]
      %v429 = vld [vmem:[%s1 + $0xdc] sm:$0xf]
      %v430 = vld [vmem:[%s1 + $0xe0] sm:$0xf]
      %v431 = vld [vmem:[%s1 + $0xe4] sm:$0xf]
      %v432 = vld [vmem:[%s1 + $0xe8] sm:$0xf]
      %v433 = vld [vmem:[%s1 + $0xec] sm:$0xf]
      %v434 = vld [vmem:[%s1 + $0xf0] sm:$0xf]
      %v435 = vld [vmem:[%s1 + $0xf4] sm:$0xf]
      %v436 = vld [vmem:[%s1 + $0xf8] sm:$0xf]
      %v437 = vld [vmem:[%s1 + $0xfc] sm:$0xf]
      %v438 = vld [vmem:[%s1 + $0x100] sm:$0xf]
      %v439 = vld [vmem:[%s1 + $0x104] sm:$0xf]
      %v440 = vld [vmem:[%s1 + $0x108] sm:$0xf]
      %v441 = vld [vmem:[%s1 + $0x10c] sm:$0xf]
      %v442 = vld [vmem:[%s1 + $0x110] sm:$0xf]
      %v443 = vld [vmem:[%s1 + $0x114] sm:$0xf]
      %v444 = vld [vmem:[%s1 + $0x118] sm:$0xf]
      %v445 = vld [vmem:[%s1 + $0x11c] sm:$0xf]
      %v446 = vld [vmem:[%s1 + $0x120] sm:$0xf]
      %v447 = vld [vmem:[%s1 + $0x124] sm:$0xf]
      %v448 = vld [vmem:[%s1 + $0x128] sm:$0xf]
      %v449 = vld [vmem:[%s1 + $0x12c] sm:$0xf]
      %v450 = vld [vmem:[%s1 + $0x130] sm:$0xf]
      %v451 = vld [vmem:[%s1 + $0x134] sm:$0xf]
      %v452 = vld [vmem:[%s1 + $0x138] sm:$0xf]
      %v453 = vld [vmem:[%s1 + $0x13c] sm:$0xf]
      %v454 = vld [vmem:[%s1 + $0x140] sm:$0xf]
      %v455 = vld [vmem:[%s1 + $0x144] sm:$0xf]
      %v456 = vld [vmem:[%s1 + $0x148] sm:$0xf]
      %v457 = vld [vmem:[%s1 + $0x14c] sm:$0xf]
      %v458 = vld [vmem:[%s1 + $0x150] sm:$0xf]
      %v459 = vld [vmem:[%s1 + $0x154] sm:$0xf]
      %v460 = vld [vmem:[%s1 + $0x158] sm:$0xf]
      %v461 = vld [vmem:[%s1 + $0x15c] sm:$0xf]
      %v462 = vld [vmem:[%s1 + $0x160] sm:$0xf]
      %v463 = vld [vmem:[%s1 + $0x164] sm:$0xf]
      %v464 = vld [vmem:[%s1 + $0x168] sm:$0xf]
      %v465 = vld [vmem:[%s1 + $0x16c] sm:$0xf]
      %v466 = vld [vmem:[%s1 + $0x170] sm:$0xf]
      %v467 = vld [vmem:[%s1 + $0x174] sm:$0xf]
      %v468 = vld [vmem:[%s1 + $0x178] sm:$0xf]
      %v469 = vld [vmem:[%s1 + $0x17c] sm:$0xf]
      %v470 = vld [vmem:[%s1 + $0x180] sm:$0xf]
      %v471 = vld [vmem:[%s1 + $0x184] sm:$0xf]
      %v472 = vld [vmem:[%s1 + $0x188] sm:$0xf]
      %v473 = vld [vmem:[%s1 + $0x18c] sm:$0xf]
      %v474 = vld [vmem:[%s1 + $0x190] sm:$0xf]
      %v475 = vld [vmem:[%s1 + $0x194] sm:$0xf]
      %v476 = vld [vmem:[%s1 + $0x198] sm:$0xf]
      %v477 = vld [vmem:[%s1 + $0x19c] sm:$0xf]
      %v478 = vld [vmem:[%s1 + $0x1a0] sm:$0xf]
      %v479 = vld [vmem:[%s1 + $0x1a4] sm:$0xf]
      %v480 = vld [vmem:[%s1 + $0x1a8] sm:$0xf]
      %v481 = vld [vmem:[%s1 + $0x1ac] sm:$0xf]
      %v482 = vld [vmem:[%s1 + $0x1b0] sm:$0xf]
      %v483 = vld [vmem:[%s1 + $0x1b4] sm:$0xf]
      %v484 = vld [vmem:[%s1 + $0x1b8] sm:$0xf]
      %v485 = vld [vmem:[%s1 + $0x1bc] sm:$0xf]
      %v486 = vld [vmem:[%s1 + $0x1c0] sm:$0xf]
      %v487 = vld [vmem:[%s1 + $0x1c4] sm:$0xf]
      %v488 = vld [vmem:[%s1 + $0x1c8] sm:$0xf]
      %v489 = vld [vmem:[%s1 + $0x1cc] sm:$0xf]
      %v490 = vld [vmem:[%s1 + $0x1d0] sm:$0xf]
      %v491 = vld [vmem:[%s1 + $0x1d4] sm:$0xf]
      %v492 = vld [vmem:[%s1 + $0x1d8] sm:$0xf]
      %v493 = vld [vmem:[%s1 + $0x1dc] sm:$0xf]
      %v494 = vld [vmem:[%s1 + $0x1e0] sm:$0xf]
      %v495 = vld [vmem:[%s1 + $0x1e4] sm:$0xf]
      %v496 = vld [vmem:[%s1 + $0x1e8] sm:$0xf]
      %v497 = vld [vmem:[%s1 + $0x1ec] sm:$0xf]
      %v498 = vld [vmem:[%s1 + $0x1f0] sm:$0xf]
      %v499 = vld [vmem:[%s1 + $0x1f4] sm:$0xf]
      %v500 = vld [vmem:[%s1 + $0x1f8] sm:$0xf]
      %v501 = vld [vmem:[%s1 + $0x1fc] sm:$0xf]
      %v502 = vld [vmem:[%s1 + $0x200] sm:$0xf]
      %v503 = vld [vmem:[%s1 + $0x204] sm:$0xf]
      %v504 = vld [vmem:[%s1 + $0x208] sm:$0xf]
      %v505 = vld [vmem:[%s1 + $0x20c] sm:$0xf]
      %v506 = vld [vmem:[%s1 + $0x210] sm:$0xf]
      %v507 = vld [vmem:[%s1 + $0x214] sm:$0xf]
      %v508 = vld [vmem:[%s1 + $0x218] sm:$0xf]
      %v509 = vld [vmem:[%s1 + $0x21c] sm:$0xf]
      %v510 = vld [vmem:[%s1 + $0x220] sm:$0xf]
      %v511 = vld [vmem:[%s1 + $0x224] sm:$0xf]
      %v512 = vld [vmem:[%s1 + $0x228] sm:$0xf]
      %v513 = vld [vmem:[%s1 + $0x22c] sm:$0xf]
      %v514 = vld [vmem:[%s1 + $0x230] sm:$0xf]
      %v515 = vld [vmem:[%s1 + $0x234] sm:$0xf]
      %v516 = vld [vmem:[%s1 + $0x238] sm:$0xf]
      %v517 = vld [vmem:[%s1 + $0x23c] sm:$0xf]
      %v518 = vld [vmem:[%s2] sm:$0x1]
      %v520 = vlaneseq
      %v521 = vshrl.u32 %v520, 7
      %v522 = vsub.s32 0, %v521
      %v523 = vrot.slane %v518, %v522
      %v685 = vunpack.c.l.b16 %v214
      %v686 = vunpack.c.h.b16 %v214
      %v687 = vunpack.c.l.b16 %v215
      %v688 = vunpack.c.h.b16 %v215
      %v689 = vunpack.c.l.b16 %v216
      %v690 = vunpack.c.h.b16 %v216
      %v691 = vunpack.c.l.b16 %v217
      %v692 = vunpack.c.h.b16 %v217
      %v693 = vunpack.c.l.b16 %v218
      %v694 = vunpack.c.l.b16 %v219
      %v695 = vunpack.c.h.b16 %v219
      %v696 = vunpack.c.l.b16 %v220
      %v697 = vunpack.c.h.b16 %v220
      %v698 = vunpack.c.l.b16 %v221
      %v699 = vunpack.c.h.b16 %v221
      %v700 = vunpack.c.l.b16 %v222
      %v701 = vunpack.c.h.b16 %v222
      %v702 = vunpack.c.l.b16 %v223
      %v703 = vunpack.c.l.b16 %v224
      %v704 = vunpack.c.h.b16 %v224
      %v705 = vunpack.c.l.b16 %v225
      %v706 = vunpack.c.h.b16 %v225
      %v707 = vunpack.c.l.b16 %v226
      %v708 = vunpack.c.h.b16 %v226
      %v709 = vunpack.c.l.b16 %v227
      %v710 = vunpack.c.h.b16 %v227
      %v711 = vunpack.c.l.b16 %v228
      %v712 = vunpack.c.l.b16 %v229
      %v713 = vunpack.c.h.b16 %v229
      %v714 = vunpack.c.l.b16 %v230
      %v715 = vunpack.c.h.b16 %v230
      %v716 = vunpack.c.l.b16 %v231
      %v717 = vunpack.c.h.b16 %v231
      %v718 = vunpack.c.l.b16 %v232
      %v719 = vunpack.c.h.b16 %v232
      %v720 = vunpack.c.l.b16 %v233
      %v721 = vunpack.c.l.b16 %v234
      %v722 = vunpack.c.h.b16 %v234
      %v723 = vunpack.c.l.b16 %v235
      %v724 = vunpack.c.h.b16 %v235
      %v725 = vunpack.c.l.b16 %v236
      %v726 = vunpack.c.h.b16 %v236
      %v727 = vunpack.c.l.b16 %v237
      %v728 = vunpack.c.h.b16 %v237
      %v729 = vunpack.c.l.b16 %v238
      %v730 = vunpack.c.l.b16 %v239
      %v731 = vunpack.c.h.b16 %v239
      %v732 = vunpack.c.l.b16 %v240
      %v733 = vunpack.c.h.b16 %v240
      %v734 = vunpack.c.l.b16 %v241
      %v735 = vunpack.c.h.b16 %v241
      %v736 = vunpack.c.l.b16 %v242
      %v737 = vunpack.c.h.b16 %v242
      %v738 = vunpack.c.l.b16 %v243
      %v739 = vunpack.c.l.b16 %v244
      %v740 = vunpack.c.h.b16 %v244
      %v741 = vunpack.c.l.b16 %v245
      %v742 = vunpack.c.h.b16 %v245
      %v743 = vunpack.c.l.b16 %v246
      %v744 = vunpack.c.h.b16 %v246
      %v745 = vunpack.c.l.b16 %v247
      %v746 = vunpack.c.h.b16 %v247
      %v747 = vunpack.c.l.b16 %v248
      %v748 = vunpack.c.l.b16 %v249
      %v749 = vunpack.c.h.b16 %v249
      %v750 = vunpack.c.l.b16 %v250
      %v751 = vunpack.c.h.b16 %v250
      %v752 = vunpack.c.l.b16 %v251
      %v753 = vunpack.c.h.b16 %v251
      %v754 = vunpack.c.l.b16 %v252
      %v755 = vunpack.c.h.b16 %v252
      %v756 = vunpack.c.l.b16 %v253
      %v757 = vunpack.c.l.b16 %v254
      %v758 = vunpack.c.h.b16 %v254
      %v759 = vunpack.c.l.b16 %v255
      %v760 = vunpack.c.h.b16 %v255
      %v761 = vunpack.c.l.b16 %v256
      %v762 = vunpack.c.h.b16 %v256
      %v763 = vunpack.c.l.b16 %v257
      %v764 = vunpack.c.h.b16 %v257
      %v765 = vunpack.c.l.b16 %v258
      %v766 = vunpack.c.l.b16 %v259
      %v767 = vunpack.c.h.b16 %v259
      %v768 = vunpack.c.l.b16 %v260
      %v769 = vunpack.c.h.b16 %v260
      %v770 = vunpack.c.l.b16 %v261
      %v771 = vunpack.c.h.b16 %v261
      %v772 = vunpack.c.l.b16 %v262
      %v773 = vunpack.c.h.b16 %v262
      %v774 = vunpack.c.l.b16 %v263
      %v775 = vunpack.c.l.b16 %v264
      %v776 = vunpack.c.h.b16 %v264
      %v777 = vunpack.c.l.b16 %v265
      %v778 = vunpack.c.h.b16 %v265
      %v779 = vunpack.c.l.b16 %v266
      %v780 = vunpack.c.h.b16 %v266
      %v781 = vunpack.c.l.b16 %v267
      %v782 = vunpack.c.h.b16 %v267
      %v783 = vunpack.c.l.b16 %v268
      %v784 = vunpack.c.l.b16 %v269
      %v785 = vunpack.c.h.b16 %v269
      %v786 = vunpack.c.l.b16 %v270
      %v787 = vunpack.c.h.b16 %v270
      %v788 = vunpack.c.l.b16 %v271
      %v789 = vunpack.c.h.b16 %v271
      %v790 = vunpack.c.l.b16 %v272
      %v791 = vunpack.c.h.b16 %v272
      %v792 = vunpack.c.l.b16 %v273
      %v793 = vunpack.c.l.b16 %v274
      %v794 = vunpack.c.h.b16 %v274
      %v795 = vunpack.c.l.b16 %v275
      %v796 = vunpack.c.h.b16 %v275
      %v797 = vunpack.c.l.b16 %v276
      %v798 = vunpack.c.h.b16 %v276
      %v799 = vunpack.c.l.b16 %v277
      %v800 = vunpack.c.h.b16 %v277
      %v801 = vunpack.c.l.b16 %v278
      %v802 = vunpack.c.l.b16 %v279
      %v803 = vunpack.c.h.b16 %v279
      %v804 = vunpack.c.l.b16 %v280
      %v805 = vunpack.c.h.b16 %v280
      %v806 = vunpack.c.l.b16 %v281
      %v807 = vunpack.c.h.b16 %v281
      %v808 = vunpack.c.l.b16 %v282
      %v809 = vunpack.c.h.b16 %v282
      %v810 = vunpack.c.l.b16 %v283
      %v811 = vunpack.c.l.b16 %v284
      %v812 = vunpack.c.h.b16 %v284
      %v813 = vunpack.c.l.b16 %v285
      %v814 = vunpack.c.h.b16 %v285
      %v815 = vunpack.c.l.b16 %v286
      %v816 = vunpack.c.h.b16 %v286
      %v817 = vunpack.c.l.b16 %v287
      %v818 = vunpack.c.h.b16 %v287
      %v819 = vunpack.c.l.b16 %v288
      %v820 = vunpack.c.l.b16 %v289
      %v821 = vunpack.c.h.b16 %v289
      %v822 = vunpack.c.l.b16 %v290
      %v823 = vunpack.c.h.b16 %v290
      %v824 = vunpack.c.l.b16 %v291
      %v825 = vunpack.c.h.b16 %v291
      %v826 = vunpack.c.l.b16 %v292
      %v827 = vunpack.c.h.b16 %v292
      %v828 = vunpack.c.l.b16 %v293
      %v829 = vunpack.c.l.b16 %v294
      %v830 = vunpack.c.h.b16 %v294
      %v831 = vunpack.c.l.b16 %v295
      %v832 = vunpack.c.h.b16 %v295
      %v833 = vunpack.c.l.b16 %v296
      %v834 = vunpack.c.h.b16 %v296
      %v835 = vunpack.c.l.b16 %v297
      %v836 = vunpack.c.h.b16 %v297
      %v837 = vunpack.c.l.b16 %v298
      %v838 = vunpack.c.l.b16 %v299
      %v839 = vunpack.c.h.b16 %v299
      %v840 = vunpack.c.l.b16 %v300
      %v841 = vunpack.c.h.b16 %v300
      %v842 = vunpack.c.l.b16 %v301
      %v843 = vunpack.c.h.b16 %v301
      %v844 = vunpack.c.l.b16 %v302
      %v845 = vunpack.c.h.b16 %v302
      %v846 = vunpack.c.l.b16 %v303
      %v847 = vunpack.c.l.b16 %v304
      %v848 = vunpack.c.h.b16 %v304
      %v849 = vunpack.c.l.b16 %v305
      %v850 = vunpack.c.h.b16 %v305
      %v851 = vunpack.c.l.b16 %v306
      %v852 = vunpack.c.h.b16 %v306
      %v853 = vunpack.c.l.b16 %v307
      %v854 = vunpack.c.h.b16 %v307
      %v855 = vunpack.c.l.b16 %v308
      %v856 = vunpack.c.l.b16 %v309
      %v857 = vunpack.c.h.b16 %v309
      %v858 = vunpack.c.l.b16 %v310
      %v859 = vunpack.c.h.b16 %v310
      %v860 = vunpack.c.l.b16 %v311
      %v861 = vunpack.c.h.b16 %v311
      %v862 = vunpack.c.l.b16 %v312
      %v863 = vunpack.c.h.b16 %v312
      %v864 = vunpack.c.l.b16 %v313
      %v865 = vunpack.c.l.b16 %v314
      %v866 = vunpack.c.h.b16 %v314
      %v867 = vunpack.c.l.b16 %v315
      %v868 = vunpack.c.h.b16 %v315
      %v869 = vunpack.c.l.b16 %v316
      %v870 = vunpack.c.h.b16 %v316
      %v871 = vunpack.c.l.b16 %v317
      %v872 = vunpack.c.h.b16 %v317
      %v873 = vunpack.c.l.b16 %v318
      %v874 = vunpack.c.l.b16 %v319
      %v875 = vunpack.c.h.b16 %v319
      %v876 = vunpack.c.l.b16 %v320
      %v877 = vunpack.c.h.b16 %v320
      %v878 = vunpack.c.l.b16 %v321
      %v879 = vunpack.c.h.b16 %v321
      %v880 = vunpack.c.l.b16 %v322
      %v881 = vunpack.c.h.b16 %v322
      %v882 = vunpack.c.l.b16 %v323
      %v883 = vunpack.c.l.b16 %v324
      %v884 = vunpack.c.h.b16 %v324
      %v885 = vunpack.c.l.b16 %v325
      %v886 = vunpack.c.h.b16 %v325
      %v887 = vunpack.c.l.b16 %v326
      %v888 = vunpack.c.h.b16 %v326
      %v889 = vunpack.c.l.b16 %v327
      %v890 = vunpack.c.h.b16 %v327
      %v891 = vunpack.c.l.b16 %v328
      %v892 = vunpack.c.l.b16 %v329
      %v893 = vunpack.c.h.b16 %v329
      %v894 = vunpack.c.l.b16 %v330
      %v895 = vunpack.c.h.b16 %v330
      %v896 = vunpack.c.l.b16 %v331
      %v897 = vunpack.c.h.b16 %v331
      %v898 = vunpack.c.l.b16 %v332
      %v899 = vunpack.c.h.b16 %v332
      %v900 = vunpack.c.l.b16 %v333
      %v901 = vunpack.c.l.b16 %v334
      %v902 = vunpack.c.h.b16 %v334
      %v903 = vunpack.c.l.b16 %v335
      %v904 = vunpack.c.h.b16 %v335
      %v905 = vunpack.c.l.b16 %v336
      %v906 = vunpack.c.h.b16 %v336
      %v907 = vunpack.c.l.b16 %v337
      %v908 = vunpack.c.h.b16 %v337
      %v909 = vunpack.c.l.b16 %v338
      %v910 = vunpack.c.l.b16 %v339
      %v911 = vunpack.c.h.b16 %v339
      %v912 = vunpack.c.l.b16 %v340
      %v913 = vunpack.c.h.b16 %v340
      %v914 = vunpack.c.l.b16 %v341
      %v915 = vunpack.c.h.b16 %v341
      %v916 = vunpack.c.l.b16 %v342
      %v917 = vunpack.c.h.b16 %v342
      %v918 = vunpack.c.l.b16 %v343
      %v919 = vunpack.c.l.b16 %v344
      %v920 = vunpack.c.h.b16 %v344
      %v921 = vunpack.c.l.b16 %v345
      %v922 = vunpack.c.h.b16 %v345
      %v923 = vunpack.c.l.b16 %v346
      %v924 = vunpack.c.h.b16 %v346
      %v925 = vunpack.c.l.b16 %v347
      %v926 = vunpack.c.h.b16 %v347
      %v927 = vunpack.c.l.b16 %v348
      %v928 = vunpack.c.l.b16 %v349
      %v929 = vunpack.c.h.b16 %v349
      %v930 = vunpack.c.l.b16 %v350
      %v931 = vunpack.c.h.b16 %v350
      %v932 = vunpack.c.l.b16 %v351
      %v933 = vunpack.c.h.b16 %v351
      %v934 = vunpack.c.l.b16 %v352
      %v935 = vunpack.c.h.b16 %v352
      %v936 = vunpack.c.l.b16 %v353
      %v937 = vunpack.c.l.b16 %v354
      %v938 = vunpack.c.h.b16 %v354
      %v939 = vunpack.c.l.b16 %v355
      %v940 = vunpack.c.h.b16 %v355
      %v941 = vunpack.c.l.b16 %v356
      %v942 = vunpack.c.h.b16 %v356
      %v943 = vunpack.c.l.b16 %v357
      %v944 = vunpack.c.h.b16 %v357
      %v945 = vunpack.c.l.b16 %v358
      %v946 = vunpack.c.l.b16 %v359
      %v947 = vunpack.c.h.b16 %v359
      %v948 = vunpack.c.l.b16 %v360
      %v949 = vunpack.c.h.b16 %v360
      %v950 = vunpack.c.l.b16 %v361
      %v951 = vunpack.c.h.b16 %v361
      %v952 = vunpack.c.l.b16 %v362
      %v953 = vunpack.c.h.b16 %v362
      %v954 = vunpack.c.l.b16 %v363
      %v955 = vunpack.c.l.b16 %v364
      %v956 = vunpack.c.h.b16 %v364
      %v957 = vunpack.c.l.b16 %v365
      %v958 = vunpack.c.h.b16 %v365
      %v959 = vunpack.c.l.b16 %v366
      %v960 = vunpack.c.h.b16 %v366
      %v961 = vunpack.c.l.b16 %v367
      %v962 = vunpack.c.h.b16 %v367
      %v963 = vunpack.c.l.b16 %v368
      %v964 = vunpack.c.l.b16 %v369
      %v965 = vunpack.c.h.b16 %v369
      %v966 = vunpack.c.l.b16 %v370
      %v967 = vunpack.c.h.b16 %v370
      %v968 = vunpack.c.l.b16 %v371
      %v969 = vunpack.c.h.b16 %v371
      %v970 = vunpack.c.l.b16 %v372
      %v971 = vunpack.c.h.b16 %v372
      %v972 = vunpack.c.l.b16 %v373
      %v973 = vpack.c.b16 %v694, %v685
      %v974 = vpack.c.b16 %v695, %v686
      %v975 = vpack.c.b16 %v696, %v687
      %v976 = vpack.c.b16 %v697, %v688
      %v977 = vpack.c.b16 %v698, %v689
      %v978 = vpack.c.b16 %v699, %v690
      %v979 = vpack.c.b16 %v700, %v691
      %v980 = vpack.c.b16 %v701, %v692
      %v981 = vpack.c.b16 %v702, %v693
      %v982 = vpack.c.b16 %v712, %v703
      %v983 = vpack.c.b16 %v713, %v704
      %v984 = vpack.c.b16 %v714, %v705
      %v985 = vpack.c.b16 %v715, %v706
      %v986 = vpack.c.b16 %v716, %v707
      %v987 = vpack.c.b16 %v717, %v708
      %v988 = vpack.c.b16 %v718, %v709
      %v989 = vpack.c.b16 %v719, %v710
      %v990 = vpack.c.b16 %v720, %v711
      %v991 = vpack.c.b16 %v730, %v721
      %v992 = vpack.c.b16 %v731, %v722
      %v993 = vpack.c.b16 %v732, %v723
      %v994 = vpack.c.b16 %v733, %v724
      %v995 = vpack.c.b16 %v734, %v725
      %v996 = vpack.c.b16 %v735, %v726
      %v997 = vpack.c.b16 %v736, %v727
      %v998 = vpack.c.b16 %v737, %v728
      %v999 = vpack.c.b16 %v738, %v729
      %v1000 = vpack.c.b16 %v748, %v739
      %v1001 = vpack.c.b16 %v749, %v740
      %v1002 = vpack.c.b16 %v750, %v741
      %v1003 = vpack.c.b16 %v751, %v742
      %v1004 = vpack.c.b16 %v752, %v743
      %v1005 = vpack.c.b16 %v753, %v744
      %v1006 = vpack.c.b16 %v754, %v745
      %v1007 = vpack.c.b16 %v755, %v746
      %v1008 = vpack.c.b16 %v756, %v747
      %v1009 = vpack.c.b16 %v766, %v757
      %v1010 = vpack.c.b16 %v767, %v758
      %v1011 = vpack.c.b16 %v768, %v759
      %v1012 = vpack.c.b16 %v769, %v760
      %v1013 = vpack.c.b16 %v770, %v761
      %v1014 = vpack.c.b16 %v771, %v762
      %v1015 = vpack.c.b16 %v772, %v763
      %v1016 = vpack.c.b16 %v773, %v764
      %v1017 = vpack.c.b16 %v774, %v765
      %v1018 = vpack.c.b16 %v784, %v775
      %v1019 = vpack.c.b16 %v785, %v776
      %v1020 = vpack.c.b16 %v786, %v777
      %v1021 = vpack.c.b16 %v787, %v778
      %v1022 = vpack.c.b16 %v788, %v779
      %v1023 = vpack.c.b16 %v789, %v780
      %v1024 = vpack.c.b16 %v790, %v781
      %v1025 = vpack.c.b16 %v791, %v782
      %v1026 = vpack.c.b16 %v792, %v783
      %v1027 = vpack.c.b16 %v802, %v793
      %v1028 = vpack.c.b16 %v803, %v794
      %v1029 = vpack.c.b16 %v804, %v795
      %v1030 = vpack.c.b16 %v805, %v796
      %v1031 = vpack.c.b16 %v806, %v797
      %v1032 = vpack.c.b16 %v807, %v798
      %v1033 = vpack.c.b16 %v808, %v799
      %v1034 = vpack.c.b16 %v809, %v800
      %v1035 = vpack.c.b16 %v810, %v801
      %v1036 = vpack.c.b16 %v820, %v811
      %v1037 = vpack.c.b16 %v821, %v812
      %v1038 = vpack.c.b16 %v822, %v813
      %v1039 = vpack.c.b16 %v823, %v814
      %v1040 = vpack.c.b16 %v824, %v815
      %v1041 = vpack.c.b16 %v825, %v816
      %v1042 = vpack.c.b16 %v826, %v817
      %v1043 = vpack.c.b16 %v827, %v818
      %v1044 = vpack.c.b16 %v828, %v819
      %v1045 = vpack.c.b16 %v838, %v829
      %v1046 = vpack.c.b16 %v839, %v830
      %v1047 = vpack.c.b16 %v840, %v831
      %v1048 = vpack.c.b16 %v841, %v832
      %v1049 = vpack.c.b16 %v842, %v833
      %v1050 = vpack.c.b16 %v843, %v834
      %v1051 = vpack.c.b16 %v844, %v835
      %v1052 = vpack.c.b16 %v845, %v836
      %v1053 = vpack.c.b16 %v846, %v837
      %v1054 = vpack.c.b16 %v856, %v847
      %v1055 = vpack.c.b16 %v857, %v848
      %v1056 = vpack.c.b16 %v858, %v849
      %v1057 = vpack.c.b16 %v859, %v850
      %v1058 = vpack.c.b16 %v860, %v851
      %v1059 = vpack.c.b16 %v861, %v852
      %v1060 = vpack.c.b16 %v862, %v853
      %v1061 = vpack.c.b16 %v863, %v854
      %v1062 = vpack.c.b16 %v864, %v855
      %v1063 = vpack.c.b16 %v874, %v865
      %v1064 = vpack.c.b16 %v875, %v866
      %v1065 = vpack.c.b16 %v876, %v867
      %v1066 = vpack.c.b16 %v877, %v868
      %v1067 = vpack.c.b16 %v878, %v869
      %v1068 = vpack.c.b16 %v879, %v870
      %v1069 = vpack.c.b16 %v880, %v871
      %v1070 = vpack.c.b16 %v881, %v872
      %v1071 = vpack.c.b16 %v882, %v873
      %v1072 = vpack.c.b16 %v892, %v883
      %v1073 = vpack.c.b16 %v893, %v884
      %v1074 = vpack.c.b16 %v894, %v885
      %v1075 = vpack.c.b16 %v895, %v886
      %v1076 = vpack.c.b16 %v896, %v887
      %v1077 = vpack.c.b16 %v897, %v888
      %v1078 = vpack.c.b16 %v898, %v889
      %v1079 = vpack.c.b16 %v899, %v890
      %v1080 = vpack.c.b16 %v900, %v891
      %v1081 = vpack.c.b16 %v910, %v901
      %v1082 = vpack.c.b16 %v911, %v902
      %v1083 = vpack.c.b16 %v912, %v903
      %v1084 = vpack.c.b16 %v913, %v904
      %v1085 = vpack.c.b16 %v914, %v905
      %v1086 = vpack.c.b16 %v915, %v906
      %v1087 = vpack.c.b16 %v916, %v907
      %v1088 = vpack.c.b16 %v917, %v908
      %v1089 = vpack.c.b16 %v918, %v909
      %v1090 = vpack.c.b16 %v928, %v919
      %v1091 = vpack.c.b16 %v929, %v920
      %v1092 = vpack.c.b16 %v930, %v921
      %v1093 = vpack.c.b16 %v931, %v922
      %v1094 = vpack.c.b16 %v932, %v923
      %v1095 = vpack.c.b16 %v933, %v924
      %v1096 = vpack.c.b16 %v934, %v925
      %v1097 = vpack.c.b16 %v935, %v926
      %v1098 = vpack.c.b16 %v936, %v927
      %v1099 = vpack.c.b16 %v946, %v937
      %v1100 = vpack.c.b16 %v947, %v938
      %v1101 = vpack.c.b16 %v948, %v939
      %v1102 = vpack.c.b16 %v949, %v940
      %v1103 = vpack.c.b16 %v950, %v941
      %v1104 = vpack.c.b16 %v951, %v942
      %v1105 = vpack.c.b16 %v952, %v943
      %v1106 = vpack.c.b16 %v953, %v944
      %v1107 = vpack.c.b16 %v954, %v945
      %v1108 = vpack.c.b16 %v964, %v955
      %v1109 = vpack.c.b16 %v965, %v956
      %v1110 = vpack.c.b16 %v966, %v957
      %v1111 = vpack.c.b16 %v967, %v958
      %v1112 = vpack.c.b16 %v968, %v959
      %v1113 = vpack.c.b16 %v969, %v960
      %v1114 = vpack.c.b16 %v970, %v961
      %v1115 = vpack.c.b16 %v971, %v962
      %v1116 = vpack.c.b16 %v972, %v963
      %v1405 = vunpack.c.l.b16 %v374
      %v1406 = vunpack.c.l.b16 %v375
      %v1407 = vunpack.c.l.b16 %v376
      %v1408 = vunpack.c.l.b16 %v377
      %v1409 = vunpack.c.l.b16 %v378
      %v1410 = vunpack.c.l.b16 %v379
      %v1411 = vunpack.c.l.b16 %v380
      %v1412 = vunpack.c.l.b16 %v381
      %v1413 = vunpack.c.l.b16 %v382
      %v1414 = vunpack.c.l.b16 %v383
      %v1415 = vunpack.c.l.b16 %v384
      %v1416 = vunpack.c.l.b16 %v385
      %v1417 = vunpack.c.l.b16 %v386
      %v1418 = vunpack.c.l.b16 %v387
      %v1419 = vunpack.c.l.b16 %v388
      %v1420 = vunpack.c.l.b16 %v389
      %v1421 = vunpack.c.l.b16 %v390
      %v1422 = vunpack.c.l.b16 %v391
      %v1423 = vunpack.c.l.b16 %v392
      %v1424 = vunpack.c.l.b16 %v393
      %v1425 = vunpack.c.l.b16 %v394
      %v1426 = vunpack.c.l.b16 %v395
      %v1427 = vunpack.c.l.b16 %v396
      %v1428 = vunpack.c.l.b16 %v397
      %v1429 = vunpack.c.l.b16 %v398
      %v1430 = vunpack.c.l.b16 %v399
      %v1431 = vunpack.c.l.b16 %v400
      %v1432 = vunpack.c.l.b16 %v401
      %v1433 = vunpack.c.l.b16 %v402
      %v1434 = vunpack.c.l.b16 %v403
      %v1435 = vunpack.c.l.b16 %v404
      %v1436 = vunpack.c.l.b16 %v405
      %v1437 = vunpack.c.l.b16 %v406
      %v1438 = vunpack.c.l.b16 %v407
      %v1439 = vunpack.c.l.b16 %v408
      %v1440 = vunpack.c.l.b16 %v409
      %v1441 = vunpack.c.l.b16 %v410
      %v1442 = vunpack.c.l.b16 %v411
      %v1443 = vunpack.c.l.b16 %v412
      %v1444 = vunpack.c.l.b16 %v413
      %v1445 = vunpack.c.l.b16 %v414
      %v1446 = vunpack.c.l.b16 %v415
      %v1447 = vunpack.c.l.b16 %v416
      %v1448 = vunpack.c.l.b16 %v417
      %v1449 = vunpack.c.l.b16 %v418
      %v1450 = vunpack.c.l.b16 %v419
      %v1451 = vunpack.c.l.b16 %v420
      %v1452 = vunpack.c.l.b16 %v421
      %v1453 = vunpack.c.l.b16 %v422
      %v1454 = vunpack.c.l.b16 %v423
      %v1455 = vunpack.c.l.b16 %v424
      %v1456 = vunpack.c.l.b16 %v425
      %v1457 = vunpack.c.l.b16 %v426
      %v1458 = vunpack.c.l.b16 %v427
      %v1459 = vunpack.c.l.b16 %v428
      %v1460 = vunpack.c.l.b16 %v429
      %v1461 = vunpack.c.l.b16 %v430
      %v1462 = vunpack.c.l.b16 %v431
      %v1463 = vunpack.c.l.b16 %v432
      %v1464 = vunpack.c.l.b16 %v433
      %v1465 = vunpack.c.l.b16 %v434
      %v1466 = vunpack.c.l.b16 %v435
      %v1467 = vunpack.c.l.b16 %v436
      %v1468 = vunpack.c.l.b16 %v437
      %v1469 = vunpack.c.l.b16 %v438
      %v1470 = vunpack.c.l.b16 %v439
      %v1471 = vunpack.c.l.b16 %v440
      %v1472 = vunpack.c.l.b16 %v441
      %v1473 = vunpack.c.l.b16 %v442
      %v1474 = vunpack.c.l.b16 %v443
      %v1475 = vunpack.c.l.b16 %v444
      %v1476 = vunpack.c.l.b16 %v445
      %v1477 = vunpack.c.l.b16 %v446
      %v1478 = vunpack.c.l.b16 %v447
      %v1479 = vunpack.c.l.b16 %v448
      %v1480 = vunpack.c.l.b16 %v449
      %v1481 = vunpack.c.l.b16 %v450
      %v1482 = vunpack.c.l.b16 %v451
      %v1483 = vunpack.c.l.b16 %v452
      %v1484 = vunpack.c.l.b16 %v453
      %v1485 = vunpack.c.l.b16 %v454
      %v1486 = vunpack.c.l.b16 %v455
      %v1487 = vunpack.c.l.b16 %v456
      %v1488 = vunpack.c.l.b16 %v457
      %v1489 = vunpack.c.l.b16 %v458
      %v1490 = vunpack.c.l.b16 %v459
      %v1491 = vunpack.c.l.b16 %v460
      %v1492 = vunpack.c.l.b16 %v461
      %v1493 = vunpack.c.l.b16 %v462
      %v1494 = vunpack.c.l.b16 %v463
      %v1495 = vunpack.c.l.b16 %v464
      %v1496 = vunpack.c.l.b16 %v465
      %v1497 = vunpack.c.l.b16 %v466
      %v1498 = vunpack.c.l.b16 %v467
      %v1499 = vunpack.c.l.b16 %v468
      %v1500 = vunpack.c.l.b16 %v469
      %v1501 = vunpack.c.l.b16 %v470
      %v1502 = vunpack.c.l.b16 %v471
      %v1503 = vunpack.c.l.b16 %v472
      %v1504 = vunpack.c.l.b16 %v473
      %v1505 = vunpack.c.l.b16 %v474
      %v1506 = vunpack.c.l.b16 %v475
      %v1507 = vunpack.c.l.b16 %v476
      %v1508 = vunpack.c.l.b16 %v477
      %v1509 = vunpack.c.l.b16 %v478
      %v1510 = vunpack.c.l.b16 %v479
      %v1511 = vunpack.c.l.b16 %v480
      %v1512 = vunpack.c.l.b16 %v481
      %v1513 = vunpack.c.l.b16 %v482
      %v1514 = vunpack.c.l.b16 %v483
      %v1515 = vunpack.c.l.b16 %v484
      %v1516 = vunpack.c.l.b16 %v485
      %v1517 = vunpack.c.l.b16 %v486
      %v1518 = vunpack.c.l.b16 %v487
      %v1519 = vunpack.c.l.b16 %v488
      %v1520 = vunpack.c.l.b16 %v489
      %v1521 = vunpack.c.l.b16 %v490
      %v1522 = vunpack.c.l.b16 %v491
      %v1523 = vunpack.c.l.b16 %v492
      %v1524 = vunpack.c.l.b16 %v493
      %v1525 = vunpack.c.l.b16 %v494
      %v1526 = vunpack.c.l.b16 %v495
      %v1527 = vunpack.c.l.b16 %v496
      %v1528 = vunpack.c.l.b16 %v497
      %v1529 = vunpack.c.l.b16 %v498
      %v1530 = vunpack.c.l.b16 %v499
      %v1531 = vunpack.c.l.b16 %v500
      %v1532 = vunpack.c.l.b16 %v501
      %v1533 = vunpack.c.l.b16 %v502
      %v1534 = vunpack.c.l.b16 %v503
      %v1535 = vunpack.c.l.b16 %v504
      %v1536 = vunpack.c.l.b16 %v505
      %v1537 = vunpack.c.l.b16 %v506
      %v1538 = vunpack.c.l.b16 %v507
      %v1539 = vunpack.c.l.b16 %v508
      %v1540 = vunpack.c.l.b16 %v509
      %v1541 = vunpack.c.l.b16 %v510
      %v1542 = vunpack.c.l.b16 %v511
      %v1543 = vunpack.c.l.b16 %v512
      %v1544 = vunpack.c.l.b16 %v513
      %v1545 = vunpack.c.l.b16 %v514
      %v1546 = vunpack.c.l.b16 %v515
      %v1547 = vunpack.c.l.b16 %v516
      %v1548 = vunpack.c.l.b16 %v517
      %v1549 = vpack.c.b16 %v1406, %v1405
      %v1550 = vpack.c.b16 %v1408, %v1407
      %v1551 = vpack.c.b16 %v1410, %v1409
      %v1552 = vpack.c.b16 %v1412, %v1411
      %v1553 = vpack.c.b16 %v1414, %v1413
      %v1554 = vpack.c.b16 %v1416, %v1415
      %v1555 = vpack.c.b16 %v1418, %v1417
      %v1556 = vpack.c.b16 %v1420, %v1419
      %v1557 = vpack.c.b16 %v1422, %v1421
      %v1558 = vpack.c.b16 %v1424, %v1423
      %v1559 = vpack.c.b16 %v1426, %v1425
      %v1560 = vpack.c.b16 %v1428, %v1427
      %v1561 = vpack.c.b16 %v1430, %v1429
      %v1562 = vpack.c.b16 %v1432, %v1431
      %v1563 = vpack.c.b16 %v1434, %v1433
      %v1564 = vpack.c.b16 %v1436, %v1435
      %v1565 = vpack.c.b16 %v1438, %v1437
      %v1566 = vpack.c.b16 %v1440, %v1439
      %v1567 = vpack.c.b16 %v1442, %v1441
      %v1568 = vpack.c.b16 %v1444, %v1443
      %v1569 = vpack.c.b16 %v1446, %v1445
      %v1570 = vpack.c.b16 %v1448, %v1447
      %v1571 = vpack.c.b16 %v1450, %v1449
      %v1572 = vpack.c.b16 %v1452, %v1451
      %v1573 = vpack.c.b16 %v1454, %v1453
      %v1574 = vpack.c.b16 %v1456, %v1455
      %v1575 = vpack.c.b16 %v1458, %v1457
      %v1576 = vpack.c.b16 %v1460, %v1459
      %v1577 = vpack.c.b16 %v1462, %v1461
      %v1578 = vpack.c.b16 %v1464, %v1463
      %v1579 = vpack.c.b16 %v1466, %v1465
      %v1580 = vpack.c.b16 %v1468, %v1467
      %v1581 = vpack.c.b16 %v1470, %v1469
      %v1582 = vpack.c.b16 %v1472, %v1471
      %v1583 = vpack.c.b16 %v1474, %v1473
      %v1584 = vpack.c.b16 %v1476, %v1475
      %v1585 = vpack.c.b16 %v1478, %v1477
      %v1586 = vpack.c.b16 %v1480, %v1479
      %v1587 = vpack.c.b16 %v1482, %v1481
      %v1588 = vpack.c.b16 %v1484, %v1483
      %v1589 = vpack.c.b16 %v1486, %v1485
      %v1590 = vpack.c.b16 %v1488, %v1487
      %v1591 = vpack.c.b16 %v1490, %v1489
      %v1592 = vpack.c.b16 %v1492, %v1491
      %v1593 = vpack.c.b16 %v1494, %v1493
      %v1594 = vpack.c.b16 %v1496, %v1495
      %v1595 = vpack.c.b16 %v1498, %v1497
      %v1596 = vpack.c.b16 %v1500, %v1499
      %v1597 = vpack.c.b16 %v1502, %v1501
      %v1598 = vpack.c.b16 %v1504, %v1503
      %v1599 = vpack.c.b16 %v1506, %v1505
      %v1600 = vpack.c.b16 %v1508, %v1507
      %v1601 = vpack.c.b16 %v1510, %v1509
      %v1602 = vpack.c.b16 %v1512, %v1511
      %v1603 = vpack.c.b16 %v1514, %v1513
      %v1604 = vpack.c.b16 %v1516, %v1515
      %v1605 = vpack.c.b16 %v1518, %v1517
      %v1606 = vpack.c.b16 %v1520, %v1519
      %v1607 = vpack.c.b16 %v1522, %v1521
      %v1608 = vpack.c.b16 %v1524, %v1523
      %v1609 = vpack.c.b16 %v1526, %v1525
      %v1610 = vpack.c.b16 %v1528, %v1527
      %v1611 = vpack.c.b16 %v1530, %v1529
      %v1612 = vpack.c.b16 %v1532, %v1531
      %v1613 = vpack.c.b16 %v1534, %v1533
      %v1614 = vpack.c.b16 %v1536, %v1535
      %v1615 = vpack.c.b16 %v1538, %v1537
      %v1616 = vpack.c.b16 %v1540, %v1539
      %v1617 = vpack.c.b16 %v1542, %v1541
      %v1618 = vpack.c.b16 %v1544, %v1543
      %v1619 = vpack.c.b16 %v1546, %v1545
      %v1620 = vpack.c.b16 %v1548, %v1547
      %1693 = vmatprep.subr.bf16.mxu0 0
      %1694 = vmatpush1.bf16.msra.mxu0 %v1556
      %1695 = vmatprep.subr.bf16.mxu0 0
      %1696 = vmatpush1.bf16.msra.mxu0 %v1555
      %1697 = vmatprep.subr.bf16.mxu0 0
      %1698 = vmatpush1.bf16.msra.mxu0 %v1554
      %1699 = vmatprep.subr.bf16.mxu0 0
      %1700 = vmatpush1.bf16.msra.mxu0 %v1553
      %1701 = vmatprep.subr.bf16.mxu0 0
      %1702 = vmatpush1.bf16.msra.mxu0 %v1552
      %1703 = vmatprep.subr.bf16.mxu0 0
      %1704 = vmatpush1.bf16.msra.mxu0 %v1551
      %1705 = vmatprep.subr.bf16.mxu0 0
      %1706 = vmatpush1.bf16.msra.mxu0 %v1550
      %1707 = vmatprep.subr.bf16.mxu0 0
      %1708 = vmatpush1.bf16.msra.mxu0 %v1549
      %1709 = vmatprep.subr.bf16.mxu0 0
      %1710 = vmatpush2.bf16.msra.mxu0 %v1564
      %1711 = vmatprep.subr.bf16.mxu0 0
      %1712 = vmatpush2.bf16.msra.mxu0 %v1563
      %1713 = vmatprep.subr.bf16.mxu0 0
      %1714 = vmatpush2.bf16.msra.mxu0 %v1562
      %1715 = vmatprep.subr.bf16.mxu0 0
      %1716 = vmatpush2.bf16.msra.mxu0 %v1561
      %1717 = vmatprep.subr.bf16.mxu0 0
      %1718 = vmatpush2.bf16.msra.mxu0 %v1560
      %1719 = vmatprep.subr.bf16.mxu0 0
      %1720 = vmatpush2.bf16.msra.mxu0 %v1559
      %1721 = vmatprep.subr.bf16.mxu0 0
      %1722 = vmatpush2.bf16.msra.mxu0 %v1558
      %1723 = vmatprep.subr.bf16.mxu0 0
      %1724 = vmatpush2.bf16.msra.mxu0 %v1557
      %1725 = vmatprep.mubr.bf16.mxu0 %v974
      %1726 = vmatmul.mubr.bf16.gmra.mxu0 %v973
      %v1727 = vpop.f32.mrf.mxu0
      %v1728 = vadd.f32 %v523, %v1727
      %v1729 = vpop.f32.mrf.mxu0
      %v1730 = vpop.f32.mrf.mxu0
      %v1731 = vadd.f32 %v523, %v1730
      %v1732 = vpop.f32.mrf.mxu0
      %1733 = vmatprep.mubr.bf16.mxu0 %v983
      %1734 = vmatmul.mubr.bf16.gmra.mxu0 %v982
      %v1735 = vpop.f32.mrf.mxu0
      %v1736 = vadd.f32 %v523, %v1735
      %v1737 = vpop.f32.mrf.mxu0
      %v1738 = vpop.f32.mrf.mxu0
      %v1739 = vadd.f32 %v523, %v1738
      %v1740 = vpop.f32.mrf.mxu0
      %1741 = vmatprep.mubr.bf16.mxu0 %v992
      %1742 = vmatmul.mubr.bf16.gmra.mxu0 %v991
      %v1743 = vpop.f32.mrf.mxu0
      %v1744 = vadd.f32 %v523, %v1743
      %v1745 = vpop.f32.mrf.mxu0
      %v1746 = vpop.f32.mrf.mxu0
      %v1747 = vadd.f32 %v523, %v1746
      %v1748 = vpop.f32.mrf.mxu0
      %1749 = vmatprep.mubr.bf16.mxu0 %v1001
      %1750 = vmatmul.mubr.bf16.gmra.mxu0 %v1000
      %v1751 = vpop.f32.mrf.mxu0
      %v1752 = vadd.f32 %v523, %v1751
      %v1753 = vpop.f32.mrf.mxu0
      %v1754 = vpop.f32.mrf.mxu0
      %v1755 = vadd.f32 %v523, %v1754
      %v1756 = vpop.f32.mrf.mxu0
      %1757 = vmatprep.mubr.bf16.mxu0 %v1010
      %1758 = vmatmul.mubr.bf16.gmra.mxu0 %v1009
      %v1759 = vpop.f32.mrf.mxu0
      %v1760 = vadd.f32 %v523, %v1759
      %v1761 = vpop.f32.mrf.mxu0
      %v1762 = vpop.f32.mrf.mxu0
      %v1763 = vadd.f32 %v523, %v1762
      %v1764 = vpop.f32.mrf.mxu0
      %1765 = vmatprep.mubr.bf16.mxu0 %v1019
      %1766 = vmatmul.mubr.bf16.gmra.mxu0 %v1018
      %v1767 = vpop.f32.mrf.mxu0
      %v1768 = vadd.f32 %v523, %v1767
      %v1769 = vpop.f32.mrf.mxu0
      %v1770 = vpop.f32.mrf.mxu0
      %v1771 = vadd.f32 %v523, %v1770
      %v1772 = vpop.f32.mrf.mxu0
      %1773 = vmatprep.mubr.bf16.mxu0 %v1028
      %1774 = vmatmul.mubr.bf16.gmra.mxu0 %v1027
      %v1775 = vpop.f32.mrf.mxu0
      %v1776 = vadd.f32 %v523, %v1775
      %v1777 = vpop.f32.mrf.mxu0
      %v1778 = vpop.f32.mrf.mxu0
      %v1779 = vadd.f32 %v523, %v1778
      %v1780 = vpop.f32.mrf.mxu0
      %1781 = vmatprep.mubr.bf16.mxu0 %v1037
      %1782 = vmatmul.mubr.bf16.gmra.mxu0 %v1036
      %v1783 = vpop.f32.mrf.mxu0
      %v1784 = vadd.f32 %v523, %v1783
      %v1785 = vpop.f32.mrf.mxu0
      %v1786 = vpop.f32.mrf.mxu0
      %v1787 = vadd.f32 %v523, %v1786
      %v1788 = vpop.f32.mrf.mxu0
      %1789 = vmatprep.mubr.bf16.mxu0 %v1046
      %1790 = vmatmul.mubr.bf16.gmra.mxu0 %v1045
      %v1791 = vpop.f32.mrf.mxu0
      %v1792 = vadd.f32 %v523, %v1791
      %v1793 = vpop.f32.mrf.mxu0
      %v1794 = vpop.f32.mrf.mxu0
      %v1795 = vadd.f32 %v523, %v1794
      %v1796 = vpop.f32.mrf.mxu0
      %1797 = vmatprep.mubr.bf16.mxu0 %v1055
      %1798 = vmatmul.mubr.bf16.gmra.mxu0 %v1054
      %v1799 = vpop.f32.mrf.mxu0
      %v1800 = vadd.f32 %v523, %v1799
      %v1801 = vpop.f32.mrf.mxu0
      %v1802 = vpop.f32.mrf.mxu0
      %v1803 = vadd.f32 %v523, %v1802
      %v1804 = vpop.f32.mrf.mxu0
      %1805 = vmatprep.mubr.bf16.mxu0 %v1064
      %1806 = vmatmul.mubr.bf16.gmra.mxu0 %v1063
      %v1807 = vpop.f32.mrf.mxu0
      %v1808 = vadd.f32 %v523, %v1807
      %v1809 = vpop.f32.mrf.mxu0
      %v1810 = vpop.f32.mrf.mxu0
      %v1811 = vadd.f32 %v523, %v1810
      %v1812 = vpop.f32.mrf.mxu0
      %1813 = vmatprep.mubr.bf16.mxu0 %v1073
      %1814 = vmatmul.mubr.bf16.gmra.mxu0 %v1072
      %v1815 = vpop.f32.mrf.mxu0
      %v1816 = vadd.f32 %v523, %v1815
      %v1817 = vpop.f32.mrf.mxu0
      %v1818 = vpop.f32.mrf.mxu0
      %v1819 = vadd.f32 %v523, %v1818
      %v1820 = vpop.f32.mrf.mxu0
      %1821 = vmatprep.mubr.bf16.mxu0 %v1082
      %1822 = vmatmul.mubr.bf16.gmra.mxu0 %v1081
      %v1823 = vpop.f32.mrf.mxu0
      %v1824 = vadd.f32 %v523, %v1823
      %v1825 = vpop.f32.mrf.mxu0
      %v1826 = vpop.f32.mrf.mxu0
      %v1827 = vadd.f32 %v523, %v1826
      %v1828 = vpop.f32.mrf.mxu0
      %1829 = vmatprep.mubr.bf16.mxu0 %v1091
      %1830 = vmatmul.mubr.bf16.gmra.mxu0 %v1090
      %v1831 = vpop.f32.mrf.mxu0
      %v1832 = vadd.f32 %v523, %v1831
      %v1833 = vpop.f32.mrf.mxu0
      %v1834 = vpop.f32.mrf.mxu0
      %v1835 = vadd.f32 %v523, %v1834
      %v1836 = vpop.f32.mrf.mxu0
      %1837 = vmatprep.mubr.bf16.mxu0 %v1100
      %1838 = vmatmul.mubr.bf16.gmra.mxu0 %v1099
      %v1839 = vpop.f32.mrf.mxu0
      %v1840 = vadd.f32 %v523, %v1839
      %v1841 = vpop.f32.mrf.mxu0
      %v1842 = vpop.f32.mrf.mxu0
      %v1843 = vadd.f32 %v523, %v1842
      %v1844 = vpop.f32.mrf.mxu0
      %1845 = vmatprep.mubr.bf16.mxu0 %v1109
      %1846 = vmatmul.mubr.bf16.gmra.mxu0 %v1108
      %v1847 = vpop.f32.mrf.mxu0
      %v1848 = vadd.f32 %v523, %v1847
      %v1849 = vpop.f32.mrf.mxu0
      %v1850 = vpop.f32.mrf.mxu0
      %v1851 = vadd.f32 %v523, %v1850
      %v1852 = vpop.f32.mrf.mxu0
      %1853 = vdwg.mxu0
      %1854 = vmatprep.subr.bf16.mxu0 0
      %1855 = vmatpush1.bf16.msra.mxu0 %v1572
      %1856 = vmatprep.subr.bf16.mxu0 0
      %1857 = vmatpush1.bf16.msra.mxu0 %v1571
      %1858 = vmatprep.subr.bf16.mxu0 0
      %1859 = vmatpush1.bf16.msra.mxu0 %v1570
      %1860 = vmatprep.subr.bf16.mxu0 0
      %1861 = vmatpush1.bf16.msra.mxu0 %v1569
      %1862 = vmatprep.subr.bf16.mxu0 0
      %1863 = vmatpush1.bf16.msra.mxu0 %v1568
      %1864 = vmatprep.subr.bf16.mxu0 0
      %1865 = vmatpush1.bf16.msra.mxu0 %v1567
      %1866 = vmatprep.subr.bf16.mxu0 0
      %1867 = vmatpush1.bf16.msra.mxu0 %v1566
      %1868 = vmatprep.subr.bf16.mxu0 0
      %1869 = vmatpush1.bf16.msra.mxu0 %v1565
      %1870 = vmatprep.subr.bf16.mxu0 0
      %1871 = vmatpush2.bf16.msra.mxu0 %v1580
      %1872 = vmatprep.subr.bf16.mxu0 0
      %1873 = vmatpush2.bf16.msra.mxu0 %v1579
      %1874 = vmatprep.subr.bf16.mxu0 0
      %1875 = vmatpush2.bf16.msra.mxu0 %v1578
      %1876 = vmatprep.subr.bf16.mxu0 0
      %1877 = vmatpush2.bf16.msra.mxu0 %v1577
      %1878 = vmatprep.subr.bf16.mxu0 0
      %1879 = vmatpush2.bf16.msra.mxu0 %v1576
      %1880 = vmatprep.subr.bf16.mxu0 0
      %1881 = vmatpush2.bf16.msra.mxu0 %v1575
      %1882 = vmatprep.subr.bf16.mxu0 0
      %1883 = vmatpush2.bf16.msra.mxu0 %v1574
      %1884 = vmatprep.subr.bf16.mxu0 0
      %1885 = vmatpush2.bf16.msra.mxu0 %v1573
      %1886 = vmatprep.mubr.bf16.mxu0 %v976
      %1887 = vmatmul.mubr.bf16.gmra.mxu0 %v975
      %v1888 = vpop.f32.mrf.mxu0
      %v1889 = vadd.f32 %v1728, %v1888
      %v1890 = vpop.f32.mrf.mxu0
      %v1891 = vpop.f32.mrf.mxu0
      %v1892 = vadd.f32 %v1731, %v1891
      %v1893 = vpop.f32.mrf.mxu0
      %1894 = vmatprep.mubr.bf16.mxu0 %v985
      %1895 = vmatmul.mubr.bf16.gmra.mxu0 %v984
      %v1896 = vpop.f32.mrf.mxu0
      %v1897 = vadd.f32 %v1736, %v1896
      %v1898 = vpop.f32.mrf.mxu0
      %v1899 = vpop.f32.mrf.mxu0
      %v1900 = vadd.f32 %v1739, %v1899
      %v1901 = vpop.f32.mrf.mxu0
      %1902 = vmatprep.mubr.bf16.mxu0 %v994
      %1903 = vmatmul.mubr.bf16.gmra.mxu0 %v993
      %v1904 = vpop.f32.mrf.mxu0
      %v1905 = vadd.f32 %v1744, %v1904
      %v1906 = vpop.f32.mrf.mxu0
      %v1907 = vpop.f32.mrf.mxu0
      %v1908 = vadd.f32 %v1747, %v1907
      %v1909 = vpop.f32.mrf.mxu0
      %1910 = vmatprep.mubr.bf16.mxu0 %v1003
      %1911 = vmatmul.mubr.bf16.gmra.mxu0 %v1002
      %v1912 = vpop.f32.mrf.mxu0
      %v1913 = vadd.f32 %v1752, %v1912
      %v1914 = vpop.f32.mrf.mxu0
      %v1915 = vpop.f32.mrf.mxu0
      %v1916 = vadd.f32 %v1755, %v1915
      %v1917 = vpop.f32.mrf.mxu0
      %1918 = vmatprep.mubr.bf16.mxu0 %v1012
      %1919 = vmatmul.mubr.bf16.gmra.mxu0 %v1011
      %v1920 = vpop.f32.mrf.mxu0
      %v1921 = vadd.f32 %v1760, %v1920
      %v1922 = vpop.f32.mrf.mxu0
      %v1923 = vpop.f32.mrf.mxu0
      %v1924 = vadd.f32 %v1763, %v1923
      %v1925 = vpop.f32.mrf.mxu0
      %1926 = vmatprep.mubr.bf16.mxu0 %v1021
      %1927 = vmatmul.mubr.bf16.gmra.mxu0 %v1020
      %v1928 = vpop.f32.mrf.mxu0
      %v1929 = vadd.f32 %v1768, %v1928
      %v1930 = vpop.f32.mrf.mxu0
      %v1931 = vpop.f32.mrf.mxu0
      %v1932 = vadd.f32 %v1771, %v1931
      %v1933 = vpop.f32.mrf.mxu0
      %1934 = vmatprep.mubr.bf16.mxu0 %v1030
      %1935 = vmatmul.mubr.bf16.gmra.mxu0 %v1029
      %v1936 = vpop.f32.mrf.mxu0
      %v1937 = vadd.f32 %v1776, %v1936
      %v1938 = vpop.f32.mrf.mxu0
      %v1939 = vpop.f32.mrf.mxu0
      %v1940 = vadd.f32 %v1779, %v1939
      %v1941 = vpop.f32.mrf.mxu0
      %1942 = vmatprep.mubr.bf16.mxu0 %v1039
      %1943 = vmatmul.mubr.bf16.gmra.mxu0 %v1038
      %v1944 = vpop.f32.mrf.mxu0
      %v1945 = vadd.f32 %v1784, %v1944
      %v1946 = vpop.f32.mrf.mxu0
      %v1947 = vpop.f32.mrf.mxu0
      %v1948 = vadd.f32 %v1787, %v1947
      %v1949 = vpop.f32.mrf.mxu0
      %1950 = vmatprep.mubr.bf16.mxu0 %v1048
      %1951 = vmatmul.mubr.bf16.gmra.mxu0 %v1047
      %v1952 = vpop.f32.mrf.mxu0
      %v1953 = vadd.f32 %v1792, %v1952
      %v1954 = vpop.f32.mrf.mxu0
      %v1955 = vpop.f32.mrf.mxu0
      %v1956 = vadd.f32 %v1795, %v1955
      %v1957 = vpop.f32.mrf.mxu0
      %1958 = vmatprep.mubr.bf16.mxu0 %v1057
      %1959 = vmatmul.mubr.bf16.gmra.mxu0 %v1056
      %v1960 = vpop.f32.mrf.mxu0
      %v1961 = vadd.f32 %v1800, %v1960
      %v1962 = vpop.f32.mrf.mxu0
      %v1963 = vpop.f32.mrf.mxu0
      %v1964 = vadd.f32 %v1803, %v1963
      %v1965 = vpop.f32.mrf.mxu0
      %1966 = vmatprep.mubr.bf16.mxu0 %v1066
      %1967 = vmatmul.mubr.bf16.gmra.mxu0 %v1065
      %v1968 = vpop.f32.mrf.mxu0
      %v1969 = vadd.f32 %v1808, %v1968
      %v1970 = vpop.f32.mrf.mxu0
      %v1971 = vpop.f32.mrf.mxu0
      %v1972 = vadd.f32 %v1811, %v1971
      %v1973 = vpop.f32.mrf.mxu0
      %1974 = vmatprep.mubr.bf16.mxu0 %v1075
      %1975 = vmatmul.mubr.bf16.gmra.mxu0 %v1074
      %v1976 = vpop.f32.mrf.mxu0
      %v1977 = vadd.f32 %v1816, %v1976
      %v1978 = vpop.f32.mrf.mxu0
      %v1979 = vpop.f32.mrf.mxu0
      %v1980 = vadd.f32 %v1819, %v1979
      %v1981 = vpop.f32.mrf.mxu0
      %1982 = vmatprep.mubr.bf16.mxu0 %v1084
      %1983 = vmatmul.mubr.bf16.gmra.mxu0 %v1083
      %v1984 = vpop.f32.mrf.mxu0
      %v1985 = vadd.f32 %v1824, %v1984
      %v1986 = vpop.f32.mrf.mxu0
      %v1987 = vpop.f32.mrf.mxu0
      %v1988 = vadd.f32 %v1827, %v1987
      %v1989 = vpop.f32.mrf.mxu0
      %1990 = vmatprep.mubr.bf16.mxu0 %v1093
      %1991 = vmatmul.mubr.bf16.gmra.mxu0 %v1092
      %v1992 = vpop.f32.mrf.mxu0
      %v1993 = vadd.f32 %v1832, %v1992
      %v1994 = vpop.f32.mrf.mxu0
      %v1995 = vpop.f32.mrf.mxu0
      %v1996 = vadd.f32 %v1835, %v1995
      %v1997 = vpop.f32.mrf.mxu0
      %1998 = vmatprep.mubr.bf16.mxu0 %v1102
      %1999 = vmatmul.mubr.bf16.gmra.mxu0 %v1101
      %v2000 = vpop.f32.mrf.mxu0
      %v2001 = vadd.f32 %v1840, %v2000
      %v2002 = vpop.f32.mrf.mxu0
      %v2003 = vpop.f32.mrf.mxu0
      %v2004 = vadd.f32 %v1843, %v2003
      %v2005 = vpop.f32.mrf.mxu0
      %2006 = vmatprep.mubr.bf16.mxu0 %v1111
      %2007 = vmatmul.mubr.bf16.gmra.mxu0 %v1110
      %v2008 = vpop.f32.mrf.mxu0
      %v2009 = vadd.f32 %v1848, %v2008
      %v2010 = vpop.f32.mrf.mxu0
      %v2011 = vpop.f32.mrf.mxu0
      %v2012 = vadd.f32 %v1851, %v2011
      %v2013 = vpop.f32.mrf.mxu0
      %2014 = vdwg.mxu0
      %2015 = vmatprep.subr.bf16.mxu0 0
      %2016 = vmatpush1.bf16.msra.mxu0 %v1588
      %2017 = vmatprep.subr.bf16.mxu0 0
      %2018 = vmatpush1.bf16.msra.mxu0 %v1587
      %2019 = vmatprep.subr.bf16.mxu0 0
      %2020 = vmatpush1.bf16.msra.mxu0 %v1586
      %2021 = vmatprep.subr.bf16.mxu0 0
      %2022 = vmatpush1.bf16.msra.mxu0 %v1585
      %2023 = vmatprep.subr.bf16.mxu0 0
      %2024 = vmatpush1.bf16.msra.mxu0 %v1584
      %2025 = vmatprep.subr.bf16.mxu0 0
      %2026 = vmatpush1.bf16.msra.mxu0 %v1583
      %2027 = vmatprep.subr.bf16.mxu0 0
      %2028 = vmatpush1.bf16.msra.mxu0 %v1582
      %2029 = vmatprep.subr.bf16.mxu0 0
      %2030 = vmatpush1.bf16.msra.mxu0 %v1581
      %2031 = vmatprep.subr.bf16.mxu0 0
      %2032 = vmatpush2.bf16.msra.mxu0 %v1596
      %2033 = vmatprep.subr.bf16.mxu0 0
      %2034 = vmatpush2.bf16.msra.mxu0 %v1595
      %2035 = vmatprep.subr.bf16.mxu0 0
      %2036 = vmatpush2.bf16.msra.mxu0 %v1594
      %2037 = vmatprep.subr.bf16.mxu0 0
      %2038 = vmatpush2.bf16.msra.mxu0 %v1593
      %2039 = vmatprep.subr.bf16.mxu0 0
      %2040 = vmatpush2.bf16.msra.mxu0 %v1592
      %2041 = vmatprep.subr.bf16.mxu0 0
      %2042 = vmatpush2.bf16.msra.mxu0 %v1591
      %2043 = vmatprep.subr.bf16.mxu0 0
      %2044 = vmatpush2.bf16.msra.mxu0 %v1590
      %2045 = vmatprep.subr.bf16.mxu0 0
      %2046 = vmatpush2.bf16.msra.mxu0 %v1589
      %2047 = vmatprep.mubr.bf16.mxu0 %v978
      %2048 = vmatmul.mubr.bf16.gmra.mxu0 %v977
      %v2049 = vpop.f32.mrf.mxu0
      %v2050 = vadd.f32 %v1889, %v2049
      %v2051 = vpop.f32.mrf.mxu0
      %v2052 = vpop.f32.mrf.mxu0
      %v2053 = vadd.f32 %v1892, %v2052
      %v2054 = vpop.f32.mrf.mxu0
      %2055 = vmatprep.mubr.bf16.mxu0 %v987
      %2056 = vmatmul.mubr.bf16.gmra.mxu0 %v986
      %v2057 = vpop.f32.mrf.mxu0
      %v2058 = vadd.f32 %v1897, %v2057
      %v2059 = vpop.f32.mrf.mxu0
      %v2060 = vpop.f32.mrf.mxu0
      %v2061 = vadd.f32 %v1900, %v2060
      %v2062 = vpop.f32.mrf.mxu0
      %2063 = vmatprep.mubr.bf16.mxu0 %v996
      %2064 = vmatmul.mubr.bf16.gmra.mxu0 %v995
      %v2065 = vpop.f32.mrf.mxu0
      %v2066 = vadd.f32 %v1905, %v2065
      %v2067 = vpop.f32.mrf.mxu0
      %v2068 = vpop.f32.mrf.mxu0
      %v2069 = vadd.f32 %v1908, %v2068
      %v2070 = vpop.f32.mrf.mxu0
      %2071 = vmatprep.mubr.bf16.mxu0 %v1005
      %2072 = vmatmul.mubr.bf16.gmra.mxu0 %v1004
      %v2073 = vpop.f32.mrf.mxu0
      %v2074 = vadd.f32 %v1913, %v2073
      %v2075 = vpop.f32.mrf.mxu0
      %v2076 = vpop.f32.mrf.mxu0
      %v2077 = vadd.f32 %v1916, %v2076
      %v2078 = vpop.f32.mrf.mxu0
      %2079 = vmatprep.mubr.bf16.mxu0 %v1014
      %2080 = vmatmul.mubr.bf16.gmra.mxu0 %v1013
      %v2081 = vpop.f32.mrf.mxu0
      %v2082 = vadd.f32 %v1921, %v2081
      %v2083 = vpop.f32.mrf.mxu0
      %v2084 = vpop.f32.mrf.mxu0
      %v2085 = vadd.f32 %v1924, %v2084
      %v2086 = vpop.f32.mrf.mxu0
      %2087 = vmatprep.mubr.bf16.mxu0 %v1023
      %2088 = vmatmul.mubr.bf16.gmra.mxu0 %v1022
      %v2089 = vpop.f32.mrf.mxu0
      %v2090 = vadd.f32 %v1929, %v2089
      %v2091 = vpop.f32.mrf.mxu0
      %v2092 = vpop.f32.mrf.mxu0
      %v2093 = vadd.f32 %v1932, %v2092
      %v2094 = vpop.f32.mrf.mxu0
      %2095 = vmatprep.mubr.bf16.mxu0 %v1032
      %2096 = vmatmul.mubr.bf16.gmra.mxu0 %v1031
      %v2097 = vpop.f32.mrf.mxu0
      %v2098 = vadd.f32 %v1937, %v2097
      %v2099 = vpop.f32.mrf.mxu0
      %v2100 = vpop.f32.mrf.mxu0
      %v2101 = vadd.f32 %v1940, %v2100
      %v2102 = vpop.f32.mrf.mxu0
      %2103 = vmatprep.mubr.bf16.mxu0 %v1041
      %2104 = vmatmul.mubr.bf16.gmra.mxu0 %v1040
      %v2105 = vpop.f32.mrf.mxu0
      %v2106 = vadd.f32 %v1945, %v2105
      %v2107 = vpop.f32.mrf.mxu0
      %v2108 = vpop.f32.mrf.mxu0
      %v2109 = vadd.f32 %v1948, %v2108
      %v2110 = vpop.f32.mrf.mxu0
      %2111 = vmatprep.mubr.bf16.mxu0 %v1050
      %2112 = vmatmul.mubr.bf16.gmra.mxu0 %v1049
      %v2113 = vpop.f32.mrf.mxu0
      %v2114 = vadd.f32 %v1953, %v2113
      %v2115 = vpop.f32.mrf.mxu0
      %v2116 = vpop.f32.mrf.mxu0
      %v2117 = vadd.f32 %v1956, %v2116
      %v2118 = vpop.f32.mrf.mxu0
      %2119 = vmatprep.mubr.bf16.mxu0 %v1059
      %2120 = vmatmul.mubr.bf16.gmra.mxu0 %v1058
      %v2121 = vpop.f32.mrf.mxu0
      %v2122 = vadd.f32 %v1961, %v2121
      %v2123 = vpop.f32.mrf.mxu0
      %v2124 = vpop.f32.mrf.mxu0
      %v2125 = vadd.f32 %v1964, %v2124
      %v2126 = vpop.f32.mrf.mxu0
      %2127 = vmatprep.mubr.bf16.mxu0 %v1068
      %2128 = vmatmul.mubr.bf16.gmra.mxu0 %v1067
      %v2129 = vpop.f32.mrf.mxu0
      %v2130 = vadd.f32 %v1969, %v2129
      %v2131 = vpop.f32.mrf.mxu0
      %v2132 = vpop.f32.mrf.mxu0
      %v2133 = vadd.f32 %v1972, %v2132
      %v2134 = vpop.f32.mrf.mxu0
      %2135 = vmatprep.mubr.bf16.mxu0 %v1077
      %2136 = vmatmul.mubr.bf16.gmra.mxu0 %v1076
      %v2137 = vpop.f32.mrf.mxu0
      %v2138 = vadd.f32 %v1977, %v2137
      %v2139 = vpop.f32.mrf.mxu0
      %v2140 = vpop.f32.mrf.mxu0
      %v2141 = vadd.f32 %v1980, %v2140
      %v2142 = vpop.f32.mrf.mxu0
      %2143 = vmatprep.mubr.bf16.mxu0 %v1086
      %2144 = vmatmul.mubr.bf16.gmra.mxu0 %v1085
      %v2145 = vpop.f32.mrf.mxu0
      %v2146 = vadd.f32 %v1985, %v2145
      %v2147 = vpop.f32.mrf.mxu0
      %v2148 = vpop.f32.mrf.mxu0
      %v2149 = vadd.f32 %v1988, %v2148
      %v2150 = vpop.f32.mrf.mxu0
      %2151 = vmatprep.mubr.bf16.mxu0 %v1095
      %2152 = vmatmul.mubr.bf16.gmra.mxu0 %v1094
      %v2153 = vpop.f32.mrf.mxu0
      %v2154 = vadd.f32 %v1993, %v2153
      %v2155 = vpop.f32.mrf.mxu0
      %v2156 = vpop.f32.mrf.mxu0
      %v2157 = vadd.f32 %v1996, %v2156
      %v2158 = vpop.f32.mrf.mxu0
      %2159 = vmatprep.mubr.bf16.mxu0 %v1104
      %2160 = vmatmul.mubr.bf16.gmra.mxu0 %v1103
      %v2161 = vpop.f32.mrf.mxu0
      %v2162 = vadd.f32 %v2001, %v2161
      %v2163 = vpop.f32.mrf.mxu0
      %v2164 = vpop.f32.mrf.mxu0
      %v2165 = vadd.f32 %v2004, %v2164
      %v2166 = vpop.f32.mrf.mxu0
      %2167 = vmatprep.mubr.bf16.mxu0 %v1113
      %2168 = vmatmul.mubr.bf16.gmra.mxu0 %v1112
      %v2169 = vpop.f32.mrf.mxu0
      %v2170 = vadd.f32 %v2009, %v2169
      %v2171 = vpop.f32.mrf.mxu0
      %v2172 = vpop.f32.mrf.mxu0
      %v2173 = vadd.f32 %v2012, %v2172
      %v2174 = vpop.f32.mrf.mxu0
      %2175 = vdwg.mxu0
      %2176 = vmatprep.subr.bf16.mxu0 0
      %2177 = vmatpush1.bf16.msra.mxu0 %v1604
      %2178 = vmatprep.subr.bf16.mxu0 0
      %2179 = vmatpush1.bf16.msra.mxu0 %v1603
      %2180 = vmatprep.subr.bf16.mxu0 0
      %2181 = vmatpush1.bf16.msra.mxu0 %v1602
      %2182 = vmatprep.subr.bf16.mxu0 0
      %2183 = vmatpush1.bf16.msra.mxu0 %v1601
      %2184 = vmatprep.subr.bf16.mxu0 0
      %2185 = vmatpush1.bf16.msra.mxu0 %v1600
      %2186 = vmatprep.subr.bf16.mxu0 0
      %2187 = vmatpush1.bf16.msra.mxu0 %v1599
      %2188 = vmatprep.subr.bf16.mxu0 0
      %2189 = vmatpush1.bf16.msra.mxu0 %v1598
      %2190 = vmatprep.subr.bf16.mxu0 0
      %2191 = vmatpush1.bf16.msra.mxu0 %v1597
      %2192 = vmatprep.subr.bf16.mxu0 0
      %2193 = vmatpush2.bf16.msra.mxu0 %v1612
      %2194 = vmatprep.subr.bf16.mxu0 0
      %2195 = vmatpush2.bf16.msra.mxu0 %v1611
      %2196 = vmatprep.subr.bf16.mxu0 0
      %2197 = vmatpush2.bf16.msra.mxu0 %v1610
      %2198 = vmatprep.subr.bf16.mxu0 0
      %2199 = vmatpush2.bf16.msra.mxu0 %v1609
      %2200 = vmatprep.subr.bf16.mxu0 0
      %2201 = vmatpush2.bf16.msra.mxu0 %v1608
      %2202 = vmatprep.subr.bf16.mxu0 0
      %2203 = vmatpush2.bf16.msra.mxu0 %v1607
      %2204 = vmatprep.subr.bf16.mxu0 0
      %2205 = vmatpush2.bf16.msra.mxu0 %v1606
      %2206 = vmatprep.subr.bf16.mxu0 0
      %2207 = vmatpush2.bf16.msra.mxu0 %v1605
      %2208 = vmatprep.mubr.bf16.mxu0 %v980
      %2209 = vmatmul.mubr.bf16.gmra.mxu0 %v979
      %v2210 = vpop.f32.mrf.mxu0
      %v2211 = vadd.f32 %v2050, %v2210
      %v2212 = vpop.f32.mrf.mxu0
      %v2213 = vpop.f32.mrf.mxu0
      %v2214 = vadd.f32 %v2053, %v2213
      %v2215 = vpop.f32.mrf.mxu0
      %2216 = vmatprep.mubr.bf16.mxu0 %v989
      %2217 = vmatmul.mubr.bf16.gmra.mxu0 %v988
      %v2218 = vpop.f32.mrf.mxu0
      %v2219 = vadd.f32 %v2058, %v2218
      %v2220 = vpop.f32.mrf.mxu0
      %v2221 = vpop.f32.mrf.mxu0
      %v2222 = vadd.f32 %v2061, %v2221
      %v2223 = vpop.f32.mrf.mxu0
      %2224 = vmatprep.mubr.bf16.mxu0 %v998
      %2225 = vmatmul.mubr.bf16.gmra.mxu0 %v997
      %v2226 = vpop.f32.mrf.mxu0
      %v2227 = vadd.f32 %v2066, %v2226
      %v2228 = vpop.f32.mrf.mxu0
      %v2229 = vpop.f32.mrf.mxu0
      %v2230 = vadd.f32 %v2069, %v2229
      %v2231 = vpop.f32.mrf.mxu0
      %2232 = vmatprep.mubr.bf16.mxu0 %v1007
      %2233 = vmatmul.mubr.bf16.gmra.mxu0 %v1006
      %v2234 = vpop.f32.mrf.mxu0
      %v2235 = vadd.f32 %v2074, %v2234
      %v2236 = vpop.f32.mrf.mxu0
      %v2237 = vpop.f32.mrf.mxu0
      %v2238 = vadd.f32 %v2077, %v2237
      %v2239 = vpop.f32.mrf.mxu0
      %2240 = vmatprep.mubr.bf16.mxu0 %v1016
      %2241 = vmatmul.mubr.bf16.gmra.mxu0 %v1015
      %v2242 = vpop.f32.mrf.mxu0
      %v2243 = vadd.f32 %v2082, %v2242
      %v2244 = vpop.f32.mrf.mxu0
      %v2245 = vpop.f32.mrf.mxu0
      %v2246 = vadd.f32 %v2085, %v2245
      %v2247 = vpop.f32.mrf.mxu0
      %2248 = vmatprep.mubr.bf16.mxu0 %v1025
      %2249 = vmatmul.mubr.bf16.gmra.mxu0 %v1024
      %v2250 = vpop.f32.mrf.mxu0
      %v2251 = vadd.f32 %v2090, %v2250
      %v2252 = vpop.f32.mrf.mxu0
      %v2253 = vpop.f32.mrf.mxu0
      %v2254 = vadd.f32 %v2093, %v2253
      %v2255 = vpop.f32.mrf.mxu0
      %2256 = vmatprep.mubr.bf16.mxu0 %v1034
      %2257 = vmatmul.mubr.bf16.gmra.mxu0 %v1033
      %v2258 = vpop.f32.mrf.mxu0
      %v2259 = vadd.f32 %v2098, %v2258
      %v2260 = vpop.f32.mrf.mxu0
      %v2261 = vpop.f32.mrf.mxu0
      %v2262 = vadd.f32 %v2101, %v2261
      %v2263 = vpop.f32.mrf.mxu0
      %2264 = vmatprep.mubr.bf16.mxu0 %v1043
      %2265 = vmatmul.mubr.bf16.gmra.mxu0 %v1042
      %v2266 = vpop.f32.mrf.mxu0
      %v2267 = vadd.f32 %v2106, %v2266
      %v2268 = vpop.f32.mrf.mxu0
      %v2269 = vpop.f32.mrf.mxu0
      %v2270 = vadd.f32 %v2109, %v2269
      %v2271 = vpop.f32.mrf.mxu0
      %2272 = vmatprep.mubr.bf16.mxu0 %v1052
      %2273 = vmatmul.mubr.bf16.gmra.mxu0 %v1051
      %v2274 = vpop.f32.mrf.mxu0
      %v2275 = vadd.f32 %v2114, %v2274
      %v2276 = vpop.f32.mrf.mxu0
      %v2277 = vpop.f32.mrf.mxu0
      %v2278 = vadd.f32 %v2117, %v2277
      %v2279 = vpop.f32.mrf.mxu0
      %2280 = vmatprep.mubr.bf16.mxu0 %v1061
      %2281 = vmatmul.mubr.bf16.gmra.mxu0 %v1060
      %v2282 = vpop.f32.mrf.mxu0
      %v2283 = vadd.f32 %v2122, %v2282
      %v2284 = vpop.f32.mrf.mxu0
      %v2285 = vpop.f32.mrf.mxu0
      %v2286 = vadd.f32 %v2125, %v2285
      %v2287 = vpop.f32.mrf.mxu0
      %2288 = vmatprep.mubr.bf16.mxu0 %v1070
      %2289 = vmatmul.mubr.bf16.gmra.mxu0 %v1069
      %v2290 = vpop.f32.mrf.mxu0
      %v2291 = vadd.f32 %v2130, %v2290
      %v2292 = vpop.f32.mrf.mxu0
      %v2293 = vpop.f32.mrf.mxu0
      %v2294 = vadd.f32 %v2133, %v2293
      %v2295 = vpop.f32.mrf.mxu0
      %2296 = vmatprep.mubr.bf16.mxu0 %v1079
      %2297 = vmatmul.mubr.bf16.gmra.mxu0 %v1078
      %v2298 = vpop.f32.mrf.mxu0
      %v2299 = vadd.f32 %v2138, %v2298
      %v2300 = vpop.f32.mrf.mxu0
      %v2301 = vpop.f32.mrf.mxu0
      %v2302 = vadd.f32 %v2141, %v2301
      %v2303 = vpop.f32.mrf.mxu0
      %2304 = vmatprep.mubr.bf16.mxu0 %v1088
      %2305 = vmatmul.mubr.bf16.gmra.mxu0 %v1087
      %v2306 = vpop.f32.mrf.mxu0
      %v2307 = vadd.f32 %v2146, %v2306
      %v2308 = vpop.f32.mrf.mxu0
      %v2309 = vpop.f32.mrf.mxu0
      %v2310 = vadd.f32 %v2149, %v2309
      %v2311 = vpop.f32.mrf.mxu0
      %2312 = vmatprep.mubr.bf16.mxu0 %v1097
      %2313 = vmatmul.mubr.bf16.gmra.mxu0 %v1096
      %v2314 = vpop.f32.mrf.mxu0
      %v2315 = vadd.f32 %v2154, %v2314
      %v2316 = vpop.f32.mrf.mxu0
      %v2317 = vpop.f32.mrf.mxu0
      %v2318 = vadd.f32 %v2157, %v2317
      %v2319 = vpop.f32.mrf.mxu0
      %2320 = vmatprep.mubr.bf16.mxu0 %v1106
      %2321 = vmatmul.mubr.bf16.gmra.mxu0 %v1105
      %v2322 = vpop.f32.mrf.mxu0
      %v2323 = vadd.f32 %v2162, %v2322
      %v2324 = vpop.f32.mrf.mxu0
      %v2325 = vpop.f32.mrf.mxu0
      %v2326 = vadd.f32 %v2165, %v2325
      %v2327 = vpop.f32.mrf.mxu0
      %2328 = vmatprep.mubr.bf16.mxu0 %v1115
      %2329 = vmatmul.mubr.bf16.gmra.mxu0 %v1114
      %v2330 = vpop.f32.mrf.mxu0
      %v2331 = vadd.f32 %v2170, %v2330
      %v2332 = vpop.f32.mrf.mxu0
      %v2333 = vpop.f32.mrf.mxu0
      %v2334 = vadd.f32 %v2173, %v2333
      %v2335 = vpop.f32.mrf.mxu0
      %2336 = vdwg.mxu0
      %2337 = vmatprep.subr.bf16.mxu0 0
      %2338 = vmatpush1.bf16.msra.mxu0 %v1620
      %2339 = vmatprep.subr.bf16.mxu0 0
      %2340 = vmatpush1.bf16.msra.mxu0 %v1619
      %2341 = vmatprep.subr.bf16.mxu0 0
      %2342 = vmatpush1.bf16.msra.mxu0 %v1618
      %2343 = vmatprep.subr.bf16.mxu0 0
      %2344 = vmatpush1.bf16.msra.mxu0 %v1617
      %2345 = vmatprep.subr.bf16.mxu0 0
      %2346 = vmatpush1.bf16.msra.mxu0 %v1616
      %2347 = vmatprep.subr.bf16.mxu0 0
      %2348 = vmatpush1.bf16.msra.mxu0 %v1615
      %2349 = vmatprep.subr.bf16.mxu0 0
      %2350 = vmatpush1.bf16.msra.mxu0 %v1614
      %2351 = vmatprep.subr.bf16.mxu0 0
      %2352 = vmatpush1.bf16.msra.mxu0 %v1613
      %2353 = vmatprep.subr.bf16.mxu0 0
      %2354 = vmatpush2.bf16.msra.mxu0 0
      %2355 = vmatprep.subr.bf16.mxu0 0
      %2356 = vmatpush2.bf16.msra.mxu0 0
      %2357 = vmatprep.subr.bf16.mxu0 0
      %2358 = vmatpush2.bf16.msra.mxu0 0
      %2359 = vmatprep.subr.bf16.mxu0 0
      %2360 = vmatpush2.bf16.msra.mxu0 0
      %2361 = vmatprep.subr.bf16.mxu0 0
      %2362 = vmatpush2.bf16.msra.mxu0 0
      %2363 = vmatprep.subr.bf16.mxu0 0
      %2364 = vmatpush2.bf16.msra.mxu0 0
      %2365 = vmatprep.subr.bf16.mxu0 0
      %2366 = vmatpush2.bf16.msra.mxu0 0
      %2367 = vmatprep.subr.bf16.mxu0 0
      %2368 = vmatpush2.bf16.msra.mxu0 0
      %2369 = vmatprep.mubr.bf16.mxu0 0
      %2370 = vmatmul.mubr.bf16.gmra.mxu0 %v981
      %v2371 = vpop.f32.mrf.mxu0
      %v2372 = vadd.f32 %v2211, %v2371
      %v2373 = vpop.f32.mrf.mxu0
      %v2374 = vpop.f32.mrf.mxu0
      %v2375 = vadd.f32 %v2214, %v2374
      %v2376 = vpop.f32.mrf.mxu0
      %2377 = vmatprep.mubr.bf16.mxu0 0
      %2378 = vmatmul.mubr.bf16.gmra.mxu0 %v990
      %v2379 = vpop.f32.mrf.mxu0
      %v2380 = vadd.f32 %v2219, %v2379
      %v2381 = vpop.f32.mrf.mxu0
      %v2382 = vpop.f32.mrf.mxu0
      %v2383 = vadd.f32 %v2222, %v2382
      %v2384 = vpop.f32.mrf.mxu0
      %2385 = vmatprep.mubr.bf16.mxu0 0
      %2386 = vmatmul.mubr.bf16.gmra.mxu0 %v999
      %v2387 = vpop.f32.mrf.mxu0
      %v2388 = vadd.f32 %v2227, %v2387
      %v2389 = vpop.f32.mrf.mxu0
      %v2390 = vpop.f32.mrf.mxu0
      %v2391 = vadd.f32 %v2230, %v2390
      %v2392 = vpop.f32.mrf.mxu0
      %2393 = vmatprep.mubr.bf16.mxu0 0
      %2394 = vmatmul.mubr.bf16.gmra.mxu0 %v1008
      %v2395 = vpop.f32.mrf.mxu0
      %v2396 = vadd.f32 %v2235, %v2395
      %v2397 = vpop.f32.mrf.mxu0
      %v2398 = vpop.f32.mrf.mxu0
      %v2399 = vadd.f32 %v2238, %v2398
      %v2400 = vpop.f32.mrf.mxu0
      %2401 = vmatprep.mubr.bf16.mxu0 0
      %2402 = vmatmul.mubr.bf16.gmra.mxu0 %v1017
      %v2403 = vpop.f32.mrf.mxu0
      %v2404 = vadd.f32 %v2243, %v2403
      %v2405 = vpop.f32.mrf.mxu0
      %v2406 = vpop.f32.mrf.mxu0
      %v2407 = vadd.f32 %v2246, %v2406
      %v2408 = vpop.f32.mrf.mxu0
      %2409 = vmatprep.mubr.bf16.mxu0 0
      %2410 = vmatmul.mubr.bf16.gmra.mxu0 %v1026
      %v2411 = vpop.f32.mrf.mxu0
      %v2412 = vadd.f32 %v2251, %v2411
      %v2413 = vpop.f32.mrf.mxu0
      %v2414 = vpop.f32.mrf.mxu0
      %v2415 = vadd.f32 %v2254, %v2414
      %v2416 = vpop.f32.mrf.mxu0
      %2417 = vmatprep.mubr.bf16.mxu0 0
      %2418 = vmatmul.mubr.bf16.gmra.mxu0 %v1035
      %v2419 = vpop.f32.mrf.mxu0
      %v2420 = vadd.f32 %v2259, %v2419
      %v2421 = vpop.f32.mrf.mxu0
      %v2422 = vpop.f32.mrf.mxu0
      %v2423 = vadd.f32 %v2262, %v2422
      %v2424 = vpop.f32.mrf.mxu0
      %2425 = vmatprep.mubr.bf16.mxu0 0
      %2426 = vmatmul.mubr.bf16.gmra.mxu0 %v1044
      %v2427 = vpop.f32.mrf.mxu0
      %v2428 = vadd.f32 %v2267, %v2427
      %v2429 = vpop.f32.mrf.mxu0
      %v2430 = vpop.f32.mrf.mxu0
      %v2431 = vadd.f32 %v2270, %v2430
      %v2432 = vpop.f32.mrf.mxu0
      %2433 = vmatprep.mubr.bf16.mxu0 0
      %2434 = vmatmul.mubr.bf16.gmra.mxu0 %v1053
      %v2435 = vpop.f32.mrf.mxu0
      %v2436 = vadd.f32 %v2275, %v2435
      %v2437 = vpop.f32.mrf.mxu0
      %v2438 = vpop.f32.mrf.mxu0
      %v2439 = vadd.f32 %v2278, %v2438
      %v2440 = vpop.f32.mrf.mxu0
      %2441 = vmatprep.mubr.bf16.mxu0 0
      %2442 = vmatmul.mubr.bf16.gmra.mxu0 %v1062
      %v2443 = vpop.f32.mrf.mxu0
      %v2444 = vadd.f32 %v2283, %v2443
      %v2445 = vpop.f32.mrf.mxu0
      %v2446 = vpop.f32.mrf.mxu0
      %v2447 = vadd.f32 %v2286, %v2446
      %v2448 = vpop.f32.mrf.mxu0
      %2449 = vmatprep.mubr.bf16.mxu0 0
      %2450 = vmatmul.mubr.bf16.gmra.mxu0 %v1071
      %v2451 = vpop.f32.mrf.mxu0
      %v2452 = vadd.f32 %v2291, %v2451
      %v2453 = vpop.f32.mrf.mxu0
      %v2454 = vpop.f32.mrf.mxu0
      %v2455 = vadd.f32 %v2294, %v2454
      %v2456 = vpop.f32.mrf.mxu0
      %2457 = vmatprep.mubr.bf16.mxu0 0
      %2458 = vmatmul.mubr.bf16.gmra.mxu0 %v1080
      %v2459 = vpop.f32.mrf.mxu0
      %v2460 = vadd.f32 %v2299, %v2459
      %v2461 = vpop.f32.mrf.mxu0
      %v2462 = vpop.f32.mrf.mxu0
      %v2463 = vadd.f32 %v2302, %v2462
      %v2464 = vpop.f32.mrf.mxu0
      %2465 = vmatprep.mubr.bf16.mxu0 0
      %2466 = vmatmul.mubr.bf16.gmra.mxu0 %v1089
      %v2467 = vpop.f32.mrf.mxu0
      %v2468 = vadd.f32 %v2307, %v2467
      %v2469 = vpop.f32.mrf.mxu0
      %v2470 = vpop.f32.mrf.mxu0
      %v2471 = vadd.f32 %v2310, %v2470
      %v2472 = vpop.f32.mrf.mxu0
      %2473 = vmatprep.mubr.bf16.mxu0 0
      %2474 = vmatmul.mubr.bf16.gmra.mxu0 %v1098
      %v2475 = vpop.f32.mrf.mxu0
      %v2476 = vadd.f32 %v2315, %v2475
      %v2477 = vpop.f32.mrf.mxu0
      %v2478 = vpop.f32.mrf.mxu0
      %v2479 = vadd.f32 %v2318, %v2478
      %v2480 = vpop.f32.mrf.mxu0
      %2481 = vmatprep.mubr.bf16.mxu0 0
      %2482 = vmatmul.mubr.bf16.gmra.mxu0 %v1107
      %v2483 = vpop.f32.mrf.mxu0
      %v2484 = vadd.f32 %v2323, %v2483
      %v2485 = vpop.f32.mrf.mxu0
      %v2486 = vpop.f32.mrf.mxu0
      %v2487 = vadd.f32 %v2326, %v2486
      %v2488 = vpop.f32.mrf.mxu0
      %2489 = vmatprep.mubr.bf16.mxu0 0
      %2490 = vmatmul.mubr.bf16.gmra.mxu0 %v1116
      %v2491 = vpop.f32.mrf.mxu0
      %v2492 = vadd.f32 %v2331, %v2491
      %v2493 = vpop.f32.mrf.mxu0
      %v2494 = vpop.f32.mrf.mxu0
      %v2495 = vadd.f32 %v2334, %v2494
      %v2496 = vpop.f32.mrf.mxu0
      %2497 = vdwg.mxu0
      %v2498 = vtanh.pop %v2372
      %v2499 = vtanh.pop %v2375
      %v2500 = vtanh.pop %v2380
      %v2501 = vtanh.pop %v2383
      %v2502 = vtanh.pop %v2388
      %v2503 = vtanh.pop %v2391
      %v2504 = vtanh.pop %v2396
      %v2505 = vtanh.pop %v2399
      %v2506 = vtanh.pop %v2404
      %v2507 = vtanh.pop %v2407
      %v2508 = vtanh.pop %v2412
      %v2509 = vtanh.pop %v2415
      %v2510 = vtanh.pop %v2420
      %v2511 = vtanh.pop %v2423
      %v2512 = vtanh.pop %v2428
      %v2513 = vtanh.pop %v2431
      %v2514 = vtanh.pop %v2436
      %v2515 = vtanh.pop %v2439
      %v2516 = vtanh.pop %v2444
      %v2517 = vtanh.pop %v2447
      %v2518 = vtanh.pop %v2452
      %v2519 = vtanh.pop %v2455
      %v2520 = vtanh.pop %v2460
      %v2521 = vtanh.pop %v2463
      %v2522 = vtanh.pop %v2468
      %v2523 = vtanh.pop %v2471
      %v2524 = vtanh.pop %v2476
      %v2525 = vtanh.pop %v2479
      %v2526 = vtanh.pop %v2484
      %v2527 = vtanh.pop %v2487
      %v2528 = vtanh.pop %v2492
      %v2529 = vtanh.pop %v2495
      %2530 = vst [vmem:[%s211] sm:$0xff] %v2498
      %2531 = vst [vmem:[%s211 + $0x8] sm:$0xff] %v2499
      %2532 = vst [vmem:[%s211 + $0x10] sm:$0xff] %v2500
      %2533 = vst [vmem:[%s211 + $0x18] sm:$0xff] %v2501
      %2534 = vst [vmem:[%s211 + $0x20] sm:$0xff] %v2502
      %2535 = vst [vmem:[%s211 + $0x28] sm:$0xff] %v2503
      %2536 = vst [vmem:[%s211 + $0x30] sm:$0xff] %v2504
      %2537 = vst [vmem:[%s211 + $0x38] sm:$0xff] %v2505
      %2538 = vst [vmem:[%s211 + $0x40] sm:$0xff] %v2506
      %2539 = vst [vmem:[%s211 + $0x48] sm:$0xff] %v2507
      %2540 = vst [vmem:[%s211 + $0x50] sm:$0xff] %v2508
      %2541 = vst [vmem:[%s211 + $0x58] sm:$0xff] %v2509
      %2542 = vst [vmem:[%s211 + $0x60] sm:$0xff] %v2510
      %2543 = vst [vmem:[%s211 + $0x68] sm:$0xff] %v2511
      %2544 = vst [vmem:[%s211 + $0x70] sm:$0xff] %v2512
      %2545 = vst [vmem:[%s211 + $0x78] sm:$0xff] %v2513
      %2546 = vst [vmem:[%s211 + $0x80] sm:$0xff] %v2514
      %2547 = vst [vmem:[%s211 + $0x88] sm:$0xff] %v2515
      %2548 = vst [vmem:[%s211 + $0x90] sm:$0xff] %v2516
      %2549 = vst [vmem:[%s211 + $0x98] sm:$0xff] %v2517
      %2550 = vst [vmem:[%s211 + $0xa0] sm:$0xff] %v2518
      %2551 = vst [vmem:[%s211 + $0xa8] sm:$0xff] %v2519
      %2552 = vst [vmem:[%s211 + $0xb0] sm:$0xff] %v2520
      %2553 = vst [vmem:[%s211 + $0xb8] sm:$0xff] %v2521
      %2554 = vst [vmem:[%s211 + $0xc0] sm:$0xff] %v2522
      %2555 = vst [vmem:[%s211 + $0xc8] sm:$0xff] %v2523
      %2556 = vst [vmem:[%s211 + $0xd0] sm:$0xff] %v2524
      %2557 = vst [vmem:[%s211 + $0xd8] sm:$0xff] %v2525
      %2558 = vst [vmem:[%s211 + $0xe0] sm:$0xff] %v2526
      %2559 = vst [vmem:[%s211 + $0xe8] sm:$0xff] %v2527
      %2560 = vst [vmem:[%s211 + $0xf0] sm:$0xff] %v2528
      %2561 = vst [vmem:[%s211 + $0xf8] sm:$0xff] %v2529
      %s2562 = smul.u32 32, %s19
      %p2563 = scmp.lt.s32.totalorder %s18, 1
      %s2564 = scalar_select %p2563, %s18, 1
      %p2565 = scmp.lt.s32.totalorder %s2562, 31
      %s2566 = scalar_select %p2565, %s2562, 31
      %s2567 = smul.addr %s2564, 32
      %s2568 = sadd.s32 %s2566, %s2567
      %s2569 = smul.addr %s2568, 8
      %s2570 = scalar_lea.vmem %s3, %s2569
      // Predicated region
      $region33: #{generator_forward.11} parent=31 // pred_check
        %p2571 = pneg %p116
      $region34: #{generator_forward.11} parent=31 // pred_check_branch
        %2573 = sbr.rel (%p2571) target = $region36
      $region35: #{generator_forward.11} parent=31 // pred_region
        %s2574 = smul.u32 32, %s19
      $region36: #{generator_forward.11} parent=31 // pred_fallthru
        _
    $region32: #{generator_forward.11} parent=5 // pred_fallthru
      _
    %p2575 = scmp.le.s32.totalorder 2, %s9
    // Predicated region
    $region37: #{generator_forward.11} parent=5 // pred_check
      %p2576 = pneg %p2575
    $region38: #{generator_forward.11} parent=5 // pred_check_branch
      %2578 = sbr.rel (%p2576) target = $region40
    $region39: #{generator_forward.11} parent=5 // pred_region
      %s2579 = ssub.s32 %s9, 2
      // Predicated region
      $region41: #{generator_forward.11} parent=39 // pred_check
        %p2580 = pneg %p122
      $region42: #{generator_forward.11} parent=39 // pred_check_branch
        %2582 = sbr.rel (%p2580) target = $region44
      $region43: #{generator_forward.11} parent=39 // pred_region
        %s2583 = smul.u32 32, %s21
        %p2584 = scmp.lt.s32.totalorder %s20, 1
        %s2585 = scalar_select %p2584, %s20, 1
        %p2586 = scmp.lt.s32.totalorder %s2583, 31
        %s2587 = scalar_select %p2586, %s2583, 31
        %s2588 = smul.addr %s2585, 32
        %s2589 = sadd.s32 %s2587, %s2588
        %s2590 = smul.addr %s2589, 8
        %s2591 = scalar_lea.vmem %s3, %s2590
      $region44: #{generator_forward.11} parent=39 // pred_fallthru
        _
    $region40: #{generator_forward.11} parent=5 // pred_fallthru
      _
  $region6: #{generator_forward.11} parent=0 // loop_footer
    %s13 = sadd.s32 1, %s9
  $region7: #{generator_forward.11} parent=0 // loop_footer_branch
    %8 = sbr.rel target = $region3
  $region8: #{generator_forward.11} parent=0 // loop_exit
    _

</llo_original>
